<compile_context>
chip_gen: v6e
topology: v6e:2x2x1
jax: 0.10.0
libtpu: 0.0.40
codegen_flags: <defaults>
</compile_context>

<pallas_src>
import functools
import math

import numpy as np

import jax
import jax.numpy as jnp
from jax.experimental import pallas as pl
from jax.experimental.pallas import tpu as pltpu


# ------------------------------ fused Pallas kernel ------------------------------- #

def _backbone_kernel(x_ref, *refs, block_dims, N, eps, neg_slope):
    """The whole 4-block Encoder3D for one backbone pass (one grid step).

    x_ref      : (N, D0, H0, W0*C0)     channels-last input, (W, C) fused on lanes
    per block  : rhs  (9*W*Cin, W*Cout) merged-K conv weights (kw + W-padding folded)
                 aff  (2, W*Cout)       rows = BN gamma / BN beta, tiled over W
                 tmat (W*Cout, W*Cout)  same-channel indicator (per-channel sums)
                 pw   (W*Cout, Wo*Cout) AvgPool along W, entries 0.125 (scale folded)
                 pdh  (N*Do, Ho, 2*H)   AvgPool along (D,H) as a batched matmul
    out_ref    : (N, Do, Ho, Wo*Cout)   last block's pooled output
    xp_refs    : per-block VMEM scratch (N, D+2, H+2, W*Cin), zero-padded D/H halo
    """
    nb = len(block_dims)
    assert len(refs) == 6 * nb + 1
    const_refs = refs[:5 * nb]
    out_ref = refs[5 * nb]
    xp_refs = refs[5 * nb + 1:]

    act = x_ref[...]                                        # (N, D, H, W*Cin)

    for i, (Cin, Cout, D, H, W) in enumerate(block_dims):
        rhs_ref, aff_ref, tmat_ref, pw_ref, pdh_ref = const_refs[5 * i:5 * i + 5]
        xp_ref = xp_refs[i]
        Do, Ho, Wo = D // 2, H // 2, W // 2
        WCin, WC, WoC = W * Cin, W * Cout, Wo * Cout
        NDH = N * D * H

        # ---- D/H zero padding: zero only the halo slabs, interior fully rewritten.
        xp_ref[:, 0:1, :, :] = jnp.zeros((N, 1, H + 2, WCin), jnp.float32)
        xp_ref[:, D + 1:D + 2, :, :] = jnp.zeros((N, 1, H + 2, WCin), jnp.float32)
        xp_ref[:, 1:D + 1, 0:1, :] = jnp.zeros((N, D, 1, WCin), jnp.float32)
        xp_ref[:, 1:D + 1, H + 1:H + 2, :] = jnp.zeros((N, D, 1, WCin), jnp.float32)
        xp_ref[:, 1:D + 1, 1:H + 1, :] = act

        # ---- Conv3d(k=3, pad=1) as ONE matmul with merged contraction K = 9*W*Cin.
        taps = jnp.concatenate(
            [xp_ref[:, pl.ds(kd, D), pl.ds(kh, H), :].reshape(NDH, WCin)
             for kd in range(3) for kh in range(3)],
            axis=1)                                          # (NDH, 9*W*Cin)
        y = jnp.dot(taps, rhs_ref[...],
                    preferred_element_type=jnp.float32)      # (NDH, W*Cout)
        # (conv bias intentionally omitted: cancelled by the BN mean subtraction)

        # ---- BatchNorm3d, training-mode batch statistics (one-pass).
        inv_count = 1.0 / float(N * D * H * W)
        tmat = tmat_ref[...]
        mean = jnp.dot(jnp.sum(y, axis=0, keepdims=True), tmat,
                       preferred_element_type=jnp.float32) * inv_count
        ey2 = jnp.dot(jnp.sum(y * y, axis=0, keepdims=True), tmat,
                      preferred_element_type=jnp.float32) * inv_count
        var = ey2 - mean * mean
        scale = aff_ref[0:1, :] * jax.lax.rsqrt(var + eps)   # gamma / std  (tiled)
        shift = aff_ref[1:2, :] - mean * scale               # beta - mean*scale
        z = y * scale + shift

        # ---- LeakyReLU(0.2); Dropout3d(p=0) is the identity.
        z = jnp.where(z > 0, z, neg_slope * z)

        # ---- AvgPool3d(2): W-pairs in lane space (0.125 folded into pw),
        #      then (D,H)-pairs as a tiny batched matmul over batch = N*Do.
        zw = jnp.dot(z, pw_ref[...],
                     preferred_element_type=jnp.float32)     # (NDH, Wo*Cout)
        zw3 = zw.reshape(N * Do, 2 * H, WoC)                 # rows (n,do | pd,h)
        pooled = jnp.einsum('boq,bqc->boc', pdh_ref[...], zw3,
                            preferred_element_type=jnp.float32)   # (N*Do, Ho, WoC)
        act = pooled.reshape(N, Do, Ho, WoC)                 # next block's input

    out_ref[...] = act


# ------------------------------ wrapper / forward --------------------------------- #

def _const_spec(a):
    zeros = (0,) * a.ndim
    return pl.BlockSpec(a.shape, lambda g, z=zeros: z)


def lilac_forward(x1, x2, block_arrays, lin_w, *, block_dims):
    """LILAC forward: linear(backbone(x1) - backbone(x2)), no optional meta."""
    xs = jnp.stack([x1, x2], axis=0)                  # (2, B, C, D, H, W)
    xs = jnp.transpose(xs, (0, 1, 3, 4, 5, 2))        # (2, B, D, H, W, C)
    two, B, D0, H0, W0, C0 = xs.shape
    x = xs.reshape(2, B, D0, H0, W0 * C0)

    nb = len(block_dims)
    Cin_l, Cout_l, D_l, H_l, W_l = block_dims[-1]
    Do, Ho, Wo = D_l // 2, H_l // 2, W_l // 2
    WoC_l = Wo * Cout_l

    consts = []
    in_specs = [pl.BlockSpec((None, B, D0, H0, W0 * C0), lambda g: (g, 0, 0, 0, 0))]
    for arrs in block_arrays:
        for name in ("rhs", "aff", "tmat", "pool_w", "pool_dh"):
            a = arrs[name]
            consts.append(a)
            in_specs.append(_const_spec(a))

    scratch = [pltpu.VMEM((B, D + 2, H + 2, W * Cin), jnp.float32)
               for (Cin, Cout, D, H, W) in block_dims]

    # Advisory cost hint for the XLA scheduler.
    flops = 0
    transcendentals = 0
    for (Cin, Cout, D, H, W) in block_dims:
        NDH = B * D * H
        WC, WoC = W * Cout, (W // 2) * Cout
        flops += 2 * NDH * (9 * W * Cin) * WC                     # conv matmul
        flops += 2 * NDH * WC * WoC                               # W pooling
        flops += 2 * (B * (D // 2)) * (H // 2) * (2 * H) * WoC    # (D,H) pooling
        flops += 8 * NDH * WC                                     # BN + LeakyReLU
        transcendentals += WC                                     # rsqrt
    flops *= 2
    transcendentals *= 2
    const_bytes = sum(int(np.prod(a.shape)) * 4 for a in consts)
    bytes_accessed = int(x.size * 4 + 2 * const_bytes + 2 * B * Do * Ho * WoC_l * 4)

    kernel = functools.partial(_backbone_kernel, block_dims=tuple(block_dims),
                               N=B, eps=1e-5, neg_slope=0.2)
    out = pl.pallas_call(
        kernel,
        grid=(2,),                                     # the two LILAC backbone passes
        in_specs=in_specs,
        out_specs=pl.BlockSpec((None, B, Do, Ho, WoC_l), lambda g: (g, 0, 0, 0, 0)),
        out_shape=jax.ShapeDtypeStruct((2, B, Do, Ho, WoC_l), jnp.float32),
        scratch_shapes=scratch,
        compiler_params=pltpu.CompilerParams(dimension_semantics=("parallel",)),
        cost_estimate=pl.CostEstimate(flops=int(flops),
                                      transcendentals=int(transcendentals),
                                      bytes_accessed=bytes_accessed),
    )(x, *consts)

    # Flatten in torch's x.view(B, C*D*H*W) order; (B,8)x(8,1) linear stays in jnp.
    feats = out.reshape(2, B, Do, Ho, Wo, Cout_l)
    feats = jnp.transpose(feats, (0, 1, 5, 2, 3, 4)).reshape(2, B, Cout_l * Do * Ho * Wo)
    f = feats[0] - feats[1]                           # backbone(x1) - backbone(x2)
    # TODO(synk): optional_meta concat path not exercised (module built with no meta).
    return jnp.dot(f, lin_w.T, precision=jax.lax.Precision.HIGHEST)


# --------------------------- constant / weight prep -------------------------- #

def _pool_pair_matrix(n):
    """(n//2, n) with M[i, j] = 1 iff j // 2 == i (non-overlapping pair pooling)."""
    m = np.zeros((n // 2, n), np.float32)
    for j in range(n):
        m[j // 2, j] = 1.0
    return m


def prepare_block(w, b, gamma, beta, N, D, H, W):
    """Precompute per-block constant matrices (done once at parameter setup)."""
    del b  # conv bias is cancelled by the training-mode BN mean subtraction
    Cout, Cin = int(w.shape[0]), int(w.shape[1])
    Do, Ho = D // 2, H // 2
    # E[kw, wi, wout] = 1 iff wi == wout + kw - 1 (folds kw taps + W zero-padding).
    E = np.zeros((3, W, W), np.float32)
    for kw in range(3):
        for ww in range(W):
            wi = ww + kw - 1
            if 0 <= wi < W:
                E[kw, wi, ww] = 1.0
    # rhs[(kd,kh,wi,ci), (wout,co)] = weight[co, ci, kd, kh, wi - wout + 1]
    rhs = jnp.einsum('kiw,ocdhk->dhicwo', E, w).reshape(9 * W * Cin, W * Cout)
    aff = jnp.stack([jnp.tile(gamma, W), jnp.tile(beta, W)], axis=0)            # (2, WC)
    tmat = jnp.asarray(np.kron(np.ones((W, W), np.float32),
                               np.eye(Cout, dtype=np.float32)))                 # (WC, WC)
    pool_w = jnp.asarray(np.kron(_pool_pair_matrix(W).T,
                                 np.eye(Cout, dtype=np.float32)) * 0.125)       # (WC, WoC)
    # (Ho, 2H) per (n, do) slab: within a slab the 2H rows are ordered (pd, h);
    # output row ho sums rows {pd*H + 2*ho + ph : pd, ph in {0,1}}.
    p2 = np.zeros((Ho, 2 * H), np.float32)
    for ho in range(Ho):
        for pd in range(2):
            for ph in range(2):
                p2[ho, pd * H + 2 * ho + ph] = 1.0
    pool_dh = jnp.asarray(np.broadcast_to(p2, (N * Do, Ho, 2 * H)).copy())      # (N*Do,Ho,2H)
    arrays = dict(rhs=rhs, aff=aff, tmat=tmat, pool_w=pool_w, pool_dh=pool_dh)
    dims = (Cin, Cout, D, H, W)
    return arrays, dims


# ------------------------------ pure-JAX reference --------------------------- #

def _reference_block(x, w, b, gamma, beta, eps=1e-5, slope=0.2):
    y = jax.lax.conv_general_dilated(
        x, w, window_strides=(1, 1, 1), padding=((1, 1), (1, 1), (1, 1)),
        dimension_numbers=("NCDHW", "OIDHW", "NCDHW"),
        precision=jax.lax.Precision.HIGHEST)
    y = y + b.reshape(1, -1, 1, 1, 1)
    mean = jnp.mean(y, axis=(0, 2, 3, 4), keepdims=True)
    var = jnp.mean((y - mean) ** 2, axis=(0, 2, 3, 4), keepdims=True)
    y = (y - mean) * jax.lax.rsqrt(var + eps)
    y = y * gamma.reshape(1, -1, 1, 1, 1) + beta.reshape(1, -1, 1, 1, 1)
    y = jnp.where(y > 0, y, slope * y)
    B, C, D, H, W = y.shape
    return y.reshape(B, C, D // 2, 2, H // 2, 2, W // 2, 2).mean(axis=(3, 5, 7))


def reference_forward(x1, x2, params, lin_w):
    def backbone(x):
        for p in params:
            x = _reference_block(x, p["w"], p["b"], p["gamma"], p["beta"])
        return x.reshape(x.shape[0], -1)
    f = backbone(x1) - backbone(x2)
    return jnp.dot(f, lin_w.T, precision=jax.lax.Precision.HIGHEST)


# ---------------------------------- main ------------------------------------ #

if __name__ == "__main__":
    key = jax.random.PRNGKey(0)

    B = 2
    inputsize = 16            # must be divisible by 2**n_of_blocks
    channels = 1
    n_of_blocks = 4
    initial_channel = 8

    # Channel schedule identical to Encoder3D.__init__.
    chs = []
    for i in range(n_of_blocks):
        if i == 0:
            chs.append((channels, initial_channel))
        elif i == n_of_blocks - 1:
            chs.append((initial_channel * 2 ** (i - 1), initial_channel))
        else:
            chs.append((initial_channel * 2 ** (i - 1), initial_channel * 2 ** i))

    keys = jax.random.split(key, n_of_blocks + 3)
    torch_params = []
    block_arrays, block_dims = [], []
    spatial = inputsize
    for i, (cin, cout) in enumerate(chs):
        std = math.sqrt(2.0 / (cin * 27))   # kaiming_normal_ (fan_in) for 3x3x3 conv
        w = jax.random.normal(keys[i], (cout, cin, 3, 3, 3), jnp.float32) * std
        b = jnp.zeros((cout,), jnp.float32)       # conv bias init to 0
        gamma = jnp.ones((cout,), jnp.float32)    # BatchNorm3d default affine
        beta = jnp.zeros((cout,), jnp.float32)
        torch_params.append(dict(w=w, b=b, gamma=gamma, beta=beta))
        arrs, dims = prepare_block(w, b, gamma, beta, B, spatial, spatial, spatial)
        block_arrays.append(arrs)
        block_dims.append(dims)
        spatial //= 2

    F = initial_channel * spatial ** 3
    bound = 1.0 / math.sqrt(F)
    lin_w = jax.random.uniform(keys[-3], (1, F), jnp.float32, -bound, bound)

    x1 = jax.random.normal(keys[-2], (B, channels, inputsize, inputsize, inputsize),
                           jnp.float32)
    x2 = jax.random.normal(keys[-1], (B, channels, inputsize, inputsize, inputsize),
                           jnp.float32)

    fwd = jax.jit(functools.partial(lilac_forward, block_dims=tuple(block_dims)))
    y = jax.block_until_ready(fwd(x1, x2, block_arrays, lin_w))
    assert y.shape == (B, 1) and y.dtype == jnp.float32

    # Correctness check against a pure-JAX reference of the torch module.
    y_ref = jax.block_until_ready(jax.jit(reference_forward)(x1, x2, torch_params, lin_w))
    np.testing.assert_allclose(np.asarray(y), np.asarray(y_ref), rtol=5e-3, atol=5e-3)

    print("KERNEL_OK")
</pallas_src>

<mosaic_0001>
module attributes {stable_mosaic.version = 11 : i64} {
  func.func @_backbone_kernel(%arg0: i32, %arg1: memref<1x2x16x16x16xf32, #tpu.memory_space<vmem>>, %arg2: memref<144x128xf32, #tpu.memory_space<vmem>>, %arg3: memref<2x128xf32, #tpu.memory_space<vmem>>, %arg4: memref<128x128xf32, #tpu.memory_space<vmem>>, %arg5: memref<128x64xf32, #tpu.memory_space<vmem>>, %arg6: memref<16x8x32xf32, #tpu.memory_space<vmem>>, %arg7: memref<576x128xf32, #tpu.memory_space<vmem>>, %arg8: memref<2x128xf32, #tpu.memory_space<vmem>>, %arg9: memref<128x128xf32, #tpu.memory_space<vmem>>, %arg10: memref<128x64xf32, #tpu.memory_space<vmem>>, %arg11: memref<8x4x16xf32, #tpu.memory_space<vmem>>, %arg12: memref<576x128xf32, #tpu.memory_space<vmem>>, %arg13: memref<2x128xf32, #tpu.memory_space<vmem>>, %arg14: memref<128x128xf32, #tpu.memory_space<vmem>>, %arg15: memref<128x64xf32, #tpu.memory_space<vmem>>, %arg16: memref<4x2x8xf32, #tpu.memory_space<vmem>>, %arg17: memref<576x16xf32, #tpu.memory_space<vmem>>, %arg18: memref<2x16xf32, #tpu.memory_space<vmem>>, %arg19: memref<16x16xf32, #tpu.memory_space<vmem>>, %arg20: memref<16x8xf32, #tpu.memory_space<vmem>>, %arg21: memref<2x1x4xf32, #tpu.memory_space<vmem>>, %arg22: memref<1x2x1x1x8xf32, #tpu.memory_space<vmem>>, %arg23: memref<2x18x18x16xf32, #tpu.memory_space<vmem>>, %arg24: memref<2x10x10x64xf32, #tpu.memory_space<vmem>>, %arg25: memref<2x6x6x64xf32, #tpu.memory_space<vmem>>, %arg26: memref<2x4x4x64xf32, #tpu.memory_space<vmem>>) attributes {dimension_semantics = [#tpu.dimension_semantics<parallel>], iteration_bounds = array<i64: 2>, scalar_prefetch = 0 : i64, scratch_operands = 4 : i64, tpu.core_type = #tpu.core_type<tc>, window_params = [{transform_indices = @transform_0, window_bounds = array<i64: 1, 2, 16, 16, 16>}, {pipeline_mode = #tpu.pipeline_mode<synchronous>, transform_indices = @transform_1, window_bounds = array<i64: 144, 128>}, {pipeline_mode = #tpu.pipeline_mode<synchronous>, transform_indices = @transform_2, window_bounds = array<i64: 2, 128>}, {pipeline_mode = #tpu.pipeline_mode<synchronous>, transform_indices = @transform_3, window_bounds = array<i64: 128, 128>}, {pipeline_mode = #tpu.pipeline_mode<synchronous>, transform_indices = @transform_4, window_bounds = array<i64: 128, 64>}, {pipeline_mode = #tpu.pipeline_mode<synchronous>, transform_indices = @transform_5, window_bounds = array<i64: 16, 8, 32>}, {pipeline_mode = #tpu.pipeline_mode<synchronous>, transform_indices = @transform_6, window_bounds = array<i64: 576, 128>}, {pipeline_mode = #tpu.pipeline_mode<synchronous>, transform_indices = @transform_7, window_bounds = array<i64: 2, 128>}, {pipeline_mode = #tpu.pipeline_mode<synchronous>, transform_indices = @transform_8, window_bounds = array<i64: 128, 128>}, {pipeline_mode = #tpu.pipeline_mode<synchronous>, transform_indices = @transform_9, window_bounds = array<i64: 128, 64>}, {pipeline_mode = #tpu.pipeline_mode<synchronous>, transform_indices = @transform_10, window_bounds = array<i64: 8, 4, 16>}, {pipeline_mode = #tpu.pipeline_mode<synchronous>, transform_indices = @transform_11, window_bounds = array<i64: 576, 128>}, {pipeline_mode = #tpu.pipeline_mode<synchronous>, transform_indices = @transform_12, window_bounds = array<i64: 2, 128>}, {pipeline_mode = #tpu.pipeline_mode<synchronous>, transform_indices = @transform_13, window_bounds = array<i64: 128, 128>}, {pipeline_mode = #tpu.pipeline_mode<synchronous>, transform_indices = @transform_14, window_bounds = array<i64: 128, 64>}, {pipeline_mode = #tpu.pipeline_mode<synchronous>, transform_indices = @transform_15, window_bounds = array<i64: 4, 2, 8>}, {pipeline_mode = #tpu.pipeline_mode<synchronous>, transform_indices = @transform_16, window_bounds = array<i64: 576, 16>}, {pipeline_mode = #tpu.pipeline_mode<synchronous>, transform_indices = @transform_17, window_bounds = array<i64: 2, 16>}, {pipeline_mode = #tpu.pipeline_mode<synchronous>, transform_indices = @transform_18, window_bounds = array<i64: 16, 16>}, {pipeline_mode = #tpu.pipeline_mode<synchronous>, transform_indices = @transform_19, window_bounds = array<i64: 16, 8>}, {pipeline_mode = #tpu.pipeline_mode<synchronous>, transform_indices = @transform_20, window_bounds = array<i64: 2, 1, 4>}, {transform_indices = @transform_21, window_bounds = array<i64: 1, 2, 1, 1, 8>}]} {
    %c0 = arith.constant 0 : index
    %c0_0 = arith.constant 0 : index
    %c0_1 = arith.constant 0 : index
    %c0_2 = arith.constant 0 : index
    %c0_3 = arith.constant 0 : index
    %0 = vector.load %arg1[%c0, %c0_0, %c0_1, %c0_2, %c0_3] : memref<1x2x16x16x16xf32, #tpu.memory_space<vmem>>, vector<1x2x16x16x16xf32>
    %1 = vector.shape_cast %0 : vector<1x2x16x16x16xf32> to vector<2x16x16x16xf32>
    %cst = arith.constant 0.000000e+00 : f32
    %2 = vector.broadcast %cst : f32 to vector<2x1x18x16xf32>
    %c0_4 = arith.constant 0 : index
    %c0_5 = arith.constant 0 : index
    %c0_6 = arith.constant 0 : index
    %c0_7 = arith.constant 0 : index
    %3 = vector.load %arg23[%c0_4, %c0_5, %c0_6, %c0_7] : memref<2x18x18x16xf32, #tpu.memory_space<vmem>>, vector<2x1x18x16xf32>
    tpu.vector_store %arg23[%c0_4, %c0_5, %c0_6, %c0_7], %2 {strides = array<i32>} : memref<2x18x18x16xf32, #tpu.memory_space<vmem>>, vector<2x1x18x16xf32>,
    %cst_8 = arith.constant 0.000000e+00 : f32
    %4 = vector.broadcast %cst_8 : f32 to vector<2x1x18x16xf32>
    %c0_9 = arith.constant 0 : index
    %c17 = arith.constant 17 : index
    %c0_10 = arith.constant 0 : index
    %c0_11 = arith.constant 0 : index
    %5 = vector.load %arg23[%c0_9, %c17, %c0_10, %c0_11] : memref<2x18x18x16xf32, #tpu.memory_space<vmem>>, vector<2x1x18x16xf32>
    tpu.vector_store %arg23[%c0_9, %c17, %c0_10, %c0_11], %4 {strides = array<i32>} : memref<2x18x18x16xf32, #tpu.memory_space<vmem>>, vector<2x1x18x16xf32>,
    %cst_12 = arith.constant 0.000000e+00 : f32
    %6 = vector.broadcast %cst_12 : f32 to vector<2x16x1x16xf32>
    %c0_13 = arith.constant 0 : index
    %c1 = arith.constant 1 : index
    %c0_14 = arith.constant 0 : index
    %c0_15 = arith.constant 0 : index
    %7 = vector.load %arg23[%c0_13, %c1, %c0_14, %c0_15] : memref<2x18x18x16xf32, #tpu.memory_space<vmem>>, vector<2x16x1x16xf32>
    tpu.vector_store %arg23[%c0_13, %c1, %c0_14, %c0_15], %6 {strides = array<i32>} : memref<2x18x18x16xf32, #tpu.memory_space<vmem>>, vector<2x16x1x16xf32>,
    %cst_16 = arith.constant 0.000000e+00 : f32
    %8 = vector.broadcast %cst_16 : f32 to vector<2x16x1x16xf32>
    %c0_17 = arith.constant 0 : index
    %c1_18 = arith.constant 1 : index
    %c17_19 = arith.constant 17 : index
    %c0_20 = arith.constant 0 : index
    %9 = vector.load %arg23[%c0_17, %c1_18, %c17_19, %c0_20] : memref<2x18x18x16xf32, #tpu.memory_space<vmem>>, vector<2x16x1x16xf32>
    tpu.vector_store %arg23[%c0_17, %c1_18, %c17_19, %c0_20], %8 {strides = array<i32>} : memref<2x18x18x16xf32, #tpu.memory_space<vmem>>, vector<2x16x1x16xf32>,
    %c0_21 = arith.constant 0 : index
    %c1_22 = arith.constant 1 : index
    %c1_23 = arith.constant 1 : index
    %c0_24 = arith.constant 0 : index
    %10 = vector.load %arg23[%c0_21, %c1_22, %c1_23, %c0_24] : memref<2x18x18x16xf32, #tpu.memory_space<vmem>>, vector<2x16x16x16xf32>
    tpu.vector_store %arg23[%c0_21, %c1_22, %c1_23, %c0_24], %1 {strides = array<i32>} : memref<2x18x18x16xf32, #tpu.memory_space<vmem>>, vector<2x16x16x16xf32>,
    %c0_25 = arith.constant 0 : index
    %c0_26 = arith.constant 0 : index
    %c0_27 = arith.constant 0 : index
    %c0_28 = arith.constant 0 : index
    %11 = vector.load %arg23[%c0_25, %c0_26, %c0_27, %c0_28] : memref<2x18x18x16xf32, #tpu.memory_space<vmem>>, vector<2x16x16x16xf32>
    %12 = vector.shape_cast %11 : vector<2x16x16x16xf32> to vector<512x16xf32>
    %c0_29 = arith.constant 0 : index
    %c0_30 = arith.constant 0 : index
    %c1_31 = arith.constant 1 : index
    %c0_32 = arith.constant 0 : index
    %13 = vector.load %arg23[%c0_29, %c0_30, %c1_31, %c0_32] : memref<2x18x18x16xf32, #tpu.memory_space<vmem>>, vector<2x16x16x16xf32>
    %14 = vector.shape_cast %13 : vector<2x16x16x16xf32> to vector<512x16xf32>
    %c0_33 = arith.constant 0 : index
    %c0_34 = arith.constant 0 : index
    %c2 = arith.constant 2 : index
    %c0_35 = arith.constant 0 : index
    %15 = vector.load %arg23[%c0_33, %c0_34, %c2, %c0_35] : memref<2x18x18x16xf32, #tpu.memory_space<vmem>>, vector<2x16x16x16xf32>
    %16 = vector.shape_cast %15 : vector<2x16x16x16xf32> to vector<512x16xf32>
    %c0_36 = arith.constant 0 : index
    %c1_37 = arith.constant 1 : index
    %c0_38 = arith.constant 0 : index
    %c0_39 = arith.constant 0 : index
    %17 = vector.load %arg23[%c0_36, %c1_37, %c0_38, %c0_39] : memref<2x18x18x16xf32, #tpu.memory_space<vmem>>, vector<2x16x16x16xf32>
    %18 = vector.shape_cast %17 : vector<2x16x16x16xf32> to vector<512x16xf32>
    %c0_40 = arith.constant 0 : index
    %c1_41 = arith.constant 1 : index
    %c1_42 = arith.constant 1 : index
    %c0_43 = arith.constant 0 : index
    %19 = vector.load %arg23[%c0_40, %c1_41, %c1_42, %c0_43] : memref<2x18x18x16xf32, #tpu.memory_space<vmem>>, vector<2x16x16x16xf32>
    %20 = vector.shape_cast %19 : vector<2x16x16x16xf32> to vector<512x16xf32>
    %c0_44 = arith.constant 0 : index
    %c1_45 = arith.constant 1 : index
    %c2_46 = arith.constant 2 : index
    %c0_47 = arith.constant 0 : index
    %21 = vector.load %arg23[%c0_44, %c1_45, %c2_46, %c0_47] : memref<2x18x18x16xf32, #tpu.memory_space<vmem>>, vector<2x16x16x16xf32>
    %22 = vector.shape_cast %21 : vector<2x16x16x16xf32> to vector<512x16xf32>
    %c0_48 = arith.constant 0 : index
    %c2_49 = arith.constant 2 : index
    %c0_50 = arith.constant 0 : index
    %c0_51 = arith.constant 0 : index
    %23 = vector.load %arg23[%c0_48, %c2_49, %c0_50, %c0_51] : memref<2x18x18x16xf32, #tpu.memory_space<vmem>>, vector<2x16x16x16xf32>
    %24 = vector.shape_cast %23 : vector<2x16x16x16xf32> to vector<512x16xf32>
    %c0_52 = arith.constant 0 : index
    %c2_53 = arith.constant 2 : index
    %c1_54 = arith.constant 1 : index
    %c0_55 = arith.constant 0 : index
    %25 = vector.load %arg23[%c0_52, %c2_53, %c1_54, %c0_55] : memref<2x18x18x16xf32, #tpu.memory_space<vmem>>, vector<2x16x16x16xf32>
    %26 = vector.shape_cast %25 : vector<2x16x16x16xf32> to vector<512x16xf32>
    %c0_56 = arith.constant 0 : index
    %c2_57 = arith.constant 2 : index
    %c2_58 = arith.constant 2 : index
    %c0_59 = arith.constant 0 : index
    %27 = vector.load %arg23[%c0_56, %c2_57, %c2_58, %c0_59] : memref<2x18x18x16xf32, #tpu.memory_space<vmem>>, vector<2x16x16x16xf32>
    %28 = vector.shape_cast %27 : vector<2x16x16x16xf32> to vector<512x16xf32>
    %29 = tpu.concatenate %12, %14, %16, %18, %20, %22, %24, %26, %28 in 1 : vector<512x16xf32>, vector<512x16xf32>, vector<512x16xf32>, vector<512x16xf32>, vector<512x16xf32>, vector<512x16xf32>, vector<512x16xf32>, vector<512x16xf32>, vector<512x16xf32> -> vector<512x144xf32>
    %c0_60 = arith.constant 0 : index
    %c0_61 = arith.constant 0 : index
    %30 = vector.load %arg2[%c0_60, %c0_61] : memref<144x128xf32, #tpu.memory_space<vmem>>, vector<144x128xf32>
    %cst_62 = arith.constant dense<0.000000e+00> : vector<512x128xf32>
    %31 = tpu.matmul %29, %30, %cst_62 {dimension_numbers = #tpu.dot_dimension_numbers<[1], [0], [0], [1], [0, 0, 1, 1], [], []>} : vector<512x144xf32>, vector<144x128xf32>, vector<512x128xf32> -> vector<512x128xf32>
    %c0_63 = arith.constant 0 : index
    %c0_64 = arith.constant 0 : index
    %32 = vector.load %arg4[%c0_63, %c0_64] : memref<128x128xf32, #tpu.memory_space<vmem>>, vector<128x128xf32>
    %cst_65 = arith.constant dense<0.000000e+00> : vector<128xf32>
    %33 = vector.multi_reduction <add>, %31, %cst_65 [0] : vector<512x128xf32> to vector<128xf32>
    %34 = vector.shape_cast %33 : vector<128xf32> to vector<1x128xf32>
    %cst_66 = arith.constant dense<0.000000e+00> : vector<1x128xf32>
    %35 = tpu.matmul %34, %32, %cst_66 {dimension_numbers = #tpu.dot_dimension_numbers<[1], [0], [0], [1], [0, 0, 1, 1], [], []>} : vector<1x128xf32>, vector<128x128xf32>, vector<1x128xf32> -> vector<1x128xf32>
    %cst_67 = arith.constant 1.22070313E-4 : f32
    %36 = vector.broadcast %cst_67 : f32 to vector<1x128xf32>
    %37 = arith.mulf %35, %36 : vector<1x128xf32>
    %38 = arith.mulf %31, %31 : vector<512x128xf32>
    %cst_68 = arith.constant dense<0.000000e+00> : vector<128xf32>
    %39 = vector.multi_reduction <add>, %38, %cst_68 [0] : vector<512x128xf32> to vector<128xf32>
    %40 = vector.shape_cast %39 : vector<128xf32> to vector<1x128xf32>
    %cst_69 = arith.constant dense<0.000000e+00> : vector<1x128xf32>
    %41 = tpu.matmul %40, %32, %cst_69 {dimension_numbers = #tpu.dot_dimension_numbers<[1], [0], [0], [1], [0, 0, 1, 1], [], []>} : vector<1x128xf32>, vector<128x128xf32>, vector<1x128xf32> -> vector<1x128xf32>
    %cst_70 = arith.constant 1.22070313E-4 : f32
    %42 = vector.broadcast %cst_70 : f32 to vector<1x128xf32>
    %43 = arith.mulf %41, %42 : vector<1x128xf32>
    %44 = arith.mulf %37, %37 : vector<1x128xf32>
    %45 = arith.subf %43, %44 : vector<1x128xf32>
    %c0_71 = arith.constant 0 : index
    %c0_72 = arith.constant 0 : index
    %46 = vector.load %arg3[%c0_71, %c0_72] : memref<2x128xf32, #tpu.memory_space<vmem>>, vector<1x128xf32>
    %cst_73 = arith.constant 9.99999974E-6 : f32
    %47 = vector.broadcast %cst_73 : f32 to vector<1x128xf32>
    %48 = arith.addf %45, %47 : vector<1x128xf32>
    %49 = math.rsqrt %48 : vector<1x128xf32>
    %50 = arith.mulf %46, %49 : vector<1x128xf32>
    %c1_74 = arith.constant 1 : index
    %c0_75 = arith.constant 0 : index
    %51 = vector.load %arg3[%c1_74, %c0_75] : memref<2x128xf32, #tpu.memory_space<vmem>>, vector<1x128xf32>
    %52 = arith.mulf %37, %50 : vector<1x128xf32>
    %53 = arith.subf %51, %52 : vector<1x128xf32>
    %54 = vector.broadcast %50 : vector<1x128xf32> to vector<512x128xf32>
    %55 = arith.mulf %31, %54 : vector<512x128xf32>
    %56 = vector.broadcast %53 : vector<1x128xf32> to vector<512x128xf32>
    %57 = arith.addf %55, %56 : vector<512x128xf32>
    %cst_76 = arith.constant 0.000000e+00 : f32
    %58 = vector.broadcast %cst_76 : f32 to vector<512x128xf32>
    %59 = arith.cmpf ogt, %57, %58 : vector<512x128xf32>
    %cst_77 = arith.constant 2.000000e-01 : f32
    %60 = vector.broadcast %cst_77 : f32 to vector<512x128xf32>
    %61 = arith.mulf %60, %57 : vector<512x128xf32>
    %62 = arith.select %59, %57, %61 : vector<512x128xi1>, vector<512x128xf32>
    %c0_78 = arith.constant 0 : index
    %c0_79 = arith.constant 0 : index
    %63 = vector.load %arg5[%c0_78, %c0_79] : memref<128x64xf32, #tpu.memory_space<vmem>>, vector<128x64xf32>
    %cst_80 = arith.constant dense<0.000000e+00> : vector<512x64xf32>
    %64 = tpu.matmul %62, %63, %cst_80 {dimension_numbers = #tpu.dot_dimension_numbers<[1], [0], [0], [1], [0, 0, 1, 1], [], []>} : vector<512x128xf32>, vector<128x64xf32>, vector<512x64xf32> -> vector<512x64xf32>
    %65 = vector.shape_cast %64 : vector<512x64xf32> to vector<16x32x64xf32>
    %c0_81 = arith.constant 0 : index
    %c0_82 = arith.constant 0 : index
    %c0_83 = arith.constant 0 : index
    %66 = vector.load %arg6[%c0_81, %c0_82, %c0_83] : memref<16x8x32xf32, #tpu.memory_space<vmem>>, vector<16x8x32xf32>
    "tpu.trace_start"() <{level = 10 : i32, message = "boq,bqc->boc"}> : () -> ()
    %cst_84 = arith.constant dense<0.000000e+00> : vector<16x8x64xf32>
    %67 = tpu.matmul %66, %65, %cst_84 {dimension_numbers = #tpu.dot_dimension_numbers<[2], [1], [1], [2], [0, 0, 0, 1, 1, 2], [0], [0]>} : vector<16x8x32xf32>, vector<16x32x64xf32>, vector<16x8x64xf32> -> vector<16x8x64xf32>
    "tpu.trace_stop"() : () -> ()
    %68 = vector.shape_cast %67 : vector<16x8x64xf32> to vector<2x8x8x64xf32>
    %cst_85 = arith.constant 0.000000e+00 : f32
    %69 = vector.broadcast %cst_85 : f32 to vector<2x1x10x64xf32>
    %c0_86 = arith.constant 0 : index
    %c0_87 = arith.constant 0 : index
    %c0_88 = arith.constant 0 : index
    %c0_89 = arith.constant 0 : index
    %70 = vector.load %arg24[%c0_86, %c0_87, %c0_88, %c0_89] : memref<2x10x10x64xf32, #tpu.memory_space<vmem>>, vector<2x1x10x64xf32>
    tpu.vector_store %arg24[%c0_86, %c0_87, %c0_88, %c0_89], %69 {strides = array<i32>} : memref<2x10x10x64xf32, #tpu.memory_space<vmem>>, vector<2x1x10x64xf32>,
    %cst_90 = arith.constant 0.000000e+00 : f32
    %71 = vector.broadcast %cst_90 : f32 to vector<2x1x10x64xf32>
    %c0_91 = arith.constant 0 : index
    %c9 = arith.constant 9 : index
    %c0_92 = arith.constant 0 : index
    %c0_93 = arith.constant 0 : index
    %72 = vector.load %arg24[%c0_91, %c9, %c0_92, %c0_93] : memref<2x10x10x64xf32, #tpu.memory_space<vmem>>, vector<2x1x10x64xf32>
    tpu.vector_store %arg24[%c0_91, %c9, %c0_92, %c0_93], %71 {strides = array<i32>} : memref<2x10x10x64xf32, #tpu.memory_space<vmem>>, vector<2x1x10x64xf32>,
    %cst_94 = arith.constant 0.000000e+00 : f32
    %73 = vector.broadcast %cst_94 : f32 to vector<2x8x1x64xf32>
    %c0_95 = arith.constant 0 : index
    %c1_96 = arith.constant 1 : index
    %c0_97 = arith.constant 0 : index
    %c0_98 = arith.constant 0 : index
    %74 = vector.load %arg24[%c0_95, %c1_96, %c0_97, %c0_98] : memref<2x10x10x64xf32, #tpu.memory_space<vmem>>, vector<2x8x1x64xf32>
    tpu.vector_store %arg24[%c0_95, %c1_96, %c0_97, %c0_98], %73 {strides = array<i32>} : memref<2x10x10x64xf32, #tpu.memory_space<vmem>>, vector<2x8x1x64xf32>,
    %cst_99 = arith.constant 0.000000e+00 : f32
    %75 = vector.broadcast %cst_99 : f32 to vector<2x8x1x64xf32>
    %c0_100 = arith.constant 0 : index
    %c1_101 = arith.constant 1 : index
    %c9_102 = arith.constant 9 : index
    %c0_103 = arith.constant 0 : index
    %76 = vector.load %arg24[%c0_100, %c1_101, %c9_102, %c0_103] : memref<2x10x10x64xf32, #tpu.memory_space<vmem>>, vector<2x8x1x64xf32>
    tpu.vector_store %arg24[%c0_100, %c1_101, %c9_102, %c0_103], %75 {strides = array<i32>} : memref<2x10x10x64xf32, #tpu.memory_space<vmem>>, vector<2x8x1x64xf32>,
    %c0_104 = arith.constant 0 : index
    %c1_105 = arith.constant 1 : index
    %c1_106 = arith.constant 1 : index
    %c0_107 = arith.constant 0 : index
    %77 = vector.load %arg24[%c0_104, %c1_105, %c1_106, %c0_107] : memref<2x10x10x64xf32, #tpu.memory_space<vmem>>, vector<2x8x8x64xf32>
    tpu.vector_store %arg24[%c0_104, %c1_105, %c1_106, %c0_107], %68 {strides = array<i32>} : memref<2x10x10x64xf32, #tpu.memory_space<vmem>>, vector<2x8x8x64xf32>,
    %c0_108 = arith.constant 0 : index
    %c0_109 = arith.constant 0 : index
    %c0_110 = arith.constant 0 : index
    %c0_111 = arith.constant 0 : index
    %78 = vector.load %arg24[%c0_108, %c0_109, %c0_110, %c0_111] : memref<2x10x10x64xf32, #tpu.memory_space<vmem>>, vector<2x8x8x64xf32>
    %79 = vector.shape_cast %78 : vector<2x8x8x64xf32> to vector<128x64xf32>
    %c0_112 = arith.constant 0 : index
    %c0_113 = arith.constant 0 : index
    %c1_114 = arith.constant 1 : index
    %c0_115 = arith.constant 0 : index
    %80 = vector.load %arg24[%c0_112, %c0_113, %c1_114, %c0_115] : memref<2x10x10x64xf32, #tpu.memory_space<vmem>>, vector<2x8x8x64xf32>
    %81 = vector.shape_cast %80 : vector<2x8x8x64xf32> to vector<128x64xf32>
    %c0_116 = arith.constant 0 : index
    %c0_117 = arith.constant 0 : index
    %c2_118 = arith.constant 2 : index
    %c0_119 = arith.constant 0 : index
    %82 = vector.load %arg24[%c0_116, %c0_117, %c2_118, %c0_119] : memref<2x10x10x64xf32, #tpu.memory_space<vmem>>, vector<2x8x8x64xf32>
    %83 = vector.shape_cast %82 : vector<2x8x8x64xf32> to vector<128x64xf32>
    %c0_120 = arith.constant 0 : index
    %c1_121 = arith.constant 1 : index
    %c0_122 = arith.constant 0 : index
    %c0_123 = arith.constant 0 : index
    %84 = vector.load %arg24[%c0_120, %c1_121, %c0_122, %c0_123] : memref<2x10x10x64xf32, #tpu.memory_space<vmem>>, vector<2x8x8x64xf32>
    %85 = vector.shape_cast %84 : vector<2x8x8x64xf32> to vector<128x64xf32>
    %c0_124 = arith.constant 0 : index
    %c1_125 = arith.constant 1 : index
    %c1_126 = arith.constant 1 : index
    %c0_127 = arith.constant 0 : index
    %86 = vector.load %arg24[%c0_124, %c1_125, %c1_126, %c0_127] : memref<2x10x10x64xf32, #tpu.memory_space<vmem>>, vector<2x8x8x64xf32>
    %87 = vector.shape_cast %86 : vector<2x8x8x64xf32> to vector<128x64xf32>
    %c0_128 = arith.constant 0 : index
    %c1_129 = arith.constant 1 : index
    %c2_130 = arith.constant 2 : index
    %c0_131 = arith.constant 0 : index
    %88 = vector.load %arg24[%c0_128, %c1_129, %c2_130, %c0_131] : memref<2x10x10x64xf32, #tpu.memory_space<vmem>>, vector<2x8x8x64xf32>
    %89 = vector.shape_cast %88 : vector<2x8x8x64xf32> to vector<128x64xf32>
    %c0_132 = arith.constant 0 : index
    %c2_133 = arith.constant 2 : index
    %c0_134 = arith.constant 0 : index
    %c0_135 = arith.constant 0 : index
    %90 = vector.load %arg24[%c0_132, %c2_133, %c0_134, %c0_135] : memref<2x10x10x64xf32, #tpu.memory_space<vmem>>, vector<2x8x8x64xf32>
    %91 = vector.shape_cast %90 : vector<2x8x8x64xf32> to vector<128x64xf32>
    %c0_136 = arith.constant 0 : index
    %c2_137 = arith.constant 2 : index
    %c1_138 = arith.constant 1 : index
    %c0_139 = arith.constant 0 : index
    %92 = vector.load %arg24[%c0_136, %c2_137, %c1_138, %c0_139] : memref<2x10x10x64xf32, #tpu.memory_space<vmem>>, vector<2x8x8x64xf32>
    %93 = vector.shape_cast %92 : vector<2x8x8x64xf32> to vector<128x64xf32>
    %c0_140 = arith.constant 0 : index
    %c2_141 = arith.constant 2 : index
    %c2_142 = arith.constant 2 : index
    %c0_143 = arith.constant 0 : index
    %94 = vector.load %arg24[%c0_140, %c2_141, %c2_142, %c0_143] : memref<2x10x10x64xf32, #tpu.memory_space<vmem>>, vector<2x8x8x64xf32>
    %95 = vector.shape_cast %94 : vector<2x8x8x64xf32> to vector<128x64xf32>
    %96 = tpu.concatenate %79, %81, %83, %85, %87, %89, %91, %93, %95 in 1 : vector<128x64xf32>, vector<128x64xf32>, vector<128x64xf32>, vector<128x64xf32>, vector<128x64xf32>, vector<128x64xf32>, vector<128x64xf32>, vector<128x64xf32>, vector<128x64xf32> -> vector<128x576xf32>
    %c0_144 = arith.constant 0 : index
    %c0_145 = arith.constant 0 : index
    %97 = vector.load %arg7[%c0_144, %c0_145] : memref<576x128xf32, #tpu.memory_space<vmem>>, vector<576x128xf32>
    %cst_146 = arith.constant dense<0.000000e+00> : vector<128x128xf32>
    %98 = tpu.matmul %96, %97, %cst_146 {dimension_numbers = #tpu.dot_dimension_numbers<[1], [0], [0], [1], [0, 0, 1, 1], [], []>} : vector<128x576xf32>, vector<576x128xf32>, vector<128x128xf32> -> vector<128x128xf32>
    %c0_147 = arith.constant 0 : index
    %c0_148 = arith.constant 0 : index
    %99 = vector.load %arg9[%c0_147, %c0_148] : memref<128x128xf32, #tpu.memory_space<vmem>>, vector<128x128xf32>
    %cst_149 = arith.constant dense<0.000000e+00> : vector<128xf32>
    %100 = vector.multi_reduction <add>, %98, %cst_149 [0] : vector<128x128xf32> to vector<128xf32>
    %101 = vector.shape_cast %100 : vector<128xf32> to vector<1x128xf32>
    %cst_150 = arith.constant dense<0.000000e+00> : vector<1x128xf32>
    %102 = tpu.matmul %101, %99, %cst_150 {dimension_numbers = #tpu.dot_dimension_numbers<[1], [0], [0], [1], [0, 0, 1, 1], [], []>} : vector<1x128xf32>, vector<128x128xf32>, vector<1x128xf32> -> vector<1x128xf32>
    %cst_151 = arith.constant 9.765625E-4 : f32
    %103 = vector.broadcast %cst_151 : f32 to vector<1x128xf32>
    %104 = arith.mulf %102, %103 : vector<1x128xf32>
    %105 = arith.mulf %98, %98 : vector<128x128xf32>
    %cst_152 = arith.constant dense<0.000000e+00> : vector<128xf32>
    %106 = vector.multi_reduction <add>, %105, %cst_152 [0] : vector<128x128xf32> to vector<128xf32>
    %107 = vector.shape_cast %106 : vector<128xf32> to vector<1x128xf32>
    %cst_153 = arith.constant dense<0.000000e+00> : vector<1x128xf32>
    %108 = tpu.matmul %107, %99, %cst_153 {dimension_numbers = #tpu.dot_dimension_numbers<[1], [0], [0], [1], [0, 0, 1, 1], [], []>} : vector<1x128xf32>, vector<128x128xf32>, vector<1x128xf32> -> vector<1x128xf32>
    %cst_154 = arith.constant 9.765625E-4 : f32
    %109 = vector.broadcast %cst_154 : f32 to vector<1x128xf32>
    %110 = arith.mulf %108, %109 : vector<1x128xf32>
    %111 = arith.mulf %104, %104 : vector<1x128xf32>
    %112 = arith.subf %110, %111 : vector<1x128xf32>
    %c0_155 = arith.constant 0 : index
    %c0_156 = arith.constant 0 : index
    %113 = vector.load %arg8[%c0_155, %c0_156] : memref<2x128xf32, #tpu.memory_space<vmem>>, vector<1x128xf32>
    %cst_157 = arith.constant 9.99999974E-6 : f32
    %114 = vector.broadcast %cst_157 : f32 to vector<1x128xf32>
    %115 = arith.addf %112, %114 : vector<1x128xf32>
    %116 = math.rsqrt %115 : vector<1x128xf32>
    %117 = arith.mulf %113, %116 : vector<1x128xf32>
    %c1_158 = arith.constant 1 : index
    %c0_159 = arith.constant 0 : index
    %118 = vector.load %arg8[%c1_158, %c0_159] : memref<2x128xf32, #tpu.memory_space<vmem>>, vector<1x128xf32>
    %119 = arith.mulf %104, %117 : vector<1x128xf32>
    %120 = arith.subf %118, %119 : vector<1x128xf32>
    %121 = vector.broadcast %117 : vector<1x128xf32> to vector<128x128xf32>
    %122 = arith.mulf %98, %121 : vector<128x128xf32>
    %123 = vector.broadcast %120 : vector<1x128xf32> to vector<128x128xf32>
    %124 = arith.addf %122, %123 : vector<128x128xf32>
    %cst_160 = arith.constant 0.000000e+00 : f32
    %125 = vector.broadcast %cst_160 : f32 to vector<128x128xf32>
    %126 = arith.cmpf ogt, %124, %125 : vector<128x128xf32>
    %cst_161 = arith.constant 2.000000e-01 : f32
    %127 = vector.broadcast %cst_161 : f32 to vector<128x128xf32>
    %128 = arith.mulf %127, %124 : vector<128x128xf32>
    %129 = arith.select %126, %124, %128 : vector<128x128xi1>, vector<128x128xf32>
    %c0_162 = arith.constant 0 : index
    %c0_163 = arith.constant 0 : index
    %130 = vector.load %arg10[%c0_162, %c0_163] : memref<128x64xf32, #tpu.memory_space<vmem>>, vector<128x64xf32>
    %cst_164 = arith.constant dense<0.000000e+00> : vector<128x64xf32>
    %131 = tpu.matmul %129, %130, %cst_164 {dimension_numbers = #tpu.dot_dimension_numbers<[1], [0], [0], [1], [0, 0, 1, 1], [], []>} : vector<128x128xf32>, vector<128x64xf32>, vector<128x64xf32> -> vector<128x64xf32>
    %132 = vector.shape_cast %131 : vector<128x64xf32> to vector<8x16x64xf32>
    %c0_165 = arith.constant 0 : index
    %c0_166 = arith.constant 0 : index
    %c0_167 = arith.constant 0 : index
    %133 = vector.load %arg11[%c0_165, %c0_166, %c0_167] : memref<8x4x16xf32, #tpu.memory_space<vmem>>, vector<8x4x16xf32>
    "tpu.trace_start"() <{level = 10 : i32, message = "boq,bqc->boc"}> : () -> ()
    %cst_168 = arith.constant dense<0.000000e+00> : vector<8x4x64xf32>
    %134 = tpu.matmul %133, %132, %cst_168 {dimension_numbers = #tpu.dot_dimension_numbers<[2], [1], [1], [2], [0, 0, 0, 1, 1, 2], [0], [0]>} : vector<8x4x16xf32>, vector<8x16x64xf32>, vector<8x4x64xf32> -> vector<8x4x64xf32>
    "tpu.trace_stop"() : () -> ()
    %135 = vector.shape_cast %134 : vector<8x4x64xf32> to vector<2x4x4x64xf32>
    %cst_169 = arith.constant 0.000000e+00 : f32
    %136 = vector.broadcast %cst_169 : f32 to vector<2x1x6x64xf32>
    %c0_170 = arith.constant 0 : index
    %c0_171 = arith.constant 0 : index
    %c0_172 = arith.constant 0 : index
    %c0_173 = arith.constant 0 : index
    %137 = vector.load %arg25[%c0_170, %c0_171, %c0_172, %c0_173] : memref<2x6x6x64xf32, #tpu.memory_space<vmem>>, vector<2x1x6x64xf32>
    tpu.vector_store %arg25[%c0_170, %c0_171, %c0_172, %c0_173], %136 {strides = array<i32>} : memref<2x6x6x64xf32, #tpu.memory_space<vmem>>, vector<2x1x6x64xf32>,
    %cst_174 = arith.constant 0.000000e+00 : f32
    %138 = vector.broadcast %cst_174 : f32 to vector<2x1x6x64xf32>
    %c0_175 = arith.constant 0 : index
    %c5 = arith.constant 5 : index
    %c0_176 = arith.constant 0 : index
    %c0_177 = arith.constant 0 : index
    %139 = vector.load %arg25[%c0_175, %c5, %c0_176, %c0_177] : memref<2x6x6x64xf32, #tpu.memory_space<vmem>>, vector<2x1x6x64xf32>
    tpu.vector_store %arg25[%c0_175, %c5, %c0_176, %c0_177], %138 {strides = array<i32>} : memref<2x6x6x64xf32, #tpu.memory_space<vmem>>, vector<2x1x6x64xf32>,
    %cst_178 = arith.constant 0.000000e+00 : f32
    %140 = vector.broadcast %cst_178 : f32 to vector<2x4x1x64xf32>
    %c0_179 = arith.constant 0 : index
    %c1_180 = arith.constant 1 : index
    %c0_181 = arith.constant 0 : index
    %c0_182 = arith.constant 0 : index
    %141 = vector.load %arg25[%c0_179, %c1_180, %c0_181, %c0_182] : memref<2x6x6x64xf32, #tpu.memory_space<vmem>>, vector<2x4x1x64xf32>
    tpu.vector_store %arg25[%c0_179, %c1_180, %c0_181, %c0_182], %140 {strides = array<i32>} : memref<2x6x6x64xf32, #tpu.memory_space<vmem>>, vector<2x4x1x64xf32>,
    %cst_183 = arith.constant 0.000000e+00 : f32
    %142 = vector.broadcast %cst_183 : f32 to vector<2x4x1x64xf32>
    %c0_184 = arith.constant 0 : index
    %c1_185 = arith.constant 1 : index
    %c5_186 = arith.constant 5 : index
    %c0_187 = arith.constant 0 : index
    %143 = vector.load %arg25[%c0_184, %c1_185, %c5_186, %c0_187] : memref<2x6x6x64xf32, #tpu.memory_space<vmem>>, vector<2x4x1x64xf32>
    tpu.vector_store %arg25[%c0_184, %c1_185, %c5_186, %c0_187], %142 {strides = array<i32>} : memref<2x6x6x64xf32, #tpu.memory_space<vmem>>, vector<2x4x1x64xf32>,
    %c0_188 = arith.constant 0 : index
    %c1_189 = arith.constant 1 : index
    %c1_190 = arith.constant 1 : index
    %c0_191 = arith.constant 0 : index
    %144 = vector.load %arg25[%c0_188, %c1_189, %c1_190, %c0_191] : memref<2x6x6x64xf32, #tpu.memory_space<vmem>>, vector<2x4x4x64xf32>
    tpu.vector_store %arg25[%c0_188, %c1_189, %c1_190, %c0_191], %135 {strides = array<i32>} : memref<2x6x6x64xf32, #tpu.memory_space<vmem>>, vector<2x4x4x64xf32>,
    %c0_192 = arith.constant 0 : index
    %c0_193 = arith.constant 0 : index
    %c0_194 = arith.constant 0 : index
    %c0_195 = arith.constant 0 : index
    %145 = vector.load %arg25[%c0_192, %c0_193, %c0_194, %c0_195] : memref<2x6x6x64xf32, #tpu.memory_space<vmem>>, vector<2x4x4x64xf32>
    %146 = vector.shape_cast %145 : vector<2x4x4x64xf32> to vector<32x64xf32>
    %c0_196 = arith.constant 0 : index
    %c0_197 = arith.constant 0 : index
    %c1_198 = arith.constant 1 : index
    %c0_199 = arith.constant 0 : index
    %147 = vector.load %arg25[%c0_196, %c0_197, %c1_198, %c0_199] : memref<2x6x6x64xf32, #tpu.memory_space<vmem>>, vector<2x4x4x64xf32>
    %148 = vector.shape_cast %147 : vector<2x4x4x64xf32> to vector<32x64xf32>
    %c0_200 = arith.constant 0 : index
    %c0_201 = arith.constant 0 : index
    %c2_202 = arith.constant 2 : index
    %c0_203 = arith.constant 0 : index
    %149 = vector.load %arg25[%c0_200, %c0_201, %c2_202, %c0_203] : memref<2x6x6x64xf32, #tpu.memory_space<vmem>>, vector<2x4x4x64xf32>
    %150 = vector.shape_cast %149 : vector<2x4x4x64xf32> to vector<32x64xf32>
    %c0_204 = arith.constant 0 : index
    %c1_205 = arith.constant 1 : index
    %c0_206 = arith.constant 0 : index
    %c0_207 = arith.constant 0 : index
    %151 = vector.load %arg25[%c0_204, %c1_205, %c0_206, %c0_207] : memref<2x6x6x64xf32, #tpu.memory_space<vmem>>, vector<2x4x4x64xf32>
    %152 = vector.shape_cast %151 : vector<2x4x4x64xf32> to vector<32x64xf32>
    %c0_208 = arith.constant 0 : index
    %c1_209 = arith.constant 1 : index
    %c1_210 = arith.constant 1 : index
    %c0_211 = arith.constant 0 : index
    %153 = vector.load %arg25[%c0_208, %c1_209, %c1_210, %c0_211] : memref<2x6x6x64xf32, #tpu.memory_space<vmem>>, vector<2x4x4x64xf32>
    %154 = vector.shape_cast %153 : vector<2x4x4x64xf32> to vector<32x64xf32>
    %c0_212 = arith.constant 0 : index
    %c1_213 = arith.constant 1 : index
    %c2_214 = arith.constant 2 : index
    %c0_215 = arith.constant 0 : index
    %155 = vector.load %arg25[%c0_212, %c1_213, %c2_214, %c0_215] : memref<2x6x6x64xf32, #tpu.memory_space<vmem>>, vector<2x4x4x64xf32>
    %156 = vector.shape_cast %155 : vector<2x4x4x64xf32> to vector<32x64xf32>
    %c0_216 = arith.constant 0 : index
    %c2_217 = arith.constant 2 : index
    %c0_218 = arith.constant 0 : index
    %c0_219 = arith.constant 0 : index
    %157 = vector.load %arg25[%c0_216, %c2_217, %c0_218, %c0_219] : memref<2x6x6x64xf32, #tpu.memory_space<vmem>>, vector<2x4x4x64xf32>
    %158 = vector.shape_cast %157 : vector<2x4x4x64xf32> to vector<32x64xf32>
    %c0_220 = arith.constant 0 : index
    %c2_221 = arith.constant 2 : index
    %c1_222 = arith.constant 1 : index
    %c0_223 = arith.constant 0 : index
    %159 = vector.load %arg25[%c0_220, %c2_221, %c1_222, %c0_223] : memref<2x6x6x64xf32, #tpu.memory_space<vmem>>, vector<2x4x4x64xf32>
    %160 = vector.shape_cast %159 : vector<2x4x4x64xf32> to vector<32x64xf32>
    %c0_224 = arith.constant 0 : index
    %c2_225 = arith.constant 2 : index
    %c2_226 = arith.constant 2 : index
    %c0_227 = arith.constant 0 : index
    %161 = vector.load %arg25[%c0_224, %c2_225, %c2_226, %c0_227] : memref<2x6x6x64xf32, #tpu.memory_space<vmem>>, vector<2x4x4x64xf32>
    %162 = vector.shape_cast %161 : vector<2x4x4x64xf32> to vector<32x64xf32>
    %163 = tpu.concatenate %146, %148, %150, %152, %154, %156, %158, %160, %162 in 1 : vector<32x64xf32>, vector<32x64xf32>, vector<32x64xf32>, vector<32x64xf32>, vector<32x64xf32>, vector<32x64xf32>, vector<32x64xf32>, vector<32x64xf32>, vector<32x64xf32> -> vector<32x576xf32>
    %c0_228 = arith.constant 0 : index
    %c0_229 = arith.constant 0 : index
    %164 = vector.load %arg12[%c0_228, %c0_229] : memref<576x128xf32, #tpu.memory_space<vmem>>, vector<576x128xf32>
    %cst_230 = arith.constant dense<0.000000e+00> : vector<32x128xf32>
    %165 = tpu.matmul %163, %164, %cst_230 {dimension_numbers = #tpu.dot_dimension_numbers<[1], [0], [0], [1], [0, 0, 1, 1], [], []>} : vector<32x576xf32>, vector<576x128xf32>, vector<32x128xf32> -> vector<32x128xf32>
    %c0_231 = arith.constant 0 : index
    %c0_232 = arith.constant 0 : index
    %166 = vector.load %arg14[%c0_231, %c0_232] : memref<128x128xf32, #tpu.memory_space<vmem>>, vector<128x128xf32>
    %cst_233 = arith.constant dense<0.000000e+00> : vector<128xf32>
    %167 = vector.multi_reduction <add>, %165, %cst_233 [0] : vector<32x128xf32> to vector<128xf32>
    %168 = vector.shape_cast %167 : vector<128xf32> to vector<1x128xf32>
    %cst_234 = arith.constant dense<0.000000e+00> : vector<1x128xf32>
    %169 = tpu.matmul %168, %166, %cst_234 {dimension_numbers = #tpu.dot_dimension_numbers<[1], [0], [0], [1], [0, 0, 1, 1], [], []>} : vector<1x128xf32>, vector<128x128xf32>, vector<1x128xf32> -> vector<1x128xf32>
    %cst_235 = arith.constant 7.812500e-03 : f32
    %170 = vector.broadcast %cst_235 : f32 to vector<1x128xf32>
    %171 = arith.mulf %169, %170 : vector<1x128xf32>
    %172 = arith.mulf %165, %165 : vector<32x128xf32>
    %cst_236 = arith.constant dense<0.000000e+00> : vector<128xf32>
    %173 = vector.multi_reduction <add>, %172, %cst_236 [0] : vector<32x128xf32> to vector<128xf32>
    %174 = vector.shape_cast %173 : vector<128xf32> to vector<1x128xf32>
    %cst_237 = arith.constant dense<0.000000e+00> : vector<1x128xf32>
    %175 = tpu.matmul %174, %166, %cst_237 {dimension_numbers = #tpu.dot_dimension_numbers<[1], [0], [0], [1], [0, 0, 1, 1], [], []>} : vector<1x128xf32>, vector<128x128xf32>, vector<1x128xf32> -> vector<1x128xf32>
    %cst_238 = arith.constant 7.812500e-03 : f32
    %176 = vector.broadcast %cst_238 : f32 to vector<1x128xf32>
    %177 = arith.mulf %175, %176 : vector<1x128xf32>
    %178 = arith.mulf %171, %171 : vector<1x128xf32>
    %179 = arith.subf %177, %178 : vector<1x128xf32>
    %c0_239 = arith.constant 0 : index
    %c0_240 = arith.constant 0 : index
    %180 = vector.load %arg13[%c0_239, %c0_240] : memref<2x128xf32, #tpu.memory_space<vmem>>, vector<1x128xf32>
    %cst_241 = arith.constant 9.99999974E-6 : f32
    %181 = vector.broadcast %cst_241 : f32 to vector<1x128xf32>
    %182 = arith.addf %179, %181 : vector<1x128xf32>
    %183 = math.rsqrt %182 : vector<1x128xf32>
    %184 = arith.mulf %180, %183 : vector<1x128xf32>
    %c1_242 = arith.constant 1 : index
    %c0_243 = arith.constant 0 : index
    %185 = vector.load %arg13[%c1_242, %c0_243] : memref<2x128xf32, #tpu.memory_space<vmem>>, vector<1x128xf32>
    %186 = arith.mulf %171, %184 : vector<1x128xf32>
    %187 = arith.subf %185, %186 : vector<1x128xf32>
    %188 = vector.broadcast %184 : vector<1x128xf32> to vector<32x128xf32>
    %189 = arith.mulf %165, %188 : vector<32x128xf32>
    %190 = vector.broadcast %187 : vector<1x128xf32> to vector<32x128xf32>
    %191 = arith.addf %189, %190 : vector<32x128xf32>
    %cst_244 = arith.constant 0.000000e+00 : f32
    %192 = vector.broadcast %cst_244 : f32 to vector<32x128xf32>
    %193 = arith.cmpf ogt, %191, %192 : vector<32x128xf32>
    %cst_245 = arith.constant 2.000000e-01 : f32
    %194 = vector.broadcast %cst_245 : f32 to vector<32x128xf32>
    %195 = arith.mulf %194, %191 : vector<32x128xf32>
    %196 = arith.select %193, %191, %195 : vector<32x128xi1>, vector<32x128xf32>
    %c0_246 = arith.constant 0 : index
    %c0_247 = arith.constant 0 : index
    %197 = vector.load %arg15[%c0_246, %c0_247] : memref<128x64xf32, #tpu.memory_space<vmem>>, vector<128x64xf32>
    %cst_248 = arith.constant dense<0.000000e+00> : vector<32x64xf32>
    %198 = tpu.matmul %196, %197, %cst_248 {dimension_numbers = #tpu.dot_dimension_numbers<[1], [0], [0], [1], [0, 0, 1, 1], [], []>} : vector<32x128xf32>, vector<128x64xf32>, vector<32x64xf32> -> vector<32x64xf32>
    %199 = vector.shape_cast %198 : vector<32x64xf32> to vector<4x8x64xf32>
    %c0_249 = arith.constant 0 : index
    %c0_250 = arith.constant 0 : index
    %c0_251 = arith.constant 0 : index
    %200 = vector.load %arg16[%c0_249, %c0_250, %c0_251] : memref<4x2x8xf32, #tpu.memory_space<vmem>>, vector<4x2x8xf32>
    "tpu.trace_start"() <{level = 10 : i32, message = "boq,bqc->boc"}> : () -> ()
    %cst_252 = arith.constant dense<0.000000e+00> : vector<4x2x64xf32>
    %201 = tpu.matmul %200, %199, %cst_252 {dimension_numbers = #tpu.dot_dimension_numbers<[2], [1], [1], [2], [0, 0, 0, 1, 1, 2], [0], [0]>} : vector<4x2x8xf32>, vector<4x8x64xf32>, vector<4x2x64xf32> -> vector<4x2x64xf32>
    "tpu.trace_stop"() : () -> ()
    %202 = vector.shape_cast %201 : vector<4x2x64xf32> to vector<2x2x2x64xf32>
    %cst_253 = arith.constant 0.000000e+00 : f32
    %203 = vector.broadcast %cst_253 : f32 to vector<2x1x4x64xf32>
    %c0_254 = arith.constant 0 : index
    %c0_255 = arith.constant 0 : index
    %c0_256 = arith.constant 0 : index
    %c0_257 = arith.constant 0 : index
    %204 = vector.load %arg26[%c0_254, %c0_255, %c0_256, %c0_257] : memref<2x4x4x64xf32, #tpu.memory_space<vmem>>, vector<2x1x4x64xf32>
    tpu.vector_store %arg26[%c0_254, %c0_255, %c0_256, %c0_257], %203 {strides = array<i32>} : memref<2x4x4x64xf32, #tpu.memory_space<vmem>>, vector<2x1x4x64xf32>,
    %cst_258 = arith.constant 0.000000e+00 : f32
    %205 = vector.broadcast %cst_258 : f32 to vector<2x1x4x64xf32>
    %c0_259 = arith.constant 0 : index
    %c3 = arith.constant 3 : index
    %c0_260 = arith.constant 0 : index
    %c0_261 = arith.constant 0 : index
    %206 = vector.load %arg26[%c0_259, %c3, %c0_260, %c0_261] : memref<2x4x4x64xf32, #tpu.memory_space<vmem>>, vector<2x1x4x64xf32>
    tpu.vector_store %arg26[%c0_259, %c3, %c0_260, %c0_261], %205 {strides = array<i32>} : memref<2x4x4x64xf32, #tpu.memory_space<vmem>>, vector<2x1x4x64xf32>,
    %cst_262 = arith.constant 0.000000e+00 : f32
    %207 = vector.broadcast %cst_262 : f32 to vector<2x2x1x64xf32>
    %c0_263 = arith.constant 0 : index
    %c1_264 = arith.constant 1 : index
    %c0_265 = arith.constant 0 : index
    %c0_266 = arith.constant 0 : index
    %208 = vector.load %arg26[%c0_263, %c1_264, %c0_265, %c0_266] : memref<2x4x4x64xf32, #tpu.memory_space<vmem>>, vector<2x2x1x64xf32>
    tpu.vector_store %arg26[%c0_263, %c1_264, %c0_265, %c0_266], %207 {strides = array<i32>} : memref<2x4x4x64xf32, #tpu.memory_space<vmem>>, vector<2x2x1x64xf32>,
    %cst_267 = arith.constant 0.000000e+00 : f32
    %209 = vector.broadcast %cst_267 : f32 to vector<2x2x1x64xf32>
    %c0_268 = arith.constant 0 : index
    %c1_269 = arith.constant 1 : index
    %c3_270 = arith.constant 3 : index
    %c0_271 = arith.constant 0 : index
    %210 = vector.load %arg26[%c0_268, %c1_269, %c3_270, %c0_271] : memref<2x4x4x64xf32, #tpu.memory_space<vmem>>, vector<2x2x1x64xf32>
    tpu.vector_store %arg26[%c0_268, %c1_269, %c3_270, %c0_271], %209 {strides = array<i32>} : memref<2x4x4x64xf32, #tpu.memory_space<vmem>>, vector<2x2x1x64xf32>,
    %c0_272 = arith.constant 0 : index
    %c1_273 = arith.constant 1 : index
    %c1_274 = arith.constant 1 : index
    %c0_275 = arith.constant 0 : index
    %211 = vector.load %arg26[%c0_272, %c1_273, %c1_274, %c0_275] : memref<2x4x4x64xf32, #tpu.memory_space<vmem>>, vector<2x2x2x64xf32>
    tpu.vector_store %arg26[%c0_272, %c1_273, %c1_274, %c0_275], %202 {strides = array<i32>} : memref<2x4x4x64xf32, #tpu.memory_space<vmem>>, vector<2x2x2x64xf32>,
    %c0_276 = arith.constant 0 : index
    %c0_277 = arith.constant 0 : index
    %c0_278 = arith.constant 0 : index
    %c0_279 = arith.constant 0 : index
    %212 = vector.load %arg26[%c0_276, %c0_277, %c0_278, %c0_279] : memref<2x4x4x64xf32, #tpu.memory_space<vmem>>, vector<2x2x2x64xf32>
    %213 = vector.shape_cast %212 : vector<2x2x2x64xf32> to vector<8x64xf32>
    %c0_280 = arith.constant 0 : index
    %c0_281 = arith.constant 0 : index
    %c1_282 = arith.constant 1 : index
    %c0_283 = arith.constant 0 : index
    %214 = vector.load %arg26[%c0_280, %c0_281, %c1_282, %c0_283] : memref<2x4x4x64xf32, #tpu.memory_space<vmem>>, vector<2x2x2x64xf32>
    %215 = vector.shape_cast %214 : vector<2x2x2x64xf32> to vector<8x64xf32>
    %c0_284 = arith.constant 0 : index
    %c0_285 = arith.constant 0 : index
    %c2_286 = arith.constant 2 : index
    %c0_287 = arith.constant 0 : index
    %216 = vector.load %arg26[%c0_284, %c0_285, %c2_286, %c0_287] : memref<2x4x4x64xf32, #tpu.memory_space<vmem>>, vector<2x2x2x64xf32>
    %217 = vector.shape_cast %216 : vector<2x2x2x64xf32> to vector<8x64xf32>
    %c0_288 = arith.constant 0 : index
    %c1_289 = arith.constant 1 : index
    %c0_290 = arith.constant 0 : index
    %c0_291 = arith.constant 0 : index
    %218 = vector.load %arg26[%c0_288, %c1_289, %c0_290, %c0_291] : memref<2x4x4x64xf32, #tpu.memory_space<vmem>>, vector<2x2x2x64xf32>
    %219 = vector.shape_cast %218 : vector<2x2x2x64xf32> to vector<8x64xf32>
    %c0_292 = arith.constant 0 : index
    %c1_293 = arith.constant 1 : index
    %c1_294 = arith.constant 1 : index
    %c0_295 = arith.constant 0 : index
    %220 = vector.load %arg26[%c0_292, %c1_293, %c1_294, %c0_295] : memref<2x4x4x64xf32, #tpu.memory_space<vmem>>, vector<2x2x2x64xf32>
    %221 = vector.shape_cast %220 : vector<2x2x2x64xf32> to vector<8x64xf32>
    %c0_296 = arith.constant 0 : index
    %c1_297 = arith.constant 1 : index
    %c2_298 = arith.constant 2 : index
    %c0_299 = arith.constant 0 : index
    %222 = vector.load %arg26[%c0_296, %c1_297, %c2_298, %c0_299] : memref<2x4x4x64xf32, #tpu.memory_space<vmem>>, vector<2x2x2x64xf32>
    %223 = vector.shape_cast %222 : vector<2x2x2x64xf32> to vector<8x64xf32>
    %c0_300 = arith.constant 0 : index
    %c2_301 = arith.constant 2 : index
    %c0_302 = arith.constant 0 : index
    %c0_303 = arith.constant 0 : index
    %224 = vector.load %arg26[%c0_300, %c2_301, %c0_302, %c0_303] : memref<2x4x4x64xf32, #tpu.memory_space<vmem>>, vector<2x2x2x64xf32>
    %225 = vector.shape_cast %224 : vector<2x2x2x64xf32> to vector<8x64xf32>
    %c0_304 = arith.constant 0 : index
    %c2_305 = arith.constant 2 : index
    %c1_306 = arith.constant 1 : index
    %c0_307 = arith.constant 0 : index
    %226 = vector.load %arg26[%c0_304, %c2_305, %c1_306, %c0_307] : memref<2x4x4x64xf32, #tpu.memory_space<vmem>>, vector<2x2x2x64xf32>
    %227 = vector.shape_cast %226 : vector<2x2x2x64xf32> to vector<8x64xf32>
    %c0_308 = arith.constant 0 : index
    %c2_309 = arith.constant 2 : index
    %c2_310 = arith.constant 2 : index
    %c0_311 = arith.constant 0 : index
    %228 = vector.load %arg26[%c0_308, %c2_309, %c2_310, %c0_311] : memref<2x4x4x64xf32, #tpu.memory_space<vmem>>, vector<2x2x2x64xf32>
    %229 = vector.shape_cast %228 : vector<2x2x2x64xf32> to vector<8x64xf32>
    %230 = tpu.concatenate %213, %215, %217, %219, %221, %223, %225, %227, %229 in 1 : vector<8x64xf32>, vector<8x64xf32>, vector<8x64xf32>, vector<8x64xf32>, vector<8x64xf32>, vector<8x64xf32>, vector<8x64xf32>, vector<8x64xf32>, vector<8x64xf32> -> vector<8x576xf32>
    %c0_312 = arith.constant 0 : index
    %c0_313 = arith.constant 0 : index
    %231 = vector.load %arg17[%c0_312, %c0_313] : memref<576x16xf32, #tpu.memory_space<vmem>>, vector<576x16xf32>
    %cst_314 = arith.constant dense<0.000000e+00> : vector<8x16xf32>
    %232 = tpu.matmul %230, %231, %cst_314 {dimension_numbers = #tpu.dot_dimension_numbers<[1], [0], [0], [1], [0, 0, 1, 1], [], []>} : vector<8x576xf32>, vector<576x16xf32>, vector<8x16xf32> -> vector<8x16xf32>
    %c0_315 = arith.constant 0 : index
    %c0_316 = arith.constant 0 : index
    %233 = vector.load %arg19[%c0_315, %c0_316] : memref<16x16xf32, #tpu.memory_space<vmem>>, vector<16x16xf32>
    %cst_317 = arith.constant dense<0.000000e+00> : vector<16xf32>
    %234 = vector.multi_reduction <add>, %232, %cst_317 [0] : vector<8x16xf32> to vector<16xf32>
    %235 = vector.shape_cast %234 : vector<16xf32> to vector<1x16xf32>
    %cst_318 = arith.constant dense<0.000000e+00> : vector<1x16xf32>
    %236 = tpu.matmul %235, %233, %cst_318 {dimension_numbers = #tpu.dot_dimension_numbers<[1], [0], [0], [1], [0, 0, 1, 1], [], []>} : vector<1x16xf32>, vector<16x16xf32>, vector<1x16xf32> -> vector<1x16xf32>
    %cst_319 = arith.constant 6.250000e-02 : f32
    %237 = vector.broadcast %cst_319 : f32 to vector<1x16xf32>
    %238 = arith.mulf %236, %237 : vector<1x16xf32>
    %239 = arith.mulf %232, %232 : vector<8x16xf32>
    %cst_320 = arith.constant dense<0.000000e+00> : vector<16xf32>
    %240 = vector.multi_reduction <add>, %239, %cst_320 [0] : vector<8x16xf32> to vector<16xf32>
    %241 = vector.shape_cast %240 : vector<16xf32> to vector<1x16xf32>
    %cst_321 = arith.constant dense<0.000000e+00> : vector<1x16xf32>
    %242 = tpu.matmul %241, %233, %cst_321 {dimension_numbers = #tpu.dot_dimension_numbers<[1], [0], [0], [1], [0, 0, 1, 1], [], []>} : vector<1x16xf32>, vector<16x16xf32>, vector<1x16xf32> -> vector<1x16xf32>
    %cst_322 = arith.constant 6.250000e-02 : f32
    %243 = vector.broadcast %cst_322 : f32 to vector<1x16xf32>
    %244 = arith.mulf %242, %243 : vector<1x16xf32>
    %245 = arith.mulf %238, %238 : vector<1x16xf32>
    %246 = arith.subf %244, %245 : vector<1x16xf32>
    %c0_323 = arith.constant 0 : index
    %c0_324 = arith.constant 0 : index
    %247 = vector.load %arg18[%c0_323, %c0_324] : memref<2x16xf32, #tpu.memory_space<vmem>>, vector<1x16xf32>
    %cst_325 = arith.constant 9.99999974E-6 : f32
    %248 = vector.broadcast %cst_325 : f32 to vector<1x16xf32>
    %249 = arith.addf %246, %248 : vector<1x16xf32>
    %250 = math.rsqrt %249 : vector<1x16xf32>
    %251 = arith.mulf %247, %250 : vector<1x16xf32>
    %c1_326 = arith.constant 1 : index
    %c0_327 = arith.constant 0 : index
    %252 = vector.load %arg18[%c1_326, %c0_327] : memref<2x16xf32, #tpu.memory_space<vmem>>, vector<1x16xf32>
    %253 = arith.mulf %238, %251 : vector<1x16xf32>
    %254 = arith.subf %252, %253 : vector<1x16xf32>
    %255 = vector.broadcast %251 : vector<1x16xf32> to vector<8x16xf32>
    %256 = arith.mulf %232, %255 : vector<8x16xf32>
    %257 = vector.broadcast %254 : vector<1x16xf32> to vector<8x16xf32>
    %258 = arith.addf %256, %257 : vector<8x16xf32>
    %cst_328 = arith.constant 0.000000e+00 : f32
    %259 = vector.broadcast %cst_328 : f32 to vector<8x16xf32>
    %260 = arith.cmpf ogt, %258, %259 : vector<8x16xf32>
    %cst_329 = arith.constant 2.000000e-01 : f32
    %261 = vector.broadcast %cst_329 : f32 to vector<8x16xf32>
    %262 = arith.mulf %261, %258 : vector<8x16xf32>
    %263 = arith.select %260, %258, %262 : vector<8x16xi1>, vector<8x16xf32>
    %c0_330 = arith.constant 0 : index
    %c0_331 = arith.constant 0 : index
    %264 = vector.load %arg20[%c0_330, %c0_331] : memref<16x8xf32, #tpu.memory_space<vmem>>, vector<16x8xf32>
    %cst_332 = arith.constant dense<0.000000e+00> : vector<8x8xf32>
    %265 = tpu.matmul %263, %264, %cst_332 {dimension_numbers = #tpu.dot_dimension_numbers<[1], [0], [0], [1], [0, 0, 1, 1], [], []>} : vector<8x16xf32>, vector<16x8xf32>, vector<8x8xf32> -> vector<8x8xf32>
    %266 = vector.shape_cast %265 : vector<8x8xf32> to vector<2x4x8xf32>
    %c0_333 = arith.constant 0 : index
    %c0_334 = arith.constant 0 : index
    %c0_335 = arith.constant 0 : index
    %267 = vector.load %arg21[%c0_333, %c0_334, %c0_335] : memref<2x1x4xf32, #tpu.memory_space<vmem>>, vector<2x1x4xf32>
    "tpu.trace_start"() <{level = 10 : i32, message = "boq,bqc->boc"}> : () -> ()
    %cst_336 = arith.constant dense<0.000000e+00> : vector<2x1x8xf32>
    %268 = tpu.matmul %267, %266, %cst_336 {dimension_numbers = #tpu.dot_dimension_numbers<[2], [1], [1], [2], [0, 0, 0, 1, 1, 2], [0], [0]>} : vector<2x1x4xf32>, vector<2x4x8xf32>, vector<2x1x8xf32> -> vector<2x1x8xf32>
    "tpu.trace_stop"() : () -> ()
    %269 = vector.shape_cast %268 : vector<2x1x8xf32> to vector<2x1x1x8xf32>
    %c0_337 = arith.constant 0 : index
    %c0_338 = arith.constant 0 : index
    %c0_339 = arith.constant 0 : index
    %c0_340 = arith.constant 0 : index
    %c0_341 = arith.constant 0 : index
    %270 = vector.load %arg22[%c0_337, %c0_338, %c0_339, %c0_340, %c0_341] : memref<1x2x1x1x8xf32, #tpu.memory_space<vmem>>, vector<1x2x1x1x8xf32>
    %271 = vector.shape_cast %270 : vector<1x2x1x1x8xf32> to vector<2x1x1x8xf32>
    %272 = vector.shape_cast %269 : vector<2x1x1x8xf32> to vector<1x2x1x1x8xf32>
    tpu.vector_store %arg22[%c0_337, %c0_338, %c0_339, %c0_340, %c0_341], %272 {strides = array<i32>} : memref<1x2x1x1x8xf32, #tpu.memory_space<vmem>>, vector<1x2x1x1x8xf32>,
    return
  }
  func.func @transform_0(%arg0: i32) -> (i32, i32, i32, i32, i32) {
    %c0_i32 = arith.constant 0 : i32
    %c0_i32_0 = arith.constant 0 : i32
    %c0_i32_1 = arith.constant 0 : i32
    %c0_i32_2 = arith.constant 0 : i32
    %c0_i32_3 = arith.constant 0 : i32
    return %arg0, %c0_i32, %c0_i32_0, %c0_i32_1, %c0_i32_2 : i32, i32, i32, i32, i32
  }
  func.func @transform_1(%arg0: i32) -> (i32, i32) {
    %c0_i32 = arith.constant 0 : i32
    %c0_i32_0 = arith.constant 0 : i32
    %c0_i32_1 = arith.constant 0 : i32
    return %c0_i32, %c0_i32_0 : i32, i32
  }
  func.func @transform_2(%arg0: i32) -> (i32, i32) {
    %c0_i32 = arith.constant 0 : i32
    %c0_i32_0 = arith.constant 0 : i32
    %c0_i32_1 = arith.constant 0 : i32
    return %c0_i32, %c0_i32_0 : i32, i32
  }
  func.func @transform_3(%arg0: i32) -> (i32, i32) {
    %c0_i32 = arith.constant 0 : i32
    %c0_i32_0 = arith.constant 0 : i32
    %c0_i32_1 = arith.constant 0 : i32
    return %c0_i32, %c0_i32_0 : i32, i32
  }
  func.func @transform_4(%arg0: i32) -> (i32, i32) {
    %c0_i32 = arith.constant 0 : i32
    %c0_i32_0 = arith.constant 0 : i32
    %c0_i32_1 = arith.constant 0 : i32
    return %c0_i32, %c0_i32_0 : i32, i32
  }
  func.func @transform_5(%arg0: i32) -> (i32, i32, i32) {
    %c0_i32 = arith.constant 0 : i32
    %c0_i32_0 = arith.constant 0 : i32
    %c0_i32_1 = arith.constant 0 : i32
    %c0_i32_2 = arith.constant 0 : i32
    return %c0_i32, %c0_i32_0, %c0_i32_1 : i32, i32, i32
  }
  func.func @transform_6(%arg0: i32) -> (i32, i32) {
    %c0_i32 = arith.constant 0 : i32
    %c0_i32_0 = arith.constant 0 : i32
    %c0_i32_1 = arith.constant 0 : i32
    return %c0_i32, %c0_i32_0 : i32, i32
  }
  func.func @transform_7(%arg0: i32) -> (i32, i32) {
    %c0_i32 = arith.constant 0 : i32
    %c0_i32_0 = arith.constant 0 : i32
    %c0_i32_1 = arith.constant 0 : i32
    return %c0_i32, %c0_i32_0 : i32, i32
  }
  func.func @transform_8(%arg0: i32) -> (i32, i32) {
    %c0_i32 = arith.constant 0 : i32
    %c0_i32_0 = arith.constant 0 : i32
    %c0_i32_1 = arith.constant 0 : i32
    return %c0_i32, %c0_i32_0 : i32, i32
  }
  func.func @transform_9(%arg0: i32) -> (i32, i32) {
    %c0_i32 = arith.constant 0 : i32
    %c0_i32_0 = arith.constant 0 : i32
    %c0_i32_1 = arith.constant 0 : i32
    return %c0_i32, %c0_i32_0 : i32, i32
  }
  func.func @transform_10(%arg0: i32) -> (i32, i32, i32) {
    %c0_i32 = arith.constant 0 : i32
    %c0_i32_0 = arith.constant 0 : i32
    %c0_i32_1 = arith.constant 0 : i32
    %c0_i32_2 = arith.constant 0 : i32
    return %c0_i32, %c0_i32_0, %c0_i32_1 : i32, i32, i32
  }
  func.func @transform_11(%arg0: i32) -> (i32, i32) {
    %c0_i32 = arith.constant 0 : i32
    %c0_i32_0 = arith.constant 0 : i32
    %c0_i32_1 = arith.constant 0 : i32
    return %c0_i32, %c0_i32_0 : i32, i32
  }
  func.func @transform_12(%arg0: i32) -> (i32, i32) {
    %c0_i32 = arith.constant 0 : i32
    %c0_i32_0 = arith.constant 0 : i32
    %c0_i32_1 = arith.constant 0 : i32
    return %c0_i32, %c0_i32_0 : i32, i32
  }
  func.func @transform_13(%arg0: i32) -> (i32, i32) {
    %c0_i32 = arith.constant 0 : i32
    %c0_i32_0 = arith.constant 0 : i32
    %c0_i32_1 = arith.constant 0 : i32
    return %c0_i32, %c0_i32_0 : i32, i32
  }
  func.func @transform_14(%arg0: i32) -> (i32, i32) {
    %c0_i32 = arith.constant 0 : i32
    %c0_i32_0 = arith.constant 0 : i32
    %c0_i32_1 = arith.constant 0 : i32
    return %c0_i32, %c0_i32_0 : i32, i32
  }
  func.func @transform_15(%arg0: i32) -> (i32, i32, i32) {
    %c0_i32 = arith.constant 0 : i32
    %c0_i32_0 = arith.constant 0 : i32
    %c0_i32_1 = arith.constant 0 : i32
    %c0_i32_2 = arith.constant 0 : i32
    return %c0_i32, %c0_i32_0, %c0_i32_1 : i32, i32, i32
  }
  func.func @transform_16(%arg0: i32) -> (i32, i32) {
    %c0_i32 = arith.constant 0 : i32
    %c0_i32_0 = arith.constant 0 : i32
    %c0_i32_1 = arith.constant 0 : i32
    return %c0_i32, %c0_i32_0 : i32, i32
  }
  func.func @transform_17(%arg0: i32) -> (i32, i32) {
    %c0_i32 = arith.constant 0 : i32
    %c0_i32_0 = arith.constant 0 : i32
    %c0_i32_1 = arith.constant 0 : i32
    return %c0_i32, %c0_i32_0 : i32, i32
  }
  func.func @transform_18(%arg0: i32) -> (i32, i32) {
    %c0_i32 = arith.constant 0 : i32
    %c0_i32_0 = arith.constant 0 : i32
    %c0_i32_1 = arith.constant 0 : i32
    return %c0_i32, %c0_i32_0 : i32, i32
  }
  func.func @transform_19(%arg0: i32) -> (i32, i32) {
    %c0_i32 = arith.constant 0 : i32
    %c0_i32_0 = arith.constant 0 : i32
    %c0_i32_1 = arith.constant 0 : i32
    return %c0_i32, %c0_i32_0 : i32, i32
  }
  func.func @transform_20(%arg0: i32) -> (i32, i32, i32) {
    %c0_i32 = arith.constant 0 : i32
    %c0_i32_0 = arith.constant 0 : i32
    %c0_i32_1 = arith.constant 0 : i32
    %c0_i32_2 = arith.constant 0 : i32
    return %c0_i32, %c0_i32_0, %c0_i32_1 : i32, i32, i32
  }
  func.func @transform_21(%arg0: i32) -> (i32, i32, i32, i32, i32) {
    %c0_i32 = arith.constant 0 : i32
    %c0_i32_0 = arith.constant 0 : i32
    %c0_i32_1 = arith.constant 0 : i32
    %c0_i32_2 = arith.constant 0 : i32
    %c0_i32_3 = arith.constant 0 : i32
    return %arg0, %c0_i32, %c0_i32_0, %c0_i32_1, %c0_i32_2 : i32, i32, i32, i32, i32
  }
}

</mosaic_0001>

<llo_original>
// kernel: lilac_forward.1
$region0: #{lilac_forward.1}
  #allocation0 [shape = 'u32[]', space=smem, size = 0x4, offset = 0x4, fixed_abs, tag = 'smem constant byte address 0x4 - core index']
  #allocation1 [shape = 'u32[144,128]{1,0:T(1,128)}', space=vmem, size = 0x12000, scoped, tag = 'internal scratch']
  #allocation2 [shape = 'f32[2,18,18,16]{3,2,1,0:T(8,128)}', space=vmem, size = 0x6c000, scoped, tag = 'scratch operand']
  #allocation3 [shape = 'f32[2,10,10,64]{3,2,1,0:T(8,128)}', space=vmem, size = 0x28000, scoped, tag = 'scratch operand']
  #allocation4 [shape = 'f32[2,6,6,64]{3,2,1,0:T(8,128)}', space=vmem, size = 0xc000, scoped, tag = 'scratch operand']
  #allocation5 [shape = 'f32[2,4,4,64]{3,2,1,0:T(4,128)}', space=vmem, size = 0x4000, scoped, tag = 'scratch operand']
  %s0 = inlined_call_operand.vmem [shape: f32[2,2,16,16,16], index: 0, kind: input, shape index: {}]
  %s1 = inlined_call_operand.vmem [shape: f32[144,128], index: 1, kind: input, shape index: {}]
  %s2 = inlined_call_operand.vmem [shape: f32[2,128], index: 2, kind: input, shape index: {}]
  %s3 = inlined_call_operand.vmem [shape: f32[128,128], index: 3, kind: input, shape index: {}]
  %s4 = inlined_call_operand.vmem [shape: f32[128,64], index: 4, kind: input, shape index: {}]
  %s5 = inlined_call_operand.vmem [shape: f32[16,8,32], index: 5, kind: input, shape index: {}]
  %s6 = inlined_call_operand.vmem [shape: f32[576,128], index: 6, kind: input, shape index: {}]
  %s7 = inlined_call_operand.vmem [shape: f32[2,128], index: 7, kind: input, shape index: {}]
  %s8 = inlined_call_operand.vmem [shape: f32[128,128], index: 8, kind: input, shape index: {}]
  %s9 = inlined_call_operand.vmem [shape: f32[128,64], index: 9, kind: input, shape index: {}]
  %s10 = inlined_call_operand.vmem [shape: f32[8,4,16], index: 10, kind: input, shape index: {}]
  %s11 = inlined_call_operand.vmem [shape: f32[576,128], index: 11, kind: input, shape index: {}]
  %s12 = inlined_call_operand.vmem [shape: f32[2,128], index: 12, kind: input, shape index: {}]
  %s13 = inlined_call_operand.vmem [shape: f32[128,128], index: 13, kind: input, shape index: {}]
  %s14 = inlined_call_operand.vmem [shape: f32[128,64], index: 14, kind: input, shape index: {}]
  %s15 = inlined_call_operand.vmem [shape: f32[4,2,8], index: 15, kind: input, shape index: {}]
  %s16 = inlined_call_operand.vmem [shape: f32[576,16], index: 16, kind: input, shape index: {}]
  %s17 = inlined_call_operand.vmem [shape: f32[2,16], index: 17, kind: input, shape index: {}]
  %s18 = inlined_call_operand.vmem [shape: f32[16,16], index: 18, kind: input, shape index: {}]
  %s19 = inlined_call_operand.vmem [shape: f32[16,8], index: 19, kind: input, shape index: {}]
  %s20 = inlined_call_operand.vmem [shape: f32[2,1,4], index: 20, kind: input, shape index: {}]
  %s21 = inlined_call_operand.vmem [shape: f32[2,2,1,1,8], index: 21, kind: output, shape index: {}]
  %s22 = sld [smem:[#allocation0]]
  $region117: #{lilac_forward.1} parent=0
    _
  %s24 = ssub.s32 1, %s22
  %s25 = scalar_select 0, %s24, %s22
  loop: start=0, step=1, limit=4
  $region2: #{lilac_forward.1} parent=0 // loop_pre_header
    _
  $region3: #{lilac_forward.1} parent=0 // loop_header
    %s27 = sphi 0, %s31
    %p28 = scmp.ge.s32.totalorder %s27, 4
    %s37 = sphi 0, %s39
    %s40 = sphi 0, %s37
    %s41 = sphi 0, %s40
    %s57 = sphi 0, %s41
    %s61 = sphi 0, %s61
    %s63 = sphi 0, %s61
    %s64 = sphi 0, %s63
    %s78 = sphi 0, %s64
    %s82 = sphi 0, %s82
    %s84 = sphi 0, %s82
    %s85 = sphi 0, %s84
    %s99 = sphi 0, %s85
    %s103 = sphi 0, %s103
    %s105 = sphi 0, %s103
    %s106 = sphi 0, %s105
    %s120 = sphi 0, %s106
    %s124 = sphi 0, %s124
    %s126 = sphi 0, %s124
    %s127 = sphi 0, %s126
    %s141 = sphi 0, %s127
    %s145 = sphi 0, %s145
    %s147 = sphi 0, %s145
    %s148 = sphi 0, %s147
    %s162 = sphi 0, %s148
    %s166 = sphi 0, %s166
    %s168 = sphi 0, %s166
    %s169 = sphi 0, %s168
    %s183 = sphi 0, %s169
    %s187 = sphi 0, %s187
    %s189 = sphi 0, %s187
    %s190 = sphi 0, %s189
    %s204 = sphi 0, %s190
    %s208 = sphi 0, %s208
    %s210 = sphi 0, %s208
    %s211 = sphi 0, %s210
    %s225 = sphi 0, %s211
    %s229 = sphi 0, %s229
    %s231 = sphi 0, %s229
    %s232 = sphi 0, %s231
    %s246 = sphi 0, %s232
    %s250 = sphi 0, %s250
    %s252 = sphi 0, %s250
    %s253 = sphi 0, %s252
    %s267 = sphi 0, %s253
    %s271 = sphi 0, %s271
    %s273 = sphi 0, %s271
    %s274 = sphi 0, %s273
    %s288 = sphi 0, %s274
    %s292 = sphi 0, %s292
    %s294 = sphi 0, %s292
    %s295 = sphi 0, %s294
    %s309 = sphi 0, %s295
    %s313 = sphi 0, %s313
    %s315 = sphi 0, %s313
    %s316 = sphi 0, %s315
    %s330 = sphi 0, %s316
    %s334 = sphi 0, %s334
    %s336 = sphi 0, %s334
    %s337 = sphi 0, %s336
    %s351 = sphi 0, %s337
    %s355 = sphi 0, %s355
    %s357 = sphi 0, %s355
    %s358 = sphi 0, %s357
    %s372 = sphi 0, %s358
    %s376 = sphi 0, %s376
    %s378 = sphi 0, %s376
    %s379 = sphi 0, %s378
    %s393 = sphi 0, %s379
    %s397 = sphi 0, %s397
    %s399 = sphi 0, %s397
    %s400 = sphi 0, %s399
    %s414 = sphi 0, %s400
    %s418 = sphi 0, %s418
    %s420 = sphi 0, %s418
    %s421 = sphi 0, %s420
    %s435 = sphi 0, %s421
    %s439 = sphi 0, %s439
    %s441 = sphi 0, %s439
    %s442 = sphi 0, %s441
    %s456 = sphi 0, %s442
    %s460 = sphi 0, %s460
    %s462 = sphi 0, %s460
    %s463 = sphi 0, %s462
    %s477 = sphi 0, %s463
    %s483 = sphi 0, %s485
    %s486 = sphi 0, %s483
    %s487 = sphi 0, %s486
    %s503 = sphi 0, %s487
  $region4: #{lilac_forward.1} parent=0 // loop_header_branch
    %30 = sbr.rel (%p28) target = $region8
  $region5: #{lilac_forward.1} parent=0 // loop_body
    %s32 = ssub.s32 %s27, 1
    %s33 = ssub.s32 %s27, 2
    %s34 = sadd.s32 %s27, 1
    %s35 = ssub.s32 %s27, %s34
    %p36 = scmp.eq.s32.totalorder %s35, 0
    %s38 = sadd.s32 %s37, 1
    %s39 = scalar_select %p36, %s37, %s38
    %p42 = pneg %p36
    %p43 = scmp.eq.s32.totalorder %s27, 1
    %p44 = por %p42, %p43
    %p45 = scmp.ne.s32.totalorder %s37, %s40
    %p46 = scmp.eq.s32.totalorder %s27, 0
    %p47 = por %p45, %p46
    %p48 = scmp.ne.s32.totalorder %s37, %s40
    %p49 = scmp.eq.s32.totalorder %s32, 1
    %p50 = por %p48, %p49
    %p51 = scmp.ne.s32.totalorder %s40, %s41
    %p52 = scmp.eq.s32.totalorder %s32, 0
    %p53 = por %p51, %p52
    %p54 = scmp.ne.s32.totalorder %s40, %s41
    %p55 = scmp.eq.s32.totalorder %s33, 1
    %p56 = por %p54, %p55
    %p58 = scmp.ne.s32.totalorder %s41, %s57
    %p59 = scmp.eq.s32.totalorder %s33, 0
    %p60 = por %p58, %p59
    %s62 = sadd.s32 %s61, 1
    %p65 = scmp.eq.s32.totalorder %s27, 1
    %p66 = scmp.ne.s32.totalorder %s61, %s63
    %p67 = scmp.eq.s32.totalorder %s27, 0
    %p68 = por %p66, %p67
    %p69 = scmp.ne.s32.totalorder %s61, %s63
    %p70 = scmp.eq.s32.totalorder %s32, 1
    %p71 = por %p69, %p70
    %p72 = scmp.ne.s32.totalorder %s63, %s64
    %p73 = scmp.eq.s32.totalorder %s32, 0
    %p74 = por %p72, %p73
    %p75 = scmp.ne.s32.totalorder %s63, %s64
    %p76 = scmp.eq.s32.totalorder %s33, 1
    %p77 = por %p75, %p76
    %p79 = scmp.ne.s32.totalorder %s64, %s78
    %p80 = scmp.eq.s32.totalorder %s33, 0
    %p81 = por %p79, %p80
    %s83 = sadd.s32 %s82, 1
    %p86 = scmp.eq.s32.totalorder %s27, 1
    %p87 = scmp.ne.s32.totalorder %s82, %s84
    %p88 = scmp.eq.s32.totalorder %s27, 0
    %p89 = por %p87, %p88
    %p90 = scmp.ne.s32.totalorder %s82, %s84
    %p91 = scmp.eq.s32.totalorder %s32, 1
    %p92 = por %p90, %p91
    %p93 = scmp.ne.s32.totalorder %s84, %s85
    %p94 = scmp.eq.s32.totalorder %s32, 0
    %p95 = por %p93, %p94
    %p96 = scmp.ne.s32.totalorder %s84, %s85
    %p97 = scmp.eq.s32.totalorder %s33, 1
    %p98 = por %p96, %p97
    %p100 = scmp.ne.s32.totalorder %s85, %s99
    %p101 = scmp.eq.s32.totalorder %s33, 0
    %p102 = por %p100, %p101
    %s104 = sadd.s32 %s103, 1
    %p107 = scmp.eq.s32.totalorder %s27, 1
    %p108 = scmp.ne.s32.totalorder %s103, %s105
    %p109 = scmp.eq.s32.totalorder %s27, 0
    %p110 = por %p108, %p109
    %p111 = scmp.ne.s32.totalorder %s103, %s105
    %p112 = scmp.eq.s32.totalorder %s32, 1
    %p113 = por %p111, %p112
    %p114 = scmp.ne.s32.totalorder %s105, %s106
    %p115 = scmp.eq.s32.totalorder %s32, 0
    %p116 = por %p114, %p115
    %p117 = scmp.ne.s32.totalorder %s105, %s106
    %p118 = scmp.eq.s32.totalorder %s33, 1
    %p119 = por %p117, %p118
    %p121 = scmp.ne.s32.totalorder %s106, %s120
    %p122 = scmp.eq.s32.totalorder %s33, 0
    %p123 = por %p121, %p122
    %s125 = sadd.s32 %s124, 1
    %p128 = scmp.eq.s32.totalorder %s27, 1
    %p129 = scmp.ne.s32.totalorder %s124, %s126
    %p130 = scmp.eq.s32.totalorder %s27, 0
    %p131 = por %p129, %p130
    %p132 = scmp.ne.s32.totalorder %s124, %s126
    %p133 = scmp.eq.s32.totalorder %s32, 1
    %p134 = por %p132, %p133
    %p135 = scmp.ne.s32.totalorder %s126, %s127
    %p136 = scmp.eq.s32.totalorder %s32, 0
    %p137 = por %p135, %p136
    %p138 = scmp.ne.s32.totalorder %s126, %s127
    %p139 = scmp.eq.s32.totalorder %s33, 1
    %p140 = por %p138, %p139
    %p142 = scmp.ne.s32.totalorder %s127, %s141
    %p143 = scmp.eq.s32.totalorder %s33, 0
    %p144 = por %p142, %p143
    %s146 = sadd.s32 %s145, 1
    %p149 = scmp.eq.s32.totalorder %s27, 1
    %p150 = scmp.ne.s32.totalorder %s145, %s147
    %p151 = scmp.eq.s32.totalorder %s27, 0
    %p152 = por %p150, %p151
    %p153 = scmp.ne.s32.totalorder %s145, %s147
    %p154 = scmp.eq.s32.totalorder %s32, 1
    %p155 = por %p153, %p154
    %p156 = scmp.ne.s32.totalorder %s147, %s148
    %p157 = scmp.eq.s32.totalorder %s32, 0
    %p158 = por %p156, %p157
    %p159 = scmp.ne.s32.totalorder %s147, %s148
    %p160 = scmp.eq.s32.totalorder %s33, 1
    %p161 = por %p159, %p160
    %p163 = scmp.ne.s32.totalorder %s148, %s162
    %p164 = scmp.eq.s32.totalorder %s33, 0
    %p165 = por %p163, %p164
    %s167 = sadd.s32 %s166, 1
    %p170 = scmp.eq.s32.totalorder %s27, 1
    %p171 = scmp.ne.s32.totalorder %s166, %s168
    %p172 = scmp.eq.s32.totalorder %s27, 0
    %p173 = por %p171, %p172
    %p174 = scmp.ne.s32.totalorder %s166, %s168
    %p175 = scmp.eq.s32.totalorder %s32, 1
    %p176 = por %p174, %p175
    %p177 = scmp.ne.s32.totalorder %s168, %s169
    %p178 = scmp.eq.s32.totalorder %s32, 0
    %p179 = por %p177, %p178
    %p180 = scmp.ne.s32.totalorder %s168, %s169
    %p181 = scmp.eq.s32.totalorder %s33, 1
    %p182 = por %p180, %p181
    %p184 = scmp.ne.s32.totalorder %s169, %s183
    %p185 = scmp.eq.s32.totalorder %s33, 0
    %p186 = por %p184, %p185
    %s188 = sadd.s32 %s187, 1
    %p191 = scmp.eq.s32.totalorder %s27, 1
    %p192 = scmp.ne.s32.totalorder %s187, %s189
    %p193 = scmp.eq.s32.totalorder %s27, 0
    %p194 = por %p192, %p193
    %p195 = scmp.ne.s32.totalorder %s187, %s189
    %p196 = scmp.eq.s32.totalorder %s32, 1
    %p197 = por %p195, %p196
    %p198 = scmp.ne.s32.totalorder %s189, %s190
    %p199 = scmp.eq.s32.totalorder %s32, 0
    %p200 = por %p198, %p199
    %p201 = scmp.ne.s32.totalorder %s189, %s190
    %p202 = scmp.eq.s32.totalorder %s33, 1
    %p203 = por %p201, %p202
    %p205 = scmp.ne.s32.totalorder %s190, %s204
    %p206 = scmp.eq.s32.totalorder %s33, 0
    %p207 = por %p205, %p206
    %s209 = sadd.s32 %s208, 1
    %p212 = scmp.eq.s32.totalorder %s27, 1
    %p213 = scmp.ne.s32.totalorder %s208, %s210
    %p214 = scmp.eq.s32.totalorder %s27, 0
    %p215 = por %p213, %p214
    %p216 = scmp.ne.s32.totalorder %s208, %s210
    %p217 = scmp.eq.s32.totalorder %s32, 1
    %p218 = por %p216, %p217
    %p219 = scmp.ne.s32.totalorder %s210, %s211
    %p220 = scmp.eq.s32.totalorder %s32, 0
    %p221 = por %p219, %p220
    %p222 = scmp.ne.s32.totalorder %s210, %s211
    %p223 = scmp.eq.s32.totalorder %s33, 1
    %p224 = por %p222, %p223
    %p226 = scmp.ne.s32.totalorder %s211, %s225
    %p227 = scmp.eq.s32.totalorder %s33, 0
    %p228 = por %p226, %p227
    %s230 = sadd.s32 %s229, 1
    %p233 = scmp.eq.s32.totalorder %s27, 1
    %p234 = scmp.ne.s32.totalorder %s229, %s231
    %p235 = scmp.eq.s32.totalorder %s27, 0
    %p236 = por %p234, %p235
    %p237 = scmp.ne.s32.totalorder %s229, %s231
    %p238 = scmp.eq.s32.totalorder %s32, 1
    %p239 = por %p237, %p238
    %p240 = scmp.ne.s32.totalorder %s231, %s232
    %p241 = scmp.eq.s32.totalorder %s32, 0
    %p242 = por %p240, %p241
    %p243 = scmp.ne.s32.totalorder %s231, %s232
    %p244 = scmp.eq.s32.totalorder %s33, 1
    %p245 = por %p243, %p244
    %p247 = scmp.ne.s32.totalorder %s232, %s246
    %p248 = scmp.eq.s32.totalorder %s33, 0
    %p249 = por %p247, %p248
    %s251 = sadd.s32 %s250, 1
    %p254 = scmp.eq.s32.totalorder %s27, 1
    %p255 = scmp.ne.s32.totalorder %s250, %s252
    %p256 = scmp.eq.s32.totalorder %s27, 0
    %p257 = por %p255, %p256
    %p258 = scmp.ne.s32.totalorder %s250, %s252
    %p259 = scmp.eq.s32.totalorder %s32, 1
    %p260 = por %p258, %p259
    %p261 = scmp.ne.s32.totalorder %s252, %s253
    %p262 = scmp.eq.s32.totalorder %s32, 0
    %p263 = por %p261, %p262
    %p264 = scmp.ne.s32.totalorder %s252, %s253
    %p265 = scmp.eq.s32.totalorder %s33, 1
    %p266 = por %p264, %p265
    %p268 = scmp.ne.s32.totalorder %s253, %s267
    %p269 = scmp.eq.s32.totalorder %s33, 0
    %p270 = por %p268, %p269
    %s272 = sadd.s32 %s271, 1
    %p275 = scmp.eq.s32.totalorder %s27, 1
    %p276 = scmp.ne.s32.totalorder %s271, %s273
    %p277 = scmp.eq.s32.totalorder %s27, 0
    %p278 = por %p276, %p277
    %p279 = scmp.ne.s32.totalorder %s271, %s273
    %p280 = scmp.eq.s32.totalorder %s32, 1
    %p281 = por %p279, %p280
    %p282 = scmp.ne.s32.totalorder %s273, %s274
    %p283 = scmp.eq.s32.totalorder %s32, 0
    %p284 = por %p282, %p283
    %p285 = scmp.ne.s32.totalorder %s273, %s274
    %p286 = scmp.eq.s32.totalorder %s33, 1
    %p287 = por %p285, %p286
    %p289 = scmp.ne.s32.totalorder %s274, %s288
    %p290 = scmp.eq.s32.totalorder %s33, 0
    %p291 = por %p289, %p290
    %s293 = sadd.s32 %s292, 1
    %p296 = scmp.eq.s32.totalorder %s27, 1
    %p297 = scmp.ne.s32.totalorder %s292, %s294
    %p298 = scmp.eq.s32.totalorder %s27, 0
    %p299 = por %p297, %p298
    %p300 = scmp.ne.s32.totalorder %s292, %s294
    %p301 = scmp.eq.s32.totalorder %s32, 1
    %p302 = por %p300, %p301
    %p303 = scmp.ne.s32.totalorder %s294, %s295
    %p304 = scmp.eq.s32.totalorder %s32, 0
    %p305 = por %p303, %p304
    %p306 = scmp.ne.s32.totalorder %s294, %s295
    %p307 = scmp.eq.s32.totalorder %s33, 1
    %p308 = por %p306, %p307
    %p310 = scmp.ne.s32.totalorder %s295, %s309
    %p311 = scmp.eq.s32.totalorder %s33, 0
    %p312 = por %p310, %p311
    %s314 = sadd.s32 %s313, 1
    %p317 = scmp.eq.s32.totalorder %s27, 1
    %p318 = scmp.ne.s32.totalorder %s313, %s315
    %p319 = scmp.eq.s32.totalorder %s27, 0
    %p320 = por %p318, %p319
    %p321 = scmp.ne.s32.totalorder %s313, %s315
    %p322 = scmp.eq.s32.totalorder %s32, 1
    %p323 = por %p321, %p322
    %p324 = scmp.ne.s32.totalorder %s315, %s316
    %p325 = scmp.eq.s32.totalorder %s32, 0
    %p326 = por %p324, %p325
    %p327 = scmp.ne.s32.totalorder %s315, %s316
    %p328 = scmp.eq.s32.totalorder %s33, 1
    %p329 = por %p327, %p328
    %p331 = scmp.ne.s32.totalorder %s316, %s330
    %p332 = scmp.eq.s32.totalorder %s33, 0
    %p333 = por %p331, %p332
    %s335 = sadd.s32 %s334, 1
    %p338 = scmp.eq.s32.totalorder %s27, 1
    %p339 = scmp.ne.s32.totalorder %s334, %s336
    %p340 = scmp.eq.s32.totalorder %s27, 0
    %p341 = por %p339, %p340
    %p342 = scmp.ne.s32.totalorder %s334, %s336
    %p343 = scmp.eq.s32.totalorder %s32, 1
    %p344 = por %p342, %p343
    %p345 = scmp.ne.s32.totalorder %s336, %s337
    %p346 = scmp.eq.s32.totalorder %s32, 0
    %p347 = por %p345, %p346
    %p348 = scmp.ne.s32.totalorder %s336, %s337
    %p349 = scmp.eq.s32.totalorder %s33, 1
    %p350 = por %p348, %p349
    %p352 = scmp.ne.s32.totalorder %s337, %s351
    %p353 = scmp.eq.s32.totalorder %s33, 0
    %p354 = por %p352, %p353
    %s356 = sadd.s32 %s355, 1
    %p359 = scmp.eq.s32.totalorder %s27, 1
    %p360 = scmp.ne.s32.totalorder %s355, %s357
    %p361 = scmp.eq.s32.totalorder %s27, 0
    %p362 = por %p360, %p361
    %p363 = scmp.ne.s32.totalorder %s355, %s357
    %p364 = scmp.eq.s32.totalorder %s32, 1
    %p365 = por %p363, %p364
    %p366 = scmp.ne.s32.totalorder %s357, %s358
    %p367 = scmp.eq.s32.totalorder %s32, 0
    %p368 = por %p366, %p367
    %p369 = scmp.ne.s32.totalorder %s357, %s358
    %p370 = scmp.eq.s32.totalorder %s33, 1
    %p371 = por %p369, %p370
    %p373 = scmp.ne.s32.totalorder %s358, %s372
    %p374 = scmp.eq.s32.totalorder %s33, 0
    %p375 = por %p373, %p374
    %s377 = sadd.s32 %s376, 1
    %p380 = scmp.eq.s32.totalorder %s27, 1
    %p381 = scmp.ne.s32.totalorder %s376, %s378
    %p382 = scmp.eq.s32.totalorder %s27, 0
    %p383 = por %p381, %p382
    %p384 = scmp.ne.s32.totalorder %s376, %s378
    %p385 = scmp.eq.s32.totalorder %s32, 1
    %p386 = por %p384, %p385
    %p387 = scmp.ne.s32.totalorder %s378, %s379
    %p388 = scmp.eq.s32.totalorder %s32, 0
    %p389 = por %p387, %p388
    %p390 = scmp.ne.s32.totalorder %s378, %s379
    %p391 = scmp.eq.s32.totalorder %s33, 1
    %p392 = por %p390, %p391
    %p394 = scmp.ne.s32.totalorder %s379, %s393
    %p395 = scmp.eq.s32.totalorder %s33, 0
    %p396 = por %p394, %p395
    %s398 = sadd.s32 %s397, 1
    %p401 = scmp.eq.s32.totalorder %s27, 1
    %p402 = scmp.ne.s32.totalorder %s397, %s399
    %p403 = scmp.eq.s32.totalorder %s27, 0
    %p404 = por %p402, %p403
    %p405 = scmp.ne.s32.totalorder %s397, %s399
    %p406 = scmp.eq.s32.totalorder %s32, 1
    %p407 = por %p405, %p406
    %p408 = scmp.ne.s32.totalorder %s399, %s400
    %p409 = scmp.eq.s32.totalorder %s32, 0
    %p410 = por %p408, %p409
    %p411 = scmp.ne.s32.totalorder %s399, %s400
    %p412 = scmp.eq.s32.totalorder %s33, 1
    %p413 = por %p411, %p412
    %p415 = scmp.ne.s32.totalorder %s400, %s414
    %p416 = scmp.eq.s32.totalorder %s33, 0
    %p417 = por %p415, %p416
    %s419 = sadd.s32 %s418, 1
    %p422 = scmp.eq.s32.totalorder %s27, 1
    %p423 = scmp.ne.s32.totalorder %s418, %s420
    %p424 = scmp.eq.s32.totalorder %s27, 0
    %p425 = por %p423, %p424
    %p426 = scmp.ne.s32.totalorder %s418, %s420
    %p427 = scmp.eq.s32.totalorder %s32, 1
    %p428 = por %p426, %p427
    %p429 = scmp.ne.s32.totalorder %s420, %s421
    %p430 = scmp.eq.s32.totalorder %s32, 0
    %p431 = por %p429, %p430
    %p432 = scmp.ne.s32.totalorder %s420, %s421
    %p433 = scmp.eq.s32.totalorder %s33, 1
    %p434 = por %p432, %p433
    %p436 = scmp.ne.s32.totalorder %s421, %s435
    %p437 = scmp.eq.s32.totalorder %s33, 0
    %p438 = por %p436, %p437
    %s440 = sadd.s32 %s439, 1
    %p443 = scmp.eq.s32.totalorder %s27, 1
    %p444 = scmp.ne.s32.totalorder %s439, %s441
    %p445 = scmp.eq.s32.totalorder %s27, 0
    %p446 = por %p444, %p445
    %p447 = scmp.ne.s32.totalorder %s439, %s441
    %p448 = scmp.eq.s32.totalorder %s32, 1
    %p449 = por %p447, %p448
    %p450 = scmp.ne.s32.totalorder %s441, %s442
    %p451 = scmp.eq.s32.totalorder %s32, 0
    %p452 = por %p450, %p451
    %p453 = scmp.ne.s32.totalorder %s441, %s442
    %p454 = scmp.eq.s32.totalorder %s33, 1
    %p455 = por %p453, %p454
    %p457 = scmp.ne.s32.totalorder %s442, %s456
    %p458 = scmp.eq.s32.totalorder %s33, 0
    %p459 = por %p457, %p458
    %s461 = sadd.s32 %s460, 1
    %p464 = scmp.eq.s32.totalorder %s27, 1
    %p465 = scmp.ne.s32.totalorder %s460, %s462
    %p466 = scmp.eq.s32.totalorder %s27, 0
    %p467 = por %p465, %p466
    %p468 = scmp.ne.s32.totalorder %s460, %s462
    %p469 = scmp.eq.s32.totalorder %s32, 1
    %p470 = por %p468, %p469
    %p471 = scmp.ne.s32.totalorder %s462, %s463
    %p472 = scmp.eq.s32.totalorder %s32, 0
    %p473 = por %p471, %p472
    %p474 = scmp.ne.s32.totalorder %s462, %s463
    %p475 = scmp.eq.s32.totalorder %s33, 1
    %p476 = por %p474, %p475
    %p478 = scmp.ne.s32.totalorder %s463, %s477
    %p479 = scmp.eq.s32.totalorder %s33, 0
    %p480 = por %p478, %p479
    %s481 = ssub.s32 %s27, %s34
    %p482 = scmp.eq.s32.totalorder %s481, 0
    %s484 = sadd.s32 %s483, 1
    %s485 = scalar_select %p482, %s483, %s484
    %p488 = pneg %p482
    %p489 = scmp.eq.s32.totalorder %s27, 1
    %p490 = por %p488, %p489
    %p491 = scmp.ne.s32.totalorder %s483, %s486
    %p492 = scmp.eq.s32.totalorder %s27, 0
    %p493 = por %p491, %p492
    %p494 = scmp.ne.s32.totalorder %s483, %s486
    %p495 = scmp.eq.s32.totalorder %s32, 1
    %p496 = por %p494, %p495
    %p497 = scmp.ne.s32.totalorder %s486, %s487
    %p498 = scmp.eq.s32.totalorder %s32, 0
    %p499 = por %p497, %p498
    %p500 = scmp.ne.s32.totalorder %s486, %s487
    %p501 = scmp.eq.s32.totalorder %s33, 1
    %p502 = por %p500, %p501
    %p504 = scmp.ne.s32.totalorder %s487, %s503
    %p505 = scmp.eq.s32.totalorder %s33, 0
    %p506 = por %p504, %p505
    %p507 = scmp.le.s32.totalorder 1, %s27
    %p508 = scmp.lt.s32.totalorder %s27, 3
    %p509 = pnand %p507, %p508
    %p510 = pneg %p509
    // Predicated region
    $region9: #{lilac_forward.1} parent=5 // pred_check
      _
    $region10: #{lilac_forward.1} parent=5 // pred_check_branch
      %512 = sbr.rel (%p509) target = $region12
    $region11: #{lilac_forward.1} parent=5 // pred_region
      %s513 = ssub.s32 %s27, 1
      // Predicated region
      $region13: #{lilac_forward.1} parent=11 // pred_check
        %p514 = pneg %p74
      $region14: #{lilac_forward.1} parent=11 // pred_check_branch
        %516 = sbr.rel (%p514) target = $region16
      $region15: #{lilac_forward.1} parent=11 // pred_region
        _
      $region16: #{lilac_forward.1} parent=11 // pred_fallthru
        _
      // Predicated region
      $region17: #{lilac_forward.1} parent=11 // pred_check
        %p517 = pneg %p95
      $region18: #{lilac_forward.1} parent=11 // pred_check_branch
        %519 = sbr.rel (%p517) target = $region20
      $region19: #{lilac_forward.1} parent=11 // pred_region
        _
      $region20: #{lilac_forward.1} parent=11 // pred_fallthru
        _
      // Predicated region
      $region21: #{lilac_forward.1} parent=11 // pred_check
        %p520 = pneg %p116
      $region22: #{lilac_forward.1} parent=11 // pred_check_branch
        %522 = sbr.rel (%p520) target = $region24
      $region23: #{lilac_forward.1} parent=11 // pred_region
        _
      $region24: #{lilac_forward.1} parent=11 // pred_fallthru
        _
      // Predicated region
      $region25: #{lilac_forward.1} parent=11 // pred_check
        %p523 = pneg %p137
      $region26: #{lilac_forward.1} parent=11 // pred_check_branch
        %525 = sbr.rel (%p523) target = $region28
      $region27: #{lilac_forward.1} parent=11 // pred_region
        _
      $region28: #{lilac_forward.1} parent=11 // pred_fallthru
        _
      // Predicated region
      $region29: #{lilac_forward.1} parent=11 // pred_check
        %p526 = pneg %p158
      $region30: #{lilac_forward.1} parent=11 // pred_check_branch
        %528 = sbr.rel (%p526) target = $region32
      $region31: #{lilac_forward.1} parent=11 // pred_region
        _
      $region32: #{lilac_forward.1} parent=11 // pred_fallthru
        _
      // Predicated region
      $region33: #{lilac_forward.1} parent=11 // pred_check
        %p529 = pneg %p179
      $region34: #{lilac_forward.1} parent=11 // pred_check_branch
        %531 = sbr.rel (%p529) target = $region36
      $region35: #{lilac_forward.1} parent=11 // pred_region
        _
      $region36: #{lilac_forward.1} parent=11 // pred_fallthru
        _
      // Predicated region
      $region37: #{lilac_forward.1} parent=11 // pred_check
        %p532 = pneg %p200
      $region38: #{lilac_forward.1} parent=11 // pred_check_branch
        %534 = sbr.rel (%p532) target = $region40
      $region39: #{lilac_forward.1} parent=11 // pred_region
        _
      $region40: #{lilac_forward.1} parent=11 // pred_fallthru
        _
      // Predicated region
      $region41: #{lilac_forward.1} parent=11 // pred_check
        %p535 = pneg %p221
      $region42: #{lilac_forward.1} parent=11 // pred_check_branch
        %537 = sbr.rel (%p535) target = $region44
      $region43: #{lilac_forward.1} parent=11 // pred_region
        _
      $region44: #{lilac_forward.1} parent=11 // pred_fallthru
        _
      // Predicated region
      $region45: #{lilac_forward.1} parent=11 // pred_check
        %p538 = pneg %p242
      $region46: #{lilac_forward.1} parent=11 // pred_check_branch
        %540 = sbr.rel (%p538) target = $region48
      $region47: #{lilac_forward.1} parent=11 // pred_region
        _
      $region48: #{lilac_forward.1} parent=11 // pred_fallthru
        _
      // Predicated region
      $region49: #{lilac_forward.1} parent=11 // pred_check
        %p541 = pneg %p263
      $region50: #{lilac_forward.1} parent=11 // pred_check_branch
        %543 = sbr.rel (%p541) target = $region52
      $region51: #{lilac_forward.1} parent=11 // pred_region
        _
      $region52: #{lilac_forward.1} parent=11 // pred_fallthru
        _
      // Predicated region
      $region53: #{lilac_forward.1} parent=11 // pred_check
        %p544 = pneg %p284
      $region54: #{lilac_forward.1} parent=11 // pred_check_branch
        %546 = sbr.rel (%p544) target = $region56
      $region55: #{lilac_forward.1} parent=11 // pred_region
        _
      $region56: #{lilac_forward.1} parent=11 // pred_fallthru
        _
      // Predicated region
      $region57: #{lilac_forward.1} parent=11 // pred_check
        %p547 = pneg %p305
      $region58: #{lilac_forward.1} parent=11 // pred_check_branch
        %549 = sbr.rel (%p547) target = $region60
      $region59: #{lilac_forward.1} parent=11 // pred_region
        _
      $region60: #{lilac_forward.1} parent=11 // pred_fallthru
        _
      // Predicated region
      $region61: #{lilac_forward.1} parent=11 // pred_check
        %p550 = pneg %p326
      $region62: #{lilac_forward.1} parent=11 // pred_check_branch
        %552 = sbr.rel (%p550) target = $region64
      $region63: #{lilac_forward.1} parent=11 // pred_region
        _
      $region64: #{lilac_forward.1} parent=11 // pred_fallthru
        _
      // Predicated region
      $region65: #{lilac_forward.1} parent=11 // pred_check
        %p553 = pneg %p347
      $region66: #{lilac_forward.1} parent=11 // pred_check_branch
        %555 = sbr.rel (%p553) target = $region68
      $region67: #{lilac_forward.1} parent=11 // pred_region
        _
      $region68: #{lilac_forward.1} parent=11 // pred_fallthru
        _
      // Predicated region
      $region69: #{lilac_forward.1} parent=11 // pred_check
        %p556 = pneg %p368
      $region70: #{lilac_forward.1} parent=11 // pred_check_branch
        %558 = sbr.rel (%p556) target = $region72
      $region71: #{lilac_forward.1} parent=11 // pred_region
        _
      $region72: #{lilac_forward.1} parent=11 // pred_fallthru
        _
      // Predicated region
      $region73: #{lilac_forward.1} parent=11 // pred_check
        %p559 = pneg %p389
      $region74: #{lilac_forward.1} parent=11 // pred_check_branch
        %561 = sbr.rel (%p559) target = $region76
      $region75: #{lilac_forward.1} parent=11 // pred_region
        _
      $region76: #{lilac_forward.1} parent=11 // pred_fallthru
        _
      // Predicated region
      $region77: #{lilac_forward.1} parent=11 // pred_check
        %p562 = pneg %p410
      $region78: #{lilac_forward.1} parent=11 // pred_check_branch
        %564 = sbr.rel (%p562) target = $region80
      $region79: #{lilac_forward.1} parent=11 // pred_region
        _
      $region80: #{lilac_forward.1} parent=11 // pred_fallthru
        _
      // Predicated region
      $region81: #{lilac_forward.1} parent=11 // pred_check
        %p565 = pneg %p431
      $region82: #{lilac_forward.1} parent=11 // pred_check_branch
        %567 = sbr.rel (%p565) target = $region84
      $region83: #{lilac_forward.1} parent=11 // pred_region
        _
      $region84: #{lilac_forward.1} parent=11 // pred_fallthru
        _
      // Predicated region
      $region85: #{lilac_forward.1} parent=11 // pred_check
        %p568 = pneg %p452
      $region86: #{lilac_forward.1} parent=11 // pred_check_branch
        %570 = sbr.rel (%p568) target = $region88
      $region87: #{lilac_forward.1} parent=11 // pred_region
        _
      $region88: #{lilac_forward.1} parent=11 // pred_fallthru
        _
      // Predicated region
      $region89: #{lilac_forward.1} parent=11 // pred_check
        %p571 = pneg %p473
      $region90: #{lilac_forward.1} parent=11 // pred_check_branch
        %573 = sbr.rel (%p571) target = $region92
      $region91: #{lilac_forward.1} parent=11 // pred_region
        _
      $region92: #{lilac_forward.1} parent=11 // pred_fallthru
        _
    $region12: #{lilac_forward.1} parent=5 // pred_fallthru
      _
    %p574 = scmp.lt.s32.totalorder %s27, 2
    // Predicated region
    $region93: #{lilac_forward.1} parent=5 // pred_check
      %p575 = pneg %p574
    $region94: #{lilac_forward.1} parent=5 // pred_check_branch
      %577 = sbr.rel (%p575) target = $region96
    $region95: #{lilac_forward.1} parent=5 // pred_region
      // Predicated region
      $region97: #{lilac_forward.1} parent=95 // pred_check
        %p578 = pneg %p47
      $region98: #{lilac_forward.1} parent=95 // pred_check_branch
        %580 = sbr.rel (%p578) target = $region100
      $region99: #{lilac_forward.1} parent=95 // pred_region
        %p581 = scmp.lt.s32.totalorder %s27, 1
        %s582 = scalar_select %p581, %s27, 1
        %s583 = smul.addr %s582, 64
        %s584 = smul.addr %s583, 8
        %s585 = scalar_lea.vmem %s0, %s584
      $region100: #{lilac_forward.1} parent=95 // pred_fallthru
        _
    $region96: #{lilac_forward.1} parent=5 // pred_fallthru
      _
    %p586 = scmp.le.s32.totalorder 1, %s27
    %p587 = scmp.lt.s32.totalorder %s27, 3
    %p588 = pnand %p586, %p587
    %p589 = pneg %p588
    // Predicated region
    $region101: #{lilac_forward.1} parent=5 // pred_check
      _
    $region102: #{lilac_forward.1} parent=5 // pred_check_branch
      %591 = sbr.rel (%p588) target = $region104
    $region103: #{lilac_forward.1} parent=5 // pred_region
      %s592 = ssub.s32 %s27, 1
      %p593 = scmp.lt.s32.totalorder %s32, 1
      %s594 = scalar_select %p593, %s32, 1
      %s595 = smul.addr %s594, 64
      %s596 = smul.addr %s595, 8
      %s597 = scalar_lea.vmem %s0, %s596
      %p598 = pneg %p53
      %p599 = pneg %p50
      %p600 = pneg %p74
      %p601 = pneg %p71
      %p602 = pneg %p95
      %p603 = pneg %p92
      %p604 = pneg %p116
      %p605 = pneg %p113
      %p606 = pneg %p137
      %p607 = pneg %p134
      %p608 = pneg %p158
      %p609 = pneg %p155
      %p610 = pneg %p179
      %p611 = pneg %p176
      %p612 = pneg %p200
      %p613 = pneg %p197
      %p614 = pneg %p221
      %p615 = pneg %p218
      %p616 = pneg %p242
      %p617 = pneg %p239
      %p618 = pneg %p263
      %p619 = pneg %p260
      %p620 = pneg %p284
      %p621 = pneg %p281
      %p622 = pneg %p305
      %p623 = pneg %p302
      %p624 = pneg %p326
      %p625 = pneg %p323
      %p626 = pneg %p347
      %p627 = pneg %p344
      %p628 = pneg %p368
      %p629 = pneg %p365
      %p630 = pneg %p389
      %p631 = pneg %p386
      %p632 = pneg %p410
      %p633 = pneg %p407
      %p634 = pneg %p431
      %p635 = pneg %p428
      %p636 = pneg %p452
      %p637 = pneg %p449
      %p638 = pneg %p473
      %p639 = pneg %p470
      %p640 = pneg %p499
      %p641 = pneg %p496
      %p642 = scmp.lt.s32.totalorder %s32, 1
      %s643 = scalar_select %p642, %s32, 1
      %s644 = smul.addr %s643, 2
      %s645 = scalar_lea.vmem %s21, %s644
      %p646 = scmp.lt.s32.totalorder %s32, 1
      %s647 = scalar_select %p646, %s32, 1
      %s648 = smul.addr %s647, 64
      %s649 = smul.addr %s648, 8
      %s650 = scalar_lea.vmem %s0, %s649
      %p651 = scmp.lt.s32.totalorder %s32, 1
      %s652 = scalar_select %p651, %s32, 1
      %s653 = smul.addr %s652, 2
      %s654 = scalar_lea.vmem %s21, %s653
      %v655 = vld [vmem:[%s650] sm:$0xff]
      %v656 = vld [vmem:[%s650 + $0x8] sm:$0xff]
      %v657 = vld [vmem:[%s650 + $0x10] sm:$0xff]
      %v658 = vld [vmem:[%s650 + $0x18] sm:$0xff]
      %v659 = vld [vmem:[%s650 + $0x20] sm:$0xff]
      %v660 = vld [vmem:[%s650 + $0x28] sm:$0xff]
      %v661 = vld [vmem:[%s650 + $0x30] sm:$0xff]
      %v662 = vld [vmem:[%s650 + $0x38] sm:$0xff]
      %v663 = vld [vmem:[%s650 + $0x40] sm:$0xff]
      %v664 = vld [vmem:[%s650 + $0x48] sm:$0xff]
      %v665 = vld [vmem:[%s650 + $0x50] sm:$0xff]
      %v666 = vld [vmem:[%s650 + $0x58] sm:$0xff]
      %v667 = vld [vmem:[%s650 + $0x60] sm:$0xff]
      %v668 = vld [vmem:[%s650 + $0x68] sm:$0xff]
      %v669 = vld [vmem:[%s650 + $0x70] sm:$0xff]
      %v670 = vld [vmem:[%s650 + $0x78] sm:$0xff]
      %v671 = vld [vmem:[%s650 + $0x80] sm:$0xff]
      %v672 = vld [vmem:[%s650 + $0x88] sm:$0xff]
      %v673 = vld [vmem:[%s650 + $0x90] sm:$0xff]
      %v674 = vld [vmem:[%s650 + $0x98] sm:$0xff]
      %v675 = vld [vmem:[%s650 + $0xa0] sm:$0xff]
      %v676 = vld [vmem:[%s650 + $0xa8] sm:$0xff]
      %v677 = vld [vmem:[%s650 + $0xb0] sm:$0xff]
      %v678 = vld [vmem:[%s650 + $0xb8] sm:$0xff]
      %v679 = vld [vmem:[%s650 + $0xc0] sm:$0xff]
      %v680 = vld [vmem:[%s650 + $0xc8] sm:$0xff]
      %v681 = vld [vmem:[%s650 + $0xd0] sm:$0xff]
      %v682 = vld [vmem:[%s650 + $0xd8] sm:$0xff]
      %v683 = vld [vmem:[%s650 + $0xe0] sm:$0xff]
      %v684 = vld [vmem:[%s650 + $0xe8] sm:$0xff]
      %v685 = vld [vmem:[%s650 + $0xf0] sm:$0xff]
      %v686 = vld [vmem:[%s650 + $0xf8] sm:$0xff]
      %v687 = vld [vmem:[%s650 + $0x100] sm:$0xff]
      %v688 = vld [vmem:[%s650 + $0x108] sm:$0xff]
      %v689 = vld [vmem:[%s650 + $0x110] sm:$0xff]
      %v690 = vld [vmem:[%s650 + $0x118] sm:$0xff]
      %v691 = vld [vmem:[%s650 + $0x120] sm:$0xff]
      %v692 = vld [vmem:[%s650 + $0x128] sm:$0xff]
      %v693 = vld [vmem:[%s650 + $0x130] sm:$0xff]
      %v694 = vld [vmem:[%s650 + $0x138] sm:$0xff]
      %v695 = vld [vmem:[%s650 + $0x140] sm:$0xff]
      %v696 = vld [vmem:[%s650 + $0x148] sm:$0xff]
      %v697 = vld [vmem:[%s650 + $0x150] sm:$0xff]
      %v698 = vld [vmem:[%s650 + $0x158] sm:$0xff]
      %v699 = vld [vmem:[%s650 + $0x160] sm:$0xff]
      %v700 = vld [vmem:[%s650 + $0x168] sm:$0xff]
      %v701 = vld [vmem:[%s650 + $0x170] sm:$0xff]
      %v702 = vld [vmem:[%s650 + $0x178] sm:$0xff]
      %v703 = vld [vmem:[%s650 + $0x180] sm:$0xff]
      %v704 = vld [vmem:[%s650 + $0x188] sm:$0xff]
      %v705 = vld [vmem:[%s650 + $0x190] sm:$0xff]
      %v706 = vld [vmem:[%s650 + $0x198] sm:$0xff]
      %v707 = vld [vmem:[%s650 + $0x1a0] sm:$0xff]
      %v708 = vld [vmem:[%s650 + $0x1a8] sm:$0xff]
      %v709 = vld [vmem:[%s650 + $0x1b0] sm:$0xff]
      %v710 = vld [vmem:[%s650 + $0x1b8] sm:$0xff]
      %v711 = vld [vmem:[%s650 + $0x1c0] sm:$0xff]
      %v712 = vld [vmem:[%s650 + $0x1c8] sm:$0xff]
      %v713 = vld [vmem:[%s650 + $0x1d0] sm:$0xff]
      %v714 = vld [vmem:[%s650 + $0x1d8] sm:$0xff]
      %v715 = vld [vmem:[%s650 + $0x1e0] sm:$0xff]
      %v716 = vld [vmem:[%s650 + $0x1e8] sm:$0xff]
      %v717 = vld [vmem:[%s650 + $0x1f0] sm:$0xff]
      %v718 = vld [vmem:[%s650 + $0x1f8] sm:$0xff]
      %vm719 = vcmask 130048
      %720 = vst.msk [vmem:[#allocation2] sm:$0xff] %vm719, 0.0
      %721 = vst.msk [vmem:[#allocation2 + $0x8] sm:$0xff] %vm719, 0.0
      %vm722 = vcmask 123904
      %723 = vst.msk [vmem:[#allocation2 + $0x10] sm:$0x3] %vm722, 0.0
      %724 = vst.msk [vmem:[#allocation2 + $0x1b0] sm:$0xff] %vm719, 0.0
      %725 = vst.msk [vmem:[#allocation2 + $0x1b8] sm:$0xff] %vm719, 0.0
      %726 = vst.msk [vmem:[#allocation2 + $0x1c0] sm:$0x3] %vm722, 0.0
      %s727 = scalar_lea.vmem [#allocation2], 408
      %728 = vst.msk [vmem:[%s727] sm:$0xff] %vm719, 0.0
      %729 = vst.msk [vmem:[%s727 + $0x8] sm:$0xff] %vm719, 0.0
      %730 = vst.msk [vmem:[%s727 + $0x10] sm:$0x3] %vm722, 0.0
      %731 = vst.msk [vmem:[%s727 + $0x1b0] sm:$0xff] %vm719, 0.0
      %732 = vst.msk [vmem:[%s727 + $0x1b8] sm:$0xff] %vm719, 0.0
      %733 = vst.msk [vmem:[%s727 + $0x1c0] sm:$0x3] %vm722, 0.0
      %s734 = scalar_lea.vmem [#allocation2], 24
      %vm735 = vcmask 122880
      %736 = vst.msk [vmem:[%s734] sm:$0x1] %vm735, 0.0
      %737 = vst.msk [vmem:[%s734 + $0x18] sm:$0x1] %vm735, 0.0
      %738 = vst.msk [vmem:[%s734 + $0x30] sm:$0x1] %vm735, 0.0
      %739 = vst.msk [vmem:[%s734 + $0x48] sm:$0x1] %vm735, 0.0
      %740 = vst.msk [vmem:[%s734 + $0x60] sm:$0x1] %vm735, 0.0
      %741 = vst.msk [vmem:[%s734 + $0x78] sm:$0x1] %vm735, 0.0
      %742 = vst.msk [vmem:[%s734 + $0x90] sm:$0x1] %vm735, 0.0
      %743 = vst.msk [vmem:[%s734 + $0xa8] sm:$0x1] %vm735, 0.0
      %744 = vst.msk [vmem:[%s734 + $0xc0] sm:$0x1] %vm735, 0.0
      %745 = vst.msk [vmem:[%s734 + $0xd8] sm:$0x1] %vm735, 0.0
      %746 = vst.msk [vmem:[%s734 + $0xf0] sm:$0x1] %vm735, 0.0
      %747 = vst.msk [vmem:[%s734 + $0x108] sm:$0x1] %vm735, 0.0
      %748 = vst.msk [vmem:[%s734 + $0x120] sm:$0x1] %vm735, 0.0
      %749 = vst.msk [vmem:[%s734 + $0x138] sm:$0x1] %vm735, 0.0
      %750 = vst.msk [vmem:[%s734 + $0x150] sm:$0x1] %vm735, 0.0
      %751 = vst.msk [vmem:[%s734 + $0x168] sm:$0x1] %vm735, 0.0
      %752 = vst.msk [vmem:[%s734 + $0x1b0] sm:$0x1] %vm735, 0.0
      %753 = vst.msk [vmem:[%s734 + $0x1c8] sm:$0x1] %vm735, 0.0
      %754 = vst.msk [vmem:[%s734 + $0x1e0] sm:$0x1] %vm735, 0.0
      %755 = vst.msk [vmem:[%s734 + $0x1f8] sm:$0x1] %vm735, 0.0
      %756 = vst.msk [vmem:[%s734 + $0x210] sm:$0x1] %vm735, 0.0
      %757 = vst.msk [vmem:[%s734 + $0x228] sm:$0x1] %vm735, 0.0
      %758 = vst.msk [vmem:[%s734 + $0x240] sm:$0x1] %vm735, 0.0
      %759 = vst.msk [vmem:[%s734 + $0x258] sm:$0x1] %vm735, 0.0
      %760 = vst.msk [vmem:[%s734 + $0x270] sm:$0x1] %vm735, 0.0
      %761 = vst.msk [vmem:[%s734 + $0x288] sm:$0x1] %vm735, 0.0
      %762 = vst.msk [vmem:[%s734 + $0x2a0] sm:$0x1] %vm735, 0.0
      %763 = vst.msk [vmem:[%s734 + $0x2b8] sm:$0x1] %vm735, 0.0
      %764 = vst.msk [vmem:[%s734 + $0x2d0] sm:$0x1] %vm735, 0.0
      %765 = vst.msk [vmem:[%s734 + $0x2e8] sm:$0x1] %vm735, 0.0
      %766 = vst.msk [vmem:[%s734 + $0x300] sm:$0x1] %vm735, 0.0
      %767 = vst.msk [vmem:[%s734 + $0x318] sm:$0x1] %vm735, 0.0
      %768 = vst.msk [vmem:[%s734 + $0x11] sm:$0x1] %vm735, 0.0
      %769 = vst.msk [vmem:[%s734 + $0x29] sm:$0x1] %vm735, 0.0
      %770 = vst.msk [vmem:[%s734 + $0x41] sm:$0x1] %vm735, 0.0
      %771 = vst.msk [vmem:[%s734 + $0x59] sm:$0x1] %vm735, 0.0
      %772 = vst.msk [vmem:[%s734 + $0x71] sm:$0x1] %vm735, 0.0
      %773 = vst.msk [vmem:[%s734 + $0x89] sm:$0x1] %vm735, 0.0
      %774 = vst.msk [vmem:[%s734 + $0xa1] sm:$0x1] %vm735, 0.0
      %775 = vst.msk [vmem:[%s734 + $0xb9] sm:$0x1] %vm735, 0.0
      %776 = vst.msk [vmem:[%s734 + $0xd1] sm:$0x1] %vm735, 0.0
      %777 = vst.msk [vmem:[%s734 + $0xe9] sm:$0x1] %vm735, 0.0
      %778 = vst.msk [vmem:[%s734 + $0x101] sm:$0x1] %vm735, 0.0
      %779 = vst.msk [vmem:[%s734 + $0x119] sm:$0x1] %vm735, 0.0
      %780 = vst.msk [vmem:[%s734 + $0x131] sm:$0x1] %vm735, 0.0
      %781 = vst.msk [vmem:[%s734 + $0x149] sm:$0x1] %vm735, 0.0
      %782 = vst.msk [vmem:[%s734 + $0x161] sm:$0x1] %vm735, 0.0
      %783 = vst.msk [vmem:[%s734 + $0x179] sm:$0x1] %vm735, 0.0
      %784 = vst.msk [vmem:[%s734 + $0x1c1] sm:$0x1] %vm735, 0.0
      %785 = vst.msk [vmem:[%s734 + $0x1d9] sm:$0x1] %vm735, 0.0
      %786 = vst.msk [vmem:[%s734 + $0x1f1] sm:$0x1] %vm735, 0.0
      %787 = vst.msk [vmem:[%s734 + $0x209] sm:$0x1] %vm735, 0.0
      %788 = vst.msk [vmem:[%s734 + $0x221] sm:$0x1] %vm735, 0.0
      %789 = vst.msk [vmem:[%s734 + $0x239] sm:$0x1] %vm735, 0.0
      %790 = vst.msk [vmem:[%s734 + $0x251] sm:$0x1] %vm735, 0.0
      %791 = vst.msk [vmem:[%s734 + $0x269] sm:$0x1] %vm735, 0.0
      %792 = vst.msk [vmem:[%s734 + $0x281] sm:$0x1] %vm735, 0.0
      %793 = vst.msk [vmem:[%s734 + $0x299] sm:$0x1] %vm735, 0.0
      %794 = vst.msk [vmem:[%s734 + $0x2b1] sm:$0x1] %vm735, 0.0
      %795 = vst.msk [vmem:[%s734 + $0x2c9] sm:$0x1] %vm735, 0.0
      %796 = vst.msk [vmem:[%s734 + $0x2e1] sm:$0x1] %vm735, 0.0
      %797 = vst.msk [vmem:[%s734 + $0x2f9] sm:$0x1] %vm735, 0.0
      %798 = vst.msk [vmem:[%s734 + $0x311] sm:$0x1] %vm735, 0.0
      %799 = vst.msk [vmem:[%s734 + $0x329] sm:$0x1] %vm735, 0.0
      %800 = vst.msk [vmem:[%s734 + $0x1] sm:$0xff] %vm719, %v655
      %801 = vst.msk [vmem:[%s734 + $0x9] sm:$0xff] %vm719, %v656
      %802 = vst.msk [vmem:[%s734 + $0x19] sm:$0xff] %vm719, %v657
      %803 = vst.msk [vmem:[%s734 + $0x21] sm:$0xff] %vm719, %v658
      %804 = vst.msk [vmem:[%s734 + $0x31] sm:$0xff] %vm719, %v659
      %805 = vst.msk [vmem:[%s734 + $0x39] sm:$0xff] %vm719, %v660
      %806 = vst.msk [vmem:[%s734 + $0x49] sm:$0xff] %vm719, %v661
      %807 = vst.msk [vmem:[%s734 + $0x51] sm:$0xff] %vm719, %v662
      %808 = vst.msk [vmem:[%s734 + $0x61] sm:$0xff] %vm719, %v663
      %809 = vst.msk [vmem:[%s734 + $0x69] sm:$0xff] %vm719, %v664
      %810 = vst.msk [vmem:[%s734 + $0x79] sm:$0xff] %vm719, %v665
      %811 = vst.msk [vmem:[%s734 + $0x81] sm:$0xff] %vm719, %v666
      %812 = vst.msk [vmem:[%s734 + $0x91] sm:$0xff] %vm719, %v667
      %813 = vst.msk [vmem:[%s734 + $0x99] sm:$0xff] %vm719, %v668
      %814 = vst.msk [vmem:[%s734 + $0xa9] sm:$0xff] %vm719, %v669
      %815 = vst.msk [vmem:[%s734 + $0xb1] sm:$0xff] %vm719, %v670
      %816 = vst.msk [vmem:[%s734 + $0xc1] sm:$0xff] %vm719, %v671
      %817 = vst.msk [vmem:[%s734 + $0xc9] sm:$0xff] %vm719, %v672
      %818 = vst.msk [vmem:[%s734 + $0xd9] sm:$0xff] %vm719, %v673
      %819 = vst.msk [vmem:[%s734 + $0xe1] sm:$0xff] %vm719, %v674
      %820 = vst.msk [vmem:[%s734 + $0xf1] sm:$0xff] %vm719, %v675
      %821 = vst.msk [vmem:[%s734 + $0xf9] sm:$0xff] %vm719, %v676
      %822 = vst.msk [vmem:[%s734 + $0x109] sm:$0xff] %vm719, %v677
      %823 = vst.msk [vmem:[%s734 + $0x111] sm:$0xff] %vm719, %v678
      %824 = vst.msk [vmem:[%s734 + $0x121] sm:$0xff] %vm719, %v679
      %825 = vst.msk [vmem:[%s734 + $0x129] sm:$0xff] %vm719, %v680
      %826 = vst.msk [vmem:[%s734 + $0x139] sm:$0xff] %vm719, %v681
      %827 = vst.msk [vmem:[%s734 + $0x141] sm:$0xff] %vm719, %v682
      %828 = vst.msk [vmem:[%s734 + $0x151] sm:$0xff] %vm719, %v683
      %829 = vst.msk [vmem:[%s734 + $0x159] sm:$0xff] %vm719, %v684
      %830 = vst.msk [vmem:[%s734 + $0x169] sm:$0xff] %vm719, %v685
      %831 = vst.msk [vmem:[%s734 + $0x171] sm:$0xff] %vm719, %v686
      %832 = vst.msk [vmem:[%s734 + $0x1b1] sm:$0xff] %vm719, %v687
      %833 = vst.msk [vmem:[%s734 + $0x1b9] sm:$0xff] %vm719, %v688
      %834 = vst.msk [vmem:[%s734 + $0x1c9] sm:$0xff] %vm719, %v689
      %835 = vst.msk [vmem:[%s734 + $0x1d1] sm:$0xff] %vm719, %v690
      %836 = vst.msk [vmem:[%s734 + $0x1e1] sm:$0xff] %vm719, %v691
      %837 = vst.msk [vmem:[%s734 + $0x1e9] sm:$0xff] %vm719, %v692
      %838 = vst.msk [vmem:[%s734 + $0x1f9] sm:$0xff] %vm719, %v693
      %839 = vst.msk [vmem:[%s734 + $0x201] sm:$0xff] %vm719, %v694
      %840 = vst.msk [vmem:[%s734 + $0x211] sm:$0xff] %vm719, %v695
      %841 = vst.msk [vmem:[%s734 + $0x219] sm:$0xff] %vm719, %v696
      %842 = vst.msk [vmem:[%s734 + $0x229] sm:$0xff] %vm719, %v697
      %843 = vst.msk [vmem:[%s734 + $0x231] sm:$0xff] %vm719, %v698
      %844 = vst.msk [vmem:[%s734 + $0x241] sm:$0xff] %vm719, %v699
      %845 = vst.msk [vmem:[%s734 + $0x249] sm:$0xff] %vm719, %v700
      %846 = vst.msk [vmem:[%s734 + $0x259] sm:$0xff] %vm719, %v701
      %847 = vst.msk [vmem:[%s734 + $0x261] sm:$0xff] %vm719, %v702
      %848 = vst.msk [vmem:[%s734 + $0x271] sm:$0xff] %vm719, %v703
      %849 = vst.msk [vmem:[%s734 + $0x279] sm:$0xff] %vm719, %v704
      %850 = vst.msk [vmem:[%s734 + $0x289] sm:$0xff] %vm719, %v705
      %851 = vst.msk [vmem:[%s734 + $0x291] sm:$0xff] %vm719, %v706
      %852 = vst.msk [vmem:[%s734 + $0x2a1] sm:$0xff] %vm719, %v707
      %853 = vst.msk [vmem:[%s734 + $0x2a9] sm:$0xff] %vm719, %v708
      %854 = vst.msk [vmem:[%s734 + $0x2b9] sm:$0xff] %vm719, %v709
      %855 = vst.msk [vmem:[%s734 + $0x2c1] sm:$0xff] %vm719, %v710
      %856 = vst.msk [vmem:[%s734 + $0x2d1] sm:$0xff] %vm719, %v711
      %857 = vst.msk [vmem:[%s734 + $0x2d9] sm:$0xff] %vm719, %v712
      %858 = vst.msk [vmem:[%s734 + $0x2e9] sm:$0xff] %vm719, %v713
      %859 = vst.msk [vmem:[%s734 + $0x2f1] sm:$0xff] %vm719, %v714
      %860 = vst.msk [vmem:[%s734 + $0x301] sm:$0xff] %vm719, %v715
      %861 = vst.msk [vmem:[%s734 + $0x309] sm:$0xff] %vm719, %v716
      %862 = vst.msk [vmem:[%s734 + $0x319] sm:$0xff] %vm719, %v717
      %863 = vst.msk [vmem:[%s734 + $0x321] sm:$0xff] %vm719, %v718
      %v864 = vld [vmem:[#allocation2] sm:$0xff]
      %v865 = vld [vmem:[#allocation2 + $0x8] sm:$0xff]
      %v866 = vld [vmem:[#allocation2 + $0x18] sm:$0xff]
      %v867 = vld [vmem:[#allocation2 + $0x20] sm:$0xff]
      %v868 = vld [vmem:[#allocation2 + $0x30] sm:$0xff]
      %v869 = vld [vmem:[#allocation2 + $0x38] sm:$0xff]
      %v870 = vld [vmem:[#allocation2 + $0x48] sm:$0xff]
      %v871 = vld [vmem:[#allocation2 + $0x50] sm:$0xff]
      %v872 = vld [vmem:[#allocation2 + $0x60] sm:$0xff]
      %v873 = vld [vmem:[#allocation2 + $0x68] sm:$0xff]
      %v874 = vld [vmem:[#allocation2 + $0x78] sm:$0xff]
      %v875 = vld [vmem:[#allocation2 + $0x80] sm:$0xff]
      %v876 = vld [vmem:[#allocation2 + $0x90] sm:$0xff]
      %v877 = vld [vmem:[#allocation2 + $0x98] sm:$0xff]
      %v878 = vld [vmem:[#allocation2 + $0xa8] sm:$0xff]
      %v879 = vld [vmem:[#allocation2 + $0xb0] sm:$0xff]
      %v880 = vld [vmem:[#allocation2 + $0xc0] sm:$0xff]
      %v881 = vld [vmem:[#allocation2 + $0xc8] sm:$0xff]
      %v882 = vld [vmem:[#allocation2 + $0xd8] sm:$0xff]
      %v883 = vld [vmem:[#allocation2 + $0xe0] sm:$0xff]
      %v884 = vld [vmem:[#allocation2 + $0xf0] sm:$0xff]
      %v885 = vld [vmem:[#allocation2 + $0xf8] sm:$0xff]
      %v886 = vld [vmem:[#allocation2 + $0x108] sm:$0xff]
      %v887 = vld [vmem:[#allocation2 + $0x110] sm:$0xff]
      %v888 = vld [vmem:[#allocation2 + $0x120] sm:$0xff]
      %v889 = vld [vmem:[#allocation2 + $0x128] sm:$0xff]
      %v890 = vld [vmem:[#allocation2 + $0x138] sm:$0xff]
      %v891 = vld [vmem:[#allocation2 + $0x140] sm:$0xff]
      %v892 = vld [vmem:[#allocation2 + $0x150] sm:$0xff]
      %v893 = vld [vmem:[#allocation2 + $0x158] sm:$0xff]
      %v894 = vld [vmem:[#allocation2 + $0x168] sm:$0xff]
      %v895 = vld [vmem:[#allocation2 + $0x170] sm:$0xff]
      %v896 = vld [vmem:[#allocation2 + $0x1b0] sm:$0xff]
      %v897 = vld [vmem:[#allocation2 + $0x1b8] sm:$0xff]
      %v898 = vld [vmem:[#allocation2 + $0x1c8] sm:$0xff]
      %v899 = vld [vmem:[#allocation2 + $0x1d0] sm:$0xff]
      %v900 = vld [vmem:[#allocation2 + $0x1e0] sm:$0xff]
      %v901 = vld [vmem:[#allocation2 + $0x1e8] sm:$0xff]
      %v902 = vld [vmem:[#allocation2 + $0x1f8] sm:$0xff]
      %v903 = vld [vmem:[#allocation2 + $0x200] sm:$0xff]
      %v904 = vld [vmem:[#allocation2 + $0x210] sm:$0xff]
      %v905 = vld [vmem:[#allocation2 + $0x218] sm:$0xff]
      %v906 = vld [vmem:[#allocation2 + $0x228] sm:$0xff]
      %v907 = vld [vmem:[#allocation2 + $0x230] sm:$0xff]
      %v908 = vld [vmem:[#allocation2 + $0x240] sm:$0xff]
      %v909 = vld [vmem:[#allocation2 + $0x248] sm:$0xff]
      %v910 = vld [vmem:[#allocation2 + $0x258] sm:$0xff]
      %v911 = vld [vmem:[#allocation2 + $0x260] sm:$0xff]
      %v912 = vld [vmem:[#allocation2 + $0x270] sm:$0xff]
      %v913 = vld [vmem:[#allocation2 + $0x278] sm:$0xff]
      %v914 = vld [vmem:[#allocation2 + $0x288] sm:$0xff]
      %v915 = vld [vmem:[#allocation2 + $0x290] sm:$0xff]
      %v916 = vld [vmem:[#allocation2 + $0x2a0] sm:$0xff]
      %v917 = vld [vmem:[#allocation2 + $0x2a8] sm:$0xff]
      %v918 = vld [vmem:[#allocation2 + $0x2b8] sm:$0xff]
      %v919 = vld [vmem:[#allocation2 + $0x2c0] sm:$0xff]
      %v920 = vld [vmem:[#allocation2 + $0x2d0] sm:$0xff]
      %v921 = vld [vmem:[#allocation2 + $0x2d8] sm:$0xff]
      %v922 = vld [vmem:[#allocation2 + $0x2e8] sm:$0xff]
      %v923 = vld [vmem:[#allocation2 + $0x2f0] sm:$0xff]
      %v924 = vld [vmem:[#allocation2 + $0x300] sm:$0xff]
      %v925 = vld [vmem:[#allocation2 + $0x308] sm:$0xff]
      %v926 = vld [vmem:[#allocation2 + $0x318] sm:$0xff]
      %v927 = vld [vmem:[#allocation2 + $0x320] sm:$0xff]
      %v928 = vld [vmem:[#allocation2 + $0x1] sm:$0xff]
      %v929 = vld [vmem:[#allocation2 + $0x9] sm:$0xff]
      %v930 = vld [vmem:[#allocation2 + $0x19] sm:$0xff]
      %v931 = vld [vmem:[#allocation2 + $0x21] sm:$0xff]
      %v932 = vld [vmem:[#allocation2 + $0x31] sm:$0xff]
      %v933 = vld [vmem:[#allocation2 + $0x39] sm:$0xff]
      %v934 = vld [vmem:[#allocation2 + $0x49] sm:$0xff]
      %v935 = vld [vmem:[#allocation2 + $0x51] sm:$0xff]
      %v936 = vld [vmem:[#allocation2 + $0x61] sm:$0xff]
      %v937 = vld [vmem:[#allocation2 + $0x69] sm:$0xff]
      %v938 = vld [vmem:[#allocation2 + $0x79] sm:$0xff]
      %v939 = vld [vmem:[#allocation2 + $0x81] sm:$0xff]
      %v940 = vld [vmem:[#allocation2 + $0x91] sm:$0xff]
      %v941 = vld [vmem:[#allocation2 + $0x99] sm:$0xff]
      %v942 = vld [vmem:[#allocation2 + $0xa9] sm:$0xff]
      %v943 = vld [vmem:[#allocation2 + $0xb1] sm:$0xff]
      %v944 = vld [vmem:[#allocation2 + $0xc1] sm:$0xff]
      %v945 = vld [vmem:[#allocation2 + $0xc9] sm:$0xff]
      %v946 = vld [vmem:[#allocation2 + $0xd9] sm:$0xff]
      %v947 = vld [vmem:[#allocation2 + $0xe1] sm:$0xff]
      %v948 = vld [vmem:[#allocation2 + $0xf1] sm:$0xff]
      %v949 = vld [vmem:[#allocation2 + $0xf9] sm:$0xff]
      %v950 = vld [vmem:[#allocation2 + $0x109] sm:$0xff]
      %v951 = vld [vmem:[#allocation2 + $0x111] sm:$0xff]
      %v952 = vld [vmem:[#allocation2 + $0x121] sm:$0xff]
      %v953 = vld [vmem:[#allocation2 + $0x129] sm:$0xff]
      %v954 = vld [vmem:[#allocation2 + $0x139] sm:$0xff]
      %v955 = vld [vmem:[#allocation2 + $0x141] sm:$0xff]
      %v956 = vld [vmem:[#allocation2 + $0x151] sm:$0xff]
      %v957 = vld [vmem:[#allocation2 + $0x159] sm:$0xff]
      %v958 = vld [vmem:[#allocation2 + $0x169] sm:$0xff]
      %v959 = vld [vmem:[#allocation2 + $0x171] sm:$0xff]
      %v960 = vld [vmem:[#allocation2 + $0x1b1] sm:$0xff]
      %v961 = vld [vmem:[#allocation2 + $0x1b9] sm:$0xff]
      %v962 = vld [vmem:[#allocation2 + $0x1c9] sm:$0xff]
      %v963 = vld [vmem:[#allocation2 + $0x1d1] sm:$0xff]
      %v964 = vld [vmem:[#allocation2 + $0x1e1] sm:$0xff]
      %v965 = vld [vmem:[#allocation2 + $0x1e9] sm:$0xff]
      %v966 = vld [vmem:[#allocation2 + $0x1f9] sm:$0xff]
      %v967 = vld [vmem:[#allocation2 + $0x201] sm:$0xff]
      %v968 = vld [vmem:[#allocation2 + $0x211] sm:$0xff]
      %v969 = vld [vmem:[#allocation2 + $0x219] sm:$0xff]
      %v970 = vld [vmem:[#allocation2 + $0x229] sm:$0xff]
      %v971 = vld [vmem:[#allocation2 + $0x231] sm:$0xff]
      %v972 = vld [vmem:[#allocation2 + $0x241] sm:$0xff]
      %v973 = vld [vmem:[#allocation2 + $0x249] sm:$0xff]
      %v974 = vld [vmem:[#allocation2 + $0x259] sm:$0xff]
      %v975 = vld [vmem:[#allocation2 + $0x261] sm:$0xff]
      %v976 = vld [vmem:[#allocation2 + $0x271] sm:$0xff]
      %v977 = vld [vmem:[#allocation2 + $0x279] sm:$0xff]
      %v978 = vld [vmem:[#allocation2 + $0x289] sm:$0xff]
      %v979 = vld [vmem:[#allocation2 + $0x291] sm:$0xff]
      %v980 = vld [vmem:[#allocation2 + $0x2a1] sm:$0xff]
      %v981 = vld [vmem:[#allocation2 + $0x2a9] sm:$0xff]
      %v982 = vld [vmem:[#allocation2 + $0x2b9] sm:$0xff]
      %v983 = vld [vmem:[#allocation2 + $0x2c1] sm:$0xff]
      %v984 = vld [vmem:[#allocation2 + $0x2d1] sm:$0xff]
      %v985 = vld [vmem:[#allocation2 + $0x2d9] sm:$0xff]
      %v986 = vld [vmem:[#allocation2 + $0x2e9] sm:$0xff]
      %v987 = vld [vmem:[#allocation2 + $0x2f1] sm:$0xff]
      %v988 = vld [vmem:[#allocation2 + $0x301] sm:$0xff]
      %v989 = vld [vmem:[#allocation2 + $0x309] sm:$0xff]
      %v990 = vld [vmem:[#allocation2 + $0x319] sm:$0xff]
      %v991 = vld [vmem:[#allocation2 + $0x321] sm:$0xff]
      %v992 = vld [vmem:[#allocation2 + $0x2] sm:$0xff]
      %v993 = vld [vmem:[#allocation2 + $0xa] sm:$0xff]
      %v994 = vld [vmem:[#allocation2 + $0x1a] sm:$0xff]
      %v995 = vld [vmem:[#allocation2 + $0x22] sm:$0xff]
      %v996 = vld [vmem:[#allocation2 + $0x32] sm:$0xff]
      %v997 = vld [vmem:[#allocation2 + $0x3a] sm:$0xff]
      %v998 = vld [vmem:[#allocation2 + $0x4a] sm:$0xff]
      %v999 = vld [vmem:[#allocation2 + $0x52] sm:$0xff]
      %v1000 = vld [vmem:[#allocation2 + $0x62] sm:$0xff]
      %v1001 = vld [vmem:[#allocation2 + $0x6a] sm:$0xff]
      %v1002 = vld [vmem:[#allocation2 + $0x7a] sm:$0xff]
      %v1003 = vld [vmem:[#allocation2 + $0x82] sm:$0xff]
      %v1004 = vld [vmem:[#allocation2 + $0x92] sm:$0xff]
      %v1005 = vld [vmem:[#allocation2 + $0x9a] sm:$0xff]
      %v1006 = vld [vmem:[#allocation2 + $0xaa] sm:$0xff]
      %v1007 = vld [vmem:[#allocation2 + $0xb2] sm:$0xff]
      %v1008 = vld [vmem:[#allocation2 + $0xc2] sm:$0xff]
      %v1009 = vld [vmem:[#allocation2 + $0xca] sm:$0xff]
      %v1010 = vld [vmem:[#allocation2 + $0xda] sm:$0xff]
      %v1011 = vld [vmem:[#allocation2 + $0xe2] sm:$0xff]
      %v1012 = vld [vmem:[#allocation2 + $0xf2] sm:$0xff]
      %v1013 = vld [vmem:[#allocation2 + $0xfa] sm:$0xff]
      %v1014 = vld [vmem:[#allocation2 + $0x10a] sm:$0xff]
      %v1015 = vld [vmem:[#allocation2 + $0x112] sm:$0xff]
      %v1016 = vld [vmem:[#allocation2 + $0x122] sm:$0xff]
      %v1017 = vld [vmem:[#allocation2 + $0x12a] sm:$0xff]
      %v1018 = vld [vmem:[#allocation2 + $0x13a] sm:$0xff]
      %v1019 = vld [vmem:[#allocation2 + $0x142] sm:$0xff]
      %v1020 = vld [vmem:[#allocation2 + $0x152] sm:$0xff]
      %v1021 = vld [vmem:[#allocation2 + $0x15a] sm:$0xff]
      %v1022 = vld [vmem:[#allocation2 + $0x16a] sm:$0xff]
      %v1023 = vld [vmem:[#allocation2 + $0x172] sm:$0xff]
      %v1024 = vld [vmem:[#allocation2 + $0x1b2] sm:$0xff]
      %v1025 = vld [vmem:[#allocation2 + $0x1ba] sm:$0xff]
      %v1026 = vld [vmem:[#allocation2 + $0x1ca] sm:$0xff]
      %v1027 = vld [vmem:[#allocation2 + $0x1d2] sm:$0xff]
      %v1028 = vld [vmem:[#allocation2 + $0x1e2] sm:$0xff]
      %v1029 = vld [vmem:[#allocation2 + $0x1ea] sm:$0xff]
      %v1030 = vld [vmem:[#allocation2 + $0x1fa] sm:$0xff]
      %v1031 = vld [vmem:[#allocation2 + $0x202] sm:$0xff]
      %v1032 = vld [vmem:[#allocation2 + $0x212] sm:$0xff]
      %v1033 = vld [vmem:[#allocation2 + $0x21a] sm:$0xff]
      %v1034 = vld [vmem:[#allocation2 + $0x22a] sm:$0xff]
      %v1035 = vld [vmem:[#allocation2 + $0x232] sm:$0xff]
      %v1036 = vld [vmem:[#allocation2 + $0x242] sm:$0xff]
      %v1037 = vld [vmem:[#allocation2 + $0x24a] sm:$0xff]
      %v1038 = vld [vmem:[#allocation2 + $0x25a] sm:$0xff]
      %v1039 = vld [vmem:[#allocation2 + $0x262] sm:$0xff]
      %v1040 = vld [vmem:[#allocation2 + $0x272] sm:$0xff]
      %v1041 = vld [vmem:[#allocation2 + $0x27a] sm:$0xff]
      %v1042 = vld [vmem:[#allocation2 + $0x28a] sm:$0xff]
      %v1043 = vld [vmem:[#allocation2 + $0x292] sm:$0xff]
      %v1044 = vld [vmem:[#allocation2 + $0x2a2] sm:$0xff]
      %v1045 = vld [vmem:[#allocation2 + $0x2aa] sm:$0xff]
      %v1046 = vld [vmem:[#allocation2 + $0x2ba] sm:$0xff]
      %v1047 = vld [vmem:[#allocation2 + $0x2c2] sm:$0xff]
      %v1048 = vld [vmem:[#allocation2 + $0x2d2] sm:$0xff]
      %v1049 = vld [vmem:[#allocation2 + $0x2da] sm:$0xff]
      %v1050 = vld [vmem:[#allocation2 + $0x2ea] sm:$0xff]
      %v1051 = vld [vmem:[#allocation2 + $0x2f2] sm:$0xff]
      %v1052 = vld [vmem:[#allocation2 + $0x302] sm:$0xff]
      %v1053 = vld [vmem:[#allocation2 + $0x30a] sm:$0xff]
      %v1054 = vld [vmem:[#allocation2 + $0x31a] sm:$0xff]
      %v1055 = vld [vmem:[#allocation2 + $0x322] sm:$0xff]
      %v1056 = vld [vmem:[%s734] sm:$0xff]
      %v1057 = vld [vmem:[%s734 + $0x8] sm:$0xff]
      %v1058 = vld [vmem:[%s734 + $0x18] sm:$0xff]
      %v1059 = vld [vmem:[%s734 + $0x20] sm:$0xff]
      %v1060 = vld [vmem:[%s734 + $0x30] sm:$0xff]
      %v1061 = vld [vmem:[%s734 + $0x38] sm:$0xff]
      %v1062 = vld [vmem:[%s734 + $0x48] sm:$0xff]
      %v1063 = vld [vmem:[%s734 + $0x50] sm:$0xff]
      %v1064 = vld [vmem:[%s734 + $0x60] sm:$0xff]
      %v1065 = vld [vmem:[%s734 + $0x68] sm:$0xff]
      %v1066 = vld [vmem:[%s734 + $0x78] sm:$0xff]
      %v1067 = vld [vmem:[%s734 + $0x80] sm:$0xff]
      %v1068 = vld [vmem:[%s734 + $0x90] sm:$0xff]
      %v1069 = vld [vmem:[%s734 + $0x98] sm:$0xff]
      %v1070 = vld [vmem:[%s734 + $0xa8] sm:$0xff]
      %v1071 = vld [vmem:[%s734 + $0xb0] sm:$0xff]
      %v1072 = vld [vmem:[%s734 + $0xc0] sm:$0xff]
      %v1073 = vld [vmem:[%s734 + $0xc8] sm:$0xff]
      %v1074 = vld [vmem:[%s734 + $0xd8] sm:$0xff]
      %v1075 = vld [vmem:[%s734 + $0xe0] sm:$0xff]
      %v1076 = vld [vmem:[%s734 + $0xf0] sm:$0xff]
      %v1077 = vld [vmem:[%s734 + $0xf8] sm:$0xff]
      %v1078 = vld [vmem:[%s734 + $0x108] sm:$0xff]
      %v1079 = vld [vmem:[%s734 + $0x110] sm:$0xff]
      %v1080 = vld [vmem:[%s734 + $0x120] sm:$0xff]
      %v1081 = vld [vmem:[%s734 + $0x128] sm:$0xff]
      %v1082 = vld [vmem:[%s734 + $0x138] sm:$0xff]
      %v1083 = vld [vmem:[%s734 + $0x140] sm:$0xff]
      %v1084 = vld [vmem:[%s734 + $0x150] sm:$0xff]
      %v1085 = vld [vmem:[%s734 + $0x158] sm:$0xff]
      %v1086 = vld [vmem:[%s734 + $0x168] sm:$0xff]
      %v1087 = vld [vmem:[%s734 + $0x170] sm:$0xff]
      %v1088 = vld [vmem:[%s734 + $0x1b0] sm:$0xff]
      %v1089 = vld [vmem:[%s734 + $0x1b8] sm:$0xff]
      %v1090 = vld [vmem:[%s734 + $0x1c8] sm:$0xff]
      %v1091 = vld [vmem:[%s734 + $0x1d0] sm:$0xff]
      %v1092 = vld [vmem:[%s734 + $0x1e0] sm:$0xff]
      %v1093 = vld [vmem:[%s734 + $0x1e8] sm:$0xff]
      %v1094 = vld [vmem:[%s734 + $0x1f8] sm:$0xff]
      %v1095 = vld [vmem:[%s734 + $0x200] sm:$0xff]
      %v1096 = vld [vmem:[%s734 + $0x210] sm:$0xff]
      %v1097 = vld [vmem:[%s734 + $0x218] sm:$0xff]
      %v1098 = vld [vmem:[%s734 + $0x228] sm:$0xff]
      %v1099 = vld [vmem:[%s734 + $0x230] sm:$0xff]
      %v1100 = vld [vmem:[%s734 + $0x240] sm:$0xff]
      %v1101 = vld [vmem:[%s734 + $0x248] sm:$0xff]
      %v1102 = vld [vmem:[%s734 + $0x258] sm:$0xff]
      %v1103 = vld [vmem:[%s734 + $0x260] sm:$0xff]
      %v1104 = vld [vmem:[%s734 + $0x270] sm:$0xff]
      %v1105 = vld [vmem:[%s734 + $0x278] sm:$0xff]
      %v1106 = vld [vmem:[%s734 + $0x288] sm:$0xff]
      %v1107 = vld [vmem:[%s734 + $0x290] sm:$0xff]
      %v1108 = vld [vmem:[%s734 + $0x2a0] sm:$0xff]
      %v1109 = vld [vmem:[%s734 + $0x2a8] sm:$0xff]
      %v1110 = vld [vmem:[%s734 + $0x2b8] sm:$0xff]
      %v1111 = vld [vmem:[%s734 + $0x2c0] sm:$0xff]
      %v1112 = vld [vmem:[%s734 + $0x2d0] sm:$0xff]
      %v1113 = vld [vmem:[%s734 + $0x2d8] sm:$0xff]
      %v1114 = vld [vmem:[%s734 + $0x2e8] sm:$0xff]
      %v1115 = vld [vmem:[%s734 + $0x2f0] sm:$0xff]
      %v1116 = vld [vmem:[%s734 + $0x300] sm:$0xff]
      %v1117 = vld [vmem:[%s734 + $0x308] sm:$0xff]
      %v1118 = vld [vmem:[%s734 + $0x318] sm:$0xff]
      %v1119 = vld [vmem:[%s734 + $0x320] sm:$0xff]
      %v1120 = vld [vmem:[%s734 + $0x1] sm:$0xff]
      %v1121 = vld [vmem:[%s734 + $0x9] sm:$0xff]
      %v1122 = vld [vmem:[%s734 + $0x19] sm:$0xff]
      %v1123 = vld [vmem:[%s734 + $0x21] sm:$0xff]
      %v1124 = vld [vmem:[%s734 + $0x31] sm:$0xff]
      %v1125 = vld [vmem:[%s734 + $0x39] sm:$0xff]
      %v1126 = vld [vmem:[%s734 + $0x49] sm:$0xff]
      %v1127 = vld [vmem:[%s734 + $0x51] sm:$0xff]
      %v1128 = vld [vmem:[%s734 + $0x61] sm:$0xff]
      %v1129 = vld [vmem:[%s734 + $0x69] sm:$0xff]
      %v1130 = vld [vmem:[%s734 + $0x79] sm:$0xff]
      %v1131 = vld [vmem:[%s734 + $0x81] sm:$0xff]
      %v1132 = vld [vmem:[%s734 + $0x91] sm:$0xff]
      %v1133 = vld [vmem:[%s734 + $0x99] sm:$0xff]
      %v1134 = vld [vmem:[%s734 + $0xa9] sm:$0xff]
      %v1135 = vld [vmem:[%s734 + $0xb1] sm:$0xff]
      %v1136 = vld [vmem:[%s734 + $0xc1] sm:$0xff]
      %v1137 = vld [vmem:[%s734 + $0xc9] sm:$0xff]
      %v1138 = vld [vmem:[%s734 + $0xd9] sm:$0xff]
      %v1139 = vld [vmem:[%s734 + $0xe1] sm:$0xff]
      %v1140 = vld [vmem:[%s734 + $0xf1] sm:$0xff]
      %v1141 = vld [vmem:[%s734 + $0xf9] sm:$0xff]
      %v1142 = vld [vmem:[%s734 + $0x109] sm:$0xff]
      %v1143 = vld [vmem:[%s734 + $0x111] sm:$0xff]
      %v1144 = vld [vmem:[%s734 + $0x121] sm:$0xff]
      %v1145 = vld [vmem:[%s734 + $0x129] sm:$0xff]
      %v1146 = vld [vmem:[%s734 + $0x139] sm:$0xff]
      %v1147 = vld [vmem:[%s734 + $0x141] sm:$0xff]
      %v1148 = vld [vmem:[%s734 + $0x151] sm:$0xff]
      %v1149 = vld [vmem:[%s734 + $0x159] sm:$0xff]
      %v1150 = vld [vmem:[%s734 + $0x169] sm:$0xff]
      %v1151 = vld [vmem:[%s734 + $0x171] sm:$0xff]
      %v1152 = vld [vmem:[%s734 + $0x1b1] sm:$0xff]
      %v1153 = vld [vmem:[%s734 + $0x1b9] sm:$0xff]
      %v1154 = vld [vmem:[%s734 + $0x1c9] sm:$0xff]
      %v1155 = vld [vmem:[%s734 + $0x1d1] sm:$0xff]
      %v1156 = vld [vmem:[%s734 + $0x1e1] sm:$0xff]
      %v1157 = vld [vmem:[%s734 + $0x1e9] sm:$0xff]
      %v1158 = vld [vmem:[%s734 + $0x1f9] sm:$0xff]
      %v1159 = vld [vmem:[%s734 + $0x201] sm:$0xff]
      %v1160 = vld [vmem:[%s734 + $0x211] sm:$0xff]
      %v1161 = vld [vmem:[%s734 + $0x219] sm:$0xff]
      %v1162 = vld [vmem:[%s734 + $0x229] sm:$0xff]
      %v1163 = vld [vmem:[%s734 + $0x231] sm:$0xff]
      %v1164 = vld [vmem:[%s734 + $0x241] sm:$0xff]
      %v1165 = vld [vmem:[%s734 + $0x249] sm:$0xff]
      %v1166 = vld [vmem:[%s734 + $0x259] sm:$0xff]
      %v1167 = vld [vmem:[%s734 + $0x261] sm:$0xff]
      %v1168 = vld [vmem:[%s734 + $0x271] sm:$0xff]
      %v1169 = vld [vmem:[%s734 + $0x279] sm:$0xff]
      %v1170 = vld [vmem:[%s734 + $0x289] sm:$0xff]
      %v1171 = vld [vmem:[%s734 + $0x291] sm:$0xff]
      %v1172 = vld [vmem:[%s734 + $0x2a1] sm:$0xff]
      %v1173 = vld [vmem:[%s734 + $0x2a9] sm:$0xff]
      %v1174 = vld [vmem:[%s734 + $0x2b9] sm:$0xff]
      %v1175 = vld [vmem:[%s734 + $0x2c1] sm:$0xff]
      %v1176 = vld [vmem:[%s734 + $0x2d1] sm:$0xff]
      %v1177 = vld [vmem:[%s734 + $0x2d9] sm:$0xff]
      %v1178 = vld [vmem:[%s734 + $0x2e9] sm:$0xff]
      %v1179 = vld [vmem:[%s734 + $0x2f1] sm:$0xff]
      %v1180 = vld [vmem:[%s734 + $0x301] sm:$0xff]
      %v1181 = vld [vmem:[%s734 + $0x309] sm:$0xff]
      %v1182 = vld [vmem:[%s734 + $0x319] sm:$0xff]
      %v1183 = vld [vmem:[%s734 + $0x321] sm:$0xff]
      %v1184 = vld [vmem:[%s734 + $0x2] sm:$0xff]
      %v1185 = vld [vmem:[%s734 + $0xa] sm:$0xff]
      %v1186 = vld [vmem:[%s734 + $0x1a] sm:$0xff]
      %v1187 = vld [vmem:[%s734 + $0x22] sm:$0xff]
      %v1188 = vld [vmem:[%s734 + $0x32] sm:$0xff]
      %v1189 = vld [vmem:[%s734 + $0x3a] sm:$0xff]
      %v1190 = vld [vmem:[%s734 + $0x4a] sm:$0xff]
      %v1191 = vld [vmem:[%s734 + $0x52] sm:$0xff]
      %v1192 = vld [vmem:[%s734 + $0x62] sm:$0xff]
      %v1193 = vld [vmem:[%s734 + $0x6a] sm:$0xff]
      %v1194 = vld [vmem:[%s734 + $0x7a] sm:$0xff]
      %v1195 = vld [vmem:[%s734 + $0x82] sm:$0xff]
      %v1196 = vld [vmem:[%s734 + $0x92] sm:$0xff]
      %v1197 = vld [vmem:[%s734 + $0x9a] sm:$0xff]
      %v1198 = vld [vmem:[%s734 + $0xaa] sm:$0xff]
      %v1199 = vld [vmem:[%s734 + $0xb2] sm:$0xff]
      %v1200 = vld [vmem:[%s734 + $0xc2] sm:$0xff]
      %v1201 = vld [vmem:[%s734 + $0xca] sm:$0xff]
      %v1202 = vld [vmem:[%s734 + $0xda] sm:$0xff]
      %v1203 = vld [vmem:[%s734 + $0xe2] sm:$0xff]
      %v1204 = vld [vmem:[%s734 + $0xf2] sm:$0xff]
      %v1205 = vld [vmem:[%s734 + $0xfa] sm:$0xff]
      %v1206 = vld [vmem:[%s734 + $0x10a] sm:$0xff]
      %v1207 = vld [vmem:[%s734 + $0x112] sm:$0xff]
      %v1208 = vld [vmem:[%s734 + $0x122] sm:$0xff]
      %v1209 = vld [vmem:[%s734 + $0x12a] sm:$0xff]
      %v1210 = vld [vmem:[%s734 + $0x13a] sm:$0xff]
      %v1211 = vld [vmem:[%s734 + $0x142] sm:$0xff]
      %v1212 = vld [vmem:[%s734 + $0x152] sm:$0xff]
      %v1213 = vld [vmem:[%s734 + $0x15a] sm:$0xff]
      %v1214 = vld [vmem:[%s734 + $0x16a] sm:$0xff]
      %v1215 = vld [vmem:[%s734 + $0x172] sm:$0xff]
      %v1216 = vld [vmem:[%s734 + $0x1b2] sm:$0xff]
      %v1217 = vld [vmem:[%s734 + $0x1ba] sm:$0xff]
      %v1218 = vld [vmem:[%s734 + $0x1ca] sm:$0xff]
      %v1219 = vld [vmem:[%s734 + $0x1d2] sm:$0xff]
      %v1220 = vld [vmem:[%s734 + $0x1e2] sm:$0xff]
      %v1221 = vld [vmem:[%s734 + $0x1ea] sm:$0xff]
      %v1222 = vld [vmem:[%s734 + $0x1fa] sm:$0xff]
      %v1223 = vld [vmem:[%s734 + $0x202] sm:$0xff]
      %v1224 = vld [vmem:[%s734 + $0x212] sm:$0xff]
      %v1225 = vld [vmem:[%s734 + $0x21a] sm:$0xff]
      %v1226 = vld [vmem:[%s734 + $0x22a] sm:$0xff]
      %v1227 = vld [vmem:[%s734 + $0x232] sm:$0xff]
      %v1228 = vld [vmem:[%s734 + $0x242] sm:$0xff]
      %v1229 = vld [vmem:[%s734 + $0x24a] sm:$0xff]
      %v1230 = vld [vmem:[%s734 + $0x25a] sm:$0xff]
      %v1231 = vld [vmem:[%s734 + $0x262] sm:$0xff]
      %v1232 = vld [vmem:[%s734 + $0x272] sm:$0xff]
      %v1233 = vld [vmem:[%s734 + $0x27a] sm:$0xff]
      %v1234 = vld [vmem:[%s734 + $0x28a] sm:$0xff]
      %v1235 = vld [vmem:[%s734 + $0x292] sm:$0xff]
      %v1236 = vld [vmem:[%s734 + $0x2a2] sm:$0xff]
      %v1237 = vld [vmem:[%s734 + $0x2aa] sm:$0xff]
      %v1238 = vld [vmem:[%s734 + $0x2ba] sm:$0xff]
      %v1239 = vld [vmem:[%s734 + $0x2c2] sm:$0xff]
      %v1240 = vld [vmem:[%s734 + $0x2d2] sm:$0xff]
      %v1241 = vld [vmem:[%s734 + $0x2da] sm:$0xff]
      %v1242 = vld [vmem:[%s734 + $0x2ea] sm:$0xff]
      %v1243 = vld [vmem:[%s734 + $0x2f2] sm:$0xff]
      %v1244 = vld [vmem:[%s734 + $0x302] sm:$0xff]
      %v1245 = vld [vmem:[%s734 + $0x30a] sm:$0xff]
      %v1246 = vld [vmem:[%s734 + $0x31a] sm:$0xff]
      %v1247 = vld [vmem:[%s734 + $0x322] sm:$0xff]
      %s1248 = scalar_lea.vmem [#allocation2], 48
      %v1249 = vld [vmem:[%s1248] sm:$0xff]
      %v1250 = vld [vmem:[%s1248 + $0x8] sm:$0xff]
      %v1251 = vld [vmem:[%s1248 + $0x18] sm:$0xff]
      %v1252 = vld [vmem:[%s1248 + $0x20] sm:$0xff]
      %v1253 = vld [vmem:[%s1248 + $0x30] sm:$0xff]
      %v1254 = vld [vmem:[%s1248 + $0x38] sm:$0xff]
      %v1255 = vld [vmem:[%s1248 + $0x48] sm:$0xff]
      %v1256 = vld [vmem:[%s1248 + $0x50] sm:$0xff]
      %v1257 = vld [vmem:[%s1248 + $0x60] sm:$0xff]
      %v1258 = vld [vmem:[%s1248 + $0x68] sm:$0xff]
      %v1259 = vld [vmem:[%s1248 + $0x78] sm:$0xff]
      %v1260 = vld [vmem:[%s1248 + $0x80] sm:$0xff]
      %v1261 = vld [vmem:[%s1248 + $0x90] sm:$0xff]
      %v1262 = vld [vmem:[%s1248 + $0x98] sm:$0xff]
      %v1263 = vld [vmem:[%s1248 + $0xa8] sm:$0xff]
      %v1264 = vld [vmem:[%s1248 + $0xb0] sm:$0xff]
      %v1265 = vld [vmem:[%s1248 + $0xc0] sm:$0xff]
      %v1266 = vld [vmem:[%s1248 + $0xc8] sm:$0xff]
      %v1267 = vld [vmem:[%s1248 + $0xd8] sm:$0xff]
      %v1268 = vld [vmem:[%s1248 + $0xe0] sm:$0xff]
      %v1269 = vld [vmem:[%s1248 + $0xf0] sm:$0xff]
      %v1270 = vld [vmem:[%s1248 + $0xf8] sm:$0xff]
      %v1271 = vld [vmem:[%s1248 + $0x108] sm:$0xff]
      %v1272 = vld [vmem:[%s1248 + $0x110] sm:$0xff]
      %v1273 = vld [vmem:[%s1248 + $0x120] sm:$0xff]
      %v1274 = vld [vmem:[%s1248 + $0x128] sm:$0xff]
      %v1275 = vld [vmem:[%s1248 + $0x138] sm:$0xff]
      %v1276 = vld [vmem:[%s1248 + $0x140] sm:$0xff]
      %v1277 = vld [vmem:[%s1248 + $0x150] sm:$0xff]
      %v1278 = vld [vmem:[%s1248 + $0x158] sm:$0xff]
      %v1279 = vld [vmem:[%s1248 + $0x168] sm:$0xff]
      %v1280 = vld [vmem:[%s1248 + $0x170] sm:$0xff]
      %v1281 = vld [vmem:[%s1248 + $0x1b0] sm:$0xff]
      %v1282 = vld [vmem:[%s1248 + $0x1b8] sm:$0xff]
      %v1283 = vld [vmem:[%s1248 + $0x1c8] sm:$0xff]
      %v1284 = vld [vmem:[%s1248 + $0x1d0] sm:$0xff]
      %v1285 = vld [vmem:[%s1248 + $0x1e0] sm:$0xff]
      %v1286 = vld [vmem:[%s1248 + $0x1e8] sm:$0xff]
      %v1287 = vld [vmem:[%s1248 + $0x1f8] sm:$0xff]
      %v1288 = vld [vmem:[%s1248 + $0x200] sm:$0xff]
      %v1289 = vld [vmem:[%s1248 + $0x210] sm:$0xff]
      %v1290 = vld [vmem:[%s1248 + $0x218] sm:$0xff]
      %v1291 = vld [vmem:[%s1248 + $0x228] sm:$0xff]
      %v1292 = vld [vmem:[%s1248 + $0x230] sm:$0xff]
      %v1293 = vld [vmem:[%s1248 + $0x240] sm:$0xff]
      %v1294 = vld [vmem:[%s1248 + $0x248] sm:$0xff]
      %v1295 = vld [vmem:[%s1248 + $0x258] sm:$0xff]
      %v1296 = vld [vmem:[%s1248 + $0x260] sm:$0xff]
      %v1297 = vld [vmem:[%s1248 + $0x270] sm:$0xff]
      %v1298 = vld [vmem:[%s1248 + $0x278] sm:$0xff]
      %v1299 = vld [vmem:[%s1248 + $0x288] sm:$0xff]
      %v1300 = vld [vmem:[%s1248 + $0x290] sm:$0xff]
      %v1301 = vld [vmem:[%s1248 + $0x2a0] sm:$0xff]
      %v1302 = vld [vmem:[%s1248 + $0x2a8] sm:$0xff]
      %v1303 = vld [vmem:[%s1248 + $0x2b8] sm:$0xff]
      %v1304 = vld [vmem:[%s1248 + $0x2c0] sm:$0xff]
      %v1305 = vld [vmem:[%s1248 + $0x2d0] sm:$0xff]
      %v1306 = vld [vmem:[%s1248 + $0x2d8] sm:$0xff]
      %v1307 = vld [vmem:[%s1248 + $0x2e8] sm:$0xff]
      %v1308 = vld [vmem:[%s1248 + $0x2f0] sm:$0xff]
      %v1309 = vld [vmem:[%s1248 + $0x300] sm:$0xff]
      %v1310 = vld [vmem:[%s1248 + $0x308] sm:$0xff]
      %v1311 = vld [vmem:[%s1248 + $0x318] sm:$0xff]
      %v1312 = vld [vmem:[%s1248 + $0x320] sm:$0xff]
      %v1313 = vld [vmem:[%s1248 + $0x1] sm:$0xff]
      %v1314 = vld [vmem:[%s1248 + $0x9] sm:$0xff]
      %v1315 = vld [vmem:[%s1248 + $0x19] sm:$0xff]
      %v1316 = vld [vmem:[%s1248 + $0x21] sm:$0xff]
      %v1317 = vld [vmem:[%s1248 + $0x31] sm:$0xff]
      %v1318 = vld [vmem:[%s1248 + $0x39] sm:$0xff]
      %v1319 = vld [vmem:[%s1248 + $0x49] sm:$0xff]
      %v1320 = vld [vmem:[%s1248 + $0x51] sm:$0xff]
      %v1321 = vld [vmem:[%s1248 + $0x61] sm:$0xff]
      %v1322 = vld [vmem:[%s1248 + $0x69] sm:$0xff]
      %v1323 = vld [vmem:[%s1248 + $0x79] sm:$0xff]
      %v1324 = vld [vmem:[%s1248 + $0x81] sm:$0xff]
      %v1325 = vld [vmem:[%s1248 + $0x91] sm:$0xff]
      %v1326 = vld [vmem:[%s1248 + $0x99] sm:$0xff]
      %v1327 = vld [vmem:[%s1248 + $0xa9] sm:$0xff]
      %v1328 = vld [vmem:[%s1248 + $0xb1] sm:$0xff]
      %v1329 = vld [vmem:[%s1248 + $0xc1] sm:$0xff]
      %v1330 = vld [vmem:[%s1248 + $0xc9] sm:$0xff]
      %v1331 = vld [vmem:[%s1248 + $0xd9] sm:$0xff]
      %v1332 = vld [vmem:[%s1248 + $0xe1] sm:$0xff]
      %v1333 = vld [vmem:[%s1248 + $0xf1] sm:$0xff]
      %v1334 = vld [vmem:[%s1248 + $0xf9] sm:$0xff]
      %v1335 = vld [vmem:[%s1248 + $0x109] sm:$0xff]
      %v1336 = vld [vmem:[%s1248 + $0x111] sm:$0xff]
      %v1337 = vld [vmem:[%s1248 + $0x121] sm:$0xff]
      %v1338 = vld [vmem:[%s1248 + $0x129] sm:$0xff]
      %v1339 = vld [vmem:[%s1248 + $0x139] sm:$0xff]
      %v1340 = vld [vmem:[%s1248 + $0x141] sm:$0xff]
      %v1341 = vld [vmem:[%s1248 + $0x151] sm:$0xff]
      %v1342 = vld [vmem:[%s1248 + $0x159] sm:$0xff]
      %v1343 = vld [vmem:[%s1248 + $0x169] sm:$0xff]
      %v1344 = vld [vmem:[%s1248 + $0x171] sm:$0xff]
      %v1345 = vld [vmem:[%s1248 + $0x1b1] sm:$0xff]
      %v1346 = vld [vmem:[%s1248 + $0x1b9] sm:$0xff]
      %v1347 = vld [vmem:[%s1248 + $0x1c9] sm:$0xff]
      %v1348 = vld [vmem:[%s1248 + $0x1d1] sm:$0xff]
      %v1349 = vld [vmem:[%s1248 + $0x1e1] sm:$0xff]
      %v1350 = vld [vmem:[%s1248 + $0x1e9] sm:$0xff]
      %v1351 = vld [vmem:[%s1248 + $0x1f9] sm:$0xff]
      %v1352 = vld [vmem:[%s1248 + $0x201] sm:$0xff]
      %v1353 = vld [vmem:[%s1248 + $0x211] sm:$0xff]
      %v1354 = vld [vmem:[%s1248 + $0x219] sm:$0xff]
      %v1355 = vld [vmem:[%s1248 + $0x229] sm:$0xff]
      %v1356 = vld [vmem:[%s1248 + $0x231] sm:$0xff]
      %v1357 = vld [vmem:[%s1248 + $0x241] sm:$0xff]
      %v1358 = vld [vmem:[%s1248 + $0x249] sm:$0xff]
      %v1359 = vld [vmem:[%s1248 + $0x259] sm:$0xff]
      %v1360 = vld [vmem:[%s1248 + $0x261] sm:$0xff]
      %v1361 = vld [vmem:[%s1248 + $0x271] sm:$0xff]
      %v1362 = vld [vmem:[%s1248 + $0x279] sm:$0xff]
      %v1363 = vld [vmem:[%s1248 + $0x289] sm:$0xff]
      %v1364 = vld [vmem:[%s1248 + $0x291] sm:$0xff]
      %v1365 = vld [vmem:[%s1248 + $0x2a1] sm:$0xff]
      %v1366 = vld [vmem:[%s1248 + $0x2a9] sm:$0xff]
      %v1367 = vld [vmem:[%s1248 + $0x2b9] sm:$0xff]
      %v1368 = vld [vmem:[%s1248 + $0x2c1] sm:$0xff]
      %v1369 = vld [vmem:[%s1248 + $0x2d1] sm:$0xff]
      %v1370 = vld [vmem:[%s1248 + $0x2d9] sm:$0xff]
      %v1371 = vld [vmem:[%s1248 + $0x2e9] sm:$0xff]
      %v1372 = vld [vmem:[%s1248 + $0x2f1] sm:$0xff]
      %v1373 = vld [vmem:[%s1248 + $0x301] sm:$0xff]
      %v1374 = vld [vmem:[%s1248 + $0x309] sm:$0xff]
      %v1375 = vld [vmem:[%s1248 + $0x319] sm:$0xff]
      %v1376 = vld [vmem:[%s1248 + $0x321] sm:$0xff]
      %v1377 = vld [vmem:[%s1248 + $0x2] sm:$0xff]
      %v1378 = vld [vmem:[%s1248 + $0xa] sm:$0xff]
      %v1379 = vld [vmem:[%s1248 + $0x1a] sm:$0xff]
      %v1380 = vld [vmem:[%s1248 + $0x22] sm:$0xff]
      %v1381 = vld [vmem:[%s1248 + $0x32] sm:$0xff]
      %v1382 = vld [vmem:[%s1248 + $0x3a] sm:$0xff]
      %v1383 = vld [vmem:[%s1248 + $0x4a] sm:$0xff]
      %v1384 = vld [vmem:[%s1248 + $0x52] sm:$0xff]
      %v1385 = vld [vmem:[%s1248 + $0x62] sm:$0xff]
      %v1386 = vld [vmem:[%s1248 + $0x6a] sm:$0xff]
      %v1387 = vld [vmem:[%s1248 + $0x7a] sm:$0xff]
      %v1388 = vld [vmem:[%s1248 + $0x82] sm:$0xff]
      %v1389 = vld [vmem:[%s1248 + $0x92] sm:$0xff]
      %v1390 = vld [vmem:[%s1248 + $0x9a] sm:$0xff]
      %v1391 = vld [vmem:[%s1248 + $0xaa] sm:$0xff]
      %v1392 = vld [vmem:[%s1248 + $0xb2] sm:$0xff]
      %v1393 = vld [vmem:[%s1248 + $0xc2] sm:$0xff]
      %v1394 = vld [vmem:[%s1248 + $0xca] sm:$0xff]
      %v1395 = vld [vmem:[%s1248 + $0xda] sm:$0xff]
      %v1396 = vld [vmem:[%s1248 + $0xe2] sm:$0xff]
      %v1397 = vld [vmem:[%s1248 + $0xf2] sm:$0xff]
      %v1398 = vld [vmem:[%s1248 + $0xfa] sm:$0xff]
      %v1399 = vld [vmem:[%s1248 + $0x10a] sm:$0xff]
      %v1400 = vld [vmem:[%s1248 + $0x112] sm:$0xff]
      %v1401 = vld [vmem:[%s1248 + $0x122] sm:$0xff]
      %v1402 = vld [vmem:[%s1248 + $0x12a] sm:$0xff]
      %v1403 = vld [vmem:[%s1248 + $0x13a] sm:$0xff]
      %v1404 = vld [vmem:[%s1248 + $0x142] sm:$0xff]
      %v1405 = vld [vmem:[%s1248 + $0x152] sm:$0xff]
      %v1406 = vld [vmem:[%s1248 + $0x15a] sm:$0xff]
      %v1407 = vld [vmem:[%s1248 + $0x16a] sm:$0xff]
      %v1408 = vld [vmem:[%s1248 + $0x172] sm:$0xff]
      %v1409 = vld [vmem:[%s1248 + $0x1b2] sm:$0xff]
      %v1410 = vld [vmem:[%s1248 + $0x1ba] sm:$0xff]
      %v1411 = vld [vmem:[%s1248 + $0x1ca] sm:$0xff]
      %v1412 = vld [vmem:[%s1248 + $0x1d2] sm:$0xff]
      %v1413 = vld [vmem:[%s1248 + $0x1e2] sm:$0xff]
      %v1414 = vld [vmem:[%s1248 + $0x1ea] sm:$0xff]
      %v1415 = vld [vmem:[%s1248 + $0x1fa] sm:$0xff]
      %v1416 = vld [vmem:[%s1248 + $0x202] sm:$0xff]
      %v1417 = vld [vmem:[%s1248 + $0x212] sm:$0xff]
      %v1418 = vld [vmem:[%s1248 + $0x21a] sm:$0xff]
      %v1419 = vld [vmem:[%s1248 + $0x22a] sm:$0xff]
      %v1420 = vld [vmem:[%s1248 + $0x232] sm:$0xff]
      %v1421 = vld [vmem:[%s1248 + $0x242] sm:$0xff]
      %v1422 = vld [vmem:[%s1248 + $0x24a] sm:$0xff]
      %v1423 = vld [vmem:[%s1248 + $0x25a] sm:$0xff]
      %v1424 = vld [vmem:[%s1248 + $0x262] sm:$0xff]
      %v1425 = vld [vmem:[%s1248 + $0x272] sm:$0xff]
      %v1426 = vld [vmem:[%s1248 + $0x27a] sm:$0xff]
      %v1427 = vld [vmem:[%s1248 + $0x28a] sm:$0xff]
      %v1428 = vld [vmem:[%s1248 + $0x292] sm:$0xff]
      %v1429 = vld [vmem:[%s1248 + $0x2a2] sm:$0xff]
      %v1430 = vld [vmem:[%s1248 + $0x2aa] sm:$0xff]
      %v1431 = vld [vmem:[%s1248 + $0x2ba] sm:$0xff]
      %v1432 = vld [vmem:[%s1248 + $0x2c2] sm:$0xff]
      %v1433 = vld [vmem:[%s1248 + $0x2d2] sm:$0xff]
      %v1434 = vld [vmem:[%s1248 + $0x2da] sm:$0xff]
      %v1435 = vld [vmem:[%s1248 + $0x2ea] sm:$0xff]
      %v1436 = vld [vmem:[%s1248 + $0x2f2] sm:$0xff]
      %v1437 = vld [vmem:[%s1248 + $0x302] sm:$0xff]
      %v1438 = vld [vmem:[%s1248 + $0x30a] sm:$0xff]
      %v1439 = vld [vmem:[%s1248 + $0x31a] sm:$0xff]
      %v1440 = vld [vmem:[%s1248 + $0x322] sm:$0xff]
      %1505 = vrot.lane.b32.xlu0 %v928, 16
      %v1506 = vpop.permute.xlu0 %1505
      %1507 = vrot.lane.b32.xlu0 %v929, 16
      %v1508 = vpop.permute.xlu0 %1507
      %1509 = vrot.lane.b32.xlu0 %v930, 16
      %v1510 = vpop.permute.xlu0 %1509
      %1511 = vrot.lane.b32.xlu0 %v931, 16
      %v1512 = vpop.permute.xlu0 %1511
      %1513 = vrot.lane.b32.xlu0 %v932, 16
      %v1514 = vpop.permute.xlu0 %1513
      %1515 = vrot.lane.b32.xlu0 %v933, 16
      %v1516 = vpop.permute.xlu0 %1515
      %1517 = vrot.lane.b32.xlu0 %v934, 16
      %v1518 = vpop.permute.xlu0 %1517
      %1519 = vrot.lane.b32.xlu0 %v935, 16
      %v1520 = vpop.permute.xlu0 %1519
      %1521 = vrot.lane.b32.xlu0 %v936, 16
      %v1522 = vpop.permute.xlu0 %1521
      %1523 = vrot.lane.b32.xlu0 %v937, 16
      %v1524 = vpop.permute.xlu0 %1523
      %1525 = vrot.lane.b32.xlu0 %v938, 16
      %v1526 = vpop.permute.xlu0 %1525
      %1527 = vrot.lane.b32.xlu0 %v939, 16
      %v1528 = vpop.permute.xlu0 %1527
      %1529 = vrot.lane.b32.xlu0 %v940, 16
      %v1530 = vpop.permute.xlu0 %1529
      %1531 = vrot.lane.b32.xlu0 %v941, 16
      %v1532 = vpop.permute.xlu0 %1531
      %1533 = vrot.lane.b32.xlu0 %v942, 16
      %v1534 = vpop.permute.xlu0 %1533
      %1535 = vrot.lane.b32.xlu0 %v943, 16
      %v1536 = vpop.permute.xlu0 %1535
      %1537 = vrot.lane.b32.xlu0 %v944, 16
      %v1538 = vpop.permute.xlu0 %1537
      %1539 = vrot.lane.b32.xlu0 %v945, 16
      %v1540 = vpop.permute.xlu0 %1539
      %1541 = vrot.lane.b32.xlu0 %v946, 16
      %v1542 = vpop.permute.xlu0 %1541
      %1543 = vrot.lane.b32.xlu0 %v947, 16
      %v1544 = vpop.permute.xlu0 %1543
      %1545 = vrot.lane.b32.xlu0 %v948, 16
      %v1546 = vpop.permute.xlu0 %1545
      %1547 = vrot.lane.b32.xlu0 %v949, 16
      %v1548 = vpop.permute.xlu0 %1547
      %1549 = vrot.lane.b32.xlu0 %v950, 16
      %v1550 = vpop.permute.xlu0 %1549
      %1551 = vrot.lane.b32.xlu0 %v951, 16
      %v1552 = vpop.permute.xlu0 %1551
      %1553 = vrot.lane.b32.xlu0 %v952, 16
      %v1554 = vpop.permute.xlu0 %1553
      %1555 = vrot.lane.b32.xlu0 %v953, 16
      %v1556 = vpop.permute.xlu0 %1555
      %1557 = vrot.lane.b32.xlu0 %v954, 16
      %v1558 = vpop.permute.xlu0 %1557
      %1559 = vrot.lane.b32.xlu0 %v955, 16
      %v1560 = vpop.permute.xlu0 %1559
      %1561 = vrot.lane.b32.xlu0 %v956, 16
      %v1562 = vpop.permute.xlu0 %1561
      %1563 = vrot.lane.b32.xlu0 %v957, 16
      %v1564 = vpop.permute.xlu0 %1563
      %1565 = vrot.lane.b32.xlu0 %v958, 16
      %v1566 = vpop.permute.xlu0 %1565
      %1567 = vrot.lane.b32.xlu0 %v959, 16
      %v1568 = vpop.permute.xlu0 %1567
      %1569 = vrot.lane.b32.xlu0 %v960, 16
      %v1570 = vpop.permute.xlu0 %1569
      %1571 = vrot.lane.b32.xlu0 %v961, 16
      %v1572 = vpop.permute.xlu0 %1571
      %1573 = vrot.lane.b32.xlu0 %v962, 16
      %v1574 = vpop.permute.xlu0 %1573
      %1575 = vrot.lane.b32.xlu0 %v963, 16
      %v1576 = vpop.permute.xlu0 %1575
      %1577 = vrot.lane.b32.xlu0 %v964, 16
      %v1578 = vpop.permute.xlu0 %1577
      %1579 = vrot.lane.b32.xlu0 %v965, 16
      %v1580 = vpop.permute.xlu0 %1579
      %1581 = vrot.lane.b32.xlu0 %v966, 16
      %v1582 = vpop.permute.xlu0 %1581
      %1583 = vrot.lane.b32.xlu0 %v967, 16
      %v1584 = vpop.permute.xlu0 %1583
      %1585 = vrot.lane.b32.xlu0 %v968, 16
      %v1586 = vpop.permute.xlu0 %1585
      %1587 = vrot.lane.b32.xlu0 %v969, 16
      %v1588 = vpop.permute.xlu0 %1587
      %1589 = vrot.lane.b32.xlu0 %v970, 16
      %v1590 = vpop.permute.xlu0 %1589
      %1591 = vrot.lane.b32.xlu0 %v971, 16
      %v1592 = vpop.permute.xlu0 %1591
      %1593 = vrot.lane.b32.xlu0 %v972, 16
      %v1594 = vpop.permute.xlu0 %1593
      %1595 = vrot.lane.b32.xlu0 %v973, 16
      %v1596 = vpop.permute.xlu0 %1595
      %1597 = vrot.lane.b32.xlu0 %v974, 16
      %v1598 = vpop.permute.xlu0 %1597
      %1599 = vrot.lane.b32.xlu0 %v975, 16
      %v1600 = vpop.permute.xlu0 %1599
      %1601 = vrot.lane.b32.xlu0 %v976, 16
      %v1602 = vpop.permute.xlu0 %1601
      %1603 = vrot.lane.b32.xlu0 %v977, 16
      %v1604 = vpop.permute.xlu0 %1603
      %1605 = vrot.lane.b32.xlu0 %v978, 16
      %v1606 = vpop.permute.xlu0 %1605
      %1607 = vrot.lane.b32.xlu0 %v979, 16
      %v1608 = vpop.permute.xlu0 %1607
      %1609 = vrot.lane.b32.xlu0 %v980, 16
      %v1610 = vpop.permute.xlu0 %1609
      %1611 = vrot.lane.b32.xlu0 %v981, 16
      %v1612 = vpop.permute.xlu0 %1611
      %1613 = vrot.lane.b32.xlu0 %v982, 16
      %v1614 = vpop.permute.xlu0 %1613
      %1615 = vrot.lane.b32.xlu0 %v983, 16
      %v1616 = vpop.permute.xlu0 %1615
      %1617 = vrot.lane.b32.xlu0 %v984, 16
      %v1618 = vpop.permute.xlu0 %1617
      %1619 = vrot.lane.b32.xlu0 %v985, 16
      %v1620 = vpop.permute.xlu0 %1619
      %1621 = vrot.lane.b32.xlu0 %v986, 16
      %v1622 = vpop.permute.xlu0 %1621
      %1623 = vrot.lane.b32.xlu0 %v987, 16
      %v1624 = vpop.permute.xlu0 %1623
      %1625 = vrot.lane.b32.xlu0 %v988, 16
      %v1626 = vpop.permute.xlu0 %1625
      %1627 = vrot.lane.b32.xlu0 %v989, 16
      %v1628 = vpop.permute.xlu0 %1627
      %1629 = vrot.lane.b32.xlu0 %v990, 16
      %v1630 = vpop.permute.xlu0 %1629
      %1631 = vrot.lane.b32.xlu0 %v991, 16
      %v1632 = vpop.permute.xlu0 %1631
      %1761 = vrot.lane.b32.xlu0 %v992, 32
      %v1762 = vpop.permute.xlu0 %1761
      %1763 = vrot.lane.b32.xlu0 %v993, 32
      %v1764 = vpop.permute.xlu0 %1763
      %1765 = vrot.lane.b32.xlu0 %v994, 32
      %v1766 = vpop.permute.xlu0 %1765
      %1767 = vrot.lane.b32.xlu0 %v995, 32
      %v1768 = vpop.permute.xlu0 %1767
      %1769 = vrot.lane.b32.xlu0 %v996, 32
      %v1770 = vpop.permute.xlu0 %1769
      %1771 = vrot.lane.b32.xlu0 %v997, 32
      %v1772 = vpop.permute.xlu0 %1771
      %1773 = vrot.lane.b32.xlu0 %v998, 32
      %v1774 = vpop.permute.xlu0 %1773
      %1775 = vrot.lane.b32.xlu0 %v999, 32
      %v1776 = vpop.permute.xlu0 %1775
      %1777 = vrot.lane.b32.xlu0 %v1000, 32
      %v1778 = vpop.permute.xlu0 %1777
      %1779 = vrot.lane.b32.xlu0 %v1001, 32
      %v1780 = vpop.permute.xlu0 %1779
      %1781 = vrot.lane.b32.xlu0 %v1002, 32
      %v1782 = vpop.permute.xlu0 %1781
      %1783 = vrot.lane.b32.xlu0 %v1003, 32
      %v1784 = vpop.permute.xlu0 %1783
      %1785 = vrot.lane.b32.xlu0 %v1004, 32
      %v1786 = vpop.permute.xlu0 %1785
      %1787 = vrot.lane.b32.xlu0 %v1005, 32
      %v1788 = vpop.permute.xlu0 %1787
      %1789 = vrot.lane.b32.xlu0 %v1006, 32
      %v1790 = vpop.permute.xlu0 %1789
      %1791 = vrot.lane.b32.xlu0 %v1007, 32
      %v1792 = vpop.permute.xlu0 %1791
      %1793 = vrot.lane.b32.xlu0 %v1008, 32
      %v1794 = vpop.permute.xlu0 %1793
      %1795 = vrot.lane.b32.xlu0 %v1009, 32
      %v1796 = vpop.permute.xlu0 %1795
      %1797 = vrot.lane.b32.xlu0 %v1010, 32
      %v1798 = vpop.permute.xlu0 %1797
      %1799 = vrot.lane.b32.xlu0 %v1011, 32
      %v1800 = vpop.permute.xlu0 %1799
      %1801 = vrot.lane.b32.xlu0 %v1012, 32
      %v1802 = vpop.permute.xlu0 %1801
      %1803 = vrot.lane.b32.xlu0 %v1013, 32
      %v1804 = vpop.permute.xlu0 %1803
      %1805 = vrot.lane.b32.xlu0 %v1014, 32
      %v1806 = vpop.permute.xlu0 %1805
      %1807 = vrot.lane.b32.xlu0 %v1015, 32
      %v1808 = vpop.permute.xlu0 %1807
      %1809 = vrot.lane.b32.xlu0 %v1016, 32
      %v1810 = vpop.permute.xlu0 %1809
      %1811 = vrot.lane.b32.xlu0 %v1017, 32
      %v1812 = vpop.permute.xlu0 %1811
      %1813 = vrot.lane.b32.xlu0 %v1018, 32
      %v1814 = vpop.permute.xlu0 %1813
      %1815 = vrot.lane.b32.xlu0 %v1019, 32
      %v1816 = vpop.permute.xlu0 %1815
      %1817 = vrot.lane.b32.xlu0 %v1020, 32
      %v1818 = vpop.permute.xlu0 %1817
      %1819 = vrot.lane.b32.xlu0 %v1021, 32
      %v1820 = vpop.permute.xlu0 %1819
      %1821 = vrot.lane.b32.xlu0 %v1022, 32
      %v1822 = vpop.permute.xlu0 %1821
      %1823 = vrot.lane.b32.xlu0 %v1023, 32
      %v1824 = vpop.permute.xlu0 %1823
      %1825 = vrot.lane.b32.xlu0 %v1024, 32
      %v1826 = vpop.permute.xlu0 %1825
      %1827 = vrot.lane.b32.xlu0 %v1025, 32
      %v1828 = vpop.permute.xlu0 %1827
      %1829 = vrot.lane.b32.xlu0 %v1026, 32
      %v1830 = vpop.permute.xlu0 %1829
      %1831 = vrot.lane.b32.xlu0 %v1027, 32
      %v1832 = vpop.permute.xlu0 %1831
      %1833 = vrot.lane.b32.xlu0 %v1028, 32
      %v1834 = vpop.permute.xlu0 %1833
      %1835 = vrot.lane.b32.xlu0 %v1029, 32
      %v1836 = vpop.permute.xlu0 %1835
      %1837 = vrot.lane.b32.xlu0 %v1030, 32
      %v1838 = vpop.permute.xlu0 %1837
      %1839 = vrot.lane.b32.xlu0 %v1031, 32
      %v1840 = vpop.permute.xlu0 %1839
      %1841 = vrot.lane.b32.xlu0 %v1032, 32
      %v1842 = vpop.permute.xlu0 %1841
      %1843 = vrot.lane.b32.xlu0 %v1033, 32
      %v1844 = vpop.permute.xlu0 %1843
      %1845 = vrot.lane.b32.xlu0 %v1034, 32
      %v1846 = vpop.permute.xlu0 %1845
      %1847 = vrot.lane.b32.xlu0 %v1035, 32
      %v1848 = vpop.permute.xlu0 %1847
      %1849 = vrot.lane.b32.xlu0 %v1036, 32
      %v1850 = vpop.permute.xlu0 %1849
      %1851 = vrot.lane.b32.xlu0 %v1037, 32
      %v1852 = vpop.permute.xlu0 %1851
      %1853 = vrot.lane.b32.xlu0 %v1038, 32
      %v1854 = vpop.permute.xlu0 %1853
      %1855 = vrot.lane.b32.xlu0 %v1039, 32
      %v1856 = vpop.permute.xlu0 %1855
      %1857 = vrot.lane.b32.xlu0 %v1040, 32
      %v1858 = vpop.permute.xlu0 %1857
      %1859 = vrot.lane.b32.xlu0 %v1041, 32
      %v1860 = vpop.permute.xlu0 %1859
      %1861 = vrot.lane.b32.xlu0 %v1042, 32
      %v1862 = vpop.permute.xlu0 %1861
      %1863 = vrot.lane.b32.xlu0 %v1043, 32
      %v1864 = vpop.permute.xlu0 %1863
      %1865 = vrot.lane.b32.xlu0 %v1044, 32
      %v1866 = vpop.permute.xlu0 %1865
      %1867 = vrot.lane.b32.xlu0 %v1045, 32
      %v1868 = vpop.permute.xlu0 %1867
      %1869 = vrot.lane.b32.xlu0 %v1046, 32
      %v1870 = vpop.permute.xlu0 %1869
      %1871 = vrot.lane.b32.xlu0 %v1047, 32
      %v1872 = vpop.permute.xlu0 %1871
      %1873 = vrot.lane.b32.xlu0 %v1048, 32
      %v1874 = vpop.permute.xlu0 %1873
      %1875 = vrot.lane.b32.xlu0 %v1049, 32
      %v1876 = vpop.permute.xlu0 %1875
      %1877 = vrot.lane.b32.xlu0 %v1050, 32
      %v1878 = vpop.permute.xlu0 %1877
      %1879 = vrot.lane.b32.xlu0 %v1051, 32
      %v1880 = vpop.permute.xlu0 %1879
      %1881 = vrot.lane.b32.xlu0 %v1052, 32
      %v1882 = vpop.permute.xlu0 %1881
      %1883 = vrot.lane.b32.xlu0 %v1053, 32
      %v1884 = vpop.permute.xlu0 %1883
      %1885 = vrot.lane.b32.xlu0 %v1054, 32
      %v1886 = vpop.permute.xlu0 %1885
      %1887 = vrot.lane.b32.xlu0 %v1055, 32
      %v1888 = vpop.permute.xlu0 %1887
      %2017 = vrot.lane.b32.xlu0 %v1056, 48
      %v2018 = vpop.permute.xlu0 %2017
      %2019 = vrot.lane.b32.xlu0 %v1057, 48
      %v2020 = vpop.permute.xlu0 %2019
      %2021 = vrot.lane.b32.xlu0 %v1058, 48
      %v2022 = vpop.permute.xlu0 %2021
      %2023 = vrot.lane.b32.xlu0 %v1059, 48
      %v2024 = vpop.permute.xlu0 %2023
      %2025 = vrot.lane.b32.xlu0 %v1060, 48
      %v2026 = vpop.permute.xlu0 %2025
      %2027 = vrot.lane.b32.xlu0 %v1061, 48
      %v2028 = vpop.permute.xlu0 %2027
      %2029 = vrot.lane.b32.xlu0 %v1062, 48
      %v2030 = vpop.permute.xlu0 %2029
      %2031 = vrot.lane.b32.xlu0 %v1063, 48
      %v2032 = vpop.permute.xlu0 %2031
      %2033 = vrot.lane.b32.xlu0 %v1064, 48
      %v2034 = vpop.permute.xlu0 %2033
      %2035 = vrot.lane.b32.xlu0 %v1065, 48
      %v2036 = vpop.permute.xlu0 %2035
      %2037 = vrot.lane.b32.xlu0 %v1066, 48
      %v2038 = vpop.permute.xlu0 %2037
      %2039 = vrot.lane.b32.xlu0 %v1067, 48
      %v2040 = vpop.permute.xlu0 %2039
      %2041 = vrot.lane.b32.xlu0 %v1068, 48
      %v2042 = vpop.permute.xlu0 %2041
      %2043 = vrot.lane.b32.xlu0 %v1069, 48
      %v2044 = vpop.permute.xlu0 %2043
      %2045 = vrot.lane.b32.xlu0 %v1070, 48
      %v2046 = vpop.permute.xlu0 %2045
      %2047 = vrot.lane.b32.xlu0 %v1071, 48
      %v2048 = vpop.permute.xlu0 %2047
      %2049 = vrot.lane.b32.xlu0 %v1072, 48
      %v2050 = vpop.permute.xlu0 %2049
      %2051 = vrot.lane.b32.xlu0 %v1073, 48
      %v2052 = vpop.permute.xlu0 %2051
      %2053 = vrot.lane.b32.xlu0 %v1074, 48
      %v2054 = vpop.permute.xlu0 %2053
      %2055 = vrot.lane.b32.xlu0 %v1075, 48
      %v2056 = vpop.permute.xlu0 %2055
      %2057 = vrot.lane.b32.xlu0 %v1076, 48
      %v2058 = vpop.permute.xlu0 %2057
      %2059 = vrot.lane.b32.xlu0 %v1077, 48
      %v2060 = vpop.permute.xlu0 %2059
      %2061 = vrot.lane.b32.xlu0 %v1078, 48
      %v2062 = vpop.permute.xlu0 %2061
      %2063 = vrot.lane.b32.xlu0 %v1079, 48
      %v2064 = vpop.permute.xlu0 %2063
      %2065 = vrot.lane.b32.xlu0 %v1080, 48
      %v2066 = vpop.permute.xlu0 %2065
      %2067 = vrot.lane.b32.xlu0 %v1081, 48
      %v2068 = vpop.permute.xlu0 %2067
      %2069 = vrot.lane.b32.xlu0 %v1082, 48
      %v2070 = vpop.permute.xlu0 %2069
      %2071 = vrot.lane.b32.xlu0 %v1083, 48
      %v2072 = vpop.permute.xlu0 %2071
      %2073 = vrot.lane.b32.xlu0 %v1084, 48
      %v2074 = vpop.permute.xlu0 %2073
      %2075 = vrot.lane.b32.xlu0 %v1085, 48
      %v2076 = vpop.permute.xlu0 %2075
      %2077 = vrot.lane.b32.xlu0 %v1086, 48
      %v2078 = vpop.permute.xlu0 %2077
      %2079 = vrot.lane.b32.xlu0 %v1087, 48
      %v2080 = vpop.permute.xlu0 %2079
      %2081 = vrot.lane.b32.xlu0 %v1088, 48
      %v2082 = vpop.permute.xlu0 %2081
      %2083 = vrot.lane.b32.xlu0 %v1089, 48
      %v2084 = vpop.permute.xlu0 %2083
      %2085 = vrot.lane.b32.xlu0 %v1090, 48
      %v2086 = vpop.permute.xlu0 %2085
      %2087 = vrot.lane.b32.xlu0 %v1091, 48
      %v2088 = vpop.permute.xlu0 %2087
      %2089 = vrot.lane.b32.xlu0 %v1092, 48
      %v2090 = vpop.permute.xlu0 %2089
      %2091 = vrot.lane.b32.xlu0 %v1093, 48
      %v2092 = vpop.permute.xlu0 %2091
      %2093 = vrot.lane.b32.xlu0 %v1094, 48
      %v2094 = vpop.permute.xlu0 %2093
      %2095 = vrot.lane.b32.xlu0 %v1095, 48
      %v2096 = vpop.permute.xlu0 %2095
      %2097 = vrot.lane.b32.xlu0 %v1096, 48
      %v2098 = vpop.permute.xlu0 %2097
      %2099 = vrot.lane.b32.xlu0 %v1097, 48
      %v2100 = vpop.permute.xlu0 %2099
      %2101 = vrot.lane.b32.xlu0 %v1098, 48
      %v2102 = vpop.permute.xlu0 %2101
      %2103 = vrot.lane.b32.xlu0 %v1099, 48
      %v2104 = vpop.permute.xlu0 %2103
      %2105 = vrot.lane.b32.xlu0 %v1100, 48
      %v2106 = vpop.permute.xlu0 %2105
      %2107 = vrot.lane.b32.xlu0 %v1101, 48
      %v2108 = vpop.permute.xlu0 %2107
      %2109 = vrot.lane.b32.xlu0 %v1102, 48
      %v2110 = vpop.permute.xlu0 %2109
      %2111 = vrot.lane.b32.xlu0 %v1103, 48
      %v2112 = vpop.permute.xlu0 %2111
      %2113 = vrot.lane.b32.xlu0 %v1104, 48
      %v2114 = vpop.permute.xlu0 %2113
      %2115 = vrot.lane.b32.xlu0 %v1105, 48
      %v2116 = vpop.permute.xlu0 %2115
      %2117 = vrot.lane.b32.xlu0 %v1106, 48
      %v2118 = vpop.permute.xlu0 %2117
      %2119 = vrot.lane.b32.xlu0 %v1107, 48
      %v2120 = vpop.permute.xlu0 %2119
      %2121 = vrot.lane.b32.xlu0 %v1108, 48
      %v2122 = vpop.permute.xlu0 %2121
      %2123 = vrot.lane.b32.xlu0 %v1109, 48
      %v2124 = vpop.permute.xlu0 %2123
      %2125 = vrot.lane.b32.xlu0 %v1110, 48
      %v2126 = vpop.permute.xlu0 %2125
      %2127 = vrot.lane.b32.xlu0 %v1111, 48
      %v2128 = vpop.permute.xlu0 %2127
      %2129 = vrot.lane.b32.xlu0 %v1112, 48
      %v2130 = vpop.permute.xlu0 %2129
      %2131 = vrot.lane.b32.xlu0 %v1113, 48
      %v2132 = vpop.permute.xlu0 %2131
      %2133 = vrot.lane.b32.xlu0 %v1114, 48
      %v2134 = vpop.permute.xlu0 %2133
      %2135 = vrot.lane.b32.xlu0 %v1115, 48
      %v2136 = vpop.permute.xlu0 %2135
      %2137 = vrot.lane.b32.xlu0 %v1116, 48
      %v2138 = vpop.permute.xlu0 %2137
      %2139 = vrot.lane.b32.xlu0 %v1117, 48
      %v2140 = vpop.permute.xlu0 %2139
      %2141 = vrot.lane.b32.xlu0 %v1118, 48
      %v2142 = vpop.permute.xlu0 %2141
      %2143 = vrot.lane.b32.xlu0 %v1119, 48
      %v2144 = vpop.permute.xlu0 %2143
      %2273 = vrot.lane.b32.xlu0 %v1120, 64
      %v2274 = vpop.permute.xlu0 %2273
      %2275 = vrot.lane.b32.xlu0 %v1121, 64
      %v2276 = vpop.permute.xlu0 %2275
      %2277 = vrot.lane.b32.xlu0 %v1122, 64
      %v2278 = vpop.permute.xlu0 %2277
      %2279 = vrot.lane.b32.xlu0 %v1123, 64
      %v2280 = vpop.permute.xlu0 %2279
      %2281 = vrot.lane.b32.xlu0 %v1124, 64
      %v2282 = vpop.permute.xlu0 %2281
      %2283 = vrot.lane.b32.xlu0 %v1125, 64
      %v2284 = vpop.permute.xlu0 %2283
      %2285 = vrot.lane.b32.xlu0 %v1126, 64
      %v2286 = vpop.permute.xlu0 %2285
      %2287 = vrot.lane.b32.xlu0 %v1127, 64
      %v2288 = vpop.permute.xlu0 %2287
      %2289 = vrot.lane.b32.xlu0 %v1128, 64
      %v2290 = vpop.permute.xlu0 %2289
      %2291 = vrot.lane.b32.xlu0 %v1129, 64
      %v2292 = vpop.permute.xlu0 %2291
      %2293 = vrot.lane.b32.xlu0 %v1130, 64
      %v2294 = vpop.permute.xlu0 %2293
      %2295 = vrot.lane.b32.xlu0 %v1131, 64
      %v2296 = vpop.permute.xlu0 %2295
      %2297 = vrot.lane.b32.xlu0 %v1132, 64
      %v2298 = vpop.permute.xlu0 %2297
      %2299 = vrot.lane.b32.xlu0 %v1133, 64
      %v2300 = vpop.permute.xlu0 %2299
      %2301 = vrot.lane.b32.xlu0 %v1134, 64
      %v2302 = vpop.permute.xlu0 %2301
      %2303 = vrot.lane.b32.xlu0 %v1135, 64
      %v2304 = vpop.permute.xlu0 %2303
      %2305 = vrot.lane.b32.xlu0 %v1136, 64
      %v2306 = vpop.permute.xlu0 %2305
      %2307 = vrot.lane.b32.xlu0 %v1137, 64
      %v2308 = vpop.permute.xlu0 %2307
      %2309 = vrot.lane.b32.xlu0 %v1138, 64
      %v2310 = vpop.permute.xlu0 %2309
      %2311 = vrot.lane.b32.xlu0 %v1139, 64
      %v2312 = vpop.permute.xlu0 %2311
      %2313 = vrot.lane.b32.xlu0 %v1140, 64
      %v2314 = vpop.permute.xlu0 %2313
      %2315 = vrot.lane.b32.xlu0 %v1141, 64
      %v2316 = vpop.permute.xlu0 %2315
      %2317 = vrot.lane.b32.xlu0 %v1142, 64
      %v2318 = vpop.permute.xlu0 %2317
      %2319 = vrot.lane.b32.xlu0 %v1143, 64
      %v2320 = vpop.permute.xlu0 %2319
      %2321 = vrot.lane.b32.xlu0 %v1144, 64
      %v2322 = vpop.permute.xlu0 %2321
      %2323 = vrot.lane.b32.xlu0 %v1145, 64
      %v2324 = vpop.permute.xlu0 %2323
      %2325 = vrot.lane.b32.xlu0 %v1146, 64
      %v2326 = vpop.permute.xlu0 %2325
      %2327 = vrot.lane.b32.xlu0 %v1147, 64
      %v2328 = vpop.permute.xlu0 %2327
      %2329 = vrot.lane.b32.xlu0 %v1148, 64
      %v2330 = vpop.permute.xlu0 %2329
      %2331 = vrot.lane.b32.xlu0 %v1149, 64
      %v2332 = vpop.permute.xlu0 %2331
      %2333 = vrot.lane.b32.xlu0 %v1150, 64
      %v2334 = vpop.permute.xlu0 %2333
      %2335 = vrot.lane.b32.xlu0 %v1151, 64
      %v2336 = vpop.permute.xlu0 %2335
      %2337 = vrot.lane.b32.xlu0 %v1152, 64
      %v2338 = vpop.permute.xlu0 %2337
      %2339 = vrot.lane.b32.xlu0 %v1153, 64
      %v2340 = vpop.permute.xlu0 %2339
      %2341 = vrot.lane.b32.xlu0 %v1154, 64
      %v2342 = vpop.permute.xlu0 %2341
      %2343 = vrot.lane.b32.xlu0 %v1155, 64
      %v2344 = vpop.permute.xlu0 %2343
      %2345 = vrot.lane.b32.xlu0 %v1156, 64
      %v2346 = vpop.permute.xlu0 %2345
      %2347 = vrot.lane.b32.xlu0 %v1157, 64
      %v2348 = vpop.permute.xlu0 %2347
      %2349 = vrot.lane.b32.xlu0 %v1158, 64
      %v2350 = vpop.permute.xlu0 %2349
      %2351 = vrot.lane.b32.xlu0 %v1159, 64
      %v2352 = vpop.permute.xlu0 %2351
      %2353 = vrot.lane.b32.xlu0 %v1160, 64
      %v2354 = vpop.permute.xlu0 %2353
      %2355 = vrot.lane.b32.xlu0 %v1161, 64
      %v2356 = vpop.permute.xlu0 %2355
      %2357 = vrot.lane.b32.xlu0 %v1162, 64
      %v2358 = vpop.permute.xlu0 %2357
      %2359 = vrot.lane.b32.xlu0 %v1163, 64
      %v2360 = vpop.permute.xlu0 %2359
      %2361 = vrot.lane.b32.xlu0 %v1164, 64
      %v2362 = vpop.permute.xlu0 %2361
      %2363 = vrot.lane.b32.xlu0 %v1165, 64
      %v2364 = vpop.permute.xlu0 %2363
      %2365 = vrot.lane.b32.xlu0 %v1166, 64
      %v2366 = vpop.permute.xlu0 %2365
      %2367 = vrot.lane.b32.xlu0 %v1167, 64
      %v2368 = vpop.permute.xlu0 %2367
      %2369 = vrot.lane.b32.xlu0 %v1168, 64
      %v2370 = vpop.permute.xlu0 %2369
      %2371 = vrot.lane.b32.xlu0 %v1169, 64
      %v2372 = vpop.permute.xlu0 %2371
      %2373 = vrot.lane.b32.xlu0 %v1170, 64
      %v2374 = vpop.permute.xlu0 %2373
      %2375 = vrot.lane.b32.xlu0 %v1171, 64
      %v2376 = vpop.permute.xlu0 %2375
      %2377 = vrot.lane.b32.xlu0 %v1172, 64
      %v2378 = vpop.permute.xlu0 %2377
      %2379 = vrot.lane.b32.xlu0 %v1173, 64
      %v2380 = vpop.permute.xlu0 %2379
      %2381 = vrot.lane.b32.xlu0 %v1174, 64
      %v2382 = vpop.permute.xlu0 %2381
      %2383 = vrot.lane.b32.xlu0 %v1175, 64
      %v2384 = vpop.permute.xlu0 %2383
      %2385 = vrot.lane.b32.xlu0 %v1176, 64
      %v2386 = vpop.permute.xlu0 %2385
      %2387 = vrot.lane.b32.xlu0 %v1177, 64
      %v2388 = vpop.permute.xlu0 %2387
      %2389 = vrot.lane.b32.xlu0 %v1178, 64
      %v2390 = vpop.permute.xlu0 %2389
      %2391 = vrot.lane.b32.xlu0 %v1179, 64
      %v2392 = vpop.permute.xlu0 %2391
      %2393 = vrot.lane.b32.xlu0 %v1180, 64
      %v2394 = vpop.permute.xlu0 %2393
      %2395 = vrot.lane.b32.xlu0 %v1181, 64
      %v2396 = vpop.permute.xlu0 %2395
      %2397 = vrot.lane.b32.xlu0 %v1182, 64
      %v2398 = vpop.permute.xlu0 %2397
      %2399 = vrot.lane.b32.xlu0 %v1183, 64
      %v2400 = vpop.permute.xlu0 %2399
      %2529 = vrot.lane.b32.xlu0 %v1184, 80
      %v2530 = vpop.permute.xlu0 %2529
      %2531 = vrot.lane.b32.xlu0 %v1185, 80
      %v2532 = vpop.permute.xlu0 %2531
      %2533 = vrot.lane.b32.xlu0 %v1186, 80
      %v2534 = vpop.permute.xlu0 %2533
      %2535 = vrot.lane.b32.xlu0 %v1187, 80
      %v2536 = vpop.permute.xlu0 %2535
      %2537 = vrot.lane.b32.xlu0 %v1188, 80
      %v2538 = vpop.permute.xlu0 %2537
      %2539 = vrot.lane.b32.xlu0 %v1189, 80
      %v2540 = vpop.permute.xlu0 %2539
      %2541 = vrot.lane.b32.xlu0 %v1190, 80
      %v2542 = vpop.permute.xlu0 %2541
      %2543 = vrot.lane.b32.xlu0 %v1191, 80
      %v2544 = vpop.permute.xlu0 %2543
      %2545 = vrot.lane.b32.xlu0 %v1192, 80
      %v2546 = vpop.permute.xlu0 %2545
      %2547 = vrot.lane.b32.xlu0 %v1193, 80
      %v2548 = vpop.permute.xlu0 %2547
      %2549 = vrot.lane.b32.xlu0 %v1194, 80
      %v2550 = vpop.permute.xlu0 %2549
      %2551 = vrot.lane.b32.xlu0 %v1195, 80
      %v2552 = vpop.permute.xlu0 %2551
      %2553 = vrot.lane.b32.xlu0 %v1196, 80
      %v2554 = vpop.permute.xlu0 %2553
      %2555 = vrot.lane.b32.xlu0 %v1197, 80
      %v2556 = vpop.permute.xlu0 %2555
      %2557 = vrot.lane.b32.xlu0 %v1198, 80
      %v2558 = vpop.permute.xlu0 %2557
      %2559 = vrot.lane.b32.xlu0 %v1199, 80
      %v2560 = vpop.permute.xlu0 %2559
      %2561 = vrot.lane.b32.xlu0 %v1200, 80
      %v2562 = vpop.permute.xlu0 %2561
      %2563 = vrot.lane.b32.xlu0 %v1201, 80
      %v2564 = vpop.permute.xlu0 %2563
      %2565 = vrot.lane.b32.xlu0 %v1202, 80
      %v2566 = vpop.permute.xlu0 %2565
      %2567 = vrot.lane.b32.xlu0 %v1203, 80
      %v2568 = vpop.permute.xlu0 %2567
      %2569 = vrot.lane.b32.xlu0 %v1204, 80
      %v2570 = vpop.permute.xlu0 %2569
      %2571 = vrot.lane.b32.xlu0 %v1205, 80
      %v2572 = vpop.permute.xlu0 %2571
      %2573 = vrot.lane.b32.xlu0 %v1206, 80
      %v2574 = vpop.permute.xlu0 %2573
      %2575 = vrot.lane.b32.xlu0 %v1207, 80
      %v2576 = vpop.permute.xlu0 %2575
      %2577 = vrot.lane.b32.xlu0 %v1208, 80
      %v2578 = vpop.permute.xlu0 %2577
      %2579 = vrot.lane.b32.xlu0 %v1209, 80
      %v2580 = vpop.permute.xlu0 %2579
      %2581 = vrot.lane.b32.xlu0 %v1210, 80
      %v2582 = vpop.permute.xlu0 %2581
      %2583 = vrot.lane.b32.xlu0 %v1211, 80
      %v2584 = vpop.permute.xlu0 %2583
      %2585 = vrot.lane.b32.xlu0 %v1212, 80
      %v2586 = vpop.permute.xlu0 %2585
      %2587 = vrot.lane.b32.xlu0 %v1213, 80
      %v2588 = vpop.permute.xlu0 %2587
      %2589 = vrot.lane.b32.xlu0 %v1214, 80
      %v2590 = vpop.permute.xlu0 %2589
      %2591 = vrot.lane.b32.xlu0 %v1215, 80
      %v2592 = vpop.permute.xlu0 %2591
      %2593 = vrot.lane.b32.xlu0 %v1216, 80
      %v2594 = vpop.permute.xlu0 %2593
      %2595 = vrot.lane.b32.xlu0 %v1217, 80
      %v2596 = vpop.permute.xlu0 %2595
      %2597 = vrot.lane.b32.xlu0 %v1218, 80
      %v2598 = vpop.permute.xlu0 %2597
      %2599 = vrot.lane.b32.xlu0 %v1219, 80
      %v2600 = vpop.permute.xlu0 %2599
      %2601 = vrot.lane.b32.xlu0 %v1220, 80
      %v2602 = vpop.permute.xlu0 %2601
      %2603 = vrot.lane.b32.xlu0 %v1221, 80
      %v2604 = vpop.permute.xlu0 %2603
      %2605 = vrot.lane.b32.xlu0 %v1222, 80
      %v2606 = vpop.permute.xlu0 %2605
      %2607 = vrot.lane.b32.xlu0 %v1223, 80
      %v2608 = vpop.permute.xlu0 %2607
      %2609 = vrot.lane.b32.xlu0 %v1224, 80
      %v2610 = vpop.permute.xlu0 %2609
      %2611 = vrot.lane.b32.xlu0 %v1225, 80
      %v2612 = vpop.permute.xlu0 %2611
      %2613 = vrot.lane.b32.xlu0 %v1226, 80
      %v2614 = vpop.permute.xlu0 %2613
      %2615 = vrot.lane.b32.xlu0 %v1227, 80
      %v2616 = vpop.permute.xlu0 %2615
      %2617 = vrot.lane.b32.xlu0 %v1228, 80
      %v2618 = vpop.permute.xlu0 %2617
      %2619 = vrot.lane.b32.xlu0 %v1229, 80
      %v2620 = vpop.permute.xlu0 %2619
      %2621 = vrot.lane.b32.xlu0 %v1230, 80
      %v2622 = vpop.permute.xlu0 %2621
      %2623 = vrot.lane.b32.xlu0 %v1231, 80
      %v2624 = vpop.permute.xlu0 %2623
      %2625 = vrot.lane.b32.xlu0 %v1232, 80
      %v2626 = vpop.permute.xlu0 %2625
      %2627 = vrot.lane.b32.xlu0 %v1233, 80
      %v2628 = vpop.permute.xlu0 %2627
      %2629 = vrot.lane.b32.xlu0 %v1234, 80
      %v2630 = vpop.permute.xlu0 %2629
      %2631 = vrot.lane.b32.xlu0 %v1235, 80
      %v2632 = vpop.permute.xlu0 %2631
      %2633 = vrot.lane.b32.xlu0 %v1236, 80
      %v2634 = vpop.permute.xlu0 %2633
      %2635 = vrot.lane.b32.xlu0 %v1237, 80
      %v2636 = vpop.permute.xlu0 %2635
      %2637 = vrot.lane.b32.xlu0 %v1238, 80
      %v2638 = vpop.permute.xlu0 %2637
      %2639 = vrot.lane.b32.xlu0 %v1239, 80
      %v2640 = vpop.permute.xlu0 %2639
      %2641 = vrot.lane.b32.xlu0 %v1240, 80
      %v2642 = vpop.permute.xlu0 %2641
      %2643 = vrot.lane.b32.xlu0 %v1241, 80
      %v2644 = vpop.permute.xlu0 %2643
      %2645 = vrot.lane.b32.xlu0 %v1242, 80
      %v2646 = vpop.permute.xlu0 %2645
      %2647 = vrot.lane.b32.xlu0 %v1243, 80
      %v2648 = vpop.permute.xlu0 %2647
      %2649 = vrot.lane.b32.xlu0 %v1244, 80
      %v2650 = vpop.permute.xlu0 %2649
      %2651 = vrot.lane.b32.xlu0 %v1245, 80
      %v2652 = vpop.permute.xlu0 %2651
      %2653 = vrot.lane.b32.xlu0 %v1246, 80
      %v2654 = vpop.permute.xlu0 %2653
      %2655 = vrot.lane.b32.xlu0 %v1247, 80
      %v2656 = vpop.permute.xlu0 %2655
      %2785 = vrot.lane.b32.xlu0 %v1249, 96
      %v2786 = vpop.permute.xlu0 %2785
      %2787 = vrot.lane.b32.xlu0 %v1250, 96
      %v2788 = vpop.permute.xlu0 %2787
      %2789 = vrot.lane.b32.xlu0 %v1251, 96
      %v2790 = vpop.permute.xlu0 %2789
      %2791 = vrot.lane.b32.xlu0 %v1252, 96
      %v2792 = vpop.permute.xlu0 %2791
      %2793 = vrot.lane.b32.xlu0 %v1253, 96
      %v2794 = vpop.permute.xlu0 %2793
      %2795 = vrot.lane.b32.xlu0 %v1254, 96
      %v2796 = vpop.permute.xlu0 %2795
      %2797 = vrot.lane.b32.xlu0 %v1255, 96
      %v2798 = vpop.permute.xlu0 %2797
      %2799 = vrot.lane.b32.xlu0 %v1256, 96
      %v2800 = vpop.permute.xlu0 %2799
      %2801 = vrot.lane.b32.xlu0 %v1257, 96
      %v2802 = vpop.permute.xlu0 %2801
      %2803 = vrot.lane.b32.xlu0 %v1258, 96
      %v2804 = vpop.permute.xlu0 %2803
      %2805 = vrot.lane.b32.xlu0 %v1259, 96
      %v2806 = vpop.permute.xlu0 %2805
      %2807 = vrot.lane.b32.xlu0 %v1260, 96
      %v2808 = vpop.permute.xlu0 %2807
      %2809 = vrot.lane.b32.xlu0 %v1261, 96
      %v2810 = vpop.permute.xlu0 %2809
      %2811 = vrot.lane.b32.xlu0 %v1262, 96
      %v2812 = vpop.permute.xlu0 %2811
      %2813 = vrot.lane.b32.xlu0 %v1263, 96
      %v2814 = vpop.permute.xlu0 %2813
      %2815 = vrot.lane.b32.xlu0 %v1264, 96
      %v2816 = vpop.permute.xlu0 %2815
      %2817 = vrot.lane.b32.xlu0 %v1265, 96
      %v2818 = vpop.permute.xlu0 %2817
      %2819 = vrot.lane.b32.xlu0 %v1266, 96
      %v2820 = vpop.permute.xlu0 %2819
      %2821 = vrot.lane.b32.xlu0 %v1267, 96
      %v2822 = vpop.permute.xlu0 %2821
      %2823 = vrot.lane.b32.xlu0 %v1268, 96
      %v2824 = vpop.permute.xlu0 %2823
      %2825 = vrot.lane.b32.xlu0 %v1269, 96
      %v2826 = vpop.permute.xlu0 %2825
      %2827 = vrot.lane.b32.xlu0 %v1270, 96
      %v2828 = vpop.permute.xlu0 %2827
      %2829 = vrot.lane.b32.xlu0 %v1271, 96
      %v2830 = vpop.permute.xlu0 %2829
      %2831 = vrot.lane.b32.xlu0 %v1272, 96
      %v2832 = vpop.permute.xlu0 %2831
      %2833 = vrot.lane.b32.xlu0 %v1273, 96
      %v2834 = vpop.permute.xlu0 %2833
      %2835 = vrot.lane.b32.xlu0 %v1274, 96
      %v2836 = vpop.permute.xlu0 %2835
      %2837 = vrot.lane.b32.xlu0 %v1275, 96
      %v2838 = vpop.permute.xlu0 %2837
      %2839 = vrot.lane.b32.xlu0 %v1276, 96
      %v2840 = vpop.permute.xlu0 %2839
      %2841 = vrot.lane.b32.xlu0 %v1277, 96
      %v2842 = vpop.permute.xlu0 %2841
      %2843 = vrot.lane.b32.xlu0 %v1278, 96
      %v2844 = vpop.permute.xlu0 %2843
      %2845 = vrot.lane.b32.xlu0 %v1279, 96
      %v2846 = vpop.permute.xlu0 %2845
      %2847 = vrot.lane.b32.xlu0 %v1280, 96
      %v2848 = vpop.permute.xlu0 %2847
      %2849 = vrot.lane.b32.xlu0 %v1281, 96
      %v2850 = vpop.permute.xlu0 %2849
      %2851 = vrot.lane.b32.xlu0 %v1282, 96
      %v2852 = vpop.permute.xlu0 %2851
      %2853 = vrot.lane.b32.xlu0 %v1283, 96
      %v2854 = vpop.permute.xlu0 %2853
      %2855 = vrot.lane.b32.xlu0 %v1284, 96
      %v2856 = vpop.permute.xlu0 %2855
      %2857 = vrot.lane.b32.xlu0 %v1285, 96
      %v2858 = vpop.permute.xlu0 %2857
      %2859 = vrot.lane.b32.xlu0 %v1286, 96
      %v2860 = vpop.permute.xlu0 %2859
      %2861 = vrot.lane.b32.xlu0 %v1287, 96
      %v2862 = vpop.permute.xlu0 %2861
      %2863 = vrot.lane.b32.xlu0 %v1288, 96
      %v2864 = vpop.permute.xlu0 %2863
      %2865 = vrot.lane.b32.xlu0 %v1289, 96
      %v2866 = vpop.permute.xlu0 %2865
      %2867 = vrot.lane.b32.xlu0 %v1290, 96
      %v2868 = vpop.permute.xlu0 %2867
      %2869 = vrot.lane.b32.xlu0 %v1291, 96
      %v2870 = vpop.permute.xlu0 %2869
      %2871 = vrot.lane.b32.xlu0 %v1292, 96
      %v2872 = vpop.permute.xlu0 %2871
      %2873 = vrot.lane.b32.xlu0 %v1293, 96
      %v2874 = vpop.permute.xlu0 %2873
      %2875 = vrot.lane.b32.xlu0 %v1294, 96
      %v2876 = vpop.permute.xlu0 %2875
      %2877 = vrot.lane.b32.xlu0 %v1295, 96
      %v2878 = vpop.permute.xlu0 %2877
      %2879 = vrot.lane.b32.xlu0 %v1296, 96
      %v2880 = vpop.permute.xlu0 %2879
      %2881 = vrot.lane.b32.xlu0 %v1297, 96
      %v2882 = vpop.permute.xlu0 %2881
      %2883 = vrot.lane.b32.xlu0 %v1298, 96
      %v2884 = vpop.permute.xlu0 %2883
      %2885 = vrot.lane.b32.xlu0 %v1299, 96
      %v2886 = vpop.permute.xlu0 %2885
      %2887 = vrot.lane.b32.xlu0 %v1300, 96
      %v2888 = vpop.permute.xlu0 %2887
      %2889 = vrot.lane.b32.xlu0 %v1301, 96
      %v2890 = vpop.permute.xlu0 %2889
      %2891 = vrot.lane.b32.xlu0 %v1302, 96
      %v2892 = vpop.permute.xlu0 %2891
      %2893 = vrot.lane.b32.xlu0 %v1303, 96
      %v2894 = vpop.permute.xlu0 %2893
      %2895 = vrot.lane.b32.xlu0 %v1304, 96
      %v2896 = vpop.permute.xlu0 %2895
      %2897 = vrot.lane.b32.xlu0 %v1305, 96
      %v2898 = vpop.permute.xlu0 %2897
      %2899 = vrot.lane.b32.xlu0 %v1306, 96
      %v2900 = vpop.permute.xlu0 %2899
      %2901 = vrot.lane.b32.xlu0 %v1307, 96
      %v2902 = vpop.permute.xlu0 %2901
      %2903 = vrot.lane.b32.xlu0 %v1308, 96
      %v2904 = vpop.permute.xlu0 %2903
      %2905 = vrot.lane.b32.xlu0 %v1309, 96
      %v2906 = vpop.permute.xlu0 %2905
      %2907 = vrot.lane.b32.xlu0 %v1310, 96
      %v2908 = vpop.permute.xlu0 %2907
      %2909 = vrot.lane.b32.xlu0 %v1311, 96
      %v2910 = vpop.permute.xlu0 %2909
      %2911 = vrot.lane.b32.xlu0 %v1312, 96
      %v2912 = vpop.permute.xlu0 %2911
      %3041 = vrot.lane.b32.xlu0 %v1313, 112
      %v3042 = vpop.permute.xlu0 %3041
      %3043 = vrot.lane.b32.xlu0 %v1314, 112
      %v3044 = vpop.permute.xlu0 %3043
      %3045 = vrot.lane.b32.xlu0 %v1315, 112
      %v3046 = vpop.permute.xlu0 %3045
      %3047 = vrot.lane.b32.xlu0 %v1316, 112
      %v3048 = vpop.permute.xlu0 %3047
      %3049 = vrot.lane.b32.xlu0 %v1317, 112
      %v3050 = vpop.permute.xlu0 %3049
      %3051 = vrot.lane.b32.xlu0 %v1318, 112
      %v3052 = vpop.permute.xlu0 %3051
      %3053 = vrot.lane.b32.xlu0 %v1319, 112
      %v3054 = vpop.permute.xlu0 %3053
      %3055 = vrot.lane.b32.xlu0 %v1320, 112
      %v3056 = vpop.permute.xlu0 %3055
      %3057 = vrot.lane.b32.xlu0 %v1321, 112
      %v3058 = vpop.permute.xlu0 %3057
      %3059 = vrot.lane.b32.xlu0 %v1322, 112
      %v3060 = vpop.permute.xlu0 %3059
      %3061 = vrot.lane.b32.xlu0 %v1323, 112
      %v3062 = vpop.permute.xlu0 %3061
      %3063 = vrot.lane.b32.xlu0 %v1324, 112
      %v3064 = vpop.permute.xlu0 %3063
      %3065 = vrot.lane.b32.xlu0 %v1325, 112
      %v3066 = vpop.permute.xlu0 %3065
      %3067 = vrot.lane.b32.xlu0 %v1326, 112
      %v3068 = vpop.permute.xlu0 %3067
      %3069 = vrot.lane.b32.xlu0 %v1327, 112
      %v3070 = vpop.permute.xlu0 %3069
      %3071 = vrot.lane.b32.xlu0 %v1328, 112
      %v3072 = vpop.permute.xlu0 %3071
      %3073 = vrot.lane.b32.xlu0 %v1329, 112
      %v3074 = vpop.permute.xlu0 %3073
      %3075 = vrot.lane.b32.xlu0 %v1330, 112
      %v3076 = vpop.permute.xlu0 %3075
      %3077 = vrot.lane.b32.xlu0 %v1331, 112
      %v3078 = vpop.permute.xlu0 %3077
      %3079 = vrot.lane.b32.xlu0 %v1332, 112
      %v3080 = vpop.permute.xlu0 %3079
      %3081 = vrot.lane.b32.xlu0 %v1333, 112
      %v3082 = vpop.permute.xlu0 %3081
      %3083 = vrot.lane.b32.xlu0 %v1334, 112
      %v3084 = vpop.permute.xlu0 %3083
      %3085 = vrot.lane.b32.xlu0 %v1335, 112
      %v3086 = vpop.permute.xlu0 %3085
      %3087 = vrot.lane.b32.xlu0 %v1336, 112
      %v3088 = vpop.permute.xlu0 %3087
      %3089 = vrot.lane.b32.xlu0 %v1337, 112
      %v3090 = vpop.permute.xlu0 %3089
      %3091 = vrot.lane.b32.xlu0 %v1338, 112
      %v3092 = vpop.permute.xlu0 %3091
      %3093 = vrot.lane.b32.xlu0 %v1339, 112
      %v3094 = vpop.permute.xlu0 %3093
      %3095 = vrot.lane.b32.xlu0 %v1340, 112
      %v3096 = vpop.permute.xlu0 %3095
      %3097 = vrot.lane.b32.xlu0 %v1341, 112
      %v3098 = vpop.permute.xlu0 %3097
      %3099 = vrot.lane.b32.xlu0 %v1342, 112
      %v3100 = vpop.permute.xlu0 %3099
      %3101 = vrot.lane.b32.xlu0 %v1343, 112
      %v3102 = vpop.permute.xlu0 %3101
      %3103 = vrot.lane.b32.xlu0 %v1344, 112
      %v3104 = vpop.permute.xlu0 %3103
      %3105 = vrot.lane.b32.xlu0 %v1345, 112
      %v3106 = vpop.permute.xlu0 %3105
      %3107 = vrot.lane.b32.xlu0 %v1346, 112
      %v3108 = vpop.permute.xlu0 %3107
      %3109 = vrot.lane.b32.xlu0 %v1347, 112
      %v3110 = vpop.permute.xlu0 %3109
      %3111 = vrot.lane.b32.xlu0 %v1348, 112
      %v3112 = vpop.permute.xlu0 %3111
      %3113 = vrot.lane.b32.xlu0 %v1349, 112
      %v3114 = vpop.permute.xlu0 %3113
      %3115 = vrot.lane.b32.xlu0 %v1350, 112
      %v3116 = vpop.permute.xlu0 %3115
      %3117 = vrot.lane.b32.xlu0 %v1351, 112
      %v3118 = vpop.permute.xlu0 %3117
      %3119 = vrot.lane.b32.xlu0 %v1352, 112
      %v3120 = vpop.permute.xlu0 %3119
      %3121 = vrot.lane.b32.xlu0 %v1353, 112
      %v3122 = vpop.permute.xlu0 %3121
      %3123 = vrot.lane.b32.xlu0 %v1354, 112
      %v3124 = vpop.permute.xlu0 %3123
      %3125 = vrot.lane.b32.xlu0 %v1355, 112
      %v3126 = vpop.permute.xlu0 %3125
      %3127 = vrot.lane.b32.xlu0 %v1356, 112
      %v3128 = vpop.permute.xlu0 %3127
      %3129 = vrot.lane.b32.xlu0 %v1357, 112
      %v3130 = vpop.permute.xlu0 %3129
      %3131 = vrot.lane.b32.xlu0 %v1358, 112
      %v3132 = vpop.permute.xlu0 %3131
      %3133 = vrot.lane.b32.xlu0 %v1359, 112
      %v3134 = vpop.permute.xlu0 %3133
      %3135 = vrot.lane.b32.xlu0 %v1360, 112
      %v3136 = vpop.permute.xlu0 %3135
      %3137 = vrot.lane.b32.xlu0 %v1361, 112
      %v3138 = vpop.permute.xlu0 %3137
      %3139 = vrot.lane.b32.xlu0 %v1362, 112
      %v3140 = vpop.permute.xlu0 %3139
      %3141 = vrot.lane.b32.xlu0 %v1363, 112
      %v3142 = vpop.permute.xlu0 %3141
      %3143 = vrot.lane.b32.xlu0 %v1364, 112
      %v3144 = vpop.permute.xlu0 %3143
      %3145 = vrot.lane.b32.xlu0 %v1365, 112
      %v3146 = vpop.permute.xlu0 %3145
      %3147 = vrot.lane.b32.xlu0 %v1366, 112
      %v3148 = vpop.permute.xlu0 %3147
      %3149 = vrot.lane.b32.xlu0 %v1367, 112
      %v3150 = vpop.permute.xlu0 %3149
      %3151 = vrot.lane.b32.xlu0 %v1368, 112
      %v3152 = vpop.permute.xlu0 %3151
      %3153 = vrot.lane.b32.xlu0 %v1369, 112
      %v3154 = vpop.permute.xlu0 %3153
      %3155 = vrot.lane.b32.xlu0 %v1370, 112
      %v3156 = vpop.permute.xlu0 %3155
      %3157 = vrot.lane.b32.xlu0 %v1371, 112
      %v3158 = vpop.permute.xlu0 %3157
      %3159 = vrot.lane.b32.xlu0 %v1372, 112
      %v3160 = vpop.permute.xlu0 %3159
      %3161 = vrot.lane.b32.xlu0 %v1373, 112
      %v3162 = vpop.permute.xlu0 %3161
      %3163 = vrot.lane.b32.xlu0 %v1374, 112
      %v3164 = vpop.permute.xlu0 %3163
      %3165 = vrot.lane.b32.xlu0 %v1375, 112
      %v3166 = vpop.permute.xlu0 %3165
      %3167 = vrot.lane.b32.xlu0 %v1376, 112
      %v3168 = vpop.permute.xlu0 %3167
      %v3233 = vsel %vm719, %v864, %v1506
      %v3234 = vsel %vm719, %v865, %v1508
      %v3235 = vsel %vm719, %v866, %v1510
      %v3236 = vsel %vm719, %v867, %v1512
      %v3237 = vsel %vm719, %v868, %v1514
      %v3238 = vsel %vm719, %v869, %v1516
      %v3239 = vsel %vm719, %v870, %v1518
      %v3240 = vsel %vm719, %v871, %v1520
      %v3241 = vsel %vm719, %v872, %v1522
      %v3242 = vsel %vm719, %v873, %v1524
      %v3243 = vsel %vm719, %v874, %v1526
      %v3244 = vsel %vm719, %v875, %v1528
      %v3245 = vsel %vm719, %v876, %v1530
      %v3246 = vsel %vm719, %v877, %v1532
      %v3247 = vsel %vm719, %v878, %v1534
      %v3248 = vsel %vm719, %v879, %v1536
      %v3249 = vsel %vm719, %v880, %v1538
      %v3250 = vsel %vm719, %v881, %v1540
      %v3251 = vsel %vm719, %v882, %v1542
      %v3252 = vsel %vm719, %v883, %v1544
      %v3253 = vsel %vm719, %v884, %v1546
      %v3254 = vsel %vm719, %v885, %v1548
      %v3255 = vsel %vm719, %v886, %v1550
      %v3256 = vsel %vm719, %v887, %v1552
      %v3257 = vsel %vm719, %v888, %v1554
      %v3258 = vsel %vm719, %v889, %v1556
      %v3259 = vsel %vm719, %v890, %v1558
      %v3260 = vsel %vm719, %v891, %v1560
      %v3261 = vsel %vm719, %v892, %v1562
      %v3262 = vsel %vm719, %v893, %v1564
      %v3263 = vsel %vm719, %v894, %v1566
      %v3264 = vsel %vm719, %v895, %v1568
      %v3265 = vsel %vm719, %v896, %v1570
      %v3266 = vsel %vm719, %v897, %v1572
      %v3267 = vsel %vm719, %v898, %v1574
      %v3268 = vsel %vm719, %v899, %v1576
      %v3269 = vsel %vm719, %v900, %v1578
      %v3270 = vsel %vm719, %v901, %v1580
      %v3271 = vsel %vm719, %v902, %v1582
      %v3272 = vsel %vm719, %v903, %v1584
      %v3273 = vsel %vm719, %v904, %v1586
      %v3274 = vsel %vm719, %v905, %v1588
      %v3275 = vsel %vm719, %v906, %v1590
      %v3276 = vsel %vm719, %v907, %v1592
      %v3277 = vsel %vm719, %v908, %v1594
      %v3278 = vsel %vm719, %v909, %v1596
      %v3279 = vsel %vm719, %v910, %v1598
      %v3280 = vsel %vm719, %v911, %v1600
      %v3281 = vsel %vm719, %v912, %v1602
      %v3282 = vsel %vm719, %v913, %v1604
      %v3283 = vsel %vm719, %v914, %v1606
      %v3284 = vsel %vm719, %v915, %v1608
      %v3285 = vsel %vm719, %v916, %v1610
      %v3286 = vsel %vm719, %v917, %v1612
      %v3287 = vsel %vm719, %v918, %v1614
      %v3288 = vsel %vm719, %v919, %v1616
      %v3289 = vsel %vm719, %v920, %v1618
      %v3290 = vsel %vm719, %v921, %v1620
      %v3291 = vsel %vm719, %v922, %v1622
      %v3292 = vsel %vm719, %v923, %v1624
      %v3293 = vsel %vm719, %v924, %v1626
      %v3294 = vsel %vm719, %v925, %v1628
      %v3295 = vsel %vm719, %v926, %v1630
      %v3296 = vsel %vm719, %v927, %v1632
      %vm3297 = vcmask 261120
      %v3298 = vsel %vm3297, %v3233, %v1762
      %v3299 = vsel %vm3297, %v3234, %v1764
      %v3300 = vsel %vm3297, %v3235, %v1766
      %v3301 = vsel %vm3297, %v3236, %v1768
      %v3302 = vsel %vm3297, %v3237, %v1770
      %v3303 = vsel %vm3297, %v3238, %v1772
      %v3304 = vsel %vm3297, %v3239, %v1774
      %v3305 = vsel %vm3297, %v3240, %v1776
      %v3306 = vsel %vm3297, %v3241, %v1778
      %v3307 = vsel %vm3297, %v3242, %v1780
      %v3308 = vsel %vm3297, %v3243, %v1782
      %v3309 = vsel %vm3297, %v3244, %v1784
      %v3310 = vsel %vm3297, %v3245, %v1786
      %v3311 = vsel %vm3297, %v3246, %v1788
      %v3312 = vsel %vm3297, %v3247, %v1790
      %v3313 = vsel %vm3297, %v3248, %v1792
      %v3314 = vsel %vm3297, %v3249, %v1794
      %v3315 = vsel %vm3297, %v3250, %v1796
      %v3316 = vsel %vm3297, %v3251, %v1798
      %v3317 = vsel %vm3297, %v3252, %v1800
      %v3318 = vsel %vm3297, %v3253, %v1802
      %v3319 = vsel %vm3297, %v3254, %v1804
      %v3320 = vsel %vm3297, %v3255, %v1806
      %v3321 = vsel %vm3297, %v3256, %v1808
      %v3322 = vsel %vm3297, %v3257, %v1810
      %v3323 = vsel %vm3297, %v3258, %v1812
      %v3324 = vsel %vm3297, %v3259, %v1814
      %v3325 = vsel %vm3297, %v3260, %v1816
      %v3326 = vsel %vm3297, %v3261, %v1818
      %v3327 = vsel %vm3297, %v3262, %v1820
      %v3328 = vsel %vm3297, %v3263, %v1822
      %v3329 = vsel %vm3297, %v3264, %v1824
      %v3330 = vsel %vm3297, %v3265, %v1826
      %v3331 = vsel %vm3297, %v3266, %v1828
      %v3332 = vsel %vm3297, %v3267, %v1830
      %v3333 = vsel %vm3297, %v3268, %v1832
      %v3334 = vsel %vm3297, %v3269, %v1834
      %v3335 = vsel %vm3297, %v3270, %v1836
      %v3336 = vsel %vm3297, %v3271, %v1838
      %v3337 = vsel %vm3297, %v3272, %v1840
      %v3338 = vsel %vm3297, %v3273, %v1842
      %v3339 = vsel %vm3297, %v3274, %v1844
      %v3340 = vsel %vm3297, %v3275, %v1846
      %v3341 = vsel %vm3297, %v3276, %v1848
      %v3342 = vsel %vm3297, %v3277, %v1850
      %v3343 = vsel %vm3297, %v3278, %v1852
      %v3344 = vsel %vm3297, %v3279, %v1854
      %v3345 = vsel %vm3297, %v3280, %v1856
      %v3346 = vsel %vm3297, %v3281, %v1858
      %v3347 = vsel %vm3297, %v3282, %v1860
      %v3348 = vsel %vm3297, %v3283, %v1862
      %v3349 = vsel %vm3297, %v3284, %v1864
      %v3350 = vsel %vm3297, %v3285, %v1866
      %v3351 = vsel %vm3297, %v3286, %v1868
      %v3352 = vsel %vm3297, %v3287, %v1870
      %v3353 = vsel %vm3297, %v3288, %v1872
      %v3354 = vsel %vm3297, %v3289, %v1874
      %v3355 = vsel %vm3297, %v3290, %v1876
      %v3356 = vsel %vm3297, %v3291, %v1878
      %v3357 = vsel %vm3297, %v3292, %v1880
      %v3358 = vsel %vm3297, %v3293, %v1882
      %v3359 = vsel %vm3297, %v3294, %v1884
      %v3360 = vsel %vm3297, %v3295, %v1886
      %v3361 = vsel %vm3297, %v3296, %v1888
      %vm3362 = vcmask 392192
      %v3363 = vsel %vm3362, %v3298, %v2018
      %v3364 = vsel %vm3362, %v3299, %v2020
      %v3365 = vsel %vm3362, %v3300, %v2022
      %v3366 = vsel %vm3362, %v3301, %v2024
      %v3367 = vsel %vm3362, %v3302, %v2026
      %v3368 = vsel %vm3362, %v3303, %v2028
      %v3369 = vsel %vm3362, %v3304, %v2030
      %v3370 = vsel %vm3362, %v3305, %v2032
      %v3371 = vsel %vm3362, %v3306, %v2034
      %v3372 = vsel %vm3362, %v3307, %v2036
      %v3373 = vsel %vm3362, %v3308, %v2038
      %v3374 = vsel %vm3362, %v3309, %v2040
      %v3375 = vsel %vm3362, %v3310, %v2042
      %v3376 = vsel %vm3362, %v3311, %v2044
      %v3377 = vsel %vm3362, %v3312, %v2046
      %v3378 = vsel %vm3362, %v3313, %v2048
      %v3379 = vsel %vm3362, %v3314, %v2050
      %v3380 = vsel %vm3362, %v3315, %v2052
      %v3381 = vsel %vm3362, %v3316, %v2054
      %v3382 = vsel %vm3362, %v3317, %v2056
      %v3383 = vsel %vm3362, %v3318, %v2058
      %v3384 = vsel %vm3362, %v3319, %v2060
      %v3385 = vsel %vm3362, %v3320, %v2062
      %v3386 = vsel %vm3362, %v3321, %v2064
      %v3387 = vsel %vm3362, %v3322, %v2066
      %v3388 = vsel %vm3362, %v3323, %v2068
      %v3389 = vsel %vm3362, %v3324, %v2070
      %v3390 = vsel %vm3362, %v3325, %v2072
      %v3391 = vsel %vm3362, %v3326, %v2074
      %v3392 = vsel %vm3362, %v3327, %v2076
      %v3393 = vsel %vm3362, %v3328, %v2078
      %v3394 = vsel %vm3362, %v3329, %v2080
      %v3395 = vsel %vm3362, %v3330, %v2082
      %v3396 = vsel %vm3362, %v3331, %v2084
      %v3397 = vsel %vm3362, %v3332, %v2086
      %v3398 = vsel %vm3362, %v3333, %v2088
      %v3399 = vsel %vm3362, %v3334, %v2090
      %v3400 = vsel %vm3362, %v3335, %v2092
      %v3401 = vsel %vm3362, %v3336, %v2094
      %v3402 = vsel %vm3362, %v3337, %v2096
      %v3403 = vsel %vm3362, %v3338, %v2098
      %v3404 = vsel %vm3362, %v3339, %v2100
      %v3405 = vsel %vm3362, %v3340, %v2102
      %v3406 = vsel %vm3362, %v3341, %v2104
      %v3407 = vsel %vm3362, %v3342, %v2106
      %v3408 = vsel %vm3362, %v3343, %v2108
      %v3409 = vsel %vm3362, %v3344, %v2110
      %v3410 = vsel %vm3362, %v3345, %v2112
      %v3411 = vsel %vm3362, %v3346, %v2114
      %v3412 = vsel %vm3362, %v3347, %v2116
      %v3413 = vsel %vm3362, %v3348, %v2118
      %v3414 = vsel %vm3362, %v3349, %v2120
      %v3415 = vsel %vm3362, %v3350, %v2122
      %v3416 = vsel %vm3362, %v3351, %v2124
      %v3417 = vsel %vm3362, %v3352, %v2126
      %v3418 = vsel %vm3362, %v3353, %v2128
      %v3419 = vsel %vm3362, %v3354, %v2130
      %v3420 = vsel %vm3362, %v3355, %v2132
      %v3421 = vsel %vm3362, %v3356, %v2134
      %v3422 = vsel %vm3362, %v3357, %v2136
      %v3423 = vsel %vm3362, %v3358, %v2138
      %v3424 = vsel %vm3362, %v3359, %v2140
      %v3425 = vsel %vm3362, %v3360, %v2142
      %v3426 = vsel %vm3362, %v3361, %v2144
      %vm3427 = vcmask 523264
      %v3428 = vsel %vm3427, %v3363, %v2274
      %v3429 = vsel %vm3427, %v3364, %v2276
      %v3430 = vsel %vm3427, %v3365, %v2278
      %v3431 = vsel %vm3427, %v3366, %v2280
      %v3432 = vsel %vm3427, %v3367, %v2282
      %v3433 = vsel %vm3427, %v3368, %v2284
      %v3434 = vsel %vm3427, %v3369, %v2286
      %v3435 = vsel %vm3427, %v3370, %v2288
      %v3436 = vsel %vm3427, %v3371, %v2290
      %v3437 = vsel %vm3427, %v3372, %v2292
      %v3438 = vsel %vm3427, %v3373, %v2294
      %v3439 = vsel %vm3427, %v3374, %v2296
      %v3440 = vsel %vm3427, %v3375, %v2298
      %v3441 = vsel %vm3427, %v3376, %v2300
      %v3442 = vsel %vm3427, %v3377, %v2302
      %v3443 = vsel %vm3427, %v3378, %v2304
      %v3444 = vsel %vm3427, %v3379, %v2306
      %v3445 = vsel %vm3427, %v3380, %v2308
      %v3446 = vsel %vm3427, %v3381, %v2310
      %v3447 = vsel %vm3427, %v3382, %v2312
      %v3448 = vsel %vm3427, %v3383, %v2314
      %v3449 = vsel %vm3427, %v3384, %v2316
      %v3450 = vsel %vm3427, %v3385, %v2318
      %v3451 = vsel %vm3427, %v3386, %v2320
      %v3452 = vsel %vm3427, %v3387, %v2322
      %v3453 = vsel %vm3427, %v3388, %v2324
      %v3454 = vsel %vm3427, %v3389, %v2326
      %v3455 = vsel %vm3427, %v3390, %v2328
      %v3456 = vsel %vm3427, %v3391, %v2330
      %v3457 = vsel %vm3427, %v3392, %v2332
      %v3458 = vsel %vm3427, %v3393, %v2334
      %v3459 = vsel %vm3427, %v3394, %v2336
      %v3460 = vsel %vm3427, %v3395, %v2338
      %v3461 = vsel %vm3427, %v3396, %v2340
      %v3462 = vsel %vm3427, %v3397, %v2342
      %v3463 = vsel %vm3427, %v3398, %v2344
      %v3464 = vsel %vm3427, %v3399, %v2346
      %v3465 = vsel %vm3427, %v3400, %v2348
      %v3466 = vsel %vm3427, %v3401, %v2350
      %v3467 = vsel %vm3427, %v3402, %v2352
      %v3468 = vsel %vm3427, %v3403, %v2354
      %v3469 = vsel %vm3427, %v3404, %v2356
      %v3470 = vsel %vm3427, %v3405, %v2358
      %v3471 = vsel %vm3427, %v3406, %v2360
      %v3472 = vsel %vm3427, %v3407, %v2362
      %v3473 = vsel %vm3427, %v3408, %v2364
      %v3474 = vsel %vm3427, %v3409, %v2366
      %v3475 = vsel %vm3427, %v3410, %v2368
      %v3476 = vsel %vm3427, %v3411, %v2370
      %v3477 = vsel %vm3427, %v3412, %v2372
      %v3478 = vsel %vm3427, %v3413, %v2374
      %v3479 = vsel %vm3427, %v3414, %v2376
      %v3480 = vsel %vm3427, %v3415, %v2378
      %v3481 = vsel %vm3427, %v3416, %v2380
      %v3482 = vsel %vm3427, %v3417, %v2382
      %v3483 = vsel %vm3427, %v3418, %v2384
      %v3484 = vsel %vm3427, %v3419, %v2386
      %v3485 = vsel %vm3427, %v3420, %v2388
      %v3486 = vsel %vm3427, %v3421, %v2390
      %v3487 = vsel %vm3427, %v3422, %v2392
      %v3488 = vsel %vm3427, %v3423, %v2394
      %v3489 = vsel %vm3427, %v3424, %v2396
      %v3490 = vsel %vm3427, %v3425, %v2398
      %v3491 = vsel %vm3427, %v3426, %v2400
      %vm3492 = vcmask 654336
      %v3493 = vsel %vm3492, %v3428, %v2530
      %v3494 = vsel %vm3492, %v3429, %v2532
      %v3495 = vsel %vm3492, %v3430, %v2534
      %v3496 = vsel %vm3492, %v3431, %v2536
      %v3497 = vsel %vm3492, %v3432, %v2538
      %v3498 = vsel %vm3492, %v3433, %v2540
      %v3499 = vsel %vm3492, %v3434, %v2542
      %v3500 = vsel %vm3492, %v3435, %v2544
      %v3501 = vsel %vm3492, %v3436, %v2546
      %v3502 = vsel %vm3492, %v3437, %v2548
      %v3503 = vsel %vm3492, %v3438, %v2550
      %v3504 = vsel %vm3492, %v3439, %v2552
      %v3505 = vsel %vm3492, %v3440, %v2554
      %v3506 = vsel %vm3492, %v3441, %v2556
      %v3507 = vsel %vm3492, %v3442, %v2558
      %v3508 = vsel %vm3492, %v3443, %v2560
      %v3509 = vsel %vm3492, %v3444, %v2562
      %v3510 = vsel %vm3492, %v3445, %v2564
      %v3511 = vsel %vm3492, %v3446, %v2566
      %v3512 = vsel %vm3492, %v3447, %v2568
      %v3513 = vsel %vm3492, %v3448, %v2570
      %v3514 = vsel %vm3492, %v3449, %v2572
      %v3515 = vsel %vm3492, %v3450, %v2574
      %v3516 = vsel %vm3492, %v3451, %v2576
      %v3517 = vsel %vm3492, %v3452, %v2578
      %v3518 = vsel %vm3492, %v3453, %v2580
      %v3519 = vsel %vm3492, %v3454, %v2582
      %v3520 = vsel %vm3492, %v3455, %v2584
      %v3521 = vsel %vm3492, %v3456, %v2586
      %v3522 = vsel %vm3492, %v3457, %v2588
      %v3523 = vsel %vm3492, %v3458, %v2590
      %v3524 = vsel %vm3492, %v3459, %v2592
      %v3525 = vsel %vm3492, %v3460, %v2594
      %v3526 = vsel %vm3492, %v3461, %v2596
      %v3527 = vsel %vm3492, %v3462, %v2598
      %v3528 = vsel %vm3492, %v3463, %v2600
      %v3529 = vsel %vm3492, %v3464, %v2602
      %v3530 = vsel %vm3492, %v3465, %v2604
      %v3531 = vsel %vm3492, %v3466, %v2606
      %v3532 = vsel %vm3492, %v3467, %v2608
      %v3533 = vsel %vm3492, %v3468, %v2610
      %v3534 = vsel %vm3492, %v3469, %v2612
      %v3535 = vsel %vm3492, %v3470, %v2614
      %v3536 = vsel %vm3492, %v3471, %v2616
      %v3537 = vsel %vm3492, %v3472, %v2618
      %v3538 = vsel %vm3492, %v3473, %v2620
      %v3539 = vsel %vm3492, %v3474, %v2622
      %v3540 = vsel %vm3492, %v3475, %v2624
      %v3541 = vsel %vm3492, %v3476, %v2626
      %v3542 = vsel %vm3492, %v3477, %v2628
      %v3543 = vsel %vm3492, %v3478, %v2630
      %v3544 = vsel %vm3492, %v3479, %v2632
      %v3545 = vsel %vm3492, %v3480, %v2634
      %v3546 = vsel %vm3492, %v3481, %v2636
      %v3547 = vsel %vm3492, %v3482, %v2638
      %v3548 = vsel %vm3492, %v3483, %v2640
      %v3549 = vsel %vm3492, %v3484, %v2642
      %v3550 = vsel %vm3492, %v3485, %v2644
      %v3551 = vsel %vm3492, %v3486, %v2646
      %v3552 = vsel %vm3492, %v3487, %v2648
      %v3553 = vsel %vm3492, %v3488, %v2650
      %v3554 = vsel %vm3492, %v3489, %v2652
      %v3555 = vsel %vm3492, %v3490, %v2654
      %v3556 = vsel %vm3492, %v3491, %v2656
      %vm3557 = vcmask 785408
      %v3558 = vsel %vm3557, %v3493, %v2786
      %v3559 = vsel %vm3557, %v3494, %v2788
      %v3560 = vsel %vm3557, %v3495, %v2790
      %v3561 = vsel %vm3557, %v3496, %v2792
      %v3562 = vsel %vm3557, %v3497, %v2794
      %v3563 = vsel %vm3557, %v3498, %v2796
      %v3564 = vsel %vm3557, %v3499, %v2798
      %v3565 = vsel %vm3557, %v3500, %v2800
      %v3566 = vsel %vm3557, %v3501, %v2802
      %v3567 = vsel %vm3557, %v3502, %v2804
      %v3568 = vsel %vm3557, %v3503, %v2806
      %v3569 = vsel %vm3557, %v3504, %v2808
      %v3570 = vsel %vm3557, %v3505, %v2810
      %v3571 = vsel %vm3557, %v3506, %v2812
      %v3572 = vsel %vm3557, %v3507, %v2814
      %v3573 = vsel %vm3557, %v3508, %v2816
      %v3574 = vsel %vm3557, %v3509, %v2818
      %v3575 = vsel %vm3557, %v3510, %v2820
      %v3576 = vsel %vm3557, %v3511, %v2822
      %v3577 = vsel %vm3557, %v3512, %v2824
      %v3578 = vsel %vm3557, %v3513, %v2826
      %v3579 = vsel %vm3557, %v3514, %v2828
      %v3580 = vsel %vm3557, %v3515, %v2830
      %v3581 = vsel %vm3557, %v3516, %v2832
      %v3582 = vsel %vm3557, %v3517, %v2834
      %v3583 = vsel %vm3557, %v3518, %v2836
      %v3584 = vsel %vm3557, %v3519, %v2838
      %v3585 = vsel %vm3557, %v3520, %v2840
      %v3586 = vsel %vm3557, %v3521, %v2842
      %v3587 = vsel %vm3557, %v3522, %v2844
      %v3588 = vsel %vm3557, %v3523, %v2846
      %v3589 = vsel %vm3557, %v3524, %v2848
      %v3590 = vsel %vm3557, %v3525, %v2850
      %v3591 = vsel %vm3557, %v3526, %v2852
      %v3592 = vsel %vm3557, %v3527, %v2854
      %v3593 = vsel %vm3557, %v3528, %v2856
      %v3594 = vsel %vm3557, %v3529, %v2858
      %v3595 = vsel %vm3557, %v3530, %v2860
      %v3596 = vsel %vm3557, %v3531, %v2862
      %v3597 = vsel %vm3557, %v3532, %v2864
      %v3598 = vsel %vm3557, %v3533, %v2866
      %v3599 = vsel %vm3557, %v3534, %v2868
      %v3600 = vsel %vm3557, %v3535, %v2870
      %v3601 = vsel %vm3557, %v3536, %v2872
      %v3602 = vsel %vm3557, %v3537, %v2874
      %v3603 = vsel %vm3557, %v3538, %v2876
      %v3604 = vsel %vm3557, %v3539, %v2878
      %v3605 = vsel %vm3557, %v3540, %v2880
      %v3606 = vsel %vm3557, %v3541, %v2882
      %v3607 = vsel %vm3557, %v3542, %v2884
      %v3608 = vsel %vm3557, %v3543, %v2886
      %v3609 = vsel %vm3557, %v3544, %v2888
      %v3610 = vsel %vm3557, %v3545, %v2890
      %v3611 = vsel %vm3557, %v3546, %v2892
      %v3612 = vsel %vm3557, %v3547, %v2894
      %v3613 = vsel %vm3557, %v3548, %v2896
      %v3614 = vsel %vm3557, %v3549, %v2898
      %v3615 = vsel %vm3557, %v3550, %v2900
      %v3616 = vsel %vm3557, %v3551, %v2902
      %v3617 = vsel %vm3557, %v3552, %v2904
      %v3618 = vsel %vm3557, %v3553, %v2906
      %v3619 = vsel %vm3557, %v3554, %v2908
      %v3620 = vsel %vm3557, %v3555, %v2910
      %v3621 = vsel %vm3557, %v3556, %v2912
      %vm3622 = vcmask 916480
      %v3623 = vsel %vm3622, %v3558, %v3042
      %v3624 = vsel %vm3622, %v3559, %v3044
      %v3625 = vsel %vm3622, %v3560, %v3046
      %v3626 = vsel %vm3622, %v3561, %v3048
      %v3627 = vsel %vm3622, %v3562, %v3050
      %v3628 = vsel %vm3622, %v3563, %v3052
      %v3629 = vsel %vm3622, %v3564, %v3054
      %v3630 = vsel %vm3622, %v3565, %v3056
      %v3631 = vsel %vm3622, %v3566, %v3058
      %v3632 = vsel %vm3622, %v3567, %v3060
      %v3633 = vsel %vm3622, %v3568, %v3062
      %v3634 = vsel %vm3622, %v3569, %v3064
      %v3635 = vsel %vm3622, %v3570, %v3066
      %v3636 = vsel %vm3622, %v3571, %v3068
      %v3637 = vsel %vm3622, %v3572, %v3070
      %v3638 = vsel %vm3622, %v3573, %v3072
      %v3639 = vsel %vm3622, %v3574, %v3074
      %v3640 = vsel %vm3622, %v3575, %v3076
      %v3641 = vsel %vm3622, %v3576, %v3078
      %v3642 = vsel %vm3622, %v3577, %v3080
      %v3643 = vsel %vm3622, %v3578, %v3082
      %v3644 = vsel %vm3622, %v3579, %v3084
      %v3645 = vsel %vm3622, %v3580, %v3086
      %v3646 = vsel %vm3622, %v3581, %v3088
      %v3647 = vsel %vm3622, %v3582, %v3090
      %v3648 = vsel %vm3622, %v3583, %v3092
      %v3649 = vsel %vm3622, %v3584, %v3094
      %v3650 = vsel %vm3622, %v3585, %v3096
      %v3651 = vsel %vm3622, %v3586, %v3098
      %v3652 = vsel %vm3622, %v3587, %v3100
      %v3653 = vsel %vm3622, %v3588, %v3102
      %v3654 = vsel %vm3622, %v3589, %v3104
      %v3655 = vsel %vm3622, %v3590, %v3106
      %v3656 = vsel %vm3622, %v3591, %v3108
      %v3657 = vsel %vm3622, %v3592, %v3110
      %v3658 = vsel %vm3622, %v3593, %v3112
      %v3659 = vsel %vm3622, %v3594, %v3114
      %v3660 = vsel %vm3622, %v3595, %v3116
      %v3661 = vsel %vm3622, %v3596, %v3118
      %v3662 = vsel %vm3622, %v3597, %v3120
      %v3663 = vsel %vm3622, %v3598, %v3122
      %v3664 = vsel %vm3622, %v3599, %v3124
      %v3665 = vsel %vm3622, %v3600, %v3126
      %v3666 = vsel %vm3622, %v3601, %v3128
      %v3667 = vsel %vm3622, %v3602, %v3130
      %v3668 = vsel %vm3622, %v3603, %v3132
      %v3669 = vsel %vm3622, %v3604, %v3134
      %v3670 = vsel %vm3622, %v3605, %v3136
      %v3671 = vsel %vm3622, %v3606, %v3138
      %v3672 = vsel %vm3622, %v3607, %v3140
      %v3673 = vsel %vm3622, %v3608, %v3142
      %v3674 = vsel %vm3622, %v3609, %v3144
      %v3675 = vsel %vm3622, %v3610, %v3146
      %v3676 = vsel %vm3622, %v3611, %v3148
      %v3677 = vsel %vm3622, %v3612, %v3150
      %v3678 = vsel %vm3622, %v3613, %v3152
      %v3679 = vsel %vm3622, %v3614, %v3154
      %v3680 = vsel %vm3622, %v3615, %v3156
      %v3681 = vsel %vm3622, %v3616, %v3158
      %v3682 = vsel %vm3622, %v3617, %v3160
      %v3683 = vsel %vm3622, %v3618, %v3162
      %v3684 = vsel %vm3622, %v3619, %v3164
      %v3685 = vsel %vm3622, %v3620, %v3166
      %v3686 = vsel %vm3622, %v3621, %v3168
      %v3687 = vld [vmem:[%s1] sm:$0xff]
      %v3688 = vld [vmem:[%s1 + $0x8] sm:$0xff]
      %v3689 = vld [vmem:[%s1 + $0x10] sm:$0xff]
      %v3690 = vld [vmem:[%s1 + $0x18] sm:$0xff]
      %v3691 = vld [vmem:[%s1 + $0x20] sm:$0xff]
      %v3692 = vld [vmem:[%s1 + $0x28] sm:$0xff]
      %v3693 = vld [vmem:[%s1 + $0x30] sm:$0xff]
      %v3694 = vld [vmem:[%s1 + $0x38] sm:$0xff]
      %v3695 = vld [vmem:[%s1 + $0x40] sm:$0xff]
      %v3696 = vld [vmem:[%s1 + $0x48] sm:$0xff]
      %v3697 = vld [vmem:[%s1 + $0x50] sm:$0xff]
      %v3698 = vld [vmem:[%s1 + $0x58] sm:$0xff]
      %v3699 = vld [vmem:[%s1 + $0x60] sm:$0xff]
      %v3700 = vld [vmem:[%s1 + $0x68] sm:$0xff]
      %v3701 = vld [vmem:[%s1 + $0x70] sm:$0xff]
      %v3702 = vld [vmem:[%s1 + $0x78] sm:$0xff]
      %v3703 = vld [vmem:[%s1 + $0x80] sm:$0xff]
      %v3704 = vld [vmem:[%s1 + $0x88] sm:$0xff]
      %v3706 = vsel %vm719, %v1377, 0
      %v3709 = vsel %vm719, %v1378, 0
      %v3712 = vsel %vm719, %v1379, 0
      %v3715 = vsel %vm719, %v1380, 0
      %v3718 = vsel %vm719, %v1381, 0
      %v3721 = vsel %vm719, %v1382, 0
      %v3724 = vsel %vm719, %v1383, 0
      %v3727 = vsel %vm719, %v1384, 0
      %v3730 = vsel %vm719, %v1385, 0
      %v3733 = vsel %vm719, %v1386, 0
      %v3736 = vsel %vm719, %v1387, 0
      %v3739 = vsel %vm719, %v1388, 0
      %v3742 = vsel %vm719, %v1389, 0
      %v3745 = vsel %vm719, %v1390, 0
      %v3748 = vsel %vm719, %v1391, 0
      %v3751 = vsel %vm719, %v1392, 0
      %v3754 = vsel %vm719, %v1393, 0
      %v3757 = vsel %vm719, %v1394, 0
      %v3760 = vsel %vm719, %v1395, 0
      %v3763 = vsel %vm719, %v1396, 0
      %v3766 = vsel %vm719, %v1397, 0
      %v3769 = vsel %vm719, %v1398, 0
      %v3772 = vsel %vm719, %v1399, 0
      %v3775 = vsel %vm719, %v1400, 0
      %v3778 = vsel %vm719, %v1401, 0
      %v3781 = vsel %vm719, %v1402, 0
      %v3784 = vsel %vm719, %v1403, 0
      %v3787 = vsel %vm719, %v1404, 0
      %v3790 = vsel %vm719, %v1405, 0
      %v3793 = vsel %vm719, %v1406, 0
      %v3796 = vsel %vm719, %v1407, 0
      %v3799 = vsel %vm719, %v1408, 0
      %v3802 = vsel %vm719, %v1409, 0
      %v3805 = vsel %vm719, %v1410, 0
      %v3808 = vsel %vm719, %v1411, 0
      %v3811 = vsel %vm719, %v1412, 0
      %v3814 = vsel %vm719, %v1413, 0
      %v3817 = vsel %vm719, %v1414, 0
      %v3820 = vsel %vm719, %v1415, 0
      %v3823 = vsel %vm719, %v1416, 0
      %v3826 = vsel %vm719, %v1417, 0
      %v3829 = vsel %vm719, %v1418, 0
      %v3832 = vsel %vm719, %v1419, 0
      %v3835 = vsel %vm719, %v1420, 0
      %v3838 = vsel %vm719, %v1421, 0
      %v3841 = vsel %vm719, %v1422, 0
      %v3844 = vsel %vm719, %v1423, 0
      %v3847 = vsel %vm719, %v1424, 0
      %v3850 = vsel %vm719, %v1425, 0
      %v3853 = vsel %vm719, %v1426, 0
      %v3856 = vsel %vm719, %v1427, 0
      %v3859 = vsel %vm719, %v1428, 0
      %v3862 = vsel %vm719, %v1429, 0
      %v3865 = vsel %vm719, %v1430, 0
      %v3868 = vsel %vm719, %v1431, 0
      %v3871 = vsel %vm719, %v1432, 0
      %v3874 = vsel %vm719, %v1433, 0
      %v3877 = vsel %vm719, %v1434, 0
      %v3880 = vsel %vm719, %v1435, 0
      %v3883 = vsel %vm719, %v1436, 0
      %v3886 = vsel %vm719, %v1437, 0
      %v3889 = vsel %vm719, %v1438, 0
      %v3892 = vsel %vm719, %v1439, 0
      %v3895 = vsel %vm719, %v1440, 0
      %3897 = vmatprep.subr.mxu0 0.0
      %3898 = vmatpush1.msra.mxu0 %v3702
      %3899 = vmatprep.subr.mxu0 0.0
      %3900 = vmatpush1.msra.mxu0 %v3701
      %3901 = vmatprep.subr.mxu0 0.0
      %3902 = vmatpush1.msra.mxu0 %v3700
      %3903 = vmatprep.subr.mxu0 0.0
      %3904 = vmatpush1.msra.mxu0 %v3699
      %3905 = vmatprep.subr.mxu0 0.0
      %3906 = vmatpush1.msra.mxu0 %v3698
      %3907 = vmatprep.subr.mxu0 0.0
      %3908 = vmatpush1.msra.mxu0 %v3697
      %3909 = vmatprep.subr.mxu0 0.0
      %3910 = vmatpush1.msra.mxu0 %v3696
      %3911 = vmatprep.subr.mxu0 0.0
      %3912 = vmatpush1.msra.mxu0 %v3695
      %3913 = vmatprep.subr.mxu0 0.0
      %3914 = vmatpush1.msra.mxu0 %v3694
      %3915 = vmatprep.subr.mxu0 0.0
      %3916 = vmatpush1.msra.mxu0 %v3693
      %3917 = vmatprep.subr.mxu0 0.0
      %3918 = vmatpush1.msra.mxu0 %v3692
      %3919 = vmatprep.subr.mxu0 0.0
      %3920 = vmatpush1.msra.mxu0 %v3691
      %3921 = vmatprep.subr.mxu0 0.0
      %3922 = vmatpush1.msra.mxu0 %v3690
      %3923 = vmatprep.subr.mxu0 0.0
      %3924 = vmatpush1.msra.mxu0 %v3689
      %3925 = vmatprep.subr.mxu0 0.0
      %3926 = vmatpush1.msra.mxu0 %v3688
      %3927 = vmatprep.subr.mxu0 0.0
      %3928 = vmatpush1.msra.mxu0 %v3687
      %3929 = vmatprep.subr.mxu0 0.0
      %3930 = vmatpush2.msra.mxu0 0.0
      %3931 = vmatprep.subr.mxu0 0.0
      %3932 = vmatpush2.msra.mxu0 0.0
      %3933 = vmatprep.subr.mxu0 0.0
      %3934 = vmatpush2.msra.mxu0 0.0
      %3935 = vmatprep.subr.mxu0 0.0
      %3936 = vmatpush2.msra.mxu0 0.0
      %3937 = vmatprep.subr.mxu0 0.0
      %3938 = vmatpush2.msra.mxu0 0.0
      %3939 = vmatprep.subr.mxu0 0.0
      %3940 = vmatpush2.msra.mxu0 0.0
      %3941 = vmatprep.subr.mxu0 0.0
      %3942 = vmatpush2.msra.mxu0 0.0
      %3943 = vmatprep.subr.mxu0 0.0
      %3944 = vmatpush2.msra.mxu0 0.0
      %3945 = vmatprep.subr.mxu0 0.0
      %3946 = vmatpush2.msra.mxu0 0.0
      %3947 = vmatprep.subr.mxu0 0.0
      %3948 = vmatpush2.msra.mxu0 0.0
      %3949 = vmatprep.subr.mxu0 0.0
      %3950 = vmatpush2.msra.mxu0 0.0
      %3951 = vmatprep.subr.mxu0 0.0
      %3952 = vmatpush2.msra.mxu0 0.0
      %3953 = vmatprep.subr.mxu0 0.0
      %3954 = vmatpush2.msra.mxu0 0.0
      %3955 = vmatprep.subr.mxu0 0.0
      %3956 = vmatpush2.msra.mxu0 0.0
      %3957 = vmatprep.subr.mxu0 0.0
      %3958 = vmatpush2.msra.mxu0 %v3704
      %3959 = vmatprep.subr.mxu0 0.0
      %3960 = vmatpush2.msra.mxu0 %v3703
      %3961 = vmatprep.mubr.f32.mxu0 %v3706
      %3962 = vmatmul.mubr.f32.gmra.mxu0 %v3623
      %v3963 = vpop.f32.mrf.mxu0
      %v3964 = vadd.f32 0.0, %v3963
      %v3965 = vpop.f32.mrf.mxu0
      %3966 = vmatprep.mubr.f32.mxu0 %v3709
      %3967 = vmatmul.mubr.f32.gmra.mxu0 %v3624
      %v3968 = vpop.f32.mrf.mxu0
      %v3969 = vadd.f32 0.0, %v3968
      %v3970 = vpop.f32.mrf.mxu0
      %3971 = vmatprep.mubr.f32.mxu0 %v3712
      %3972 = vmatmul.mubr.f32.gmra.mxu0 %v3625
      %v3973 = vpop.f32.mrf.mxu0
      %v3974 = vadd.f32 0.0, %v3973
      %v3975 = vpop.f32.mrf.mxu0
      %3976 = vmatprep.mubr.f32.mxu0 %v3715
      %3977 = vmatmul.mubr.f32.gmra.mxu0 %v3626
      %v3978 = vpop.f32.mrf.mxu0
      %v3979 = vadd.f32 0.0, %v3978
      %v3980 = vpop.f32.mrf.mxu0
      %3981 = vmatprep.mubr.f32.mxu0 %v3718
      %3982 = vmatmul.mubr.f32.gmra.mxu0 %v3627
      %v3983 = vpop.f32.mrf.mxu0
      %v3984 = vadd.f32 0.0, %v3983
      %v3985 = vpop.f32.mrf.mxu0
      %3986 = vmatprep.mubr.f32.mxu0 %v3721
      %3987 = vmatmul.mubr.f32.gmra.mxu0 %v3628
      %v3988 = vpop.f32.mrf.mxu0
      %v3989 = vadd.f32 0.0, %v3988
      %v3990 = vpop.f32.mrf.mxu0
      %3991 = vmatprep.mubr.f32.mxu0 %v3724
      %3992 = vmatmul.mubr.f32.gmra.mxu0 %v3629
      %v3993 = vpop.f32.mrf.mxu0
      %v3994 = vadd.f32 0.0, %v3993
      %v3995 = vpop.f32.mrf.mxu0
      %3996 = vmatprep.mubr.f32.mxu0 %v3727
      %3997 = vmatmul.mubr.f32.gmra.mxu0 %v3630
      %v3998 = vpop.f32.mrf.mxu0
      %v3999 = vadd.f32 0.0, %v3998
      %v4000 = vpop.f32.mrf.mxu0
      %4001 = vmatprep.mubr.f32.mxu0 %v3730
      %4002 = vmatmul.mubr.f32.gmra.mxu0 %v3631
      %v4003 = vpop.f32.mrf.mxu0
      %v4004 = vadd.f32 0.0, %v4003
      %v4005 = vpop.f32.mrf.mxu0
      %4006 = vmatprep.mubr.f32.mxu0 %v3733
      %4007 = vmatmul.mubr.f32.gmra.mxu0 %v3632
      %v4008 = vpop.f32.mrf.mxu0
      %v4009 = vadd.f32 0.0, %v4008
      %v4010 = vpop.f32.mrf.mxu0
      %4011 = vmatprep.mubr.f32.mxu0 %v3736
      %4012 = vmatmul.mubr.f32.gmra.mxu0 %v3633
      %v4013 = vpop.f32.mrf.mxu0
      %v4014 = vadd.f32 0.0, %v4013
      %v4015 = vpop.f32.mrf.mxu0
      %4016 = vmatprep.mubr.f32.mxu0 %v3739
      %4017 = vmatmul.mubr.f32.gmra.mxu0 %v3634
      %v4018 = vpop.f32.mrf.mxu0
      %v4019 = vadd.f32 0.0, %v4018
      %v4020 = vpop.f32.mrf.mxu0
      %4021 = vmatprep.mubr.f32.mxu0 %v3742
      %4022 = vmatmul.mubr.f32.gmra.mxu0 %v3635
      %v4023 = vpop.f32.mrf.mxu0
      %v4024 = vadd.f32 0.0, %v4023
      %v4025 = vpop.f32.mrf.mxu0
      %4026 = vmatprep.mubr.f32.mxu0 %v3745
      %4027 = vmatmul.mubr.f32.gmra.mxu0 %v3636
      %v4028 = vpop.f32.mrf.mxu0
      %v4029 = vadd.f32 0.0, %v4028
      %v4030 = vpop.f32.mrf.mxu0
      %4031 = vmatprep.mubr.f32.mxu0 %v3748
      %4032 = vmatmul.mubr.f32.gmra.mxu0 %v3637
      %v4033 = vpop.f32.mrf.mxu0
      %v4034 = vadd.f32 0.0, %v4033
      %v4035 = vpop.f32.mrf.mxu0
      %4036 = vmatprep.mubr.f32.mxu0 %v3751
      %4037 = vmatmul.mubr.f32.gmra.mxu0 %v3638
      %v4038 = vpop.f32.mrf.mxu0
      %v4039 = vadd.f32 0.0, %v4038
      %v4040 = vpop.f32.mrf.mxu0
      %4041 = vmatprep.mubr.f32.mxu0 %v3754
      %4042 = vmatmul.mubr.f32.gmra.mxu0 %v3639
      %v4043 = vpop.f32.mrf.mxu0
      %v4044 = vadd.f32 0.0, %v4043
      %v4045 = vpop.f32.mrf.mxu0
      %4046 = vmatprep.mubr.f32.mxu0 %v3757
      %4047 = vmatmul.mubr.f32.gmra.mxu0 %v3640
      %v4048 = vpop.f32.mrf.mxu0
      %v4049 = vadd.f32 0.0, %v4048
      %v4050 = vpop.f32.mrf.mxu0
      %4051 = vmatprep.mubr.f32.mxu0 %v3760
      %4052 = vmatmul.mubr.f32.gmra.mxu0 %v3641
      %v4053 = vpop.f32.mrf.mxu0
      %v4054 = vadd.f32 0.0, %v4053
      %v4055 = vpop.f32.mrf.mxu0
      %4056 = vmatprep.mubr.f32.mxu0 %v3763
      %4057 = vmatmul.mubr.f32.gmra.mxu0 %v3642
      %v4058 = vpop.f32.mrf.mxu0
      %v4059 = vadd.f32 0.0, %v4058
      %v4060 = vpop.f32.mrf.mxu0
      %4061 = vmatprep.mubr.f32.mxu0 %v3766
      %4062 = vmatmul.mubr.f32.gmra.mxu0 %v3643
      %v4063 = vpop.f32.mrf.mxu0
      %v4064 = vadd.f32 0.0, %v4063
      %v4065 = vpop.f32.mrf.mxu0
      %4066 = vmatprep.mubr.f32.mxu0 %v3769
      %4067 = vmatmul.mubr.f32.gmra.mxu0 %v3644
      %v4068 = vpop.f32.mrf.mxu0
      %v4069 = vadd.f32 0.0, %v4068
      %v4070 = vpop.f32.mrf.mxu0
      %4071 = vmatprep.mubr.f32.mxu0 %v3772
      %4072 = vmatmul.mubr.f32.gmra.mxu0 %v3645
      %v4073 = vpop.f32.mrf.mxu0
      %v4074 = vadd.f32 0.0, %v4073
      %v4075 = vpop.f32.mrf.mxu0
      %4076 = vmatprep.mubr.f32.mxu0 %v3775
      %4077 = vmatmul.mubr.f32.gmra.mxu0 %v3646
      %v4078 = vpop.f32.mrf.mxu0
      %v4079 = vadd.f32 0.0, %v4078
      %v4080 = vpop.f32.mrf.mxu0
      %4081 = vmatprep.mubr.f32.mxu0 %v3778
      %4082 = vmatmul.mubr.f32.gmra.mxu0 %v3647
      %v4083 = vpop.f32.mrf.mxu0
      %v4084 = vadd.f32 0.0, %v4083
      %v4085 = vpop.f32.mrf.mxu0
      %4086 = vmatprep.mubr.f32.mxu0 %v3781
      %4087 = vmatmul.mubr.f32.gmra.mxu0 %v3648
      %v4088 = vpop.f32.mrf.mxu0
      %v4089 = vadd.f32 0.0, %v4088
      %v4090 = vpop.f32.mrf.mxu0
      %4091 = vmatprep.mubr.f32.mxu0 %v3784
      %4092 = vmatmul.mubr.f32.gmra.mxu0 %v3649
      %v4093 = vpop.f32.mrf.mxu0
      %v4094 = vadd.f32 0.0, %v4093
      %v4095 = vpop.f32.mrf.mxu0
      %4096 = vmatprep.mubr.f32.mxu0 %v3787
      %4097 = vmatmul.mubr.f32.gmra.mxu0 %v3650
      %v4098 = vpop.f32.mrf.mxu0
      %v4099 = vadd.f32 0.0, %v4098
      %v4100 = vpop.f32.mrf.mxu0
      %4101 = vmatprep.mubr.f32.mxu0 %v3790
      %4102 = vmatmul.mubr.f32.gmra.mxu0 %v3651
      %v4103 = vpop.f32.mrf.mxu0
      %v4104 = vadd.f32 0.0, %v4103
      %v4105 = vpop.f32.mrf.mxu0
      %4106 = vmatprep.mubr.f32.mxu0 %v3793
      %4107 = vmatmul.mubr.f32.gmra.mxu0 %v3652
      %v4108 = vpop.f32.mrf.mxu0
      %v4109 = vadd.f32 0.0, %v4108
      %v4110 = vpop.f32.mrf.mxu0
      %4111 = vmatprep.mubr.f32.mxu0 %v3796
      %4112 = vmatmul.mubr.f32.gmra.mxu0 %v3653
      %v4113 = vpop.f32.mrf.mxu0
      %v4114 = vadd.f32 0.0, %v4113
      %v4115 = vpop.f32.mrf.mxu0
      %4116 = vmatprep.mubr.f32.mxu0 %v3799
      %4117 = vmatmul.mubr.f32.gmra.mxu0 %v3654
      %v4118 = vpop.f32.mrf.mxu0
      %v4119 = vadd.f32 0.0, %v4118
      %v4120 = vpop.f32.mrf.mxu0
      %4121 = vmatprep.mubr.f32.mxu0 %v3802
      %4122 = vmatmul.mubr.f32.gmra.mxu0 %v3655
      %v4123 = vpop.f32.mrf.mxu0
      %v4124 = vadd.f32 0.0, %v4123
      %v4125 = vpop.f32.mrf.mxu0
      %4126 = vmatprep.mubr.f32.mxu0 %v3805
      %4127 = vmatmul.mubr.f32.gmra.mxu0 %v3656
      %v4128 = vpop.f32.mrf.mxu0
      %v4129 = vadd.f32 0.0, %v4128
      %v4130 = vpop.f32.mrf.mxu0
      %4131 = vmatprep.mubr.f32.mxu0 %v3808
      %4132 = vmatmul.mubr.f32.gmra.mxu0 %v3657
      %v4133 = vpop.f32.mrf.mxu0
      %v4134 = vadd.f32 0.0, %v4133
      %v4135 = vpop.f32.mrf.mxu0
      %4136 = vmatprep.mubr.f32.mxu0 %v3811
      %4137 = vmatmul.mubr.f32.gmra.mxu0 %v3658
      %v4138 = vpop.f32.mrf.mxu0
      %v4139 = vadd.f32 0.0, %v4138
      %v4140 = vpop.f32.mrf.mxu0
      %4141 = vmatprep.mubr.f32.mxu0 %v3814
      %4142 = vmatmul.mubr.f32.gmra.mxu0 %v3659
      %v4143 = vpop.f32.mrf.mxu0
      %v4144 = vadd.f32 0.0, %v4143
      %v4145 = vpop.f32.mrf.mxu0
      %4146 = vmatprep.mubr.f32.mxu0 %v3817
      %4147 = vmatmul.mubr.f32.gmra.mxu0 %v3660
      %v4148 = vpop.f32.mrf.mxu0
      %v4149 = vadd.f32 0.0, %v4148
      %v4150 = vpop.f32.mrf.mxu0
      %4151 = vmatprep.mubr.f32.mxu0 %v3820
      %4152 = vmatmul.mubr.f32.gmra.mxu0 %v3661
      %v4153 = vpop.f32.mrf.mxu0
      %v4154 = vadd.f32 0.0, %v4153
      %v4155 = vpop.f32.mrf.mxu0
      %4156 = vmatprep.mubr.f32.mxu0 %v3823
      %4157 = vmatmul.mubr.f32.gmra.mxu0 %v3662
      %v4158 = vpop.f32.mrf.mxu0
      %v4159 = vadd.f32 0.0, %v4158
      %v4160 = vpop.f32.mrf.mxu0
      %4161 = vmatprep.mubr.f32.mxu0 %v3826
      %4162 = vmatmul.mubr.f32.gmra.mxu0 %v3663
      %v4163 = vpop.f32.mrf.mxu0
      %v4164 = vadd.f32 0.0, %v4163
      %v4165 = vpop.f32.mrf.mxu0
      %4166 = vmatprep.mubr.f32.mxu0 %v3829
      %4167 = vmatmul.mubr.f32.gmra.mxu0 %v3664
      %v4168 = vpop.f32.mrf.mxu0
      %v4169 = vadd.f32 0.0, %v4168
      %v4170 = vpop.f32.mrf.mxu0
      %4171 = vmatprep.mubr.f32.mxu0 %v3832
      %4172 = vmatmul.mubr.f32.gmra.mxu0 %v3665
      %v4173 = vpop.f32.mrf.mxu0
      %v4174 = vadd.f32 0.0, %v4173
      %v4175 = vpop.f32.mrf.mxu0
      %4176 = vmatprep.mubr.f32.mxu0 %v3835
      %4177 = vmatmul.mubr.f32.gmra.mxu0 %v3666
      %v4178 = vpop.f32.mrf.mxu0
      %v4179 = vadd.f32 0.0, %v4178
      %v4180 = vpop.f32.mrf.mxu0
      %4181 = vmatprep.mubr.f32.mxu0 %v3838
      %4182 = vmatmul.mubr.f32.gmra.mxu0 %v3667
      %v4183 = vpop.f32.mrf.mxu0
      %v4184 = vadd.f32 0.0, %v4183
      %v4185 = vpop.f32.mrf.mxu0
      %4186 = vmatprep.mubr.f32.mxu0 %v3841
      %4187 = vmatmul.mubr.f32.gmra.mxu0 %v3668
      %v4188 = vpop.f32.mrf.mxu0
      %v4189 = vadd.f32 0.0, %v4188
      %v4190 = vpop.f32.mrf.mxu0
      %4191 = vmatprep.mubr.f32.mxu0 %v3844
      %4192 = vmatmul.mubr.f32.gmra.mxu0 %v3669
      %v4193 = vpop.f32.mrf.mxu0
      %v4194 = vadd.f32 0.0, %v4193
      %v4195 = vpop.f32.mrf.mxu0
      %4196 = vmatprep.mubr.f32.mxu0 %v3847
      %4197 = vmatmul.mubr.f32.gmra.mxu0 %v3670
      %v4198 = vpop.f32.mrf.mxu0
      %v4199 = vadd.f32 0.0, %v4198
      %v4200 = vpop.f32.mrf.mxu0
      %4201 = vmatprep.mubr.f32.mxu0 %v3850
      %4202 = vmatmul.mubr.f32.gmra.mxu0 %v3671
      %v4203 = vpop.f32.mrf.mxu0
      %v4204 = vadd.f32 0.0, %v4203
      %v4205 = vpop.f32.mrf.mxu0
      %4206 = vmatprep.mubr.f32.mxu0 %v3853
      %4207 = vmatmul.mubr.f32.gmra.mxu0 %v3672
      %v4208 = vpop.f32.mrf.mxu0
      %v4209 = vadd.f32 0.0, %v4208
      %v4210 = vpop.f32.mrf.mxu0
      %4211 = vmatprep.mubr.f32.mxu0 %v3856
      %4212 = vmatmul.mubr.f32.gmra.mxu0 %v3673
      %v4213 = vpop.f32.mrf.mxu0
      %v4214 = vadd.f32 0.0, %v4213
      %v4215 = vpop.f32.mrf.mxu0
      %4216 = vmatprep.mubr.f32.mxu0 %v3859
      %4217 = vmatmul.mubr.f32.gmra.mxu0 %v3674
      %v4218 = vpop.f32.mrf.mxu0
      %v4219 = vadd.f32 0.0, %v4218
      %v4220 = vpop.f32.mrf.mxu0
      %4221 = vmatprep.mubr.f32.mxu0 %v3862
      %4222 = vmatmul.mubr.f32.gmra.mxu0 %v3675
      %v4223 = vpop.f32.mrf.mxu0
      %v4224 = vadd.f32 0.0, %v4223
      %v4225 = vpop.f32.mrf.mxu0
      %4226 = vmatprep.mubr.f32.mxu0 %v3865
      %4227 = vmatmul.mubr.f32.gmra.mxu0 %v3676
      %v4228 = vpop.f32.mrf.mxu0
      %v4229 = vadd.f32 0.0, %v4228
      %v4230 = vpop.f32.mrf.mxu0
      %4231 = vmatprep.mubr.f32.mxu0 %v3868
      %4232 = vmatmul.mubr.f32.gmra.mxu0 %v3677
      %v4233 = vpop.f32.mrf.mxu0
      %v4234 = vadd.f32 0.0, %v4233
      %v4235 = vpop.f32.mrf.mxu0
      %4236 = vmatprep.mubr.f32.mxu0 %v3871
      %4237 = vmatmul.mubr.f32.gmra.mxu0 %v3678
      %v4238 = vpop.f32.mrf.mxu0
      %v4239 = vadd.f32 0.0, %v4238
      %v4240 = vpop.f32.mrf.mxu0
      %4241 = vmatprep.mubr.f32.mxu0 %v3874
      %4242 = vmatmul.mubr.f32.gmra.mxu0 %v3679
      %v4243 = vpop.f32.mrf.mxu0
      %v4244 = vadd.f32 0.0, %v4243
      %v4245 = vpop.f32.mrf.mxu0
      %4246 = vmatprep.mubr.f32.mxu0 %v3877
      %4247 = vmatmul.mubr.f32.gmra.mxu0 %v3680
      %v4248 = vpop.f32.mrf.mxu0
      %v4249 = vadd.f32 0.0, %v4248
      %v4250 = vpop.f32.mrf.mxu0
      %4251 = vmatprep.mubr.f32.mxu0 %v3880
      %4252 = vmatmul.mubr.f32.gmra.mxu0 %v3681
      %v4253 = vpop.f32.mrf.mxu0
      %v4254 = vadd.f32 0.0, %v4253
      %v4255 = vpop.f32.mrf.mxu0
      %4256 = vmatprep.mubr.f32.mxu0 %v3883
      %4257 = vmatmul.mubr.f32.gmra.mxu0 %v3682
      %v4258 = vpop.f32.mrf.mxu0
      %v4259 = vadd.f32 0.0, %v4258
      %v4260 = vpop.f32.mrf.mxu0
      %4261 = vmatprep.mubr.f32.mxu0 %v3886
      %4262 = vmatmul.mubr.f32.gmra.mxu0 %v3683
      %v4263 = vpop.f32.mrf.mxu0
      %v4264 = vadd.f32 0.0, %v4263
      %v4265 = vpop.f32.mrf.mxu0
      %4266 = vmatprep.mubr.f32.mxu0 %v3889
      %4267 = vmatmul.mubr.f32.gmra.mxu0 %v3684
      %v4268 = vpop.f32.mrf.mxu0
      %v4269 = vadd.f32 0.0, %v4268
      %v4270 = vpop.f32.mrf.mxu0
      %4271 = vmatprep.mubr.f32.mxu0 %v3892
      %4272 = vmatmul.mubr.f32.gmra.mxu0 %v3685
      %v4273 = vpop.f32.mrf.mxu0
      %v4274 = vadd.f32 0.0, %v4273
      %v4275 = vpop.f32.mrf.mxu0
      %4276 = vmatprep.mubr.f32.mxu0 %v3895
      %4277 = vmatmul.mubr.f32.gmra.mxu0 %v3686
      %v4278 = vpop.f32.mrf.mxu0
      %v4279 = vadd.f32 0.0, %v4278
      %v4280 = vpop.f32.mrf.mxu0
      %4281 = vdwg.mxu0
      %v4282 = vld [vmem:[%s3] sm:$0xff]
      %v4283 = vld [vmem:[%s3 + $0x8] sm:$0xff]
      %v4284 = vld [vmem:[%s3 + $0x10] sm:$0xff]
      %v4285 = vld [vmem:[%s3 + $0x18] sm:$0xff]
      %v4286 = vld [vmem:[%s3 + $0x20] sm:$0xff]
      %v4287 = vld [vmem:[%s3 + $0x28] sm:$0xff]
      %v4288 = vld [vmem:[%s3 + $0x30] sm:$0xff]
      %v4289 = vld [vmem:[%s3 + $0x38] sm:$0xff]
      %v4290 = vld [vmem:[%s3 + $0x40] sm:$0xff]
      %v4291 = vld [vmem:[%s3 + $0x48] sm:$0xff]
      %v4292 = vld [vmem:[%s3 + $0x50] sm:$0xff]
      %v4293 = vld [vmem:[%s3 + $0x58] sm:$0xff]
      %v4294 = vld [vmem:[%s3 + $0x60] sm:$0xff]
      %v4295 = vld [vmem:[%s3 + $0x68] sm:$0xff]
      %v4296 = vld [vmem:[%s3 + $0x70] sm:$0xff]
      %v4297 = vld [vmem:[%s3 + $0x78] sm:$0xff]
      %v4298 = vadd.f32 %v3964, %v3969
      %v4299 = vadd.f32 %v4298, %v3974
      %v4300 = vadd.f32 %v4299, %v3979
      %v4301 = vadd.f32 %v4300, %v3984
      %v4302 = vadd.f32 %v4301, %v3989
      %v4303 = vadd.f32 %v4302, %v3994
      %v4304 = vadd.f32 %v4303, %v3999
      %v4305 = vadd.f32 %v4304, %v4004
      %v4306 = vadd.f32 %v4305, %v4009
      %v4307 = vadd.f32 %v4306, %v4014
      %v4308 = vadd.f32 %v4307, %v4019
      %v4309 = vadd.f32 %v4308, %v4024
      %v4310 = vadd.f32 %v4309, %v4029
      %v4311 = vadd.f32 %v4310, %v4034
      %v4312 = vadd.f32 %v4311, %v4039
      %v4313 = vadd.f32 %v4312, %v4044
      %v4314 = vadd.f32 %v4313, %v4049
      %v4315 = vadd.f32 %v4314, %v4054
      %v4316 = vadd.f32 %v4315, %v4059
      %v4317 = vadd.f32 %v4316, %v4064
      %v4318 = vadd.f32 %v4317, %v4069
      %v4319 = vadd.f32 %v4318, %v4074
      %v4320 = vadd.f32 %v4319, %v4079
      %v4321 = vadd.f32 %v4320, %v4084
      %v4322 = vadd.f32 %v4321, %v4089
      %v4323 = vadd.f32 %v4322, %v4094
      %v4324 = vadd.f32 %v4323, %v4099
      %v4325 = vadd.f32 %v4324, %v4104
      %v4326 = vadd.f32 %v4325, %v4109
      %v4327 = vadd.f32 %v4326, %v4114
      %v4328 = vadd.f32 %v4327, %v4119
      %v4329 = vadd.f32 %v4328, %v4124
      %v4330 = vadd.f32 %v4329, %v4129
      %v4331 = vadd.f32 %v4330, %v4134
      %v4332 = vadd.f32 %v4331, %v4139
      %v4333 = vadd.f32 %v4332, %v4144
      %v4334 = vadd.f32 %v4333, %v4149
      %v4335 = vadd.f32 %v4334, %v4154
      %v4336 = vadd.f32 %v4335, %v4159
      %v4337 = vadd.f32 %v4336, %v4164
      %v4338 = vadd.f32 %v4337, %v4169
      %v4339 = vadd.f32 %v4338, %v4174
      %v4340 = vadd.f32 %v4339, %v4179
      %v4341 = vadd.f32 %v4340, %v4184
      %v4342 = vadd.f32 %v4341, %v4189
      %v4343 = vadd.f32 %v4342, %v4194
      %v4344 = vadd.f32 %v4343, %v4199
      %v4345 = vadd.f32 %v4344, %v4204
      %v4346 = vadd.f32 %v4345, %v4209
      %v4347 = vadd.f32 %v4346, %v4214
      %v4348 = vadd.f32 %v4347, %v4219
      %v4349 = vadd.f32 %v4348, %v4224
      %v4350 = vadd.f32 %v4349, %v4229
      %v4351 = vadd.f32 %v4350, %v4234
      %v4352 = vadd.f32 %v4351, %v4239
      %v4353 = vadd.f32 %v4352, %v4244
      %v4354 = vadd.f32 %v4353, %v4249
      %v4355 = vadd.f32 %v4354, %v4254
      %v4356 = vadd.f32 %v4355, %v4259
      %v4357 = vadd.f32 %v4356, %v4264
      %v4358 = vadd.f32 %v4357, %v4269
      %v4359 = vadd.f32 %v4358, %v4274
      %v4360 = vadd.f32 %v4359, %v4279
      %v4361 = vrot.slane %v4360, 4
      %v4362 = vadd.f32 %v4360, %v4361
      %v4363 = vrot.slane %v4362, 2
      %v4364 = vadd.f32 %v4362, %v4363
      %v4365 = vrot.slane %v4364, 1
      %v4366 = vadd.f32 %v4364, %v4365
      %4367 = vmatprep.subr.mxu0 0.0
      %4368 = vmatpush1.msra.mxu0 %v4297
      %4369 = vmatprep.subr.mxu0 0.0
      %4370 = vmatpush1.msra.mxu0 %v4296
      %4371 = vmatprep.subr.mxu0 0.0
      %4372 = vmatpush1.msra.mxu0 %v4295
      %4373 = vmatprep.subr.mxu0 0.0
      %4374 = vmatpush1.msra.mxu0 %v4294
      %4375 = vmatprep.subr.mxu0 0.0
      %4376 = vmatpush1.msra.mxu0 %v4293
      %4377 = vmatprep.subr.mxu0 0.0
      %4378 = vmatpush1.msra.mxu0 %v4292
      %4379 = vmatprep.subr.mxu0 0.0
      %4380 = vmatpush1.msra.mxu0 %v4291
      %4381 = vmatprep.subr.mxu0 0.0
      %4382 = vmatpush1.msra.mxu0 %v4290
      %4383 = vmatprep.subr.mxu0 0.0
      %4384 = vmatpush1.msra.mxu0 %v4289
      %4385 = vmatprep.subr.mxu0 0.0
      %4386 = vmatpush1.msra.mxu0 %v4288
      %4387 = vmatprep.subr.mxu0 0.0
      %4388 = vmatpush1.msra.mxu0 %v4287
      %4389 = vmatprep.subr.mxu0 0.0
      %4390 = vmatpush1.msra.mxu0 %v4286
      %4391 = vmatprep.subr.mxu0 0.0
      %4392 = vmatpush1.msra.mxu0 %v4285
      %4393 = vmatprep.subr.mxu0 0.0
      %4394 = vmatpush1.msra.mxu0 %v4284
      %4395 = vmatprep.subr.mxu0 0.0
      %4396 = vmatpush1.msra.mxu0 %v4283
      %4397 = vmatprep.subr.mxu0 0.0
      %4398 = vmatpush1.msra.mxu0 %v4282
      %4399 = vmatprep.subr.mxu0 0.0
      %4400 = vmatpush2.msra.mxu0 0.0
      %4401 = vmatprep.subr.mxu0 0.0
      %4402 = vmatpush2.msra.mxu0 0.0
      %4403 = vmatprep.subr.mxu0 0.0
      %4404 = vmatpush2.msra.mxu0 0.0
      %4405 = vmatprep.subr.mxu0 0.0
      %4406 = vmatpush2.msra.mxu0 0.0
      %4407 = vmatprep.subr.mxu0 0.0
      %4408 = vmatpush2.msra.mxu0 0.0
      %4409 = vmatprep.subr.mxu0 0.0
      %4410 = vmatpush2.msra.mxu0 0.0
      %4411 = vmatprep.subr.mxu0 0.0
      %4412 = vmatpush2.msra.mxu0 0.0
      %4413 = vmatprep.subr.mxu0 0.0
      %4414 = vmatpush2.msra.mxu0 0.0
      %4415 = vmatprep.subr.mxu0 0.0
      %4416 = vmatpush2.msra.mxu0 0.0
      %4417 = vmatprep.subr.mxu0 0.0
      %4418 = vmatpush2.msra.mxu0 0.0
      %4419 = vmatprep.subr.mxu0 0.0
      %4420 = vmatpush2.msra.mxu0 0.0
      %4421 = vmatprep.subr.mxu0 0.0
      %4422 = vmatpush2.msra.mxu0 0.0
      %4423 = vmatprep.subr.mxu0 0.0
      %4424 = vmatpush2.msra.mxu0 0.0
      %4425 = vmatprep.subr.mxu0 0.0
      %4426 = vmatpush2.msra.mxu0 0.0
      %4427 = vmatprep.subr.mxu0 0.0
      %4428 = vmatpush2.msra.mxu0 0.0
      %4429 = vmatprep.subr.mxu0 0.0
      %4430 = vmatpush2.msra.mxu0 0.0
      %4431 = vmatprep.mubr.f32.mxu0 0.0
      %4432 = vmatmul.mubr.f32.gmra.mxu0 %v4366
      %v4433 = vpop.f32.mrf.mxu0
      %v4434 = vadd.f32 0.0, %v4433
      %v4435 = vpop.f32.mrf.mxu0
      %4436 = vdwg.mxu0
      %v4437 = vmul.f32 %v4434, 0.00012207031
      %v4438 = vmul.f32 %v3964, %v3964
      %v4439 = vmul.f32 %v3969, %v3969
      %v4440 = vmul.f32 %v3974, %v3974
      %v4441 = vmul.f32 %v3979, %v3979
      %v4442 = vmul.f32 %v3984, %v3984
      %v4443 = vmul.f32 %v3989, %v3989
      %v4444 = vmul.f32 %v3994, %v3994
      %v4445 = vmul.f32 %v3999, %v3999
      %v4446 = vmul.f32 %v4004, %v4004
      %v4447 = vmul.f32 %v4009, %v4009
      %v4448 = vmul.f32 %v4014, %v4014
      %v4449 = vmul.f32 %v4019, %v4019
      %v4450 = vmul.f32 %v4024, %v4024
      %v4451 = vmul.f32 %v4029, %v4029
      %v4452 = vmul.f32 %v4034, %v4034
      %v4453 = vmul.f32 %v4039, %v4039
      %v4454 = vmul.f32 %v4044, %v4044
      %v4455 = vmul.f32 %v4049, %v4049
      %v4456 = vmul.f32 %v4054, %v4054
      %v4457 = vmul.f32 %v4059, %v4059
      %v4458 = vmul.f32 %v4064, %v4064
      %v4459 = vmul.f32 %v4069, %v4069
      %v4460 = vmul.f32 %v4074, %v4074
      %v4461 = vmul.f32 %v4079, %v4079
      %v4462 = vmul.f32 %v4084, %v4084
      %v4463 = vmul.f32 %v4089, %v4089
      %v4464 = vmul.f32 %v4094, %v4094
      %v4465 = vmul.f32 %v4099, %v4099
      %v4466 = vmul.f32 %v4104, %v4104
      %v4467 = vmul.f32 %v4109, %v4109
      %v4468 = vmul.f32 %v4114, %v4114
      %v4469 = vmul.f32 %v4119, %v4119
      %v4470 = vmul.f32 %v4124, %v4124
      %v4471 = vmul.f32 %v4129, %v4129
      %v4472 = vmul.f32 %v4134, %v4134
      %v4473 = vmul.f32 %v4139, %v4139
      %v4474 = vmul.f32 %v4144, %v4144
      %v4475 = vmul.f32 %v4149, %v4149
      %v4476 = vmul.f32 %v4154, %v4154
      %v4477 = vmul.f32 %v4159, %v4159
      %v4478 = vmul.f32 %v4164, %v4164
      %v4479 = vmul.f32 %v4169, %v4169
      %v4480 = vmul.f32 %v4174, %v4174
      %v4481 = vmul.f32 %v4179, %v4179
      %v4482 = vmul.f32 %v4184, %v4184
      %v4483 = vmul.f32 %v4189, %v4189
      %v4484 = vmul.f32 %v4194, %v4194
      %v4485 = vmul.f32 %v4199, %v4199
      %v4486 = vmul.f32 %v4204, %v4204
      %v4487 = vmul.f32 %v4209, %v4209
      %v4488 = vmul.f32 %v4214, %v4214
      %v4489 = vmul.f32 %v4219, %v4219
      %v4490 = vmul.f32 %v4224, %v4224
      %v4491 = vmul.f32 %v4229, %v4229
      %v4492 = vmul.f32 %v4234, %v4234
      %v4493 = vmul.f32 %v4239, %v4239
      %v4494 = vmul.f32 %v4244, %v4244
      %v4495 = vmul.f32 %v4249, %v4249
      %v4496 = vmul.f32 %v4254, %v4254
      %v4497 = vmul.f32 %v4259, %v4259
      %v4498 = vmul.f32 %v4264, %v4264
      %v4499 = vmul.f32 %v4269, %v4269
      %v4500 = vmul.f32 %v4274, %v4274
      %v4501 = vmul.f32 %v4279, %v4279
      %v4502 = vadd.f32 %v4438, %v4439
      %v4503 = vadd.f32 %v4502, %v4440
      %v4504 = vadd.f32 %v4503, %v4441
      %v4505 = vadd.f32 %v4504, %v4442
      %v4506 = vadd.f32 %v4505, %v4443
      %v4507 = vadd.f32 %v4506, %v4444
      %v4508 = vadd.f32 %v4507, %v4445
      %v4509 = vadd.f32 %v4508, %v4446
      %v4510 = vadd.f32 %v4509, %v4447
      %v4511 = vadd.f32 %v4510, %v4448
      %v4512 = vadd.f32 %v4511, %v4449
      %v4513 = vadd.f32 %v4512, %v4450
      %v4514 = vadd.f32 %v4513, %v4451
      %v4515 = vadd.f32 %v4514, %v4452
      %v4516 = vadd.f32 %v4515, %v4453
      %v4517 = vadd.f32 %v4516, %v4454
      %v4518 = vadd.f32 %v4517, %v4455
      %v4519 = vadd.f32 %v4518, %v4456
      %v4520 = vadd.f32 %v4519, %v4457
      %v4521 = vadd.f32 %v4520, %v4458
      %v4522 = vadd.f32 %v4521, %v4459
      %v4523 = vadd.f32 %v4522, %v4460
      %v4524 = vadd.f32 %v4523, %v4461
      %v4525 = vadd.f32 %v4524, %v4462
      %v4526 = vadd.f32 %v4525, %v4463
      %v4527 = vadd.f32 %v4526, %v4464
      %v4528 = vadd.f32 %v4527, %v4465
      %v4529 = vadd.f32 %v4528, %v4466
      %v4530 = vadd.f32 %v4529, %v4467
      %v4531 = vadd.f32 %v4530, %v4468
      %v4532 = vadd.f32 %v4531, %v4469
      %v4533 = vadd.f32 %v4532, %v4470
      %v4534 = vadd.f32 %v4533, %v4471
      %v4535 = vadd.f32 %v4534, %v4472
      %v4536 = vadd.f32 %v4535, %v4473
      %v4537 = vadd.f32 %v4536, %v4474
      %v4538 = vadd.f32 %v4537, %v4475
      %v4539 = vadd.f32 %v4538, %v4476
      %v4540 = vadd.f32 %v4539, %v4477
      %v4541 = vadd.f32 %v4540, %v4478
      %v4542 = vadd.f32 %v4541, %v4479
      %v4543 = vadd.f32 %v4542, %v4480
      %v4544 = vadd.f32 %v4543, %v4481
      %v4545 = vadd.f32 %v4544, %v4482
      %v4546 = vadd.f32 %v4545, %v4483
      %v4547 = vadd.f32 %v4546, %v4484
      %v4548 = vadd.f32 %v4547, %v4485
      %v4549 = vadd.f32 %v4548, %v4486
      %v4550 = vadd.f32 %v4549, %v4487
      %v4551 = vadd.f32 %v4550, %v4488
      %v4552 = vadd.f32 %v4551, %v4489
      %v4553 = vadd.f32 %v4552, %v4490
      %v4554 = vadd.f32 %v4553, %v4491
      %v4555 = vadd.f32 %v4554, %v4492
      %v4556 = vadd.f32 %v4555, %v4493
      %v4557 = vadd.f32 %v4556, %v4494
      %v4558 = vadd.f32 %v4557, %v4495
      %v4559 = vadd.f32 %v4558, %v4496
      %v4560 = vadd.f32 %v4559, %v4497
      %v4561 = vadd.f32 %v4560, %v4498
      %v4562 = vadd.f32 %v4561, %v4499
      %v4563 = vadd.f32 %v4562, %v4500
      %v4564 = vadd.f32 %v4563, %v4501
      %v4565 = vrot.slane %v4564, 4
      %v4566 = vadd.f32 %v4564, %v4565
      %v4567 = vrot.slane %v4566, 2
      %v4568 = vadd.f32 %v4566, %v4567
      %v4569 = vrot.slane %v4568, 1
      %v4570 = vadd.f32 %v4568, %v4569
      %4571 = vmatprep.subr.mxu0 0.0
      %4572 = vmatpush1.msra.mxu0 %v4297
      %4573 = vmatprep.subr.mxu0 0.0
      %4574 = vmatpush1.msra.mxu0 %v4296
      %4575 = vmatprep.subr.mxu0 0.0
      %4576 = vmatpush1.msra.mxu0 %v4295
      %4577 = vmatprep.subr.mxu0 0.0
      %4578 = vmatpush1.msra.mxu0 %v4294
      %4579 = vmatprep.subr.mxu0 0.0
      %4580 = vmatpush1.msra.mxu0 %v4293
      %4581 = vmatprep.subr.mxu0 0.0
      %4582 = vmatpush1.msra.mxu0 %v4292
      %4583 = vmatprep.subr.mxu0 0.0
      %4584 = vmatpush1.msra.mxu0 %v4291
      %4585 = vmatprep.subr.mxu0 0.0
      %4586 = vmatpush1.msra.mxu0 %v4290
      %4587 = vmatprep.subr.mxu0 0.0
      %4588 = vmatpush1.msra.mxu0 %v4289
      %4589 = vmatprep.subr.mxu0 0.0
      %4590 = vmatpush1.msra.mxu0 %v4288
      %4591 = vmatprep.subr.mxu0 0.0
      %4592 = vmatpush1.msra.mxu0 %v4287
      %4593 = vmatprep.subr.mxu0 0.0
      %4594 = vmatpush1.msra.mxu0 %v4286
      %4595 = vmatprep.subr.mxu0 0.0
      %4596 = vmatpush1.msra.mxu0 %v4285
      %4597 = vmatprep.subr.mxu0 0.0
      %4598 = vmatpush1.msra.mxu0 %v4284
      %4599 = vmatprep.subr.mxu0 0.0
      %4600 = vmatpush1.msra.mxu0 %v4283
      %4601 = vmatprep.subr.mxu0 0.0
      %4602 = vmatpush1.msra.mxu0 %v4282
      %4603 = vmatprep.subr.mxu0 0.0
      %4604 = vmatpush2.msra.mxu0 0.0
      %4605 = vmatprep.subr.mxu0 0.0
      %4606 = vmatpush2.msra.mxu0 0.0
      %4607 = vmatprep.subr.mxu0 0.0
      %4608 = vmatpush2.msra.mxu0 0.0
      %4609 = vmatprep.subr.mxu0 0.0
      %4610 = vmatpush2.msra.mxu0 0.0
      %4611 = vmatprep.subr.mxu0 0.0
      %4612 = vmatpush2.msra.mxu0 0.0
      %4613 = vmatprep.subr.mxu0 0.0
      %4614 = vmatpush2.msra.mxu0 0.0
      %4615 = vmatprep.subr.mxu0 0.0
      %4616 = vmatpush2.msra.mxu0 0.0
      %4617 = vmatprep.subr.mxu0 0.0
      %4618 = vmatpush2.msra.mxu0 0.0
      %4619 = vmatprep.subr.mxu0 0.0
      %4620 = vmatpush2.msra.mxu0 0.0
      %4621 = vmatprep.subr.mxu0 0.0
      %4622 = vmatpush2.msra.mxu0 0.0
      %4623 = vmatprep.subr.mxu0 0.0
      %4624 = vmatpush2.msra.mxu0 0.0
      %4625 = vmatprep.subr.mxu0 0.0
      %4626 = vmatpush2.msra.mxu0 0.0
      %4627 = vmatprep.subr.mxu0 0.0
      %4628 = vmatpush2.msra.mxu0 0.0
      %4629 = vmatprep.subr.mxu0 0.0
      %4630 = vmatpush2.msra.mxu0 0.0
      %4631 = vmatprep.subr.mxu0 0.0
      %4632 = vmatpush2.msra.mxu0 0.0
      %4633 = vmatprep.subr.mxu0 0.0
      %4634 = vmatpush2.msra.mxu0 0.0
      %4635 = vmatprep.mubr.f32.mxu0 0.0
      %4636 = vmatmul.mubr.f32.gmra.mxu0 %v4570
      %v4637 = vpop.f32.mrf.mxu0
      %v4638 = vadd.f32 0.0, %v4637
      %v4639 = vpop.f32.mrf.mxu0
      %4640 = vdwg.mxu0
      %v4641 = vmul.f32 %v4638, 0.00012207031
      %v4642 = vmul.f32 %v4437, %v4437
      %v4643 = vsub.f32 %v4641, %v4642
      %v4644 = vld [vmem:[%s2] sm:$0x1]
      %v4645 = vadd.f32 %v4643, 1e-05
      %v4646 = vrsqrt.pop %v4645
      %v4647 = vmul.f32 %v4644, %v4646
      %v4648 = vld [vmem:[%s2 + $0x1] sm:$0x1]
      %v4649 = vmul.f32 %v4437, %v4647
      %v4650 = vsub.f32 %v4648, %v4649
      %v4651 = vlaneseq
      %v4652 = vshrl.u32 %v4651, 7
      %v4653 = vsub.s32 0, %v4652
      %v4654 = vrot.slane %v4647, %v4653
      %v4655 = vmul.f32 %v3964, %v4654
      %v4656 = vmul.f32 %v3969, %v4654
      %v4657 = vmul.f32 %v3974, %v4654
      %v4658 = vmul.f32 %v3979, %v4654
      %v4659 = vmul.f32 %v3984, %v4654
      %v4660 = vmul.f32 %v3989, %v4654
      %v4661 = vmul.f32 %v3994, %v4654
      %v4662 = vmul.f32 %v3999, %v4654
      %v4663 = vmul.f32 %v4004, %v4654
      %v4664 = vmul.f32 %v4009, %v4654
      %v4665 = vmul.f32 %v4014, %v4654
      %v4666 = vmul.f32 %v4019, %v4654
      %v4667 = vmul.f32 %v4024, %v4654
      %v4668 = vmul.f32 %v4029, %v4654
      %v4669 = vmul.f32 %v4034, %v4654
      %v4670 = vmul.f32 %v4039, %v4654
      %v4671 = vmul.f32 %v4044, %v4654
      %v4672 = vmul.f32 %v4049, %v4654
      %v4673 = vmul.f32 %v4054, %v4654
      %v4674 = vmul.f32 %v4059, %v4654
      %v4675 = vmul.f32 %v4064, %v4654
      %v4676 = vmul.f32 %v4069, %v4654
      %v4677 = vmul.f32 %v4074, %v4654
      %v4678 = vmul.f32 %v4079, %v4654
      %v4679 = vmul.f32 %v4084, %v4654
      %v4680 = vmul.f32 %v4089, %v4654
      %v4681 = vmul.f32 %v4094, %v4654
      %v4682 = vmul.f32 %v4099, %v4654
      %v4683 = vmul.f32 %v4104, %v4654
      %v4684 = vmul.f32 %v4109, %v4654
      %v4685 = vmul.f32 %v4114, %v4654
      %v4686 = vmul.f32 %v4119, %v4654
      %v4687 = vmul.f32 %v4124, %v4654
      %v4688 = vmul.f32 %v4129, %v4654
      %v4689 = vmul.f32 %v4134, %v4654
      %v4690 = vmul.f32 %v4139, %v4654
      %v4691 = vmul.f32 %v4144, %v4654
      %v4692 = vmul.f32 %v4149, %v4654
      %v4693 = vmul.f32 %v4154, %v4654
      %v4694 = vmul.f32 %v4159, %v4654
      %v4695 = vmul.f32 %v4164, %v4654
      %v4696 = vmul.f32 %v4169, %v4654
      %v4697 = vmul.f32 %v4174, %v4654
      %v4698 = vmul.f32 %v4179, %v4654
      %v4699 = vmul.f32 %v4184, %v4654
      %v4700 = vmul.f32 %v4189, %v4654
      %v4701 = vmul.f32 %v4194, %v4654
      %v4702 = vmul.f32 %v4199, %v4654
      %v4703 = vmul.f32 %v4204, %v4654
      %v4704 = vmul.f32 %v4209, %v4654
      %v4705 = vmul.f32 %v4214, %v4654
      %v4706 = vmul.f32 %v4219, %v4654
      %v4707 = vmul.f32 %v4224, %v4654
      %v4708 = vmul.f32 %v4229, %v4654
      %v4709 = vmul.f32 %v4234, %v4654
      %v4710 = vmul.f32 %v4239, %v4654
      %v4711 = vmul.f32 %v4244, %v4654
      %v4712 = vmul.f32 %v4249, %v4654
      %v4713 = vmul.f32 %v4254, %v4654
      %v4714 = vmul.f32 %v4259, %v4654
      %v4715 = vmul.f32 %v4264, %v4654
      %v4716 = vmul.f32 %v4269, %v4654
      %v4717 = vmul.f32 %v4274, %v4654
      %v4718 = vmul.f32 %v4279, %v4654
      %v4719 = vlaneseq
      %v4720 = vshrl.u32 %v4719, 7
      %v4721 = vsub.s32 0, %v4720
      %v4722 = vrot.slane %v4650, %v4721
      %v4723 = vadd.f32 %v4655, %v4722
      %v4724 = vadd.f32 %v4656, %v4722
      %v4725 = vadd.f32 %v4657, %v4722
      %v4726 = vadd.f32 %v4658, %v4722
      %v4727 = vadd.f32 %v4659, %v4722
      %v4728 = vadd.f32 %v4660, %v4722
      %v4729 = vadd.f32 %v4661, %v4722
      %v4730 = vadd.f32 %v4662, %v4722
      %v4731 = vadd.f32 %v4663, %v4722
      %v4732 = vadd.f32 %v4664, %v4722
      %v4733 = vadd.f32 %v4665, %v4722
      %v4734 = vadd.f32 %v4666, %v4722
      %v4735 = vadd.f32 %v4667, %v4722
      %v4736 = vadd.f32 %v4668, %v4722
      %v4737 = vadd.f32 %v4669, %v4722
      %v4738 = vadd.f32 %v4670, %v4722
      %v4739 = vadd.f32 %v4671, %v4722
      %v4740 = vadd.f32 %v4672, %v4722
      %v4741 = vadd.f32 %v4673, %v4722
      %v4742 = vadd.f32 %v4674, %v4722
      %v4743 = vadd.f32 %v4675, %v4722
      %v4744 = vadd.f32 %v4676, %v4722
      %v4745 = vadd.f32 %v4677, %v4722
      %v4746 = vadd.f32 %v4678, %v4722
      %v4747 = vadd.f32 %v4679, %v4722
      %v4748 = vadd.f32 %v4680, %v4722
      %v4749 = vadd.f32 %v4681, %v4722
      %v4750 = vadd.f32 %v4682, %v4722
      %v4751 = vadd.f32 %v4683, %v4722
      %v4752 = vadd.f32 %v4684, %v4722
      %v4753 = vadd.f32 %v4685, %v4722
      %v4754 = vadd.f32 %v4686, %v4722
      %v4755 = vadd.f32 %v4687, %v4722
      %v4756 = vadd.f32 %v4688, %v4722
      %v4757 = vadd.f32 %v4689, %v4722
      %v4758 = vadd.f32 %v4690, %v4722
      %v4759 = vadd.f32 %v4691, %v4722
      %v4760 = vadd.f32 %v4692, %v4722
      %v4761 = vadd.f32 %v4693, %v4722
      %v4762 = vadd.f32 %v4694, %v4722
      %v4763 = vadd.f32 %v4695, %v4722
      %v4764 = vadd.f32 %v4696, %v4722
      %v4765 = vadd.f32 %v4697, %v4722
      %v4766 = vadd.f32 %v4698, %v4722
      %v4767 = vadd.f32 %v4699, %v4722
      %v4768 = vadd.f32 %v4700, %v4722
      %v4769 = vadd.f32 %v4701, %v4722
      %v4770 = vadd.f32 %v4702, %v4722
      %v4771 = vadd.f32 %v4703, %v4722
      %v4772 = vadd.f32 %v4704, %v4722
      %v4773 = vadd.f32 %v4705, %v4722
      %v4774 = vadd.f32 %v4706, %v4722
      %v4775 = vadd.f32 %v4707, %v4722
      %v4776 = vadd.f32 %v4708, %v4722
      %v4777 = vadd.f32 %v4709, %v4722
      %v4778 = vadd.f32 %v4710, %v4722
      %v4779 = vadd.f32 %v4711, %v4722
      %v4780 = vadd.f32 %v4712, %v4722
      %v4781 = vadd.f32 %v4713, %v4722
      %v4782 = vadd.f32 %v4714, %v4722
      %v4783 = vadd.f32 %v4715, %v4722
      %v4784 = vadd.f32 %v4716, %v4722
      %v4785 = vadd.f32 %v4717, %v4722
      %v4786 = vadd.f32 %v4718, %v4722
      %vm4787 = vcmp.gt.f32.partialorder %v4723, 0.0
      %vm4788 = vcmp.gt.f32.partialorder %v4724, 0.0
      %vm4789 = vcmp.gt.f32.partialorder %v4725, 0.0
      %vm4790 = vcmp.gt.f32.partialorder %v4726, 0.0
      %vm4791 = vcmp.gt.f32.partialorder %v4727, 0.0
      %vm4792 = vcmp.gt.f32.partialorder %v4728, 0.0
      %vm4793 = vcmp.gt.f32.partialorder %v4729, 0.0
      %vm4794 = vcmp.gt.f32.partialorder %v4730, 0.0
      %vm4795 = vcmp.gt.f32.partialorder %v4731, 0.0
      %vm4796 = vcmp.gt.f32.partialorder %v4732, 0.0
      %vm4797 = vcmp.gt.f32.partialorder %v4733, 0.0
      %vm4798 = vcmp.gt.f32.partialorder %v4734, 0.0
      %vm4799 = vcmp.gt.f32.partialorder %v4735, 0.0
      %vm4800 = vcmp.gt.f32.partialorder %v4736, 0.0
      %vm4801 = vcmp.gt.f32.partialorder %v4737, 0.0
      %vm4802 = vcmp.gt.f32.partialorder %v4738, 0.0
      %vm4803 = vcmp.gt.f32.partialorder %v4739, 0.0
      %vm4804 = vcmp.gt.f32.partialorder %v4740, 0.0
      %vm4805 = vcmp.gt.f32.partialorder %v4741, 0.0
      %vm4806 = vcmp.gt.f32.partialorder %v4742, 0.0
      %vm4807 = vcmp.gt.f32.partialorder %v4743, 0.0
      %vm4808 = vcmp.gt.f32.partialorder %v4744, 0.0
      %vm4809 = vcmp.gt.f32.partialorder %v4745, 0.0
      %vm4810 = vcmp.gt.f32.partialorder %v4746, 0.0
      %vm4811 = vcmp.gt.f32.partialorder %v4747, 0.0
      %vm4812 = vcmp.gt.f32.partialorder %v4748, 0.0
      %vm4813 = vcmp.gt.f32.partialorder %v4749, 0.0
      %vm4814 = vcmp.gt.f32.partialorder %v4750, 0.0
      %vm4815 = vcmp.gt.f32.partialorder %v4751, 0.0
      %vm4816 = vcmp.gt.f32.partialorder %v4752, 0.0
      %vm4817 = vcmp.gt.f32.partialorder %v4753, 0.0
      %vm4818 = vcmp.gt.f32.partialorder %v4754, 0.0
      %vm4819 = vcmp.gt.f32.partialorder %v4755, 0.0
      %vm4820 = vcmp.gt.f32.partialorder %v4756, 0.0
      %vm4821 = vcmp.gt.f32.partialorder %v4757, 0.0
      %vm4822 = vcmp.gt.f32.partialorder %v4758, 0.0
      %vm4823 = vcmp.gt.f32.partialorder %v4759, 0.0
      %vm4824 = vcmp.gt.f32.partialorder %v4760, 0.0
      %vm4825 = vcmp.gt.f32.partialorder %v4761, 0.0
      %vm4826 = vcmp.gt.f32.partialorder %v4762, 0.0
      %vm4827 = vcmp.gt.f32.partialorder %v4763, 0.0
      %vm4828 = vcmp.gt.f32.partialorder %v4764, 0.0
      %vm4829 = vcmp.gt.f32.partialorder %v4765, 0.0
      %vm4830 = vcmp.gt.f32.partialorder %v4766, 0.0
      %vm4831 = vcmp.gt.f32.partialorder %v4767, 0.0
      %vm4832 = vcmp.gt.f32.partialorder %v4768, 0.0
      %vm4833 = vcmp.gt.f32.partialorder %v4769, 0.0
      %vm4834 = vcmp.gt.f32.partialorder %v4770, 0.0
      %vm4835 = vcmp.gt.f32.partialorder %v4771, 0.0
      %vm4836 = vcmp.gt.f32.partialorder %v4772, 0.0
      %vm4837 = vcmp.gt.f32.partialorder %v4773, 0.0
      %vm4838 = vcmp.gt.f32.partialorder %v4774, 0.0
      %vm4839 = vcmp.gt.f32.partialorder %v4775, 0.0
      %vm4840 = vcmp.gt.f32.partialorder %v4776, 0.0
      %vm4841 = vcmp.gt.f32.partialorder %v4777, 0.0
      %vm4842 = vcmp.gt.f32.partialorder %v4778, 0.0
      %vm4843 = vcmp.gt.f32.partialorder %v4779, 0.0
      %vm4844 = vcmp.gt.f32.partialorder %v4780, 0.0
      %vm4845 = vcmp.gt.f32.partialorder %v4781, 0.0
      %vm4846 = vcmp.gt.f32.partialorder %v4782, 0.0
      %vm4847 = vcmp.gt.f32.partialorder %v4783, 0.0
      %vm4848 = vcmp.gt.f32.partialorder %v4784, 0.0
      %vm4849 = vcmp.gt.f32.partialorder %v4785, 0.0
      %vm4850 = vcmp.gt.f32.partialorder %v4786, 0.0
      %v4851 = vmul.f32 %v4723, 0.2
      %v4852 = vmul.f32 %v4724, 0.2
      %v4853 = vmul.f32 %v4725, 0.2
      %v4854 = vmul.f32 %v4726, 0.2
      %v4855 = vmul.f32 %v4727, 0.2
      %v4856 = vmul.f32 %v4728, 0.2
      %v4857 = vmul.f32 %v4729, 0.2
      %v4858 = vmul.f32 %v4730, 0.2
      %v4859 = vmul.f32 %v4731, 0.2
      %v4860 = vmul.f32 %v4732, 0.2
      %v4861 = vmul.f32 %v4733, 0.2
      %v4862 = vmul.f32 %v4734, 0.2
      %v4863 = vmul.f32 %v4735, 0.2
      %v4864 = vmul.f32 %v4736, 0.2
      %v4865 = vmul.f32 %v4737, 0.2
      %v4866 = vmul.f32 %v4738, 0.2
      %v4867 = vmul.f32 %v4739, 0.2
      %v4868 = vmul.f32 %v4740, 0.2
      %v4869 = vmul.f32 %v4741, 0.2
      %v4870 = vmul.f32 %v4742, 0.2
      %v4871 = vmul.f32 %v4743, 0.2
      %v4872 = vmul.f32 %v4744, 0.2
      %v4873 = vmul.f32 %v4745, 0.2
      %v4874 = vmul.f32 %v4746, 0.2
      %v4875 = vmul.f32 %v4747, 0.2
      %v4876 = vmul.f32 %v4748, 0.2
      %v4877 = vmul.f32 %v4749, 0.2
      %v4878 = vmul.f32 %v4750, 0.2
      %v4879 = vmul.f32 %v4751, 0.2
      %v4880 = vmul.f32 %v4752, 0.2
      %v4881 = vmul.f32 %v4753, 0.2
      %v4882 = vmul.f32 %v4754, 0.2
      %v4883 = vmul.f32 %v4755, 0.2
      %v4884 = vmul.f32 %v4756, 0.2
      %v4885 = vmul.f32 %v4757, 0.2
      %v4886 = vmul.f32 %v4758, 0.2
      %v4887 = vmul.f32 %v4759, 0.2
      %v4888 = vmul.f32 %v4760, 0.2
      %v4889 = vmul.f32 %v4761, 0.2
      %v4890 = vmul.f32 %v4762, 0.2
      %v4891 = vmul.f32 %v4763, 0.2
      %v4892 = vmul.f32 %v4764, 0.2
      %v4893 = vmul.f32 %v4765, 0.2
      %v4894 = vmul.f32 %v4766, 0.2
      %v4895 = vmul.f32 %v4767, 0.2
      %v4896 = vmul.f32 %v4768, 0.2
      %v4897 = vmul.f32 %v4769, 0.2
      %v4898 = vmul.f32 %v4770, 0.2
      %v4899 = vmul.f32 %v4771, 0.2
      %v4900 = vmul.f32 %v4772, 0.2
      %v4901 = vmul.f32 %v4773, 0.2
      %v4902 = vmul.f32 %v4774, 0.2
      %v4903 = vmul.f32 %v4775, 0.2
      %v4904 = vmul.f32 %v4776, 0.2
      %v4905 = vmul.f32 %v4777, 0.2
      %v4906 = vmul.f32 %v4778, 0.2
      %v4907 = vmul.f32 %v4779, 0.2
      %v4908 = vmul.f32 %v4780, 0.2
      %v4909 = vmul.f32 %v4781, 0.2
      %v4910 = vmul.f32 %v4782, 0.2
      %v4911 = vmul.f32 %v4783, 0.2
      %v4912 = vmul.f32 %v4784, 0.2
      %v4913 = vmul.f32 %v4785, 0.2
      %v4914 = vmul.f32 %v4786, 0.2
      %v4915 = vsel %vm4787, %v4723, %v4851
      %v4916 = vsel %vm4788, %v4724, %v4852
      %v4917 = vsel %vm4789, %v4725, %v4853
      %v4918 = vsel %vm4790, %v4726, %v4854
      %v4919 = vsel %vm4791, %v4727, %v4855
      %v4920 = vsel %vm4792, %v4728, %v4856
      %v4921 = vsel %vm4793, %v4729, %v4857
      %v4922 = vsel %vm4794, %v4730, %v4858
      %v4923 = vsel %vm4795, %v4731, %v4859
      %v4924 = vsel %vm4796, %v4732, %v4860
      %v4925 = vsel %vm4797, %v4733, %v4861
      %v4926 = vsel %vm4798, %v4734, %v4862
      %v4927 = vsel %vm4799, %v4735, %v4863
      %v4928 = vsel %vm4800, %v4736, %v4864
      %v4929 = vsel %vm4801, %v4737, %v4865
      %v4930 = vsel %vm4802, %v4738, %v4866
      %v4931 = vsel %vm4803, %v4739, %v4867
      %v4932 = vsel %vm4804, %v4740, %v4868
      %v4933 = vsel %vm4805, %v4741, %v4869
      %v4934 = vsel %vm4806, %v4742, %v4870
      %v4935 = vsel %vm4807, %v4743, %v4871
      %v4936 = vsel %vm4808, %v4744, %v4872
      %v4937 = vsel %vm4809, %v4745, %v4873
      %v4938 = vsel %vm4810, %v4746, %v4874
      %v4939 = vsel %vm4811, %v4747, %v4875
      %v4940 = vsel %vm4812, %v4748, %v4876
      %v4941 = vsel %vm4813, %v4749, %v4877
      %v4942 = vsel %vm4814, %v4750, %v4878
      %v4943 = vsel %vm4815, %v4751, %v4879
      %v4944 = vsel %vm4816, %v4752, %v4880
      %v4945 = vsel %vm4817, %v4753, %v4881
      %v4946 = vsel %vm4818, %v4754, %v4882
      %v4947 = vsel %vm4819, %v4755, %v4883
      %v4948 = vsel %vm4820, %v4756, %v4884
      %v4949 = vsel %vm4821, %v4757, %v4885
      %v4950 = vsel %vm4822, %v4758, %v4886
      %v4951 = vsel %vm4823, %v4759, %v4887
      %v4952 = vsel %vm4824, %v4760, %v4888
      %v4953 = vsel %vm4825, %v4761, %v4889
      %v4954 = vsel %vm4826, %v4762, %v4890
      %v4955 = vsel %vm4827, %v4763, %v4891
      %v4956 = vsel %vm4828, %v4764, %v4892
      %v4957 = vsel %vm4829, %v4765, %v4893
      %v4958 = vsel %vm4830, %v4766, %v4894
      %v4959 = vsel %vm4831, %v4767, %v4895
      %v4960 = vsel %vm4832, %v4768, %v4896
      %v4961 = vsel %vm4833, %v4769, %v4897
      %v4962 = vsel %vm4834, %v4770, %v4898
      %v4963 = vsel %vm4835, %v4771, %v4899
      %v4964 = vsel %vm4836, %v4772, %v4900
      %v4965 = vsel %vm4837, %v4773, %v4901
      %v4966 = vsel %vm4838, %v4774, %v4902
      %v4967 = vsel %vm4839, %v4775, %v4903
      %v4968 = vsel %vm4840, %v4776, %v4904
      %v4969 = vsel %vm4841, %v4777, %v4905
      %v4970 = vsel %vm4842, %v4778, %v4906
      %v4971 = vsel %vm4843, %v4779, %v4907
      %v4972 = vsel %vm4844, %v4780, %v4908
      %v4973 = vsel %vm4845, %v4781, %v4909
      %v4974 = vsel %vm4846, %v4782, %v4910
      %v4975 = vsel %vm4847, %v4783, %v4911
      %v4976 = vsel %vm4848, %v4784, %v4912
      %v4977 = vsel %vm4849, %v4785, %v4913
      %v4978 = vsel %vm4850, %v4786, %v4914
      %v4979 = vld [vmem:[%s4] sm:$0xff]
      %v4980 = vld [vmem:[%s4 + $0x8] sm:$0xff]
      %v4981 = vld [vmem:[%s4 + $0x10] sm:$0xff]
      %v4982 = vld [vmem:[%s4 + $0x18] sm:$0xff]
      %v4983 = vld [vmem:[%s4 + $0x20] sm:$0xff]
      %v4984 = vld [vmem:[%s4 + $0x28] sm:$0xff]
      %v4985 = vld [vmem:[%s4 + $0x30] sm:$0xff]
      %v4986 = vld [vmem:[%s4 + $0x38] sm:$0xff]
      %v4987 = vld [vmem:[%s4 + $0x40] sm:$0xff]
      %v4988 = vld [vmem:[%s4 + $0x48] sm:$0xff]
      %v4989 = vld [vmem:[%s4 + $0x50] sm:$0xff]
      %v4990 = vld [vmem:[%s4 + $0x58] sm:$0xff]
      %v4991 = vld [vmem:[%s4 + $0x60] sm:$0xff]
      %v4992 = vld [vmem:[%s4 + $0x68] sm:$0xff]
      %v4993 = vld [vmem:[%s4 + $0x70] sm:$0xff]
      %v4994 = vld [vmem:[%s4 + $0x78] sm:$0xff]
      %4995 = vmatprep.subr.mxu0 0.0
      %4996 = vmatpush1.msra.mxu0 %v4994
      %4997 = vmatprep.subr.mxu0 0.0
      %4998 = vmatpush1.msra.mxu0 %v4993
      %4999 = vmatprep.subr.mxu0 0.0
      %5000 = vmatpush1.msra.mxu0 %v4992
      %5001 = vmatprep.subr.mxu0 0.0
      %5002 = vmatpush1.msra.mxu0 %v4991
      %5003 = vmatprep.subr.mxu0 0.0
      %5004 = vmatpush1.msra.mxu0 %v4990
      %5005 = vmatprep.subr.mxu0 0.0
      %5006 = vmatpush1.msra.mxu0 %v4989
      %5007 = vmatprep.subr.mxu0 0.0
      %5008 = vmatpush1.msra.mxu0 %v4988
      %5009 = vmatprep.subr.mxu0 0.0
      %5010 = vmatpush1.msra.mxu0 %v4987
      %5011 = vmatprep.subr.mxu0 0.0
      %5012 = vmatpush1.msra.mxu0 %v4986
      %5013 = vmatprep.subr.mxu0 0.0
      %5014 = vmatpush1.msra.mxu0 %v4985
      %5015 = vmatprep.subr.mxu0 0.0
      %5016 = vmatpush1.msra.mxu0 %v4984
      %5017 = vmatprep.subr.mxu0 0.0
      %5018 = vmatpush1.msra.mxu0 %v4983
      %5019 = vmatprep.subr.mxu0 0.0
      %5020 = vmatpush1.msra.mxu0 %v4982
      %5021 = vmatprep.subr.mxu0 0.0
      %5022 = vmatpush1.msra.mxu0 %v4981
      %5023 = vmatprep.subr.mxu0 0.0
      %5024 = vmatpush1.msra.mxu0 %v4980
      %5025 = vmatprep.subr.mxu0 0.0
      %5026 = vmatpush1.msra.mxu0 %v4979
      %5027 = vmatprep.subr.mxu0 0.0
      %5028 = vmatpush2.msra.mxu0 0.0
      %5029 = vmatprep.subr.mxu0 0.0
      %5030 = vmatpush2.msra.mxu0 0.0
      %5031 = vmatprep.subr.mxu0 0.0
      %5032 = vmatpush2.msra.mxu0 0.0
      %5033 = vmatprep.subr.mxu0 0.0
      %5034 = vmatpush2.msra.mxu0 0.0
      %5035 = vmatprep.subr.mxu0 0.0
      %5036 = vmatpush2.msra.mxu0 0.0
      %5037 = vmatprep.subr.mxu0 0.0
      %5038 = vmatpush2.msra.mxu0 0.0
      %5039 = vmatprep.subr.mxu0 0.0
      %5040 = vmatpush2.msra.mxu0 0.0
      %5041 = vmatprep.subr.mxu0 0.0
      %5042 = vmatpush2.msra.mxu0 0.0
      %5043 = vmatprep.subr.mxu0 0.0
      %5044 = vmatpush2.msra.mxu0 0.0
      %5045 = vmatprep.subr.mxu0 0.0
      %5046 = vmatpush2.msra.mxu0 0.0
      %5047 = vmatprep.subr.mxu0 0.0
      %5048 = vmatpush2.msra.mxu0 0.0
      %5049 = vmatprep.subr.mxu0 0.0
      %5050 = vmatpush2.msra.mxu0 0.0
      %5051 = vmatprep.subr.mxu0 0.0
      %5052 = vmatpush2.msra.mxu0 0.0
      %5053 = vmatprep.subr.mxu0 0.0
      %5054 = vmatpush2.msra.mxu0 0.0
      %5055 = vmatprep.subr.mxu0 0.0
      %5056 = vmatpush2.msra.mxu0 0.0
      %5057 = vmatprep.subr.mxu0 0.0
      %5058 = vmatpush2.msra.mxu0 0.0
      %5059 = vmatprep.mubr.f32.mxu0 0.0
      %5060 = vmatmul.mubr.f32.gmra.mxu0 %v4915
      %v5061 = vpop.f32.mrf.mxu0
      %v5062 = vadd.f32 0.0, %v5061
      %v5063 = vpop.f32.mrf.mxu0
      %5064 = vmatprep.mubr.f32.mxu0 0.0
      %5065 = vmatmul.mubr.f32.gmra.mxu0 %v4916
      %v5066 = vpop.f32.mrf.mxu0
      %v5067 = vadd.f32 0.0, %v5066
      %v5068 = vpop.f32.mrf.mxu0
      %5069 = vmatprep.mubr.f32.mxu0 0.0
      %5070 = vmatmul.mubr.f32.gmra.mxu0 %v4917
      %v5071 = vpop.f32.mrf.mxu0
      %v5072 = vadd.f32 0.0, %v5071
      %v5073 = vpop.f32.mrf.mxu0
      %5074 = vmatprep.mubr.f32.mxu0 0.0
      %5075 = vmatmul.mubr.f32.gmra.mxu0 %v4918
      %v5076 = vpop.f32.mrf.mxu0
      %v5077 = vadd.f32 0.0, %v5076
      %v5078 = vpop.f32.mrf.mxu0
      %5079 = vmatprep.mubr.f32.mxu0 0.0
      %5080 = vmatmul.mubr.f32.gmra.mxu0 %v4919
      %v5081 = vpop.f32.mrf.mxu0
      %v5082 = vadd.f32 0.0, %v5081
      %v5083 = vpop.f32.mrf.mxu0
      %5084 = vmatprep.mubr.f32.mxu0 0.0
      %5085 = vmatmul.mubr.f32.gmra.mxu0 %v4920
      %v5086 = vpop.f32.mrf.mxu0
      %v5087 = vadd.f32 0.0, %v5086
      %v5088 = vpop.f32.mrf.mxu0
      %5089 = vmatprep.mubr.f32.mxu0 0.0
      %5090 = vmatmul.mubr.f32.gmra.mxu0 %v4921
      %v5091 = vpop.f32.mrf.mxu0
      %v5092 = vadd.f32 0.0, %v5091
      %v5093 = vpop.f32.mrf.mxu0
      %5094 = vmatprep.mubr.f32.mxu0 0.0
      %5095 = vmatmul.mubr.f32.gmra.mxu0 %v4922
      %v5096 = vpop.f32.mrf.mxu0
      %v5097 = vadd.f32 0.0, %v5096
      %v5098 = vpop.f32.mrf.mxu0
      %5099 = vmatprep.mubr.f32.mxu0 0.0
      %5100 = vmatmul.mubr.f32.gmra.mxu0 %v4923
      %v5101 = vpop.f32.mrf.mxu0
      %v5102 = vadd.f32 0.0, %v5101
      %v5103 = vpop.f32.mrf.mxu0
      %5104 = vmatprep.mubr.f32.mxu0 0.0
      %5105 = vmatmul.mubr.f32.gmra.mxu0 %v4924
      %v5106 = vpop.f32.mrf.mxu0
      %v5107 = vadd.f32 0.0, %v5106
      %v5108 = vpop.f32.mrf.mxu0
      %5109 = vmatprep.mubr.f32.mxu0 0.0
      %5110 = vmatmul.mubr.f32.gmra.mxu0 %v4925
      %v5111 = vpop.f32.mrf.mxu0
      %v5112 = vadd.f32 0.0, %v5111
      %v5113 = vpop.f32.mrf.mxu0
      %5114 = vmatprep.mubr.f32.mxu0 0.0
      %5115 = vmatmul.mubr.f32.gmra.mxu0 %v4926
      %v5116 = vpop.f32.mrf.mxu0
      %v5117 = vadd.f32 0.0, %v5116
      %v5118 = vpop.f32.mrf.mxu0
      %5119 = vmatprep.mubr.f32.mxu0 0.0
      %5120 = vmatmul.mubr.f32.gmra.mxu0 %v4927
      %v5121 = vpop.f32.mrf.mxu0
      %v5122 = vadd.f32 0.0, %v5121
      %v5123 = vpop.f32.mrf.mxu0
      %5124 = vmatprep.mubr.f32.mxu0 0.0
      %5125 = vmatmul.mubr.f32.gmra.mxu0 %v4928
      %v5126 = vpop.f32.mrf.mxu0
      %v5127 = vadd.f32 0.0, %v5126
      %v5128 = vpop.f32.mrf.mxu0
      %5129 = vmatprep.mubr.f32.mxu0 0.0
      %5130 = vmatmul.mubr.f32.gmra.mxu0 %v4929
      %v5131 = vpop.f32.mrf.mxu0
      %v5132 = vadd.f32 0.0, %v5131
      %v5133 = vpop.f32.mrf.mxu0
      %5134 = vmatprep.mubr.f32.mxu0 0.0
      %5135 = vmatmul.mubr.f32.gmra.mxu0 %v4930
      %v5136 = vpop.f32.mrf.mxu0
      %v5137 = vadd.f32 0.0, %v5136
      %v5138 = vpop.f32.mrf.mxu0
      %5139 = vmatprep.mubr.f32.mxu0 0.0
      %5140 = vmatmul.mubr.f32.gmra.mxu0 %v4931
      %v5141 = vpop.f32.mrf.mxu0
      %v5142 = vadd.f32 0.0, %v5141
      %v5143 = vpop.f32.mrf.mxu0
      %5144 = vmatprep.mubr.f32.mxu0 0.0
      %5145 = vmatmul.mubr.f32.gmra.mxu0 %v4932
      %v5146 = vpop.f32.mrf.mxu0
      %v5147 = vadd.f32 0.0, %v5146
      %v5148 = vpop.f32.mrf.mxu0
      %5149 = vmatprep.mubr.f32.mxu0 0.0
      %5150 = vmatmul.mubr.f32.gmra.mxu0 %v4933
      %v5151 = vpop.f32.mrf.mxu0
      %v5152 = vadd.f32 0.0, %v5151
      %v5153 = vpop.f32.mrf.mxu0
      %5154 = vmatprep.mubr.f32.mxu0 0.0
      %5155 = vmatmul.mubr.f32.gmra.mxu0 %v4934
      %v5156 = vpop.f32.mrf.mxu0
      %v5157 = vadd.f32 0.0, %v5156
      %v5158 = vpop.f32.mrf.mxu0
      %5159 = vmatprep.mubr.f32.mxu0 0.0
      %5160 = vmatmul.mubr.f32.gmra.mxu0 %v4935
      %v5161 = vpop.f32.mrf.mxu0
      %v5162 = vadd.f32 0.0, %v5161
      %v5163 = vpop.f32.mrf.mxu0
      %5164 = vmatprep.mubr.f32.mxu0 0.0
      %5165 = vmatmul.mubr.f32.gmra.mxu0 %v4936
      %v5166 = vpop.f32.mrf.mxu0
      %v5167 = vadd.f32 0.0, %v5166
      %v5168 = vpop.f32.mrf.mxu0
      %5169 = vmatprep.mubr.f32.mxu0 0.0
      %5170 = vmatmul.mubr.f32.gmra.mxu0 %v4937
      %v5171 = vpop.f32.mrf.mxu0
      %v5172 = vadd.f32 0.0, %v5171
      %v5173 = vpop.f32.mrf.mxu0
      %5174 = vmatprep.mubr.f32.mxu0 0.0
      %5175 = vmatmul.mubr.f32.gmra.mxu0 %v4938
      %v5176 = vpop.f32.mrf.mxu0
      %v5177 = vadd.f32 0.0, %v5176
      %v5178 = vpop.f32.mrf.mxu0
      %5179 = vmatprep.mubr.f32.mxu0 0.0
      %5180 = vmatmul.mubr.f32.gmra.mxu0 %v4939
      %v5181 = vpop.f32.mrf.mxu0
      %v5182 = vadd.f32 0.0, %v5181
      %v5183 = vpop.f32.mrf.mxu0
      %5184 = vmatprep.mubr.f32.mxu0 0.0
      %5185 = vmatmul.mubr.f32.gmra.mxu0 %v4940
      %v5186 = vpop.f32.mrf.mxu0
      %v5187 = vadd.f32 0.0, %v5186
      %v5188 = vpop.f32.mrf.mxu0
      %5189 = vmatprep.mubr.f32.mxu0 0.0
      %5190 = vmatmul.mubr.f32.gmra.mxu0 %v4941
      %v5191 = vpop.f32.mrf.mxu0
      %v5192 = vadd.f32 0.0, %v5191
      %v5193 = vpop.f32.mrf.mxu0
      %5194 = vmatprep.mubr.f32.mxu0 0.0
      %5195 = vmatmul.mubr.f32.gmra.mxu0 %v4942
      %v5196 = vpop.f32.mrf.mxu0
      %v5197 = vadd.f32 0.0, %v5196
      %v5198 = vpop.f32.mrf.mxu0
      %5199 = vmatprep.mubr.f32.mxu0 0.0
      %5200 = vmatmul.mubr.f32.gmra.mxu0 %v4943
      %v5201 = vpop.f32.mrf.mxu0
      %v5202 = vadd.f32 0.0, %v5201
      %v5203 = vpop.f32.mrf.mxu0
      %5204 = vmatprep.mubr.f32.mxu0 0.0
      %5205 = vmatmul.mubr.f32.gmra.mxu0 %v4944
      %v5206 = vpop.f32.mrf.mxu0
      %v5207 = vadd.f32 0.0, %v5206
      %v5208 = vpop.f32.mrf.mxu0
      %5209 = vmatprep.mubr.f32.mxu0 0.0
      %5210 = vmatmul.mubr.f32.gmra.mxu0 %v4945
      %v5211 = vpop.f32.mrf.mxu0
      %v5212 = vadd.f32 0.0, %v5211
      %v5213 = vpop.f32.mrf.mxu0
      %5214 = vmatprep.mubr.f32.mxu0 0.0
      %5215 = vmatmul.mubr.f32.gmra.mxu0 %v4946
      %v5216 = vpop.f32.mrf.mxu0
      %v5217 = vadd.f32 0.0, %v5216
      %v5218 = vpop.f32.mrf.mxu0
      %5219 = vmatprep.mubr.f32.mxu0 0.0
      %5220 = vmatmul.mubr.f32.gmra.mxu0 %v4947
      %v5221 = vpop.f32.mrf.mxu0
      %v5222 = vadd.f32 0.0, %v5221
      %v5223 = vpop.f32.mrf.mxu0
      %5224 = vmatprep.mubr.f32.mxu0 0.0
      %5225 = vmatmul.mubr.f32.gmra.mxu0 %v4948
      %v5226 = vpop.f32.mrf.mxu0
      %v5227 = vadd.f32 0.0, %v5226
      %v5228 = vpop.f32.mrf.mxu0
      %5229 = vmatprep.mubr.f32.mxu0 0.0
      %5230 = vmatmul.mubr.f32.gmra.mxu0 %v4949
      %v5231 = vpop.f32.mrf.mxu0
      %v5232 = vadd.f32 0.0, %v5231
      %v5233 = vpop.f32.mrf.mxu0
      %5234 = vmatprep.mubr.f32.mxu0 0.0
      %5235 = vmatmul.mubr.f32.gmra.mxu0 %v4950
      %v5236 = vpop.f32.mrf.mxu0
      %v5237 = vadd.f32 0.0, %v5236
      %v5238 = vpop.f32.mrf.mxu0
      %5239 = vmatprep.mubr.f32.mxu0 0.0
      %5240 = vmatmul.mubr.f32.gmra.mxu0 %v4951
      %v5241 = vpop.f32.mrf.mxu0
      %v5242 = vadd.f32 0.0, %v5241
      %v5243 = vpop.f32.mrf.mxu0
      %5244 = vmatprep.mubr.f32.mxu0 0.0
      %5245 = vmatmul.mubr.f32.gmra.mxu0 %v4952
      %v5246 = vpop.f32.mrf.mxu0
      %v5247 = vadd.f32 0.0, %v5246
      %v5248 = vpop.f32.mrf.mxu0
      %5249 = vmatprep.mubr.f32.mxu0 0.0
      %5250 = vmatmul.mubr.f32.gmra.mxu0 %v4953
      %v5251 = vpop.f32.mrf.mxu0
      %v5252 = vadd.f32 0.0, %v5251
      %v5253 = vpop.f32.mrf.mxu0
      %5254 = vmatprep.mubr.f32.mxu0 0.0
      %5255 = vmatmul.mubr.f32.gmra.mxu0 %v4954
      %v5256 = vpop.f32.mrf.mxu0
      %v5257 = vadd.f32 0.0, %v5256
      %v5258 = vpop.f32.mrf.mxu0
      %5259 = vmatprep.mubr.f32.mxu0 0.0
      %5260 = vmatmul.mubr.f32.gmra.mxu0 %v4955
      %v5261 = vpop.f32.mrf.mxu0
      %v5262 = vadd.f32 0.0, %v5261
      %v5263 = vpop.f32.mrf.mxu0
      %5264 = vmatprep.mubr.f32.mxu0 0.0
      %5265 = vmatmul.mubr.f32.gmra.mxu0 %v4956
      %v5266 = vpop.f32.mrf.mxu0
      %v5267 = vadd.f32 0.0, %v5266
      %v5268 = vpop.f32.mrf.mxu0
      %5269 = vmatprep.mubr.f32.mxu0 0.0
      %5270 = vmatmul.mubr.f32.gmra.mxu0 %v4957
      %v5271 = vpop.f32.mrf.mxu0
      %v5272 = vadd.f32 0.0, %v5271
      %v5273 = vpop.f32.mrf.mxu0
      %5274 = vmatprep.mubr.f32.mxu0 0.0
      %5275 = vmatmul.mubr.f32.gmra.mxu0 %v4958
      %v5276 = vpop.f32.mrf.mxu0
      %v5277 = vadd.f32 0.0, %v5276
      %v5278 = vpop.f32.mrf.mxu0
      %5279 = vmatprep.mubr.f32.mxu0 0.0
      %5280 = vmatmul.mubr.f32.gmra.mxu0 %v4959
      %v5281 = vpop.f32.mrf.mxu0
      %v5282 = vadd.f32 0.0, %v5281
      %v5283 = vpop.f32.mrf.mxu0
      %5284 = vmatprep.mubr.f32.mxu0 0.0
      %5285 = vmatmul.mubr.f32.gmra.mxu0 %v4960
      %v5286 = vpop.f32.mrf.mxu0
      %v5287 = vadd.f32 0.0, %v5286
      %v5288 = vpop.f32.mrf.mxu0
      %5289 = vmatprep.mubr.f32.mxu0 0.0
      %5290 = vmatmul.mubr.f32.gmra.mxu0 %v4961
      %v5291 = vpop.f32.mrf.mxu0
      %v5292 = vadd.f32 0.0, %v5291
      %v5293 = vpop.f32.mrf.mxu0
      %5294 = vmatprep.mubr.f32.mxu0 0.0
      %5295 = vmatmul.mubr.f32.gmra.mxu0 %v4962
      %v5296 = vpop.f32.mrf.mxu0
      %v5297 = vadd.f32 0.0, %v5296
      %v5298 = vpop.f32.mrf.mxu0
      %5299 = vmatprep.mubr.f32.mxu0 0.0
      %5300 = vmatmul.mubr.f32.gmra.mxu0 %v4963
      %v5301 = vpop.f32.mrf.mxu0
      %v5302 = vadd.f32 0.0, %v5301
      %v5303 = vpop.f32.mrf.mxu0
      %5304 = vmatprep.mubr.f32.mxu0 0.0
      %5305 = vmatmul.mubr.f32.gmra.mxu0 %v4964
      %v5306 = vpop.f32.mrf.mxu0
      %v5307 = vadd.f32 0.0, %v5306
      %v5308 = vpop.f32.mrf.mxu0
      %5309 = vmatprep.mubr.f32.mxu0 0.0
      %5310 = vmatmul.mubr.f32.gmra.mxu0 %v4965
      %v5311 = vpop.f32.mrf.mxu0
      %v5312 = vadd.f32 0.0, %v5311
      %v5313 = vpop.f32.mrf.mxu0
      %5314 = vmatprep.mubr.f32.mxu0 0.0
      %5315 = vmatmul.mubr.f32.gmra.mxu0 %v4966
      %v5316 = vpop.f32.mrf.mxu0
      %v5317 = vadd.f32 0.0, %v5316
      %v5318 = vpop.f32.mrf.mxu0
      %5319 = vmatprep.mubr.f32.mxu0 0.0
      %5320 = vmatmul.mubr.f32.gmra.mxu0 %v4967
      %v5321 = vpop.f32.mrf.mxu0
      %v5322 = vadd.f32 0.0, %v5321
      %v5323 = vpop.f32.mrf.mxu0
      %5324 = vmatprep.mubr.f32.mxu0 0.0
      %5325 = vmatmul.mubr.f32.gmra.mxu0 %v4968
      %v5326 = vpop.f32.mrf.mxu0
      %v5327 = vadd.f32 0.0, %v5326
      %v5328 = vpop.f32.mrf.mxu0
      %5329 = vmatprep.mubr.f32.mxu0 0.0
      %5330 = vmatmul.mubr.f32.gmra.mxu0 %v4969
      %v5331 = vpop.f32.mrf.mxu0
      %v5332 = vadd.f32 0.0, %v5331
      %v5333 = vpop.f32.mrf.mxu0
      %5334 = vmatprep.mubr.f32.mxu0 0.0
      %5335 = vmatmul.mubr.f32.gmra.mxu0 %v4970
      %v5336 = vpop.f32.mrf.mxu0
      %v5337 = vadd.f32 0.0, %v5336
      %v5338 = vpop.f32.mrf.mxu0
      %5339 = vmatprep.mubr.f32.mxu0 0.0
      %5340 = vmatmul.mubr.f32.gmra.mxu0 %v4971
      %v5341 = vpop.f32.mrf.mxu0
      %v5342 = vadd.f32 0.0, %v5341
      %v5343 = vpop.f32.mrf.mxu0
      %5344 = vmatprep.mubr.f32.mxu0 0.0
      %5345 = vmatmul.mubr.f32.gmra.mxu0 %v4972
      %v5346 = vpop.f32.mrf.mxu0
      %v5347 = vadd.f32 0.0, %v5346
      %v5348 = vpop.f32.mrf.mxu0
      %5349 = vmatprep.mubr.f32.mxu0 0.0
      %5350 = vmatmul.mubr.f32.gmra.mxu0 %v4973
      %v5351 = vpop.f32.mrf.mxu0
      %v5352 = vadd.f32 0.0, %v5351
      %v5353 = vpop.f32.mrf.mxu0
      %5354 = vmatprep.mubr.f32.mxu0 0.0
      %5355 = vmatmul.mubr.f32.gmra.mxu0 %v4974
      %v5356 = vpop.f32.mrf.mxu0
      %v5357 = vadd.f32 0.0, %v5356
      %v5358 = vpop.f32.mrf.mxu0
      %5359 = vmatprep.mubr.f32.mxu0 0.0
      %5360 = vmatmul.mubr.f32.gmra.mxu0 %v4975
      %v5361 = vpop.f32.mrf.mxu0
      %v5362 = vadd.f32 0.0, %v5361
      %v5363 = vpop.f32.mrf.mxu0
      %5364 = vmatprep.mubr.f32.mxu0 0.0
      %5365 = vmatmul.mubr.f32.gmra.mxu0 %v4976
      %v5366 = vpop.f32.mrf.mxu0
      %v5367 = vadd.f32 0.0, %v5366
      %v5368 = vpop.f32.mrf.mxu0
      %5369 = vmatprep.mubr.f32.mxu0 0.0
      %5370 = vmatmul.mubr.f32.gmra.mxu0 %v4977
      %v5371 = vpop.f32.mrf.mxu0
      %v5372 = vadd.f32 0.0, %v5371
      %v5373 = vpop.f32.mrf.mxu0
      %5374 = vmatprep.mubr.f32.mxu0 0.0
      %5375 = vmatmul.mubr.f32.gmra.mxu0 %v4978
      %v5376 = vpop.f32.mrf.mxu0
      %v5377 = vadd.f32 0.0, %v5376
      %v5378 = vpop.f32.mrf.mxu0
      %5379 = vdwg.mxu0
      %v5380 = vld [vmem:[%s5] sm:$0xff]
      %v5381 = vld [vmem:[%s5 + $0x8] sm:$0xff]
      %v5382 = vld [vmem:[%s5 + $0x10] sm:$0xff]
      %v5383 = vld [vmem:[%s5 + $0x18] sm:$0xff]
      %v5384 = vld [vmem:[%s5 + $0x20] sm:$0xff]
      %v5385 = vld [vmem:[%s5 + $0x28] sm:$0xff]
      %v5386 = vld [vmem:[%s5 + $0x30] sm:$0xff]
      %v5387 = vld [vmem:[%s5 + $0x38] sm:$0xff]
      %v5388 = vld [vmem:[%s5 + $0x40] sm:$0xff]
      %v5389 = vld [vmem:[%s5 + $0x48] sm:$0xff]
      %v5390 = vld [vmem:[%s5 + $0x50] sm:$0xff]
      %v5391 = vld [vmem:[%s5 + $0x58] sm:$0xff]
      %v5392 = vld [vmem:[%s5 + $0x60] sm:$0xff]
      %v5393 = vld [vmem:[%s5 + $0x68] sm:$0xff]
      %v5394 = vld [vmem:[%s5 + $0x70] sm:$0xff]
      %v5395 = vld [vmem:[%s5 + $0x78] sm:$0xff]
      %v5397 = vsel %vm3297, %v5380, 0
      %5399 = vmatprep.subr.mxu0 0.0
      %5400 = vmatpush1.msra.mxu0 0.0
      %5401 = vmatprep.subr.mxu0 0.0
      %5402 = vmatpush1.msra.mxu0 0.0
      %5403 = vmatprep.subr.mxu0 0.0
      %5404 = vmatpush1.msra.mxu0 0.0
      %5405 = vmatprep.subr.mxu0 0.0
      %5406 = vmatpush1.msra.mxu0 0.0
      %5407 = vmatprep.subr.mxu0 0.0
      %5408 = vmatpush1.msra.mxu0 0.0
      %5409 = vmatprep.subr.mxu0 0.0
      %5410 = vmatpush1.msra.mxu0 0.0
      %5411 = vmatprep.subr.mxu0 0.0
      %5412 = vmatpush1.msra.mxu0 0.0
      %5413 = vmatprep.subr.mxu0 0.0
      %5414 = vmatpush1.msra.mxu0 0.0
      %5415 = vmatprep.subr.mxu0 0.0
      %5416 = vmatpush1.msra.mxu0 0.0
      %5417 = vmatprep.subr.mxu0 0.0
      %5418 = vmatpush1.msra.mxu0 0.0
      %5419 = vmatprep.subr.mxu0 0.0
      %5420 = vmatpush1.msra.mxu0 0.0
      %5421 = vmatprep.subr.mxu0 0.0
      %5422 = vmatpush1.msra.mxu0 0.0
      %5423 = vmatprep.subr.mxu0 0.0
      %5424 = vmatpush1.msra.mxu0 %v5077
      %5425 = vmatprep.subr.mxu0 0.0
      %5426 = vmatpush1.msra.mxu0 %v5072
      %5427 = vmatprep.subr.mxu0 0.0
      %5428 = vmatpush1.msra.mxu0 %v5067
      %5429 = vmatprep.subr.mxu0 0.0
      %5430 = vmatpush1.msra.mxu0 %v5062
      %5431 = vmatprep.subr.mxu0 0.0
      %5432 = vmatpush2.msra.mxu0 0.0
      %5433 = vmatprep.subr.mxu0 0.0
      %5434 = vmatpush2.msra.mxu0 0.0
      %5435 = vmatprep.subr.mxu0 0.0
      %5436 = vmatpush2.msra.mxu0 0.0
      %5437 = vmatprep.subr.mxu0 0.0
      %5438 = vmatpush2.msra.mxu0 0.0
      %5439 = vmatprep.subr.mxu0 0.0
      %5440 = vmatpush2.msra.mxu0 0.0
      %5441 = vmatprep.subr.mxu0 0.0
      %5442 = vmatpush2.msra.mxu0 0.0
      %5443 = vmatprep.subr.mxu0 0.0
      %5444 = vmatpush2.msra.mxu0 0.0
      %5445 = vmatprep.subr.mxu0 0.0
      %5446 = vmatpush2.msra.mxu0 0.0
      %5447 = vmatprep.subr.mxu0 0.0
      %5448 = vmatpush2.msra.mxu0 0.0
      %5449 = vmatprep.subr.mxu0 0.0
      %5450 = vmatpush2.msra.mxu0 0.0
      %5451 = vmatprep.subr.mxu0 0.0
      %5452 = vmatpush2.msra.mxu0 0.0
      %5453 = vmatprep.subr.mxu0 0.0
      %5454 = vmatpush2.msra.mxu0 0.0
      %5455 = vmatprep.subr.mxu0 0.0
      %5456 = vmatpush2.msra.mxu0 0.0
      %5457 = vmatprep.subr.mxu0 0.0
      %5458 = vmatpush2.msra.mxu0 0.0
      %5459 = vmatprep.subr.mxu0 0.0
      %5460 = vmatpush2.msra.mxu0 0.0
      %5461 = vmatprep.subr.mxu0 0.0
      %5462 = vmatpush2.msra.mxu0 0.0
      %5463 = vmatprep.mubr.f32.mxu0 0.0
      %5464 = vmatmul.mubr.f32.gmra.mxu0 %v5397
      %v5465 = vpop.f32.mrf.mxu0
      %v5466 = vadd.f32 0.0, %v5465
      %v5467 = vpop.f32.mrf.mxu0
      %5468 = vdwg.mxu0
      %v5470 = vsel %vm3297, %v5381, 0
      %5472 = vmatprep.subr.mxu0 0.0
      %5473 = vmatpush1.msra.mxu0 0.0
      %5474 = vmatprep.subr.mxu0 0.0
      %5475 = vmatpush1.msra.mxu0 0.0
      %5476 = vmatprep.subr.mxu0 0.0
      %5477 = vmatpush1.msra.mxu0 0.0
      %5478 = vmatprep.subr.mxu0 0.0
      %5479 = vmatpush1.msra.mxu0 0.0
      %5480 = vmatprep.subr.mxu0 0.0
      %5481 = vmatpush1.msra.mxu0 0.0
      %5482 = vmatprep.subr.mxu0 0.0
      %5483 = vmatpush1.msra.mxu0 0.0
      %5484 = vmatprep.subr.mxu0 0.0
      %5485 = vmatpush1.msra.mxu0 0.0
      %5486 = vmatprep.subr.mxu0 0.0
      %5487 = vmatpush1.msra.mxu0 0.0
      %5488 = vmatprep.subr.mxu0 0.0
      %5489 = vmatpush1.msra.mxu0 0.0
      %5490 = vmatprep.subr.mxu0 0.0
      %5491 = vmatpush1.msra.mxu0 0.0
      %5492 = vmatprep.subr.mxu0 0.0
      %5493 = vmatpush1.msra.mxu0 0.0
      %5494 = vmatprep.subr.mxu0 0.0
      %5495 = vmatpush1.msra.mxu0 0.0
      %5496 = vmatprep.subr.mxu0 0.0
      %5497 = vmatpush1.msra.mxu0 %v5097
      %5498 = vmatprep.subr.mxu0 0.0
      %5499 = vmatpush1.msra.mxu0 %v5092
      %5500 = vmatprep.subr.mxu0 0.0
      %5501 = vmatpush1.msra.mxu0 %v5087
      %5502 = vmatprep.subr.mxu0 0.0
      %5503 = vmatpush1.msra.mxu0 %v5082
      %5504 = vmatprep.subr.mxu0 0.0
      %5505 = vmatpush2.msra.mxu0 0.0
      %5506 = vmatprep.subr.mxu0 0.0
      %5507 = vmatpush2.msra.mxu0 0.0
      %5508 = vmatprep.subr.mxu0 0.0
      %5509 = vmatpush2.msra.mxu0 0.0
      %5510 = vmatprep.subr.mxu0 0.0
      %5511 = vmatpush2.msra.mxu0 0.0
      %5512 = vmatprep.subr.mxu0 0.0
      %5513 = vmatpush2.msra.mxu0 0.0
      %5514 = vmatprep.subr.mxu0 0.0
      %5515 = vmatpush2.msra.mxu0 0.0
      %5516 = vmatprep.subr.mxu0 0.0
      %5517 = vmatpush2.msra.mxu0 0.0
      %5518 = vmatprep.subr.mxu0 0.0
      %5519 = vmatpush2.msra.mxu0 0.0
      %5520 = vmatprep.subr.mxu0 0.0
      %5521 = vmatpush2.msra.mxu0 0.0
      %5522 = vmatprep.subr.mxu0 0.0
      %5523 = vmatpush2.msra.mxu0 0.0
      %5524 = vmatprep.subr.mxu0 0.0
      %5525 = vmatpush2.msra.mxu0 0.0
      %5526 = vmatprep.subr.mxu0 0.0
      %5527 = vmatpush2.msra.mxu0 0.0
      %5528 = vmatprep.subr.mxu0 0.0
      %5529 = vmatpush2.msra.mxu0 0.0
      %5530 = vmatprep.subr.mxu0 0.0
      %5531 = vmatpush2.msra.mxu0 0.0
      %5532 = vmatprep.subr.mxu0 0.0
      %5533 = vmatpush2.msra.mxu0 0.0
      %5534 = vmatprep.subr.mxu0 0.0
      %5535 = vmatpush2.msra.mxu0 0.0
      %5536 = vmatprep.mubr.f32.mxu0 0.0
      %5537 = vmatmul.mubr.f32.gmra.mxu0 %v5470
      %v5538 = vpop.f32.mrf.mxu0
      %v5539 = vadd.f32 0.0, %v5538
      %v5540 = vpop.f32.mrf.mxu0
      %5541 = vdwg.mxu0
      %v5543 = vsel %vm3297, %v5382, 0
      %5545 = vmatprep.subr.mxu0 0.0
      %5546 = vmatpush1.msra.mxu0 0.0
      %5547 = vmatprep.subr.mxu0 0.0
      %5548 = vmatpush1.msra.mxu0 0.0
      %5549 = vmatprep.subr.mxu0 0.0
      %5550 = vmatpush1.msra.mxu0 0.0
      %5551 = vmatprep.subr.mxu0 0.0
      %5552 = vmatpush1.msra.mxu0 0.0
      %5553 = vmatprep.subr.mxu0 0.0
      %5554 = vmatpush1.msra.mxu0 0.0
      %5555 = vmatprep.subr.mxu0 0.0
      %5556 = vmatpush1.msra.mxu0 0.0
      %5557 = vmatprep.subr.mxu0 0.0
      %5558 = vmatpush1.msra.mxu0 0.0
      %5559 = vmatprep.subr.mxu0 0.0
      %5560 = vmatpush1.msra.mxu0 0.0
      %5561 = vmatprep.subr.mxu0 0.0
      %5562 = vmatpush1.msra.mxu0 0.0
      %5563 = vmatprep.subr.mxu0 0.0
      %5564 = vmatpush1.msra.mxu0 0.0
      %5565 = vmatprep.subr.mxu0 0.0
      %5566 = vmatpush1.msra.mxu0 0.0
      %5567 = vmatprep.subr.mxu0 0.0
      %5568 = vmatpush1.msra.mxu0 0.0
      %5569 = vmatprep.subr.mxu0 0.0
      %5570 = vmatpush1.msra.mxu0 %v5117
      %5571 = vmatprep.subr.mxu0 0.0
      %5572 = vmatpush1.msra.mxu0 %v5112
      %5573 = vmatprep.subr.mxu0 0.0
      %5574 = vmatpush1.msra.mxu0 %v5107
      %5575 = vmatprep.subr.mxu0 0.0
      %5576 = vmatpush1.msra.mxu0 %v5102
      %5577 = vmatprep.subr.mxu0 0.0
      %5578 = vmatpush2.msra.mxu0 0.0
      %5579 = vmatprep.subr.mxu0 0.0
      %5580 = vmatpush2.msra.mxu0 0.0
      %5581 = vmatprep.subr.mxu0 0.0
      %5582 = vmatpush2.msra.mxu0 0.0
      %5583 = vmatprep.subr.mxu0 0.0
      %5584 = vmatpush2.msra.mxu0 0.0
      %5585 = vmatprep.subr.mxu0 0.0
      %5586 = vmatpush2.msra.mxu0 0.0
      %5587 = vmatprep.subr.mxu0 0.0
      %5588 = vmatpush2.msra.mxu0 0.0
      %5589 = vmatprep.subr.mxu0 0.0
      %5590 = vmatpush2.msra.mxu0 0.0
      %5591 = vmatprep.subr.mxu0 0.0
      %5592 = vmatpush2.msra.mxu0 0.0
      %5593 = vmatprep.subr.mxu0 0.0
      %5594 = vmatpush2.msra.mxu0 0.0
      %5595 = vmatprep.subr.mxu0 0.0
      %5596 = vmatpush2.msra.mxu0 0.0
      %5597 = vmatprep.subr.mxu0 0.0
      %5598 = vmatpush2.msra.mxu0 0.0
      %5599 = vmatprep.subr.mxu0 0.0
      %5600 = vmatpush2.msra.mxu0 0.0
      %5601 = vmatprep.subr.mxu0 0.0
      %5602 = vmatpush2.msra.mxu0 0.0
      %5603 = vmatprep.subr.mxu0 0.0
      %5604 = vmatpush2.msra.mxu0 0.0
      %5605 = vmatprep.subr.mxu0 0.0
      %5606 = vmatpush2.msra.mxu0 0.0
      %5607 = vmatprep.subr.mxu0 0.0
      %5608 = vmatpush2.msra.mxu0 0.0
      %5609 = vmatprep.mubr.f32.mxu0 0.0
      %5610 = vmatmul.mubr.f32.gmra.mxu0 %v5543
      %v5611 = vpop.f32.mrf.mxu0
      %v5612 = vadd.f32 0.0, %v5611
      %v5613 = vpop.f32.mrf.mxu0
      %5614 = vdwg.mxu0
      %v5616 = vsel %vm3297, %v5383, 0
      %5618 = vmatprep.subr.mxu0 0.0
      %5619 = vmatpush1.msra.mxu0 0.0
      %5620 = vmatprep.subr.mxu0 0.0
      %5621 = vmatpush1.msra.mxu0 0.0
      %5622 = vmatprep.subr.mxu0 0.0
      %5623 = vmatpush1.msra.mxu0 0.0
      %5624 = vmatprep.subr.mxu0 0.0
      %5625 = vmatpush1.msra.mxu0 0.0
      %5626 = vmatprep.subr.mxu0 0.0
      %5627 = vmatpush1.msra.mxu0 0.0
      %5628 = vmatprep.subr.mxu0 0.0
      %5629 = vmatpush1.msra.mxu0 0.0
      %5630 = vmatprep.subr.mxu0 0.0
      %5631 = vmatpush1.msra.mxu0 0.0
      %5632 = vmatprep.subr.mxu0 0.0
      %5633 = vmatpush1.msra.mxu0 0.0
      %5634 = vmatprep.subr.mxu0 0.0
      %5635 = vmatpush1.msra.mxu0 0.0
      %5636 = vmatprep.subr.mxu0 0.0
      %5637 = vmatpush1.msra.mxu0 0.0
      %5638 = vmatprep.subr.mxu0 0.0
      %5639 = vmatpush1.msra.mxu0 0.0
      %5640 = vmatprep.subr.mxu0 0.0
      %5641 = vmatpush1.msra.mxu0 0.0
      %5642 = vmatprep.subr.mxu0 0.0
      %5643 = vmatpush1.msra.mxu0 %v5137
      %5644 = vmatprep.subr.mxu0 0.0
      %5645 = vmatpush1.msra.mxu0 %v5132
      %5646 = vmatprep.subr.mxu0 0.0
      %5647 = vmatpush1.msra.mxu0 %v5127
      %5648 = vmatprep.subr.mxu0 0.0
      %5649 = vmatpush1.msra.mxu0 %v5122
      %5650 = vmatprep.subr.mxu0 0.0
      %5651 = vmatpush2.msra.mxu0 0.0
      %5652 = vmatprep.subr.mxu0 0.0
      %5653 = vmatpush2.msra.mxu0 0.0
      %5654 = vmatprep.subr.mxu0 0.0
      %5655 = vmatpush2.msra.mxu0 0.0
      %5656 = vmatprep.subr.mxu0 0.0
      %5657 = vmatpush2.msra.mxu0 0.0
      %5658 = vmatprep.subr.mxu0 0.0
      %5659 = vmatpush2.msra.mxu0 0.0
      %5660 = vmatprep.subr.mxu0 0.0
      %5661 = vmatpush2.msra.mxu0 0.0
      %5662 = vmatprep.subr.mxu0 0.0
      %5663 = vmatpush2.msra.mxu0 0.0
      %5664 = vmatprep.subr.mxu0 0.0
      %5665 = vmatpush2.msra.mxu0 0.0
      %5666 = vmatprep.subr.mxu0 0.0
      %5667 = vmatpush2.msra.mxu0 0.0
      %5668 = vmatprep.subr.mxu0 0.0
      %5669 = vmatpush2.msra.mxu0 0.0
      %5670 = vmatprep.subr.mxu0 0.0
      %5671 = vmatpush2.msra.mxu0 0.0
      %5672 = vmatprep.subr.mxu0 0.0
      %5673 = vmatpush2.msra.mxu0 0.0
      %5674 = vmatprep.subr.mxu0 0.0
      %5675 = vmatpush2.msra.mxu0 0.0
      %5676 = vmatprep.subr.mxu0 0.0
      %5677 = vmatpush2.msra.mxu0 0.0
      %5678 = vmatprep.subr.mxu0 0.0
      %5679 = vmatpush2.msra.mxu0 0.0
      %5680 = vmatprep.subr.mxu0 0.0
      %5681 = vmatpush2.msra.mxu0 0.0
      %5682 = vmatprep.mubr.f32.mxu0 0.0
      %5683 = vmatmul.mubr.f32.gmra.mxu0 %v5616
      %v5684 = vpop.f32.mrf.mxu0
      %v5685 = vadd.f32 0.0, %v5684
      %v5686 = vpop.f32.mrf.mxu0
      %5687 = vdwg.mxu0
      %v5689 = vsel %vm3297, %v5384, 0
      %5691 = vmatprep.subr.mxu0 0.0
      %5692 = vmatpush1.msra.mxu0 0.0
      %5693 = vmatprep.subr.mxu0 0.0
      %5694 = vmatpush1.msra.mxu0 0.0
      %5695 = vmatprep.subr.mxu0 0.0
      %5696 = vmatpush1.msra.mxu0 0.0
      %5697 = vmatprep.subr.mxu0 0.0
      %5698 = vmatpush1.msra.mxu0 0.0
      %5699 = vmatprep.subr.mxu0 0.0
      %5700 = vmatpush1.msra.mxu0 0.0
      %5701 = vmatprep.subr.mxu0 0.0
      %5702 = vmatpush1.msra.mxu0 0.0
      %5703 = vmatprep.subr.mxu0 0.0
      %5704 = vmatpush1.msra.mxu0 0.0
      %5705 = vmatprep.subr.mxu0 0.0
      %5706 = vmatpush1.msra.mxu0 0.0
      %5707 = vmatprep.subr.mxu0 0.0
      %5708 = vmatpush1.msra.mxu0 0.0
      %5709 = vmatprep.subr.mxu0 0.0
      %5710 = vmatpush1.msra.mxu0 0.0
      %5711 = vmatprep.subr.mxu0 0.0
      %5712 = vmatpush1.msra.mxu0 0.0
      %5713 = vmatprep.subr.mxu0 0.0
      %5714 = vmatpush1.msra.mxu0 0.0
      %5715 = vmatprep.subr.mxu0 0.0
      %5716 = vmatpush1.msra.mxu0 %v5157
      %5717 = vmatprep.subr.mxu0 0.0
      %5718 = vmatpush1.msra.mxu0 %v5152
      %5719 = vmatprep.subr.mxu0 0.0
      %5720 = vmatpush1.msra.mxu0 %v5147
      %5721 = vmatprep.subr.mxu0 0.0
      %5722 = vmatpush1.msra.mxu0 %v5142
      %5723 = vmatprep.subr.mxu0 0.0
      %5724 = vmatpush2.msra.mxu0 0.0
      %5725 = vmatprep.subr.mxu0 0.0
      %5726 = vmatpush2.msra.mxu0 0.0
      %5727 = vmatprep.subr.mxu0 0.0
      %5728 = vmatpush2.msra.mxu0 0.0
      %5729 = vmatprep.subr.mxu0 0.0
      %5730 = vmatpush2.msra.mxu0 0.0
      %5731 = vmatprep.subr.mxu0 0.0
      %5732 = vmatpush2.msra.mxu0 0.0
      %5733 = vmatprep.subr.mxu0 0.0
      %5734 = vmatpush2.msra.mxu0 0.0
      %5735 = vmatprep.subr.mxu0 0.0
      %5736 = vmatpush2.msra.mxu0 0.0
      %5737 = vmatprep.subr.mxu0 0.0
      %5738 = vmatpush2.msra.mxu0 0.0
      %5739 = vmatprep.subr.mxu0 0.0
      %5740 = vmatpush2.msra.mxu0 0.0
      %5741 = vmatprep.subr.mxu0 0.0
      %5742 = vmatpush2.msra.mxu0 0.0
      %5743 = vmatprep.subr.mxu0 0.0
      %5744 = vmatpush2.msra.mxu0 0.0
      %5745 = vmatprep.subr.mxu0 0.0
      %5746 = vmatpush2.msra.mxu0 0.0
      %5747 = vmatprep.subr.mxu0 0.0
      %5748 = vmatpush2.msra.mxu0 0.0
      %5749 = vmatprep.subr.mxu0 0.0
      %5750 = vmatpush2.msra.mxu0 0.0
      %5751 = vmatprep.subr.mxu0 0.0
      %5752 = vmatpush2.msra.mxu0 0.0
      %5753 = vmatprep.subr.mxu0 0.0
      %5754 = vmatpush2.msra.mxu0 0.0
      %5755 = vmatprep.mubr.f32.mxu0 0.0
      %5756 = vmatmul.mubr.f32.gmra.mxu0 %v5689
      %v5757 = vpop.f32.mrf.mxu0
      %v5758 = vadd.f32 0.0, %v5757
      %v5759 = vpop.f32.mrf.mxu0
      %5760 = vdwg.mxu0
      %v5762 = vsel %vm3297, %v5385, 0
      %5764 = vmatprep.subr.mxu0 0.0
      %5765 = vmatpush1.msra.mxu0 0.0
      %5766 = vmatprep.subr.mxu0 0.0
      %5767 = vmatpush1.msra.mxu0 0.0
      %5768 = vmatprep.subr.mxu0 0.0
      %5769 = vmatpush1.msra.mxu0 0.0
      %5770 = vmatprep.subr.mxu0 0.0
      %5771 = vmatpush1.msra.mxu0 0.0
      %5772 = vmatprep.subr.mxu0 0.0
      %5773 = vmatpush1.msra.mxu0 0.0
      %5774 = vmatprep.subr.mxu0 0.0
      %5775 = vmatpush1.msra.mxu0 0.0
      %5776 = vmatprep.subr.mxu0 0.0
      %5777 = vmatpush1.msra.mxu0 0.0
      %5778 = vmatprep.subr.mxu0 0.0
      %5779 = vmatpush1.msra.mxu0 0.0
      %5780 = vmatprep.subr.mxu0 0.0
      %5781 = vmatpush1.msra.mxu0 0.0
      %5782 = vmatprep.subr.mxu0 0.0
      %5783 = vmatpush1.msra.mxu0 0.0
      %5784 = vmatprep.subr.mxu0 0.0
      %5785 = vmatpush1.msra.mxu0 0.0
      %5786 = vmatprep.subr.mxu0 0.0
      %5787 = vmatpush1.msra.mxu0 0.0
      %5788 = vmatprep.subr.mxu0 0.0
      %5789 = vmatpush1.msra.mxu0 %v5177
      %5790 = vmatprep.subr.mxu0 0.0
      %5791 = vmatpush1.msra.mxu0 %v5172
      %5792 = vmatprep.subr.mxu0 0.0
      %5793 = vmatpush1.msra.mxu0 %v5167
      %5794 = vmatprep.subr.mxu0 0.0
      %5795 = vmatpush1.msra.mxu0 %v5162
      %5796 = vmatprep.subr.mxu0 0.0
      %5797 = vmatpush2.msra.mxu0 0.0
      %5798 = vmatprep.subr.mxu0 0.0
      %5799 = vmatpush2.msra.mxu0 0.0
      %5800 = vmatprep.subr.mxu0 0.0
      %5801 = vmatpush2.msra.mxu0 0.0
      %5802 = vmatprep.subr.mxu0 0.0
      %5803 = vmatpush2.msra.mxu0 0.0
      %5804 = vmatprep.subr.mxu0 0.0
      %5805 = vmatpush2.msra.mxu0 0.0
      %5806 = vmatprep.subr.mxu0 0.0
      %5807 = vmatpush2.msra.mxu0 0.0
      %5808 = vmatprep.subr.mxu0 0.0
      %5809 = vmatpush2.msra.mxu0 0.0
      %5810 = vmatprep.subr.mxu0 0.0
      %5811 = vmatpush2.msra.mxu0 0.0
      %5812 = vmatprep.subr.mxu0 0.0
      %5813 = vmatpush2.msra.mxu0 0.0
      %5814 = vmatprep.subr.mxu0 0.0
      %5815 = vmatpush2.msra.mxu0 0.0
      %5816 = vmatprep.subr.mxu0 0.0
      %5817 = vmatpush2.msra.mxu0 0.0
      %5818 = vmatprep.subr.mxu0 0.0
      %5819 = vmatpush2.msra.mxu0 0.0
      %5820 = vmatprep.subr.mxu0 0.0
      %5821 = vmatpush2.msra.mxu0 0.0
      %5822 = vmatprep.subr.mxu0 0.0
      %5823 = vmatpush2.msra.mxu0 0.0
      %5824 = vmatprep.subr.mxu0 0.0
      %5825 = vmatpush2.msra.mxu0 0.0
      %5826 = vmatprep.subr.mxu0 0.0
      %5827 = vmatpush2.msra.mxu0 0.0
      %5828 = vmatprep.mubr.f32.mxu0 0.0
      %5829 = vmatmul.mubr.f32.gmra.mxu0 %v5762
      %v5830 = vpop.f32.mrf.mxu0
      %v5831 = vadd.f32 0.0, %v5830
      %v5832 = vpop.f32.mrf.mxu0
      %5833 = vdwg.mxu0
      %v5835 = vsel %vm3297, %v5386, 0
      %5837 = vmatprep.subr.mxu0 0.0
      %5838 = vmatpush1.msra.mxu0 0.0
      %5839 = vmatprep.subr.mxu0 0.0
      %5840 = vmatpush1.msra.mxu0 0.0
      %5841 = vmatprep.subr.mxu0 0.0
      %5842 = vmatpush1.msra.mxu0 0.0
      %5843 = vmatprep.subr.mxu0 0.0
      %5844 = vmatpush1.msra.mxu0 0.0
      %5845 = vmatprep.subr.mxu0 0.0
      %5846 = vmatpush1.msra.mxu0 0.0
      %5847 = vmatprep.subr.mxu0 0.0
      %5848 = vmatpush1.msra.mxu0 0.0
      %5849 = vmatprep.subr.mxu0 0.0
      %5850 = vmatpush1.msra.mxu0 0.0
      %5851 = vmatprep.subr.mxu0 0.0
      %5852 = vmatpush1.msra.mxu0 0.0
      %5853 = vmatprep.subr.mxu0 0.0
      %5854 = vmatpush1.msra.mxu0 0.0
      %5855 = vmatprep.subr.mxu0 0.0
      %5856 = vmatpush1.msra.mxu0 0.0
      %5857 = vmatprep.subr.mxu0 0.0
      %5858 = vmatpush1.msra.mxu0 0.0
      %5859 = vmatprep.subr.mxu0 0.0
      %5860 = vmatpush1.msra.mxu0 0.0
      %5861 = vmatprep.subr.mxu0 0.0
      %5862 = vmatpush1.msra.mxu0 %v5197
      %5863 = vmatprep.subr.mxu0 0.0
      %5864 = vmatpush1.msra.mxu0 %v5192
      %5865 = vmatprep.subr.mxu0 0.0
      %5866 = vmatpush1.msra.mxu0 %v5187
      %5867 = vmatprep.subr.mxu0 0.0
      %5868 = vmatpush1.msra.mxu0 %v5182
      %5869 = vmatprep.subr.mxu0 0.0
      %5870 = vmatpush2.msra.mxu0 0.0
      %5871 = vmatprep.subr.mxu0 0.0
      %5872 = vmatpush2.msra.mxu0 0.0
      %5873 = vmatprep.subr.mxu0 0.0
      %5874 = vmatpush2.msra.mxu0 0.0
      %5875 = vmatprep.subr.mxu0 0.0
      %5876 = vmatpush2.msra.mxu0 0.0
      %5877 = vmatprep.subr.mxu0 0.0
      %5878 = vmatpush2.msra.mxu0 0.0
      %5879 = vmatprep.subr.mxu0 0.0
      %5880 = vmatpush2.msra.mxu0 0.0
      %5881 = vmatprep.subr.mxu0 0.0
      %5882 = vmatpush2.msra.mxu0 0.0
      %5883 = vmatprep.subr.mxu0 0.0
      %5884 = vmatpush2.msra.mxu0 0.0
      %5885 = vmatprep.subr.mxu0 0.0
      %5886 = vmatpush2.msra.mxu0 0.0
      %5887 = vmatprep.subr.mxu0 0.0
      %5888 = vmatpush2.msra.mxu0 0.0
      %5889 = vmatprep.subr.mxu0 0.0
      %5890 = vmatpush2.msra.mxu0 0.0
      %5891 = vmatprep.subr.mxu0 0.0
      %5892 = vmatpush2.msra.mxu0 0.0
      %5893 = vmatprep.subr.mxu0 0.0
      %5894 = vmatpush2.msra.mxu0 0.0
      %5895 = vmatprep.subr.mxu0 0.0
      %5896 = vmatpush2.msra.mxu0 0.0
      %5897 = vmatprep.subr.mxu0 0.0
      %5898 = vmatpush2.msra.mxu0 0.0
      %5899 = vmatprep.subr.mxu0 0.0
      %5900 = vmatpush2.msra.mxu0 0.0
      %5901 = vmatprep.mubr.f32.mxu0 0.0
      %5902 = vmatmul.mubr.f32.gmra.mxu0 %v5835
      %v5903 = vpop.f32.mrf.mxu0
      %v5904 = vadd.f32 0.0, %v5903
      %v5905 = vpop.f32.mrf.mxu0
      %5906 = vdwg.mxu0
      %v5908 = vsel %vm3297, %v5387, 0
      %5910 = vmatprep.subr.mxu0 0.0
      %5911 = vmatpush1.msra.mxu0 0.0
      %5912 = vmatprep.subr.mxu0 0.0
      %5913 = vmatpush1.msra.mxu0 0.0
      %5914 = vmatprep.subr.mxu0 0.0
      %5915 = vmatpush1.msra.mxu0 0.0
      %5916 = vmatprep.subr.mxu0 0.0
      %5917 = vmatpush1.msra.mxu0 0.0
      %5918 = vmatprep.subr.mxu0 0.0
      %5919 = vmatpush1.msra.mxu0 0.0
      %5920 = vmatprep.subr.mxu0 0.0
      %5921 = vmatpush1.msra.mxu0 0.0
      %5922 = vmatprep.subr.mxu0 0.0
      %5923 = vmatpush1.msra.mxu0 0.0
      %5924 = vmatprep.subr.mxu0 0.0
      %5925 = vmatpush1.msra.mxu0 0.0
      %5926 = vmatprep.subr.mxu0 0.0
      %5927 = vmatpush1.msra.mxu0 0.0
      %5928 = vmatprep.subr.mxu0 0.0
      %5929 = vmatpush1.msra.mxu0 0.0
      %5930 = vmatprep.subr.mxu0 0.0
      %5931 = vmatpush1.msra.mxu0 0.0
      %5932 = vmatprep.subr.mxu0 0.0
      %5933 = vmatpush1.msra.mxu0 0.0
      %5934 = vmatprep.subr.mxu0 0.0
      %5935 = vmatpush1.msra.mxu0 %v5217
      %5936 = vmatprep.subr.mxu0 0.0
      %5937 = vmatpush1.msra.mxu0 %v5212
      %5938 = vmatprep.subr.mxu0 0.0
      %5939 = vmatpush1.msra.mxu0 %v5207
      %5940 = vmatprep.subr.mxu0 0.0
      %5941 = vmatpush1.msra.mxu0 %v5202
      %5942 = vmatprep.subr.mxu0 0.0
      %5943 = vmatpush2.msra.mxu0 0.0
      %5944 = vmatprep.subr.mxu0 0.0
      %5945 = vmatpush2.msra.mxu0 0.0
      %5946 = vmatprep.subr.mxu0 0.0
      %5947 = vmatpush2.msra.mxu0 0.0
      %5948 = vmatprep.subr.mxu0 0.0
      %5949 = vmatpush2.msra.mxu0 0.0
      %5950 = vmatprep.subr.mxu0 0.0
      %5951 = vmatpush2.msra.mxu0 0.0
      %5952 = vmatprep.subr.mxu0 0.0
      %5953 = vmatpush2.msra.mxu0 0.0
      %5954 = vmatprep.subr.mxu0 0.0
      %5955 = vmatpush2.msra.mxu0 0.0
      %5956 = vmatprep.subr.mxu0 0.0
      %5957 = vmatpush2.msra.mxu0 0.0
      %5958 = vmatprep.subr.mxu0 0.0
      %5959 = vmatpush2.msra.mxu0 0.0
      %5960 = vmatprep.subr.mxu0 0.0
      %5961 = vmatpush2.msra.mxu0 0.0
      %5962 = vmatprep.subr.mxu0 0.0
      %5963 = vmatpush2.msra.mxu0 0.0
      %5964 = vmatprep.subr.mxu0 0.0
      %5965 = vmatpush2.msra.mxu0 0.0
      %5966 = vmatprep.subr.mxu0 0.0
      %5967 = vmatpush2.msra.mxu0 0.0
      %5968 = vmatprep.subr.mxu0 0.0
      %5969 = vmatpush2.msra.mxu0 0.0
      %5970 = vmatprep.subr.mxu0 0.0
      %5971 = vmatpush2.msra.mxu0 0.0
      %5972 = vmatprep.subr.mxu0 0.0
      %5973 = vmatpush2.msra.mxu0 0.0
      %5974 = vmatprep.mubr.f32.mxu0 0.0
      %5975 = vmatmul.mubr.f32.gmra.mxu0 %v5908
      %v5976 = vpop.f32.mrf.mxu0
      %v5977 = vadd.f32 0.0, %v5976
      %v5978 = vpop.f32.mrf.mxu0
      %5979 = vdwg.mxu0
      %v5981 = vsel %vm3297, %v5388, 0
      %5983 = vmatprep.subr.mxu0 0.0
      %5984 = vmatpush1.msra.mxu0 0.0
      %5985 = vmatprep.subr.mxu0 0.0
      %5986 = vmatpush1.msra.mxu0 0.0
      %5987 = vmatprep.subr.mxu0 0.0
      %5988 = vmatpush1.msra.mxu0 0.0
      %5989 = vmatprep.subr.mxu0 0.0
      %5990 = vmatpush1.msra.mxu0 0.0
      %5991 = vmatprep.subr.mxu0 0.0
      %5992 = vmatpush1.msra.mxu0 0.0
      %5993 = vmatprep.subr.mxu0 0.0
      %5994 = vmatpush1.msra.mxu0 0.0
      %5995 = vmatprep.subr.mxu0 0.0
      %5996 = vmatpush1.msra.mxu0 0.0
      %5997 = vmatprep.subr.mxu0 0.0
      %5998 = vmatpush1.msra.mxu0 0.0
      %5999 = vmatprep.subr.mxu0 0.0
      %6000 = vmatpush1.msra.mxu0 0.0
      %6001 = vmatprep.subr.mxu0 0.0
      %6002 = vmatpush1.msra.mxu0 0.0
      %6003 = vmatprep.subr.mxu0 0.0
      %6004 = vmatpush1.msra.mxu0 0.0
      %6005 = vmatprep.subr.mxu0 0.0
      %6006 = vmatpush1.msra.mxu0 0.0
      %6007 = vmatprep.subr.mxu0 0.0
      %6008 = vmatpush1.msra.mxu0 %v5237
      %6009 = vmatprep.subr.mxu0 0.0
      %6010 = vmatpush1.msra.mxu0 %v5232
      %6011 = vmatprep.subr.mxu0 0.0
      %6012 = vmatpush1.msra.mxu0 %v5227
      %6013 = vmatprep.subr.mxu0 0.0
      %6014 = vmatpush1.msra.mxu0 %v5222
      %6015 = vmatprep.subr.mxu0 0.0
      %6016 = vmatpush2.msra.mxu0 0.0
      %6017 = vmatprep.subr.mxu0 0.0
      %6018 = vmatpush2.msra.mxu0 0.0
      %6019 = vmatprep.subr.mxu0 0.0
      %6020 = vmatpush2.msra.mxu0 0.0
      %6021 = vmatprep.subr.mxu0 0.0
      %6022 = vmatpush2.msra.mxu0 0.0
      %6023 = vmatprep.subr.mxu0 0.0
      %6024 = vmatpush2.msra.mxu0 0.0
      %6025 = vmatprep.subr.mxu0 0.0
      %6026 = vmatpush2.msra.mxu0 0.0
      %6027 = vmatprep.subr.mxu0 0.0
      %6028 = vmatpush2.msra.mxu0 0.0
      %6029 = vmatprep.subr.mxu0 0.0
      %6030 = vmatpush2.msra.mxu0 0.0
      %6031 = vmatprep.subr.mxu0 0.0
      %6032 = vmatpush2.msra.mxu0 0.0
      %6033 = vmatprep.subr.mxu0 0.0
      %6034 = vmatpush2.msra.mxu0 0.0
      %6035 = vmatprep.subr.mxu0 0.0
      %6036 = vmatpush2.msra.mxu0 0.0
      %6037 = vmatprep.subr.mxu0 0.0
      %6038 = vmatpush2.msra.mxu0 0.0
      %6039 = vmatprep.subr.mxu0 0.0
      %6040 = vmatpush2.msra.mxu0 0.0
      %6041 = vmatprep.subr.mxu0 0.0
      %6042 = vmatpush2.msra.mxu0 0.0
      %6043 = vmatprep.subr.mxu0 0.0
      %6044 = vmatpush2.msra.mxu0 0.0
      %6045 = vmatprep.subr.mxu0 0.0
      %6046 = vmatpush2.msra.mxu0 0.0
      %6047 = vmatprep.mubr.f32.mxu0 0.0
      %6048 = vmatmul.mubr.f32.gmra.mxu0 %v5981
      %v6049 = vpop.f32.mrf.mxu0
      %v6050 = vadd.f32 0.0, %v6049
      %v6051 = vpop.f32.mrf.mxu0
      %6052 = vdwg.mxu0
      %v6054 = vsel %vm3297, %v5389, 0
      %6056 = vmatprep.subr.mxu0 0.0
      %6057 = vmatpush1.msra.mxu0 0.0
      %6058 = vmatprep.subr.mxu0 0.0
      %6059 = vmatpush1.msra.mxu0 0.0
      %6060 = vmatprep.subr.mxu0 0.0
      %6061 = vmatpush1.msra.mxu0 0.0
      %6062 = vmatprep.subr.mxu0 0.0
      %6063 = vmatpush1.msra.mxu0 0.0
      %6064 = vmatprep.subr.mxu0 0.0
      %6065 = vmatpush1.msra.mxu0 0.0
      %6066 = vmatprep.subr.mxu0 0.0
      %6067 = vmatpush1.msra.mxu0 0.0
      %6068 = vmatprep.subr.mxu0 0.0
      %6069 = vmatpush1.msra.mxu0 0.0
      %6070 = vmatprep.subr.mxu0 0.0
      %6071 = vmatpush1.msra.mxu0 0.0
      %6072 = vmatprep.subr.mxu0 0.0
      %6073 = vmatpush1.msra.mxu0 0.0
      %6074 = vmatprep.subr.mxu0 0.0
      %6075 = vmatpush1.msra.mxu0 0.0
      %6076 = vmatprep.subr.mxu0 0.0
      %6077 = vmatpush1.msra.mxu0 0.0
      %6078 = vmatprep.subr.mxu0 0.0
      %6079 = vmatpush1.msra.mxu0 0.0
      %6080 = vmatprep.subr.mxu0 0.0
      %6081 = vmatpush1.msra.mxu0 %v5257
      %6082 = vmatprep.subr.mxu0 0.0
      %6083 = vmatpush1.msra.mxu0 %v5252
      %6084 = vmatprep.subr.mxu0 0.0
      %6085 = vmatpush1.msra.mxu0 %v5247
      %6086 = vmatprep.subr.mxu0 0.0
      %6087 = vmatpush1.msra.mxu0 %v5242
      %6088 = vmatprep.subr.mxu0 0.0
      %6089 = vmatpush2.msra.mxu0 0.0
      %6090 = vmatprep.subr.mxu0 0.0
      %6091 = vmatpush2.msra.mxu0 0.0
      %6092 = vmatprep.subr.mxu0 0.0
      %6093 = vmatpush2.msra.mxu0 0.0
      %6094 = vmatprep.subr.mxu0 0.0
      %6095 = vmatpush2.msra.mxu0 0.0
      %6096 = vmatprep.subr.mxu0 0.0
      %6097 = vmatpush2.msra.mxu0 0.0
      %6098 = vmatprep.subr.mxu0 0.0
      %6099 = vmatpush2.msra.mxu0 0.0
      %6100 = vmatprep.subr.mxu0 0.0
      %6101 = vmatpush2.msra.mxu0 0.0
      %6102 = vmatprep.subr.mxu0 0.0
      %6103 = vmatpush2.msra.mxu0 0.0
      %6104 = vmatprep.subr.mxu0 0.0
      %6105 = vmatpush2.msra.mxu0 0.0
      %6106 = vmatprep.subr.mxu0 0.0
      %6107 = vmatpush2.msra.mxu0 0.0
      %6108 = vmatprep.subr.mxu0 0.0
      %6109 = vmatpush2.msra.mxu0 0.0
      %6110 = vmatprep.subr.mxu0 0.0
      %6111 = vmatpush2.msra.mxu0 0.0
      %6112 = vmatprep.subr.mxu0 0.0
      %6113 = vmatpush2.msra.mxu0 0.0
      %6114 = vmatprep.subr.mxu0 0.0
      %6115 = vmatpush2.msra.mxu0 0.0
      %6116 = vmatprep.subr.mxu0 0.0
      %6117 = vmatpush2.msra.mxu0 0.0
      %6118 = vmatprep.subr.mxu0 0.0
      %6119 = vmatpush2.msra.mxu0 0.0
      %6120 = vmatprep.mubr.f32.mxu0 0.0
      %6121 = vmatmul.mubr.f32.gmra.mxu0 %v6054
      %v6122 = vpop.f32.mrf.mxu0
      %v6123 = vadd.f32 0.0, %v6122
      %v6124 = vpop.f32.mrf.mxu0
      %6125 = vdwg.mxu0
      %v6127 = vsel %vm3297, %v5390, 0
      %6129 = vmatprep.subr.mxu0 0.0
      %6130 = vmatpush1.msra.mxu0 0.0
      %6131 = vmatprep.subr.mxu0 0.0
      %6132 = vmatpush1.msra.mxu0 0.0
      %6133 = vmatprep.subr.mxu0 0.0
      %6134 = vmatpush1.msra.mxu0 0.0
      %6135 = vmatprep.subr.mxu0 0.0
      %6136 = vmatpush1.msra.mxu0 0.0
      %6137 = vmatprep.subr.mxu0 0.0
      %6138 = vmatpush1.msra.mxu0 0.0
      %6139 = vmatprep.subr.mxu0 0.0
      %6140 = vmatpush1.msra.mxu0 0.0
      %6141 = vmatprep.subr.mxu0 0.0
      %6142 = vmatpush1.msra.mxu0 0.0
      %6143 = vmatprep.subr.mxu0 0.0
      %6144 = vmatpush1.msra.mxu0 0.0
      %6145 = vmatprep.subr.mxu0 0.0
      %6146 = vmatpush1.msra.mxu0 0.0
      %6147 = vmatprep.subr.mxu0 0.0
      %6148 = vmatpush1.msra.mxu0 0.0
      %6149 = vmatprep.subr.mxu0 0.0
      %6150 = vmatpush1.msra.mxu0 0.0
      %6151 = vmatprep.subr.mxu0 0.0
      %6152 = vmatpush1.msra.mxu0 0.0
      %6153 = vmatprep.subr.mxu0 0.0
      %6154 = vmatpush1.msra.mxu0 %v5277
      %6155 = vmatprep.subr.mxu0 0.0
      %6156 = vmatpush1.msra.mxu0 %v5272
      %6157 = vmatprep.subr.mxu0 0.0
      %6158 = vmatpush1.msra.mxu0 %v5267
      %6159 = vmatprep.subr.mxu0 0.0
      %6160 = vmatpush1.msra.mxu0 %v5262
      %6161 = vmatprep.subr.mxu0 0.0
      %6162 = vmatpush2.msra.mxu0 0.0
      %6163 = vmatprep.subr.mxu0 0.0
      %6164 = vmatpush2.msra.mxu0 0.0
      %6165 = vmatprep.subr.mxu0 0.0
      %6166 = vmatpush2.msra.mxu0 0.0
      %6167 = vmatprep.subr.mxu0 0.0
      %6168 = vmatpush2.msra.mxu0 0.0
      %6169 = vmatprep.subr.mxu0 0.0
      %6170 = vmatpush2.msra.mxu0 0.0
      %6171 = vmatprep.subr.mxu0 0.0
      %6172 = vmatpush2.msra.mxu0 0.0
      %6173 = vmatprep.subr.mxu0 0.0
      %6174 = vmatpush2.msra.mxu0 0.0
      %6175 = vmatprep.subr.mxu0 0.0
      %6176 = vmatpush2.msra.mxu0 0.0
      %6177 = vmatprep.subr.mxu0 0.0
      %6178 = vmatpush2.msra.mxu0 0.0
      %6179 = vmatprep.subr.mxu0 0.0
      %6180 = vmatpush2.msra.mxu0 0.0
      %6181 = vmatprep.subr.mxu0 0.0
      %6182 = vmatpush2.msra.mxu0 0.0
      %6183 = vmatprep.subr.mxu0 0.0
      %6184 = vmatpush2.msra.mxu0 0.0
      %6185 = vmatprep.subr.mxu0 0.0
      %6186 = vmatpush2.msra.mxu0 0.0
      %6187 = vmatprep.subr.mxu0 0.0
      %6188 = vmatpush2.msra.mxu0 0.0
      %6189 = vmatprep.subr.mxu0 0.0
      %6190 = vmatpush2.msra.mxu0 0.0
      %6191 = vmatprep.subr.mxu0 0.0
      %6192 = vmatpush2.msra.mxu0 0.0
      %6193 = vmatprep.mubr.f32.mxu0 0.0
      %6194 = vmatmul.mubr.f32.gmra.mxu0 %v6127
      %v6195 = vpop.f32.mrf.mxu0
      %v6196 = vadd.f32 0.0, %v6195
      %v6197 = vpop.f32.mrf.mxu0
      %6198 = vdwg.mxu0
      %v6200 = vsel %vm3297, %v5391, 0
      %6202 = vmatprep.subr.mxu0 0.0
      %6203 = vmatpush1.msra.mxu0 0.0
      %6204 = vmatprep.subr.mxu0 0.0
      %6205 = vmatpush1.msra.mxu0 0.0
      %6206 = vmatprep.subr.mxu0 0.0
      %6207 = vmatpush1.msra.mxu0 0.0
      %6208 = vmatprep.subr.mxu0 0.0
      %6209 = vmatpush1.msra.mxu0 0.0
      %6210 = vmatprep.subr.mxu0 0.0
      %6211 = vmatpush1.msra.mxu0 0.0
      %6212 = vmatprep.subr.mxu0 0.0
      %6213 = vmatpush1.msra.mxu0 0.0
      %6214 = vmatprep.subr.mxu0 0.0
      %6215 = vmatpush1.msra.mxu0 0.0
      %6216 = vmatprep.subr.mxu0 0.0
      %6217 = vmatpush1.msra.mxu0 0.0
      %6218 = vmatprep.subr.mxu0 0.0
      %6219 = vmatpush1.msra.mxu0 0.0
      %6220 = vmatprep.subr.mxu0 0.0
      %6221 = vmatpush1.msra.mxu0 0.0
      %6222 = vmatprep.subr.mxu0 0.0
      %6223 = vmatpush1.msra.mxu0 0.0
      %6224 = vmatprep.subr.mxu0 0.0
      %6225 = vmatpush1.msra.mxu0 0.0
      %6226 = vmatprep.subr.mxu0 0.0
      %6227 = vmatpush1.msra.mxu0 %v5297
      %6228 = vmatprep.subr.mxu0 0.0
      %6229 = vmatpush1.msra.mxu0 %v5292
      %6230 = vmatprep.subr.mxu0 0.0
      %6231 = vmatpush1.msra.mxu0 %v5287
      %6232 = vmatprep.subr.mxu0 0.0
      %6233 = vmatpush1.msra.mxu0 %v5282
      %6234 = vmatprep.subr.mxu0 0.0
      %6235 = vmatpush2.msra.mxu0 0.0
      %6236 = vmatprep.subr.mxu0 0.0
      %6237 = vmatpush2.msra.mxu0 0.0
      %6238 = vmatprep.subr.mxu0 0.0
      %6239 = vmatpush2.msra.mxu0 0.0
      %6240 = vmatprep.subr.mxu0 0.0
      %6241 = vmatpush2.msra.mxu0 0.0
      %6242 = vmatprep.subr.mxu0 0.0
      %6243 = vmatpush2.msra.mxu0 0.0
      %6244 = vmatprep.subr.mxu0 0.0
      %6245 = vmatpush2.msra.mxu0 0.0
      %6246 = vmatprep.subr.mxu0 0.0
      %6247 = vmatpush2.msra.mxu0 0.0
      %6248 = vmatprep.subr.mxu0 0.0
      %6249 = vmatpush2.msra.mxu0 0.0
      %6250 = vmatprep.subr.mxu0 0.0
      %6251 = vmatpush2.msra.mxu0 0.0
      %6252 = vmatprep.subr.mxu0 0.0
      %6253 = vmatpush2.msra.mxu0 0.0
      %6254 = vmatprep.subr.mxu0 0.0
      %6255 = vmatpush2.msra.mxu0 0.0
      %6256 = vmatprep.subr.mxu0 0.0
      %6257 = vmatpush2.msra.mxu0 0.0
      %6258 = vmatprep.subr.mxu0 0.0
      %6259 = vmatpush2.msra.mxu0 0.0
      %6260 = vmatprep.subr.mxu0 0.0
      %6261 = vmatpush2.msra.mxu0 0.0
      %6262 = vmatprep.subr.mxu0 0.0
      %6263 = vmatpush2.msra.mxu0 0.0
      %6264 = vmatprep.subr.mxu0 0.0
      %6265 = vmatpush2.msra.mxu0 0.0
      %6266 = vmatprep.mubr.f32.mxu0 0.0
      %6267 = vmatmul.mubr.f32.gmra.mxu0 %v6200
      %v6268 = vpop.f32.mrf.mxu0
      %v6269 = vadd.f32 0.0, %v6268
      %v6270 = vpop.f32.mrf.mxu0
      %6271 = vdwg.mxu0
      %v6273 = vsel %vm3297, %v5392, 0
      %6275 = vmatprep.subr.mxu0 0.0
      %6276 = vmatpush1.msra.mxu0 0.0
      %6277 = vmatprep.subr.mxu0 0.0
      %6278 = vmatpush1.msra.mxu0 0.0
      %6279 = vmatprep.subr.mxu0 0.0
      %6280 = vmatpush1.msra.mxu0 0.0
      %6281 = vmatprep.subr.mxu0 0.0
      %6282 = vmatpush1.msra.mxu0 0.0
      %6283 = vmatprep.subr.mxu0 0.0
      %6284 = vmatpush1.msra.mxu0 0.0
      %6285 = vmatprep.subr.mxu0 0.0
      %6286 = vmatpush1.msra.mxu0 0.0
      %6287 = vmatprep.subr.mxu0 0.0
      %6288 = vmatpush1.msra.mxu0 0.0
      %6289 = vmatprep.subr.mxu0 0.0
      %6290 = vmatpush1.msra.mxu0 0.0
      %6291 = vmatprep.subr.mxu0 0.0
      %6292 = vmatpush1.msra.mxu0 0.0
      %6293 = vmatprep.subr.mxu0 0.0
      %6294 = vmatpush1.msra.mxu0 0.0
      %6295 = vmatprep.subr.mxu0 0.0
      %6296 = vmatpush1.msra.mxu0 0.0
      %6297 = vmatprep.subr.mxu0 0.0
      %6298 = vmatpush1.msra.mxu0 0.0
      %6299 = vmatprep.subr.mxu0 0.0
      %6300 = vmatpush1.msra.mxu0 %v5317
      %6301 = vmatprep.subr.mxu0 0.0
      %6302 = vmatpush1.msra.mxu0 %v5312
      %6303 = vmatprep.subr.mxu0 0.0
      %6304 = vmatpush1.msra.mxu0 %v5307
      %6305 = vmatprep.subr.mxu0 0.0
      %6306 = vmatpush1.msra.mxu0 %v5302
      %6307 = vmatprep.subr.mxu0 0.0
      %6308 = vmatpush2.msra.mxu0 0.0
      %6309 = vmatprep.subr.mxu0 0.0
      %6310 = vmatpush2.msra.mxu0 0.0
      %6311 = vmatprep.subr.mxu0 0.0
      %6312 = vmatpush2.msra.mxu0 0.0
      %6313 = vmatprep.subr.mxu0 0.0
      %6314 = vmatpush2.msra.mxu0 0.0
      %6315 = vmatprep.subr.mxu0 0.0
      %6316 = vmatpush2.msra.mxu0 0.0
      %6317 = vmatprep.subr.mxu0 0.0
      %6318 = vmatpush2.msra.mxu0 0.0
      %6319 = vmatprep.subr.mxu0 0.0
      %6320 = vmatpush2.msra.mxu0 0.0
      %6321 = vmatprep.subr.mxu0 0.0
      %6322 = vmatpush2.msra.mxu0 0.0
      %6323 = vmatprep.subr.mxu0 0.0
      %6324 = vmatpush2.msra.mxu0 0.0
      %6325 = vmatprep.subr.mxu0 0.0
      %6326 = vmatpush2.msra.mxu0 0.0
      %6327 = vmatprep.subr.mxu0 0.0
      %6328 = vmatpush2.msra.mxu0 0.0
      %6329 = vmatprep.subr.mxu0 0.0
      %6330 = vmatpush2.msra.mxu0 0.0
      %6331 = vmatprep.subr.mxu0 0.0
      %6332 = vmatpush2.msra.mxu0 0.0
      %6333 = vmatprep.subr.mxu0 0.0
      %6334 = vmatpush2.msra.mxu0 0.0
      %6335 = vmatprep.subr.mxu0 0.0
      %6336 = vmatpush2.msra.mxu0 0.0
      %6337 = vmatprep.subr.mxu0 0.0
      %6338 = vmatpush2.msra.mxu0 0.0
      %6339 = vmatprep.mubr.f32.mxu0 0.0
      %6340 = vmatmul.mubr.f32.gmra.mxu0 %v6273
      %v6341 = vpop.f32.mrf.mxu0
      %v6342 = vadd.f32 0.0, %v6341
      %v6343 = vpop.f32.mrf.mxu0
      %6344 = vdwg.mxu0
      %v6346 = vsel %vm3297, %v5393, 0
      %6348 = vmatprep.subr.mxu0 0.0
      %6349 = vmatpush1.msra.mxu0 0.0
      %6350 = vmatprep.subr.mxu0 0.0
      %6351 = vmatpush1.msra.mxu0 0.0
      %6352 = vmatprep.subr.mxu0 0.0
      %6353 = vmatpush1.msra.mxu0 0.0
      %6354 = vmatprep.subr.mxu0 0.0
      %6355 = vmatpush1.msra.mxu0 0.0
      %6356 = vmatprep.subr.mxu0 0.0
      %6357 = vmatpush1.msra.mxu0 0.0
      %6358 = vmatprep.subr.mxu0 0.0
      %6359 = vmatpush1.msra.mxu0 0.0
      %6360 = vmatprep.subr.mxu0 0.0
      %6361 = vmatpush1.msra.mxu0 0.0
      %6362 = vmatprep.subr.mxu0 0.0
      %6363 = vmatpush1.msra.mxu0 0.0
      %6364 = vmatprep.subr.mxu0 0.0
      %6365 = vmatpush1.msra.mxu0 0.0
      %6366 = vmatprep.subr.mxu0 0.0
      %6367 = vmatpush1.msra.mxu0 0.0
      %6368 = vmatprep.subr.mxu0 0.0
      %6369 = vmatpush1.msra.mxu0 0.0
      %6370 = vmatprep.subr.mxu0 0.0
      %6371 = vmatpush1.msra.mxu0 0.0
      %6372 = vmatprep.subr.mxu0 0.0
      %6373 = vmatpush1.msra.mxu0 %v5337
      %6374 = vmatprep.subr.mxu0 0.0
      %6375 = vmatpush1.msra.mxu0 %v5332
      %6376 = vmatprep.subr.mxu0 0.0
      %6377 = vmatpush1.msra.mxu0 %v5327
      %6378 = vmatprep.subr.mxu0 0.0
      %6379 = vmatpush1.msra.mxu0 %v5322
      %6380 = vmatprep.subr.mxu0 0.0
      %6381 = vmatpush2.msra.mxu0 0.0
      %6382 = vmatprep.subr.mxu0 0.0
      %6383 = vmatpush2.msra.mxu0 0.0
      %6384 = vmatprep.subr.mxu0 0.0
      %6385 = vmatpush2.msra.mxu0 0.0
      %6386 = vmatprep.subr.mxu0 0.0
      %6387 = vmatpush2.msra.mxu0 0.0
      %6388 = vmatprep.subr.mxu0 0.0
      %6389 = vmatpush2.msra.mxu0 0.0
      %6390 = vmatprep.subr.mxu0 0.0
      %6391 = vmatpush2.msra.mxu0 0.0
      %6392 = vmatprep.subr.mxu0 0.0
      %6393 = vmatpush2.msra.mxu0 0.0
      %6394 = vmatprep.subr.mxu0 0.0
      %6395 = vmatpush2.msra.mxu0 0.0
      %6396 = vmatprep.subr.mxu0 0.0
      %6397 = vmatpush2.msra.mxu0 0.0
      %6398 = vmatprep.subr.mxu0 0.0
      %6399 = vmatpush2.msra.mxu0 0.0
      %6400 = vmatprep.subr.mxu0 0.0
      %6401 = vmatpush2.msra.mxu0 0.0
      %6402 = vmatprep.subr.mxu0 0.0
      %6403 = vmatpush2.msra.mxu0 0.0
      %6404 = vmatprep.subr.mxu0 0.0
      %6405 = vmatpush2.msra.mxu0 0.0
      %6406 = vmatprep.subr.mxu0 0.0
      %6407 = vmatpush2.msra.mxu0 0.0
      %6408 = vmatprep.subr.mxu0 0.0
      %6409 = vmatpush2.msra.mxu0 0.0
      %6410 = vmatprep.subr.mxu0 0.0
      %6411 = vmatpush2.msra.mxu0 0.0
      %6412 = vmatprep.mubr.f32.mxu0 0.0
      %6413 = vmatmul.mubr.f32.gmra.mxu0 %v6346
      %v6414 = vpop.f32.mrf.mxu0
      %v6415 = vadd.f32 0.0, %v6414
      %v6416 = vpop.f32.mrf.mxu0
      %6417 = vdwg.mxu0
      %v6419 = vsel %vm3297, %v5394, 0
      %6421 = vmatprep.subr.mxu0 0.0
      %6422 = vmatpush1.msra.mxu0 0.0
      %6423 = vmatprep.subr.mxu0 0.0
      %6424 = vmatpush1.msra.mxu0 0.0
      %6425 = vmatprep.subr.mxu0 0.0
      %6426 = vmatpush1.msra.mxu0 0.0
      %6427 = vmatprep.subr.mxu0 0.0
      %6428 = vmatpush1.msra.mxu0 0.0
      %6429 = vmatprep.subr.mxu0 0.0
      %6430 = vmatpush1.msra.mxu0 0.0
      %6431 = vmatprep.subr.mxu0 0.0
      %6432 = vmatpush1.msra.mxu0 0.0
      %6433 = vmatprep.subr.mxu0 0.0
      %6434 = vmatpush1.msra.mxu0 0.0
      %6435 = vmatprep.subr.mxu0 0.0
      %6436 = vmatpush1.msra.mxu0 0.0
      %6437 = vmatprep.subr.mxu0 0.0
      %6438 = vmatpush1.msra.mxu0 0.0
      %6439 = vmatprep.subr.mxu0 0.0
      %6440 = vmatpush1.msra.mxu0 0.0
      %6441 = vmatprep.subr.mxu0 0.0
      %6442 = vmatpush1.msra.mxu0 0.0
      %6443 = vmatprep.subr.mxu0 0.0
      %6444 = vmatpush1.msra.mxu0 0.0
      %6445 = vmatprep.subr.mxu0 0.0
      %6446 = vmatpush1.msra.mxu0 %v5357
      %6447 = vmatprep.subr.mxu0 0.0
      %6448 = vmatpush1.msra.mxu0 %v5352
      %6449 = vmatprep.subr.mxu0 0.0
      %6450 = vmatpush1.msra.mxu0 %v5347
      %6451 = vmatprep.subr.mxu0 0.0
      %6452 = vmatpush1.msra.mxu0 %v5342
      %6453 = vmatprep.subr.mxu0 0.0
      %6454 = vmatpush2.msra.mxu0 0.0
      %6455 = vmatprep.subr.mxu0 0.0
      %6456 = vmatpush2.msra.mxu0 0.0
      %6457 = vmatprep.subr.mxu0 0.0
      %6458 = vmatpush2.msra.mxu0 0.0
      %6459 = vmatprep.subr.mxu0 0.0
      %6460 = vmatpush2.msra.mxu0 0.0
      %6461 = vmatprep.subr.mxu0 0.0
      %6462 = vmatpush2.msra.mxu0 0.0
      %6463 = vmatprep.subr.mxu0 0.0
      %6464 = vmatpush2.msra.mxu0 0.0
      %6465 = vmatprep.subr.mxu0 0.0
      %6466 = vmatpush2.msra.mxu0 0.0
      %6467 = vmatprep.subr.mxu0 0.0
      %6468 = vmatpush2.msra.mxu0 0.0
      %6469 = vmatprep.subr.mxu0 0.0
      %6470 = vmatpush2.msra.mxu0 0.0
      %6471 = vmatprep.subr.mxu0 0.0
      %6472 = vmatpush2.msra.mxu0 0.0
      %6473 = vmatprep.subr.mxu0 0.0
      %6474 = vmatpush2.msra.mxu0 0.0
      %6475 = vmatprep.subr.mxu0 0.0
      %6476 = vmatpush2.msra.mxu0 0.0
      %6477 = vmatprep.subr.mxu0 0.0
      %6478 = vmatpush2.msra.mxu0 0.0
      %6479 = vmatprep.subr.mxu0 0.0
      %6480 = vmatpush2.msra.mxu0 0.0
      %6481 = vmatprep.subr.mxu0 0.0
      %6482 = vmatpush2.msra.mxu0 0.0
      %6483 = vmatprep.subr.mxu0 0.0
      %6484 = vmatpush2.msra.mxu0 0.0
      %6485 = vmatprep.mubr.f32.mxu0 0.0
      %6486 = vmatmul.mubr.f32.gmra.mxu0 %v6419
      %v6487 = vpop.f32.mrf.mxu0
      %v6488 = vadd.f32 0.0, %v6487
      %v6489 = vpop.f32.mrf.mxu0
      %6490 = vdwg.mxu0
      %v6492 = vsel %vm3297, %v5395, 0
      %6494 = vmatprep.subr.mxu0 0.0
      %6495 = vmatpush1.msra.mxu0 0.0
      %6496 = vmatprep.subr.mxu0 0.0
      %6497 = vmatpush1.msra.mxu0 0.0
      %6498 = vmatprep.subr.mxu0 0.0
      %6499 = vmatpush1.msra.mxu0 0.0
      %6500 = vmatprep.subr.mxu0 0.0
      %6501 = vmatpush1.msra.mxu0 0.0
      %6502 = vmatprep.subr.mxu0 0.0
      %6503 = vmatpush1.msra.mxu0 0.0
      %6504 = vmatprep.subr.mxu0 0.0
      %6505 = vmatpush1.msra.mxu0 0.0
      %6506 = vmatprep.subr.mxu0 0.0
      %6507 = vmatpush1.msra.mxu0 0.0
      %6508 = vmatprep.subr.mxu0 0.0
      %6509 = vmatpush1.msra.mxu0 0.0
      %6510 = vmatprep.subr.mxu0 0.0
      %6511 = vmatpush1.msra.mxu0 0.0
      %6512 = vmatprep.subr.mxu0 0.0
      %6513 = vmatpush1.msra.mxu0 0.0
      %6514 = vmatprep.subr.mxu0 0.0
      %6515 = vmatpush1.msra.mxu0 0.0
      %6516 = vmatprep.subr.mxu0 0.0
      %6517 = vmatpush1.msra.mxu0 0.0
      %6518 = vmatprep.subr.mxu0 0.0
      %6519 = vmatpush1.msra.mxu0 %v5377
      %6520 = vmatprep.subr.mxu0 0.0
      %6521 = vmatpush1.msra.mxu0 %v5372
      %6522 = vmatprep.subr.mxu0 0.0
      %6523 = vmatpush1.msra.mxu0 %v5367
      %6524 = vmatprep.subr.mxu0 0.0
      %6525 = vmatpush1.msra.mxu0 %v5362
      %6526 = vmatprep.subr.mxu0 0.0
      %6527 = vmatpush2.msra.mxu0 0.0
      %6528 = vmatprep.subr.mxu0 0.0
      %6529 = vmatpush2.msra.mxu0 0.0
      %6530 = vmatprep.subr.mxu0 0.0
      %6531 = vmatpush2.msra.mxu0 0.0
      %6532 = vmatprep.subr.mxu0 0.0
      %6533 = vmatpush2.msra.mxu0 0.0
      %6534 = vmatprep.subr.mxu0 0.0
      %6535 = vmatpush2.msra.mxu0 0.0
      %6536 = vmatprep.subr.mxu0 0.0
      %6537 = vmatpush2.msra.mxu0 0.0
      %6538 = vmatprep.subr.mxu0 0.0
      %6539 = vmatpush2.msra.mxu0 0.0
      %6540 = vmatprep.subr.mxu0 0.0
      %6541 = vmatpush2.msra.mxu0 0.0
      %6542 = vmatprep.subr.mxu0 0.0
      %6543 = vmatpush2.msra.mxu0 0.0
      %6544 = vmatprep.subr.mxu0 0.0
      %6545 = vmatpush2.msra.mxu0 0.0
      %6546 = vmatprep.subr.mxu0 0.0
      %6547 = vmatpush2.msra.mxu0 0.0
      %6548 = vmatprep.subr.mxu0 0.0
      %6549 = vmatpush2.msra.mxu0 0.0
      %6550 = vmatprep.subr.mxu0 0.0
      %6551 = vmatpush2.msra.mxu0 0.0
      %6552 = vmatprep.subr.mxu0 0.0
      %6553 = vmatpush2.msra.mxu0 0.0
      %6554 = vmatprep.subr.mxu0 0.0
      %6555 = vmatpush2.msra.mxu0 0.0
      %6556 = vmatprep.subr.mxu0 0.0
      %6557 = vmatpush2.msra.mxu0 0.0
      %6558 = vmatprep.mubr.f32.mxu0 0.0
      %6559 = vmatmul.mubr.f32.gmra.mxu0 %v6492
      %v6560 = vpop.f32.mrf.mxu0
      %v6561 = vadd.f32 0.0, %v6560
      %v6562 = vpop.f32.mrf.mxu0
      %6563 = vdwg.mxu0
      %6564 = vst.msk [vmem:[#allocation3] sm:$0xff] %vm3427, 0.0
      %vm6565 = vcmask 517120
      %6566 = vst.msk [vmem:[#allocation3 + $0x8] sm:$0x3] %vm6565, 0.0
      %6567 = vst.msk [vmem:[#allocation3 + $0xa0] sm:$0xff] %vm3427, 0.0
      %6568 = vst.msk [vmem:[#allocation3 + $0xa8] sm:$0x3] %vm6565, 0.0
      %s6569 = scalar_lea.vmem [#allocation3], 144
      %6570 = vst.msk [vmem:[%s6569] sm:$0xff] %vm3427, 0.0
      %6571 = vst.msk [vmem:[%s6569 + $0x8] sm:$0x3] %vm6565, 0.0
      %6572 = vst.msk [vmem:[%s6569 + $0xa0] sm:$0xff] %vm3427, 0.0
      %6573 = vst.msk [vmem:[%s6569 + $0xa8] sm:$0x3] %vm6565, 0.0
      %s6574 = scalar_lea.vmem [#allocation3], 16
      %vm6575 = vcmask 516096
      %6576 = vst.msk [vmem:[%s6574] sm:$0x1] %vm6575, 0.0
      %6577 = vst.msk [vmem:[%s6574 + $0x10] sm:$0x1] %vm6575, 0.0
      %6578 = vst.msk [vmem:[%s6574 + $0x20] sm:$0x1] %vm6575, 0.0
      %6579 = vst.msk [vmem:[%s6574 + $0x30] sm:$0x1] %vm6575, 0.0
      %6580 = vst.msk [vmem:[%s6574 + $0x40] sm:$0x1] %vm6575, 0.0
      %6581 = vst.msk [vmem:[%s6574 + $0x50] sm:$0x1] %vm6575, 0.0
      %6582 = vst.msk [vmem:[%s6574 + $0x60] sm:$0x1] %vm6575, 0.0
      %6583 = vst.msk [vmem:[%s6574 + $0x70] sm:$0x1] %vm6575, 0.0
      %6584 = vst.msk [vmem:[%s6574 + $0xa0] sm:$0x1] %vm6575, 0.0
      %6585 = vst.msk [vmem:[%s6574 + $0xb0] sm:$0x1] %vm6575, 0.0
      %6586 = vst.msk [vmem:[%s6574 + $0xc0] sm:$0x1] %vm6575, 0.0
      %6587 = vst.msk [vmem:[%s6574 + $0xd0] sm:$0x1] %vm6575, 0.0
      %6588 = vst.msk [vmem:[%s6574 + $0xe0] sm:$0x1] %vm6575, 0.0
      %6589 = vst.msk [vmem:[%s6574 + $0xf0] sm:$0x1] %vm6575, 0.0
      %6590 = vst.msk [vmem:[%s6574 + $0x100] sm:$0x1] %vm6575, 0.0
      %6591 = vst.msk [vmem:[%s6574 + $0x110] sm:$0x1] %vm6575, 0.0
      %6592 = vst.msk [vmem:[%s6574 + $0x9] sm:$0x1] %vm6575, 0.0
      %6593 = vst.msk [vmem:[%s6574 + $0x19] sm:$0x1] %vm6575, 0.0
      %6594 = vst.msk [vmem:[%s6574 + $0x29] sm:$0x1] %vm6575, 0.0
      %6595 = vst.msk [vmem:[%s6574 + $0x39] sm:$0x1] %vm6575, 0.0
      %6596 = vst.msk [vmem:[%s6574 + $0x49] sm:$0x1] %vm6575, 0.0
      %6597 = vst.msk [vmem:[%s6574 + $0x59] sm:$0x1] %vm6575, 0.0
      %6598 = vst.msk [vmem:[%s6574 + $0x69] sm:$0x1] %vm6575, 0.0
      %6599 = vst.msk [vmem:[%s6574 + $0x79] sm:$0x1] %vm6575, 0.0
      %6600 = vst.msk [vmem:[%s6574 + $0xa9] sm:$0x1] %vm6575, 0.0
      %6601 = vst.msk [vmem:[%s6574 + $0xb9] sm:$0x1] %vm6575, 0.0
      %6602 = vst.msk [vmem:[%s6574 + $0xc9] sm:$0x1] %vm6575, 0.0
      %6603 = vst.msk [vmem:[%s6574 + $0xd9] sm:$0x1] %vm6575, 0.0
      %6604 = vst.msk [vmem:[%s6574 + $0xe9] sm:$0x1] %vm6575, 0.0
      %6605 = vst.msk [vmem:[%s6574 + $0xf9] sm:$0x1] %vm6575, 0.0
      %6606 = vst.msk [vmem:[%s6574 + $0x109] sm:$0x1] %vm6575, 0.0
      %6607 = vst.msk [vmem:[%s6574 + $0x119] sm:$0x1] %vm6575, 0.0
      %6608 = vst.msk [vmem:[%s6574 + $0x1] sm:$0xff] %vm3427, %v5466
      %6609 = vst.msk [vmem:[%s6574 + $0x11] sm:$0xff] %vm3427, %v5539
      %6610 = vst.msk [vmem:[%s6574 + $0x21] sm:$0xff] %vm3427, %v5612
      %6611 = vst.msk [vmem:[%s6574 + $0x31] sm:$0xff] %vm3427, %v5685
      %6612 = vst.msk [vmem:[%s6574 + $0x41] sm:$0xff] %vm3427, %v5758
      %6613 = vst.msk [vmem:[%s6574 + $0x51] sm:$0xff] %vm3427, %v5831
      %6614 = vst.msk [vmem:[%s6574 + $0x61] sm:$0xff] %vm3427, %v5904
      %6615 = vst.msk [vmem:[%s6574 + $0x71] sm:$0xff] %vm3427, %v5977
      %6616 = vst.msk [vmem:[%s6574 + $0xa1] sm:$0xff] %vm3427, %v6050
      %6617 = vst.msk [vmem:[%s6574 + $0xb1] sm:$0xff] %vm3427, %v6123
      %6618 = vst.msk [vmem:[%s6574 + $0xc1] sm:$0xff] %vm3427, %v6196
      %6619 = vst.msk [vmem:[%s6574 + $0xd1] sm:$0xff] %vm3427, %v6269
      %6620 = vst.msk [vmem:[%s6574 + $0xe1] sm:$0xff] %vm3427, %v6342
      %6621 = vst.msk [vmem:[%s6574 + $0xf1] sm:$0xff] %vm3427, %v6415
      %6622 = vst.msk [vmem:[%s6574 + $0x101] sm:$0xff] %vm3427, %v6488
      %6623 = vst.msk [vmem:[%s6574 + $0x111] sm:$0xff] %vm3427, %v6561
      %v6624 = vld [vmem:[#allocation3] sm:$0xff]
      %v6625 = vld [vmem:[#allocation3 + $0x10] sm:$0xff]
      %v6626 = vld [vmem:[#allocation3 + $0x20] sm:$0xff]
      %v6627 = vld [vmem:[#allocation3 + $0x30] sm:$0xff]
      %v6628 = vld [vmem:[#allocation3 + $0x40] sm:$0xff]
      %v6629 = vld [vmem:[#allocation3 + $0x50] sm:$0xff]
      %v6630 = vld [vmem:[#allocation3 + $0x60] sm:$0xff]
      %v6631 = vld [vmem:[#allocation3 + $0x70] sm:$0xff]
      %v6632 = vld [vmem:[#allocation3 + $0xa0] sm:$0xff]
      %v6633 = vld [vmem:[#allocation3 + $0xb0] sm:$0xff]
      %v6634 = vld [vmem:[#allocation3 + $0xc0] sm:$0xff]
      %v6635 = vld [vmem:[#allocation3 + $0xd0] sm:$0xff]
      %v6636 = vld [vmem:[#allocation3 + $0xe0] sm:$0xff]
      %v6637 = vld [vmem:[#allocation3 + $0xf0] sm:$0xff]
      %v6638 = vld [vmem:[#allocation3 + $0x100] sm:$0xff]
      %v6639 = vld [vmem:[#allocation3 + $0x110] sm:$0xff]
      %v6640 = vld [vmem:[#allocation3 + $0x1] sm:$0xff]
      %v6641 = vld [vmem:[#allocation3 + $0x11] sm:$0xff]
      %v6642 = vld [vmem:[#allocation3 + $0x21] sm:$0xff]
      %v6643 = vld [vmem:[#allocation3 + $0x31] sm:$0xff]
      %v6644 = vld [vmem:[#allocation3 + $0x41] sm:$0xff]
      %v6645 = vld [vmem:[#allocation3 + $0x51] sm:$0xff]
      %v6646 = vld [vmem:[#allocation3 + $0x61] sm:$0xff]
      %v6647 = vld [vmem:[#allocation3 + $0x71] sm:$0xff]
      %v6648 = vld [vmem:[#allocation3 + $0xa1] sm:$0xff]
      %v6649 = vld [vmem:[#allocation3 + $0xb1] sm:$0xff]
      %v6650 = vld [vmem:[#allocation3 + $0xc1] sm:$0xff]
      %v6651 = vld [vmem:[#allocation3 + $0xd1] sm:$0xff]
      %v6652 = vld [vmem:[#allocation3 + $0xe1] sm:$0xff]
      %v6653 = vld [vmem:[#allocation3 + $0xf1] sm:$0xff]
      %v6654 = vld [vmem:[#allocation3 + $0x101] sm:$0xff]
      %v6655 = vld [vmem:[#allocation3 + $0x111] sm:$0xff]
      %v6656 = vld [vmem:[#allocation3 + $0x2] sm:$0xff]
      %v6657 = vld [vmem:[#allocation3 + $0x12] sm:$0xff]
      %v6658 = vld [vmem:[#allocation3 + $0x22] sm:$0xff]
      %v6659 = vld [vmem:[#allocation3 + $0x32] sm:$0xff]
      %v6660 = vld [vmem:[#allocation3 + $0x42] sm:$0xff]
      %v6661 = vld [vmem:[#allocation3 + $0x52] sm:$0xff]
      %v6662 = vld [vmem:[#allocation3 + $0x62] sm:$0xff]
      %v6663 = vld [vmem:[#allocation3 + $0x72] sm:$0xff]
      %v6664 = vld [vmem:[#allocation3 + $0xa2] sm:$0xff]
      %v6665 = vld [vmem:[#allocation3 + $0xb2] sm:$0xff]
      %v6666 = vld [vmem:[#allocation3 + $0xc2] sm:$0xff]
      %v6667 = vld [vmem:[#allocation3 + $0xd2] sm:$0xff]
      %v6668 = vld [vmem:[#allocation3 + $0xe2] sm:$0xff]
      %v6669 = vld [vmem:[#allocation3 + $0xf2] sm:$0xff]
      %v6670 = vld [vmem:[#allocation3 + $0x102] sm:$0xff]
      %v6671 = vld [vmem:[#allocation3 + $0x112] sm:$0xff]
      %v6672 = vld [vmem:[%s6574] sm:$0xff]
      %v6673 = vld [vmem:[%s6574 + $0x10] sm:$0xff]
      %v6674 = vld [vmem:[%s6574 + $0x20] sm:$0xff]
      %v6675 = vld [vmem:[%s6574 + $0x30] sm:$0xff]
      %v6676 = vld [vmem:[%s6574 + $0x40] sm:$0xff]
      %v6677 = vld [vmem:[%s6574 + $0x50] sm:$0xff]
      %v6678 = vld [vmem:[%s6574 + $0x60] sm:$0xff]
      %v6679 = vld [vmem:[%s6574 + $0x70] sm:$0xff]
      %v6680 = vld [vmem:[%s6574 + $0xa0] sm:$0xff]
      %v6681 = vld [vmem:[%s6574 + $0xb0] sm:$0xff]
      %v6682 = vld [vmem:[%s6574 + $0xc0] sm:$0xff]
      %v6683 = vld [vmem:[%s6574 + $0xd0] sm:$0xff]
      %v6684 = vld [vmem:[%s6574 + $0xe0] sm:$0xff]
      %v6685 = vld [vmem:[%s6574 + $0xf0] sm:$0xff]
      %v6686 = vld [vmem:[%s6574 + $0x100] sm:$0xff]
      %v6687 = vld [vmem:[%s6574 + $0x110] sm:$0xff]
      %v6688 = vld [vmem:[%s6574 + $0x1] sm:$0xff]
      %v6689 = vld [vmem:[%s6574 + $0x11] sm:$0xff]
      %v6690 = vld [vmem:[%s6574 + $0x21] sm:$0xff]
      %v6691 = vld [vmem:[%s6574 + $0x31] sm:$0xff]
      %v6692 = vld [vmem:[%s6574 + $0x41] sm:$0xff]
      %v6693 = vld [vmem:[%s6574 + $0x51] sm:$0xff]
      %v6694 = vld [vmem:[%s6574 + $0x61] sm:$0xff]
      %v6695 = vld [vmem:[%s6574 + $0x71] sm:$0xff]
      %v6696 = vld [vmem:[%s6574 + $0xa1] sm:$0xff]
      %v6697 = vld [vmem:[%s6574 + $0xb1] sm:$0xff]
      %v6698 = vld [vmem:[%s6574 + $0xc1] sm:$0xff]
      %v6699 = vld [vmem:[%s6574 + $0xd1] sm:$0xff]
      %v6700 = vld [vmem:[%s6574 + $0xe1] sm:$0xff]
      %v6701 = vld [vmem:[%s6574 + $0xf1] sm:$0xff]
      %v6702 = vld [vmem:[%s6574 + $0x101] sm:$0xff]
      %v6703 = vld [vmem:[%s6574 + $0x111] sm:$0xff]
      %v6704 = vld [vmem:[%s6574 + $0x2] sm:$0xff]
      %v6705 = vld [vmem:[%s6574 + $0x12] sm:$0xff]
      %v6706 = vld [vmem:[%s6574 + $0x22] sm:$0xff]
      %v6707 = vld [vmem:[%s6574 + $0x32] sm:$0xff]
      %v6708 = vld [vmem:[%s6574 + $0x42] sm:$0xff]
      %v6709 = vld [vmem:[%s6574 + $0x52] sm:$0xff]
      %v6710 = vld [vmem:[%s6574 + $0x62] sm:$0xff]
      %v6711 = vld [vmem:[%s6574 + $0x72] sm:$0xff]
      %v6712 = vld [vmem:[%s6574 + $0xa2] sm:$0xff]
      %v6713 = vld [vmem:[%s6574 + $0xb2] sm:$0xff]
      %v6714 = vld [vmem:[%s6574 + $0xc2] sm:$0xff]
      %v6715 = vld [vmem:[%s6574 + $0xd2] sm:$0xff]
      %v6716 = vld [vmem:[%s6574 + $0xe2] sm:$0xff]
      %v6717 = vld [vmem:[%s6574 + $0xf2] sm:$0xff]
      %v6718 = vld [vmem:[%s6574 + $0x102] sm:$0xff]
      %v6719 = vld [vmem:[%s6574 + $0x112] sm:$0xff]
      %s6720 = scalar_lea.vmem [#allocation3], 32
      %v6721 = vld [vmem:[%s6720] sm:$0xff]
      %v6722 = vld [vmem:[%s6720 + $0x10] sm:$0xff]
      %v6723 = vld [vmem:[%s6720 + $0x20] sm:$0xff]
      %v6724 = vld [vmem:[%s6720 + $0x30] sm:$0xff]
      %v6725 = vld [vmem:[%s6720 + $0x40] sm:$0xff]
      %v6726 = vld [vmem:[%s6720 + $0x50] sm:$0xff]
      %v6727 = vld [vmem:[%s6720 + $0x60] sm:$0xff]
      %v6728 = vld [vmem:[%s6720 + $0x70] sm:$0xff]
      %v6729 = vld [vmem:[%s6720 + $0xa0] sm:$0xff]
      %v6730 = vld [vmem:[%s6720 + $0xb0] sm:$0xff]
      %v6731 = vld [vmem:[%s6720 + $0xc0] sm:$0xff]
      %v6732 = vld [vmem:[%s6720 + $0xd0] sm:$0xff]
      %v6733 = vld [vmem:[%s6720 + $0xe0] sm:$0xff]
      %v6734 = vld [vmem:[%s6720 + $0xf0] sm:$0xff]
      %v6735 = vld [vmem:[%s6720 + $0x100] sm:$0xff]
      %v6736 = vld [vmem:[%s6720 + $0x110] sm:$0xff]
      %v6737 = vld [vmem:[%s6720 + $0x1] sm:$0xff]
      %v6738 = vld [vmem:[%s6720 + $0x11] sm:$0xff]
      %v6739 = vld [vmem:[%s6720 + $0x21] sm:$0xff]
      %v6740 = vld [vmem:[%s6720 + $0x31] sm:$0xff]
      %v6741 = vld [vmem:[%s6720 + $0x41] sm:$0xff]
      %v6742 = vld [vmem:[%s6720 + $0x51] sm:$0xff]
      %v6743 = vld [vmem:[%s6720 + $0x61] sm:$0xff]
      %v6744 = vld [vmem:[%s6720 + $0x71] sm:$0xff]
      %v6745 = vld [vmem:[%s6720 + $0xa1] sm:$0xff]
      %v6746 = vld [vmem:[%s6720 + $0xb1] sm:$0xff]
      %v6747 = vld [vmem:[%s6720 + $0xc1] sm:$0xff]
      %v6748 = vld [vmem:[%s6720 + $0xd1] sm:$0xff]
      %v6749 = vld [vmem:[%s6720 + $0xe1] sm:$0xff]
      %v6750 = vld [vmem:[%s6720 + $0xf1] sm:$0xff]
      %v6751 = vld [vmem:[%s6720 + $0x101] sm:$0xff]
      %v6752 = vld [vmem:[%s6720 + $0x111] sm:$0xff]
      %v6753 = vld [vmem:[%s6720 + $0x2] sm:$0xff]
      %v6754 = vld [vmem:[%s6720 + $0x12] sm:$0xff]
      %v6755 = vld [vmem:[%s6720 + $0x22] sm:$0xff]
      %v6756 = vld [vmem:[%s6720 + $0x32] sm:$0xff]
      %v6757 = vld [vmem:[%s6720 + $0x42] sm:$0xff]
      %v6758 = vld [vmem:[%s6720 + $0x52] sm:$0xff]
      %v6759 = vld [vmem:[%s6720 + $0x62] sm:$0xff]
      %v6760 = vld [vmem:[%s6720 + $0x72] sm:$0xff]
      %v6761 = vld [vmem:[%s6720 + $0xa2] sm:$0xff]
      %v6762 = vld [vmem:[%s6720 + $0xb2] sm:$0xff]
      %v6763 = vld [vmem:[%s6720 + $0xc2] sm:$0xff]
      %v6764 = vld [vmem:[%s6720 + $0xd2] sm:$0xff]
      %v6765 = vld [vmem:[%s6720 + $0xe2] sm:$0xff]
      %v6766 = vld [vmem:[%s6720 + $0xf2] sm:$0xff]
      %v6767 = vld [vmem:[%s6720 + $0x102] sm:$0xff]
      %v6768 = vld [vmem:[%s6720 + $0x112] sm:$0xff]
      %6785 = vrot.lane.b32.xlu0 %v6640, 64
      %v6786 = vpop.permute.xlu0 %6785
      %6787 = vrot.lane.b32.xlu0 %v6641, 64
      %v6788 = vpop.permute.xlu0 %6787
      %6789 = vrot.lane.b32.xlu0 %v6642, 64
      %v6790 = vpop.permute.xlu0 %6789
      %6791 = vrot.lane.b32.xlu0 %v6643, 64
      %v6792 = vpop.permute.xlu0 %6791
      %6793 = vrot.lane.b32.xlu0 %v6644, 64
      %v6794 = vpop.permute.xlu0 %6793
      %6795 = vrot.lane.b32.xlu0 %v6645, 64
      %v6796 = vpop.permute.xlu0 %6795
      %6797 = vrot.lane.b32.xlu0 %v6646, 64
      %v6798 = vpop.permute.xlu0 %6797
      %6799 = vrot.lane.b32.xlu0 %v6647, 64
      %v6800 = vpop.permute.xlu0 %6799
      %6801 = vrot.lane.b32.xlu0 %v6648, 64
      %v6802 = vpop.permute.xlu0 %6801
      %6803 = vrot.lane.b32.xlu0 %v6649, 64
      %v6804 = vpop.permute.xlu0 %6803
      %6805 = vrot.lane.b32.xlu0 %v6650, 64
      %v6806 = vpop.permute.xlu0 %6805
      %6807 = vrot.lane.b32.xlu0 %v6651, 64
      %v6808 = vpop.permute.xlu0 %6807
      %6809 = vrot.lane.b32.xlu0 %v6652, 64
      %v6810 = vpop.permute.xlu0 %6809
      %6811 = vrot.lane.b32.xlu0 %v6653, 64
      %v6812 = vpop.permute.xlu0 %6811
      %6813 = vrot.lane.b32.xlu0 %v6654, 64
      %v6814 = vpop.permute.xlu0 %6813
      %6815 = vrot.lane.b32.xlu0 %v6655, 64
      %v6816 = vpop.permute.xlu0 %6815
      %6849 = vrot.lane.b32.xlu0 %v6672, 64
      %v6850 = vpop.permute.xlu0 %6849
      %6851 = vrot.lane.b32.xlu0 %v6673, 64
      %v6852 = vpop.permute.xlu0 %6851
      %6853 = vrot.lane.b32.xlu0 %v6674, 64
      %v6854 = vpop.permute.xlu0 %6853
      %6855 = vrot.lane.b32.xlu0 %v6675, 64
      %v6856 = vpop.permute.xlu0 %6855
      %6857 = vrot.lane.b32.xlu0 %v6676, 64
      %v6858 = vpop.permute.xlu0 %6857
      %6859 = vrot.lane.b32.xlu0 %v6677, 64
      %v6860 = vpop.permute.xlu0 %6859
      %6861 = vrot.lane.b32.xlu0 %v6678, 64
      %v6862 = vpop.permute.xlu0 %6861
      %6863 = vrot.lane.b32.xlu0 %v6679, 64
      %v6864 = vpop.permute.xlu0 %6863
      %6865 = vrot.lane.b32.xlu0 %v6680, 64
      %v6866 = vpop.permute.xlu0 %6865
      %6867 = vrot.lane.b32.xlu0 %v6681, 64
      %v6868 = vpop.permute.xlu0 %6867
      %6869 = vrot.lane.b32.xlu0 %v6682, 64
      %v6870 = vpop.permute.xlu0 %6869
      %6871 = vrot.lane.b32.xlu0 %v6683, 64
      %v6872 = vpop.permute.xlu0 %6871
      %6873 = vrot.lane.b32.xlu0 %v6684, 64
      %v6874 = vpop.permute.xlu0 %6873
      %6875 = vrot.lane.b32.xlu0 %v6685, 64
      %v6876 = vpop.permute.xlu0 %6875
      %6877 = vrot.lane.b32.xlu0 %v6686, 64
      %v6878 = vpop.permute.xlu0 %6877
      %6879 = vrot.lane.b32.xlu0 %v6687, 64
      %v6880 = vpop.permute.xlu0 %6879
      %6913 = vrot.lane.b32.xlu0 %v6704, 64
      %v6914 = vpop.permute.xlu0 %6913
      %6915 = vrot.lane.b32.xlu0 %v6705, 64
      %v6916 = vpop.permute.xlu0 %6915
      %6917 = vrot.lane.b32.xlu0 %v6706, 64
      %v6918 = vpop.permute.xlu0 %6917
      %6919 = vrot.lane.b32.xlu0 %v6707, 64
      %v6920 = vpop.permute.xlu0 %6919
      %6921 = vrot.lane.b32.xlu0 %v6708, 64
      %v6922 = vpop.permute.xlu0 %6921
      %6923 = vrot.lane.b32.xlu0 %v6709, 64
      %v6924 = vpop.permute.xlu0 %6923
      %6925 = vrot.lane.b32.xlu0 %v6710, 64
      %v6926 = vpop.permute.xlu0 %6925
      %6927 = vrot.lane.b32.xlu0 %v6711, 64
      %v6928 = vpop.permute.xlu0 %6927
      %6929 = vrot.lane.b32.xlu0 %v6712, 64
      %v6930 = vpop.permute.xlu0 %6929
      %6931 = vrot.lane.b32.xlu0 %v6713, 64
      %v6932 = vpop.permute.xlu0 %6931
      %6933 = vrot.lane.b32.xlu0 %v6714, 64
      %v6934 = vpop.permute.xlu0 %6933
      %6935 = vrot.lane.b32.xlu0 %v6715, 64
      %v6936 = vpop.permute.xlu0 %6935
      %6937 = vrot.lane.b32.xlu0 %v6716, 64
      %v6938 = vpop.permute.xlu0 %6937
      %6939 = vrot.lane.b32.xlu0 %v6717, 64
      %v6940 = vpop.permute.xlu0 %6939
      %6941 = vrot.lane.b32.xlu0 %v6718, 64
      %v6942 = vpop.permute.xlu0 %6941
      %6943 = vrot.lane.b32.xlu0 %v6719, 64
      %v6944 = vpop.permute.xlu0 %6943
      %6977 = vrot.lane.b32.xlu0 %v6737, 64
      %v6978 = vpop.permute.xlu0 %6977
      %6979 = vrot.lane.b32.xlu0 %v6738, 64
      %v6980 = vpop.permute.xlu0 %6979
      %6981 = vrot.lane.b32.xlu0 %v6739, 64
      %v6982 = vpop.permute.xlu0 %6981
      %6983 = vrot.lane.b32.xlu0 %v6740, 64
      %v6984 = vpop.permute.xlu0 %6983
      %6985 = vrot.lane.b32.xlu0 %v6741, 64
      %v6986 = vpop.permute.xlu0 %6985
      %6987 = vrot.lane.b32.xlu0 %v6742, 64
      %v6988 = vpop.permute.xlu0 %6987
      %6989 = vrot.lane.b32.xlu0 %v6743, 64
      %v6990 = vpop.permute.xlu0 %6989
      %6991 = vrot.lane.b32.xlu0 %v6744, 64
      %v6992 = vpop.permute.xlu0 %6991
      %6993 = vrot.lane.b32.xlu0 %v6745, 64
      %v6994 = vpop.permute.xlu0 %6993
      %6995 = vrot.lane.b32.xlu0 %v6746, 64
      %v6996 = vpop.permute.xlu0 %6995
      %6997 = vrot.lane.b32.xlu0 %v6747, 64
      %v6998 = vpop.permute.xlu0 %6997
      %6999 = vrot.lane.b32.xlu0 %v6748, 64
      %v7000 = vpop.permute.xlu0 %6999
      %7001 = vrot.lane.b32.xlu0 %v6749, 64
      %v7002 = vpop.permute.xlu0 %7001
      %7003 = vrot.lane.b32.xlu0 %v6750, 64
      %v7004 = vpop.permute.xlu0 %7003
      %7005 = vrot.lane.b32.xlu0 %v6751, 64
      %v7006 = vpop.permute.xlu0 %7005
      %7007 = vrot.lane.b32.xlu0 %v6752, 64
      %v7008 = vpop.permute.xlu0 %7007
      %v7025 = vsel %vm3427, %v6624, %v6786
      %v7026 = vsel %vm3427, %v6625, %v6788
      %v7027 = vsel %vm3427, %v6626, %v6790
      %v7028 = vsel %vm3427, %v6627, %v6792
      %v7029 = vsel %vm3427, %v6628, %v6794
      %v7030 = vsel %vm3427, %v6629, %v6796
      %v7031 = vsel %vm3427, %v6630, %v6798
      %v7032 = vsel %vm3427, %v6631, %v6800
      %v7033 = vsel %vm3427, %v6632, %v6802
      %v7034 = vsel %vm3427, %v6633, %v6804
      %v7035 = vsel %vm3427, %v6634, %v6806
      %v7036 = vsel %vm3427, %v6635, %v6808
      %v7037 = vsel %vm3427, %v6636, %v6810
      %v7038 = vsel %vm3427, %v6637, %v6812
      %v7039 = vsel %vm3427, %v6638, %v6814
      %v7040 = vsel %vm3427, %v6639, %v6816
      %v7041 = vsel %vm3427, %v6656, %v6850
      %v7042 = vsel %vm3427, %v6657, %v6852
      %v7043 = vsel %vm3427, %v6658, %v6854
      %v7044 = vsel %vm3427, %v6659, %v6856
      %v7045 = vsel %vm3427, %v6660, %v6858
      %v7046 = vsel %vm3427, %v6661, %v6860
      %v7047 = vsel %vm3427, %v6662, %v6862
      %v7048 = vsel %vm3427, %v6663, %v6864
      %v7049 = vsel %vm3427, %v6664, %v6866
      %v7050 = vsel %vm3427, %v6665, %v6868
      %v7051 = vsel %vm3427, %v6666, %v6870
      %v7052 = vsel %vm3427, %v6667, %v6872
      %v7053 = vsel %vm3427, %v6668, %v6874
      %v7054 = vsel %vm3427, %v6669, %v6876
      %v7055 = vsel %vm3427, %v6670, %v6878
      %v7056 = vsel %vm3427, %v6671, %v6880
      %v7057 = vsel %vm3427, %v6688, %v6914
      %v7058 = vsel %vm3427, %v6689, %v6916
      %v7059 = vsel %vm3427, %v6690, %v6918
      %v7060 = vsel %vm3427, %v6691, %v6920
      %v7061 = vsel %vm3427, %v6692, %v6922
      %v7062 = vsel %vm3427, %v6693, %v6924
      %v7063 = vsel %vm3427, %v6694, %v6926
      %v7064 = vsel %vm3427, %v6695, %v6928
      %v7065 = vsel %vm3427, %v6696, %v6930
      %v7066 = vsel %vm3427, %v6697, %v6932
      %v7067 = vsel %vm3427, %v6698, %v6934
      %v7068 = vsel %vm3427, %v6699, %v6936
      %v7069 = vsel %vm3427, %v6700, %v6938
      %v7070 = vsel %vm3427, %v6701, %v6940
      %v7071 = vsel %vm3427, %v6702, %v6942
      %v7072 = vsel %vm3427, %v6703, %v6944
      %v7073 = vsel %vm3427, %v6721, %v6978
      %v7074 = vsel %vm3427, %v6722, %v6980
      %v7075 = vsel %vm3427, %v6723, %v6982
      %v7076 = vsel %vm3427, %v6724, %v6984
      %v7077 = vsel %vm3427, %v6725, %v6986
      %v7078 = vsel %vm3427, %v6726, %v6988
      %v7079 = vsel %vm3427, %v6727, %v6990
      %v7080 = vsel %vm3427, %v6728, %v6992
      %v7081 = vsel %vm3427, %v6729, %v6994
      %v7082 = vsel %vm3427, %v6730, %v6996
      %v7083 = vsel %vm3427, %v6731, %v6998
      %v7084 = vsel %vm3427, %v6732, %v7000
      %v7085 = vsel %vm3427, %v6733, %v7002
      %v7086 = vsel %vm3427, %v6734, %v7004
      %v7087 = vsel %vm3427, %v6735, %v7006
      %v7088 = vsel %vm3427, %v6736, %v7008
      %v7089 = vld [vmem:[%s6] sm:$0xff]
      %v7090 = vld [vmem:[%s6 + $0x8] sm:$0xff]
      %v7091 = vld [vmem:[%s6 + $0x10] sm:$0xff]
      %v7092 = vld [vmem:[%s6 + $0x18] sm:$0xff]
      %v7093 = vld [vmem:[%s6 + $0x20] sm:$0xff]
      %v7094 = vld [vmem:[%s6 + $0x28] sm:$0xff]
      %v7095 = vld [vmem:[%s6 + $0x30] sm:$0xff]
      %v7096 = vld [vmem:[%s6 + $0x38] sm:$0xff]
      %v7097 = vld [vmem:[%s6 + $0x40] sm:$0xff]
      %v7098 = vld [vmem:[%s6 + $0x48] sm:$0xff]
      %v7099 = vld [vmem:[%s6 + $0x50] sm:$0xff]
      %v7100 = vld [vmem:[%s6 + $0x58] sm:$0xff]
      %v7101 = vld [vmem:[%s6 + $0x60] sm:$0xff]
      %v7102 = vld [vmem:[%s6 + $0x68] sm:$0xff]
      %v7103 = vld [vmem:[%s6 + $0x70] sm:$0xff]
      %v7104 = vld [vmem:[%s6 + $0x78] sm:$0xff]
      %v7105 = vld [vmem:[%s6 + $0x80] sm:$0xff]
      %v7106 = vld [vmem:[%s6 + $0x88] sm:$0xff]
      %v7107 = vld [vmem:[%s6 + $0x90] sm:$0xff]
      %v7108 = vld [vmem:[%s6 + $0x98] sm:$0xff]
      %v7109 = vld [vmem:[%s6 + $0xa0] sm:$0xff]
      %v7110 = vld [vmem:[%s6 + $0xa8] sm:$0xff]
      %v7111 = vld [vmem:[%s6 + $0xb0] sm:$0xff]
      %v7112 = vld [vmem:[%s6 + $0xb8] sm:$0xff]
      %v7113 = vld [vmem:[%s6 + $0xc0] sm:$0xff]
      %v7114 = vld [vmem:[%s6 + $0xc8] sm:$0xff]
      %v7115 = vld [vmem:[%s6 + $0xd0] sm:$0xff]
      %v7116 = vld [vmem:[%s6 + $0xd8] sm:$0xff]
      %v7117 = vld [vmem:[%s6 + $0xe0] sm:$0xff]
      %v7118 = vld [vmem:[%s6 + $0xe8] sm:$0xff]
      %v7119 = vld [vmem:[%s6 + $0xf0] sm:$0xff]
      %v7120 = vld [vmem:[%s6 + $0xf8] sm:$0xff]
      %v7121 = vld [vmem:[%s6 + $0x100] sm:$0xff]
      %v7122 = vld [vmem:[%s6 + $0x108] sm:$0xff]
      %v7123 = vld [vmem:[%s6 + $0x110] sm:$0xff]
      %v7124 = vld [vmem:[%s6 + $0x118] sm:$0xff]
      %v7125 = vld [vmem:[%s6 + $0x120] sm:$0xff]
      %v7126 = vld [vmem:[%s6 + $0x128] sm:$0xff]
      %v7127 = vld [vmem:[%s6 + $0x130] sm:$0xff]
      %v7128 = vld [vmem:[%s6 + $0x138] sm:$0xff]
      %v7129 = vld [vmem:[%s6 + $0x140] sm:$0xff]
      %v7130 = vld [vmem:[%s6 + $0x148] sm:$0xff]
      %v7131 = vld [vmem:[%s6 + $0x150] sm:$0xff]
      %v7132 = vld [vmem:[%s6 + $0x158] sm:$0xff]
      %v7133 = vld [vmem:[%s6 + $0x160] sm:$0xff]
      %v7134 = vld [vmem:[%s6 + $0x168] sm:$0xff]
      %v7135 = vld [vmem:[%s6 + $0x170] sm:$0xff]
      %v7136 = vld [vmem:[%s6 + $0x178] sm:$0xff]
      %v7137 = vld [vmem:[%s6 + $0x180] sm:$0xff]
      %v7138 = vld [vmem:[%s6 + $0x188] sm:$0xff]
      %v7139 = vld [vmem:[%s6 + $0x190] sm:$0xff]
      %v7140 = vld [vmem:[%s6 + $0x198] sm:$0xff]
      %v7141 = vld [vmem:[%s6 + $0x1a0] sm:$0xff]
      %v7142 = vld [vmem:[%s6 + $0x1a8] sm:$0xff]
      %v7143 = vld [vmem:[%s6 + $0x1b0] sm:$0xff]
      %v7144 = vld [vmem:[%s6 + $0x1b8] sm:$0xff]
      %v7145 = vld [vmem:[%s6 + $0x1c0] sm:$0xff]
      %v7146 = vld [vmem:[%s6 + $0x1c8] sm:$0xff]
      %v7147 = vld [vmem:[%s6 + $0x1d0] sm:$0xff]
      %v7148 = vld [vmem:[%s6 + $0x1d8] sm:$0xff]
      %v7149 = vld [vmem:[%s6 + $0x1e0] sm:$0xff]
      %v7150 = vld [vmem:[%s6 + $0x1e8] sm:$0xff]
      %v7151 = vld [vmem:[%s6 + $0x1f0] sm:$0xff]
      %v7152 = vld [vmem:[%s6 + $0x1f8] sm:$0xff]
      %v7153 = vld [vmem:[%s6 + $0x200] sm:$0xff]
      %v7154 = vld [vmem:[%s6 + $0x208] sm:$0xff]
      %v7155 = vld [vmem:[%s6 + $0x210] sm:$0xff]
      %v7156 = vld [vmem:[%s6 + $0x218] sm:$0xff]
      %v7157 = vld [vmem:[%s6 + $0x220] sm:$0xff]
      %v7158 = vld [vmem:[%s6 + $0x228] sm:$0xff]
      %v7159 = vld [vmem:[%s6 + $0x230] sm:$0xff]
      %v7160 = vld [vmem:[%s6 + $0x238] sm:$0xff]
      %v7162 = vsel %vm3427, %v6753, 0
      %v7165 = vsel %vm3427, %v6754, 0
      %v7168 = vsel %vm3427, %v6755, 0
      %v7171 = vsel %vm3427, %v6756, 0
      %v7174 = vsel %vm3427, %v6757, 0
      %v7177 = vsel %vm3427, %v6758, 0
      %v7180 = vsel %vm3427, %v6759, 0
      %v7183 = vsel %vm3427, %v6760, 0
      %v7186 = vsel %vm3427, %v6761, 0
      %v7189 = vsel %vm3427, %v6762, 0
      %v7192 = vsel %vm3427, %v6763, 0
      %v7195 = vsel %vm3427, %v6764, 0
      %v7198 = vsel %vm3427, %v6765, 0
      %v7201 = vsel %vm3427, %v6766, 0
      %v7204 = vsel %vm3427, %v6767, 0
      %v7207 = vsel %vm3427, %v6768, 0
      %7209 = vmatprep.subr.mxu0 0.0
      %7210 = vmatpush1.msra.mxu0 %v7104
      %7211 = vmatprep.subr.mxu0 0.0
      %7212 = vmatpush1.msra.mxu0 %v7103
      %7213 = vmatprep.subr.mxu0 0.0
      %7214 = vmatpush1.msra.mxu0 %v7102
      %7215 = vmatprep.subr.mxu0 0.0
      %7216 = vmatpush1.msra.mxu0 %v7101
      %7217 = vmatprep.subr.mxu0 0.0
      %7218 = vmatpush1.msra.mxu0 %v7100
      %7219 = vmatprep.subr.mxu0 0.0
      %7220 = vmatpush1.msra.mxu0 %v7099
      %7221 = vmatprep.subr.mxu0 0.0
      %7222 = vmatpush1.msra.mxu0 %v7098
      %7223 = vmatprep.subr.mxu0 0.0
      %7224 = vmatpush1.msra.mxu0 %v7097
      %7225 = vmatprep.subr.mxu0 0.0
      %7226 = vmatpush1.msra.mxu0 %v7096
      %7227 = vmatprep.subr.mxu0 0.0
      %7228 = vmatpush1.msra.mxu0 %v7095
      %7229 = vmatprep.subr.mxu0 0.0
      %7230 = vmatpush1.msra.mxu0 %v7094
      %7231 = vmatprep.subr.mxu0 0.0
      %7232 = vmatpush1.msra.mxu0 %v7093
      %7233 = vmatprep.subr.mxu0 0.0
      %7234 = vmatpush1.msra.mxu0 %v7092
      %7235 = vmatprep.subr.mxu0 0.0
      %7236 = vmatpush1.msra.mxu0 %v7091
      %7237 = vmatprep.subr.mxu0 0.0
      %7238 = vmatpush1.msra.mxu0 %v7090
      %7239 = vmatprep.subr.mxu0 0.0
      %7240 = vmatpush1.msra.mxu0 %v7089
      %7241 = vmatprep.subr.mxu0 0.0
      %7242 = vmatpush2.msra.mxu0 %v7120
      %7243 = vmatprep.subr.mxu0 0.0
      %7244 = vmatpush2.msra.mxu0 %v7119
      %7245 = vmatprep.subr.mxu0 0.0
      %7246 = vmatpush2.msra.mxu0 %v7118
      %7247 = vmatprep.subr.mxu0 0.0
      %7248 = vmatpush2.msra.mxu0 %v7117
      %7249 = vmatprep.subr.mxu0 0.0
      %7250 = vmatpush2.msra.mxu0 %v7116
      %7251 = vmatprep.subr.mxu0 0.0
      %7252 = vmatpush2.msra.mxu0 %v7115
      %7253 = vmatprep.subr.mxu0 0.0
      %7254 = vmatpush2.msra.mxu0 %v7114
      %7255 = vmatprep.subr.mxu0 0.0
      %7256 = vmatpush2.msra.mxu0 %v7113
      %7257 = vmatprep.subr.mxu0 0.0
      %7258 = vmatpush2.msra.mxu0 %v7112
      %7259 = vmatprep.subr.mxu0 0.0
      %7260 = vmatpush2.msra.mxu0 %v7111
      %7261 = vmatprep.subr.mxu0 0.0
      %7262 = vmatpush2.msra.mxu0 %v7110
      %7263 = vmatprep.subr.mxu0 0.0
      %7264 = vmatpush2.msra.mxu0 %v7109
      %7265 = vmatprep.subr.mxu0 0.0
      %7266 = vmatpush2.msra.mxu0 %v7108
      %7267 = vmatprep.subr.mxu0 0.0
      %7268 = vmatpush2.msra.mxu0 %v7107
      %7269 = vmatprep.subr.mxu0 0.0
      %7270 = vmatpush2.msra.mxu0 %v7106
      %7271 = vmatprep.subr.mxu0 0.0
      %7272 = vmatpush2.msra.mxu0 %v7105
      %7273 = vmatprep.mubr.f32.mxu0 %v7041
      %7274 = vmatmul.mubr.f32.gmra.mxu0 %v7025
      %v7275 = vpop.f32.mrf.mxu0
      %v7276 = vadd.f32 0.0, %v7275
      %v7277 = vpop.f32.mrf.mxu0
      %7278 = vmatprep.mubr.f32.mxu0 %v7042
      %7279 = vmatmul.mubr.f32.gmra.mxu0 %v7026
      %v7280 = vpop.f32.mrf.mxu0
      %v7281 = vadd.f32 0.0, %v7280
      %v7282 = vpop.f32.mrf.mxu0
      %7283 = vmatprep.mubr.f32.mxu0 %v7043
      %7284 = vmatmul.mubr.f32.gmra.mxu0 %v7027
      %v7285 = vpop.f32.mrf.mxu0
      %v7286 = vadd.f32 0.0, %v7285
      %v7287 = vpop.f32.mrf.mxu0
      %7288 = vmatprep.mubr.f32.mxu0 %v7044
      %7289 = vmatmul.mubr.f32.gmra.mxu0 %v7028
      %v7290 = vpop.f32.mrf.mxu0
      %v7291 = vadd.f32 0.0, %v7290
      %v7292 = vpop.f32.mrf.mxu0
      %7293 = vmatprep.mubr.f32.mxu0 %v7045
      %7294 = vmatmul.mubr.f32.gmra.mxu0 %v7029
      %v7295 = vpop.f32.mrf.mxu0
      %v7296 = vadd.f32 0.0, %v7295
      %v7297 = vpop.f32.mrf.mxu0
      %7298 = vmatprep.mubr.f32.mxu0 %v7046
      %7299 = vmatmul.mubr.f32.gmra.mxu0 %v7030
      %v7300 = vpop.f32.mrf.mxu0
      %v7301 = vadd.f32 0.0, %v7300
      %v7302 = vpop.f32.mrf.mxu0
      %7303 = vmatprep.mubr.f32.mxu0 %v7047
      %7304 = vmatmul.mubr.f32.gmra.mxu0 %v7031
      %v7305 = vpop.f32.mrf.mxu0
      %v7306 = vadd.f32 0.0, %v7305
      %v7307 = vpop.f32.mrf.mxu0
      %7308 = vmatprep.mubr.f32.mxu0 %v7048
      %7309 = vmatmul.mubr.f32.gmra.mxu0 %v7032
      %v7310 = vpop.f32.mrf.mxu0
      %v7311 = vadd.f32 0.0, %v7310
      %v7312 = vpop.f32.mrf.mxu0
      %7313 = vmatprep.mubr.f32.mxu0 %v7049
      %7314 = vmatmul.mubr.f32.gmra.mxu0 %v7033
      %v7315 = vpop.f32.mrf.mxu0
      %v7316 = vadd.f32 0.0, %v7315
      %v7317 = vpop.f32.mrf.mxu0
      %7318 = vmatprep.mubr.f32.mxu0 %v7050
      %7319 = vmatmul.mubr.f32.gmra.mxu0 %v7034
      %v7320 = vpop.f32.mrf.mxu0
      %v7321 = vadd.f32 0.0, %v7320
      %v7322 = vpop.f32.mrf.mxu0
      %7323 = vmatprep.mubr.f32.mxu0 %v7051
      %7324 = vmatmul.mubr.f32.gmra.mxu0 %v7035
      %v7325 = vpop.f32.mrf.mxu0
      %v7326 = vadd.f32 0.0, %v7325
      %v7327 = vpop.f32.mrf.mxu0
      %7328 = vmatprep.mubr.f32.mxu0 %v7052
      %7329 = vmatmul.mubr.f32.gmra.mxu0 %v7036
      %v7330 = vpop.f32.mrf.mxu0
      %v7331 = vadd.f32 0.0, %v7330
      %v7332 = vpop.f32.mrf.mxu0
      %7333 = vmatprep.mubr.f32.mxu0 %v7053
      %7334 = vmatmul.mubr.f32.gmra.mxu0 %v7037
      %v7335 = vpop.f32.mrf.mxu0
      %v7336 = vadd.f32 0.0, %v7335
      %v7337 = vpop.f32.mrf.mxu0
      %7338 = vmatprep.mubr.f32.mxu0 %v7054
      %7339 = vmatmul.mubr.f32.gmra.mxu0 %v7038
      %v7340 = vpop.f32.mrf.mxu0
      %v7341 = vadd.f32 0.0, %v7340
      %v7342 = vpop.f32.mrf.mxu0
      %7343 = vmatprep.mubr.f32.mxu0 %v7055
      %7344 = vmatmul.mubr.f32.gmra.mxu0 %v7039
      %v7345 = vpop.f32.mrf.mxu0
      %v7346 = vadd.f32 0.0, %v7345
      %v7347 = vpop.f32.mrf.mxu0
      %7348 = vmatprep.mubr.f32.mxu0 %v7056
      %7349 = vmatmul.mubr.f32.gmra.mxu0 %v7040
      %v7350 = vpop.f32.mrf.mxu0
      %v7351 = vadd.f32 0.0, %v7350
      %v7352 = vpop.f32.mrf.mxu0
      %7353 = vdwg.mxu0
      %7354 = vmatprep.subr.mxu0 0.0
      %7355 = vmatpush1.msra.mxu0 %v7136
      %7356 = vmatprep.subr.mxu0 0.0
      %7357 = vmatpush1.msra.mxu0 %v7135
      %7358 = vmatprep.subr.mxu0 0.0
      %7359 = vmatpush1.msra.mxu0 %v7134
      %7360 = vmatprep.subr.mxu0 0.0
      %7361 = vmatpush1.msra.mxu0 %v7133
      %7362 = vmatprep.subr.mxu0 0.0
      %7363 = vmatpush1.msra.mxu0 %v7132
      %7364 = vmatprep.subr.mxu0 0.0
      %7365 = vmatpush1.msra.mxu0 %v7131
      %7366 = vmatprep.subr.mxu0 0.0
      %7367 = vmatpush1.msra.mxu0 %v7130
      %7368 = vmatprep.subr.mxu0 0.0
      %7369 = vmatpush1.msra.mxu0 %v7129
      %7370 = vmatprep.subr.mxu0 0.0
      %7371 = vmatpush1.msra.mxu0 %v7128
      %7372 = vmatprep.subr.mxu0 0.0
      %7373 = vmatpush1.msra.mxu0 %v7127
      %7374 = vmatprep.subr.mxu0 0.0
      %7375 = vmatpush1.msra.mxu0 %v7126
      %7376 = vmatprep.subr.mxu0 0.0
      %7377 = vmatpush1.msra.mxu0 %v7125
      %7378 = vmatprep.subr.mxu0 0.0
      %7379 = vmatpush1.msra.mxu0 %v7124
      %7380 = vmatprep.subr.mxu0 0.0
      %7381 = vmatpush1.msra.mxu0 %v7123
      %7382 = vmatprep.subr.mxu0 0.0
      %7383 = vmatpush1.msra.mxu0 %v7122
      %7384 = vmatprep.subr.mxu0 0.0
      %7385 = vmatpush1.msra.mxu0 %v7121
      %7386 = vmatprep.subr.mxu0 0.0
      %7387 = vmatpush2.msra.mxu0 %v7152
      %7388 = vmatprep.subr.mxu0 0.0
      %7389 = vmatpush2.msra.mxu0 %v7151
      %7390 = vmatprep.subr.mxu0 0.0
      %7391 = vmatpush2.msra.mxu0 %v7150
      %7392 = vmatprep.subr.mxu0 0.0
      %7393 = vmatpush2.msra.mxu0 %v7149
      %7394 = vmatprep.subr.mxu0 0.0
      %7395 = vmatpush2.msra.mxu0 %v7148
      %7396 = vmatprep.subr.mxu0 0.0
      %7397 = vmatpush2.msra.mxu0 %v7147
      %7398 = vmatprep.subr.mxu0 0.0
      %7399 = vmatpush2.msra.mxu0 %v7146
      %7400 = vmatprep.subr.mxu0 0.0
      %7401 = vmatpush2.msra.mxu0 %v7145
      %7402 = vmatprep.subr.mxu0 0.0
      %7403 = vmatpush2.msra.mxu0 %v7144
      %7404 = vmatprep.subr.mxu0 0.0
      %7405 = vmatpush2.msra.mxu0 %v7143
      %7406 = vmatprep.subr.mxu0 0.0
      %7407 = vmatpush2.msra.mxu0 %v7142
      %7408 = vmatprep.subr.mxu0 0.0
      %7409 = vmatpush2.msra.mxu0 %v7141
      %7410 = vmatprep.subr.mxu0 0.0
      %7411 = vmatpush2.msra.mxu0 %v7140
      %7412 = vmatprep.subr.mxu0 0.0
      %7413 = vmatpush2.msra.mxu0 %v7139
      %7414 = vmatprep.subr.mxu0 0.0
      %7415 = vmatpush2.msra.mxu0 %v7138
      %7416 = vmatprep.subr.mxu0 0.0
      %7417 = vmatpush2.msra.mxu0 %v7137
      %7418 = vmatprep.mubr.f32.mxu0 %v7073
      %7419 = vmatmul.mubr.f32.gmra.mxu0 %v7057
      %v7420 = vpop.f32.mrf.mxu0
      %v7421 = vadd.f32 %v7276, %v7420
      %v7422 = vpop.f32.mrf.mxu0
      %7423 = vmatprep.mubr.f32.mxu0 %v7074
      %7424 = vmatmul.mubr.f32.gmra.mxu0 %v7058
      %v7425 = vpop.f32.mrf.mxu0
      %v7426 = vadd.f32 %v7281, %v7425
      %v7427 = vpop.f32.mrf.mxu0
      %7428 = vmatprep.mubr.f32.mxu0 %v7075
      %7429 = vmatmul.mubr.f32.gmra.mxu0 %v7059
      %v7430 = vpop.f32.mrf.mxu0
      %v7431 = vadd.f32 %v7286, %v7430
      %v7432 = vpop.f32.mrf.mxu0
      %7433 = vmatprep.mubr.f32.mxu0 %v7076
      %7434 = vmatmul.mubr.f32.gmra.mxu0 %v7060
      %v7435 = vpop.f32.mrf.mxu0
      %v7436 = vadd.f32 %v7291, %v7435
      %v7437 = vpop.f32.mrf.mxu0
      %7438 = vmatprep.mubr.f32.mxu0 %v7077
      %7439 = vmatmul.mubr.f32.gmra.mxu0 %v7061
      %v7440 = vpop.f32.mrf.mxu0
      %v7441 = vadd.f32 %v7296, %v7440
      %v7442 = vpop.f32.mrf.mxu0
      %7443 = vmatprep.mubr.f32.mxu0 %v7078
      %7444 = vmatmul.mubr.f32.gmra.mxu0 %v7062
      %v7445 = vpop.f32.mrf.mxu0
      %v7446 = vadd.f32 %v7301, %v7445
      %v7447 = vpop.f32.mrf.mxu0
      %7448 = vmatprep.mubr.f32.mxu0 %v7079
      %7449 = vmatmul.mubr.f32.gmra.mxu0 %v7063
      %v7450 = vpop.f32.mrf.mxu0
      %v7451 = vadd.f32 %v7306, %v7450
      %v7452 = vpop.f32.mrf.mxu0
      %7453 = vmatprep.mubr.f32.mxu0 %v7080
      %7454 = vmatmul.mubr.f32.gmra.mxu0 %v7064
      %v7455 = vpop.f32.mrf.mxu0
      %v7456 = vadd.f32 %v7311, %v7455
      %v7457 = vpop.f32.mrf.mxu0
      %7458 = vmatprep.mubr.f32.mxu0 %v7081
      %7459 = vmatmul.mubr.f32.gmra.mxu0 %v7065
      %v7460 = vpop.f32.mrf.mxu0
      %v7461 = vadd.f32 %v7316, %v7460
      %v7462 = vpop.f32.mrf.mxu0
      %7463 = vmatprep.mubr.f32.mxu0 %v7082
      %7464 = vmatmul.mubr.f32.gmra.mxu0 %v7066
      %v7465 = vpop.f32.mrf.mxu0
      %v7466 = vadd.f32 %v7321, %v7465
      %v7467 = vpop.f32.mrf.mxu0
      %7468 = vmatprep.mubr.f32.mxu0 %v7083
      %7469 = vmatmul.mubr.f32.gmra.mxu0 %v7067
      %v7470 = vpop.f32.mrf.mxu0
      %v7471 = vadd.f32 %v7326, %v7470
      %v7472 = vpop.f32.mrf.mxu0
      %7473 = vmatprep.mubr.f32.mxu0 %v7084
      %7474 = vmatmul.mubr.f32.gmra.mxu0 %v7068
      %v7475 = vpop.f32.mrf.mxu0
      %v7476 = vadd.f32 %v7331, %v7475
      %v7477 = vpop.f32.mrf.mxu0
      %7478 = vmatprep.mubr.f32.mxu0 %v7085
      %7479 = vmatmul.mubr.f32.gmra.mxu0 %v7069
      %v7480 = vpop.f32.mrf.mxu0
      %v7481 = vadd.f32 %v7336, %v7480
      %v7482 = vpop.f32.mrf.mxu0
      %7483 = vmatprep.mubr.f32.mxu0 %v7086
      %7484 = vmatmul.mubr.f32.gmra.mxu0 %v7070
      %v7485 = vpop.f32.mrf.mxu0
      %v7486 = vadd.f32 %v7341, %v7485
      %v7487 = vpop.f32.mrf.mxu0
      %7488 = vmatprep.mubr.f32.mxu0 %v7087
      %7489 = vmatmul.mubr.f32.gmra.mxu0 %v7071
      %v7490 = vpop.f32.mrf.mxu0
      %v7491 = vadd.f32 %v7346, %v7490
      %v7492 = vpop.f32.mrf.mxu0
      %7493 = vmatprep.mubr.f32.mxu0 %v7088
      %7494 = vmatmul.mubr.f32.gmra.mxu0 %v7072
      %v7495 = vpop.f32.mrf.mxu0
      %v7496 = vadd.f32 %v7351, %v7495
      %v7497 = vpop.f32.mrf.mxu0
      %7498 = vdwg.mxu0
      %7499 = vmatprep.subr.mxu0 0.0
      %7500 = vmatpush1.msra.mxu0 0.0
      %7501 = vmatprep.subr.mxu0 0.0
      %7502 = vmatpush1.msra.mxu0 0.0
      %7503 = vmatprep.subr.mxu0 0.0
      %7504 = vmatpush1.msra.mxu0 0.0
      %7505 = vmatprep.subr.mxu0 0.0
      %7506 = vmatpush1.msra.mxu0 0.0
      %7507 = vmatprep.subr.mxu0 0.0
      %7508 = vmatpush1.msra.mxu0 0.0
      %7509 = vmatprep.subr.mxu0 0.0
      %7510 = vmatpush1.msra.mxu0 0.0
      %7511 = vmatprep.subr.mxu0 0.0
      %7512 = vmatpush1.msra.mxu0 0.0
      %7513 = vmatprep.subr.mxu0 0.0
      %7514 = vmatpush1.msra.mxu0 0.0
      %7515 = vmatprep.subr.mxu0 0.0
      %7516 = vmatpush1.msra.mxu0 %v7160
      %7517 = vmatprep.subr.mxu0 0.0
      %7518 = vmatpush1.msra.mxu0 %v7159
      %7519 = vmatprep.subr.mxu0 0.0
      %7520 = vmatpush1.msra.mxu0 %v7158
      %7521 = vmatprep.subr.mxu0 0.0
      %7522 = vmatpush1.msra.mxu0 %v7157
      %7523 = vmatprep.subr.mxu0 0.0
      %7524 = vmatpush1.msra.mxu0 %v7156
      %7525 = vmatprep.subr.mxu0 0.0
      %7526 = vmatpush1.msra.mxu0 %v7155
      %7527 = vmatprep.subr.mxu0 0.0
      %7528 = vmatpush1.msra.mxu0 %v7154
      %7529 = vmatprep.subr.mxu0 0.0
      %7530 = vmatpush1.msra.mxu0 %v7153
      %7531 = vmatprep.subr.mxu0 0.0
      %7532 = vmatpush2.msra.mxu0 0.0
      %7533 = vmatprep.subr.mxu0 0.0
      %7534 = vmatpush2.msra.mxu0 0.0
      %7535 = vmatprep.subr.mxu0 0.0
      %7536 = vmatpush2.msra.mxu0 0.0
      %7537 = vmatprep.subr.mxu0 0.0
      %7538 = vmatpush2.msra.mxu0 0.0
      %7539 = vmatprep.subr.mxu0 0.0
      %7540 = vmatpush2.msra.mxu0 0.0
      %7541 = vmatprep.subr.mxu0 0.0
      %7542 = vmatpush2.msra.mxu0 0.0
      %7543 = vmatprep.subr.mxu0 0.0
      %7544 = vmatpush2.msra.mxu0 0.0
      %7545 = vmatprep.subr.mxu0 0.0
      %7546 = vmatpush2.msra.mxu0 0.0
      %7547 = vmatprep.subr.mxu0 0.0
      %7548 = vmatpush2.msra.mxu0 0.0
      %7549 = vmatprep.subr.mxu0 0.0
      %7550 = vmatpush2.msra.mxu0 0.0
      %7551 = vmatprep.subr.mxu0 0.0
      %7552 = vmatpush2.msra.mxu0 0.0
      %7553 = vmatprep.subr.mxu0 0.0
      %7554 = vmatpush2.msra.mxu0 0.0
      %7555 = vmatprep.subr.mxu0 0.0
      %7556 = vmatpush2.msra.mxu0 0.0
      %7557 = vmatprep.subr.mxu0 0.0
      %7558 = vmatpush2.msra.mxu0 0.0
      %7559 = vmatprep.subr.mxu0 0.0
      %7560 = vmatpush2.msra.mxu0 0.0
      %7561 = vmatprep.subr.mxu0 0.0
      %7562 = vmatpush2.msra.mxu0 0.0
      %7563 = vmatprep.mubr.f32.mxu0 0.0
      %7564 = vmatmul.mubr.f32.gmra.mxu0 %v7162
      %v7565 = vpop.f32.mrf.mxu0
      %v7566 = vadd.f32 %v7421, %v7565
      %v7567 = vpop.f32.mrf.mxu0
      %7568 = vmatprep.mubr.f32.mxu0 0.0
      %7569 = vmatmul.mubr.f32.gmra.mxu0 %v7165
      %v7570 = vpop.f32.mrf.mxu0
      %v7571 = vadd.f32 %v7426, %v7570
      %v7572 = vpop.f32.mrf.mxu0
      %7573 = vmatprep.mubr.f32.mxu0 0.0
      %7574 = vmatmul.mubr.f32.gmra.mxu0 %v7168
      %v7575 = vpop.f32.mrf.mxu0
      %v7576 = vadd.f32 %v7431, %v7575
      %v7577 = vpop.f32.mrf.mxu0
      %7578 = vmatprep.mubr.f32.mxu0 0.0
      %7579 = vmatmul.mubr.f32.gmra.mxu0 %v7171
      %v7580 = vpop.f32.mrf.mxu0
      %v7581 = vadd.f32 %v7436, %v7580
      %v7582 = vpop.f32.mrf.mxu0
      %7583 = vmatprep.mubr.f32.mxu0 0.0
      %7584 = vmatmul.mubr.f32.gmra.mxu0 %v7174
      %v7585 = vpop.f32.mrf.mxu0
      %v7586 = vadd.f32 %v7441, %v7585
      %v7587 = vpop.f32.mrf.mxu0
      %7588 = vmatprep.mubr.f32.mxu0 0.0
      %7589 = vmatmul.mubr.f32.gmra.mxu0 %v7177
      %v7590 = vpop.f32.mrf.mxu0
      %v7591 = vadd.f32 %v7446, %v7590
      %v7592 = vpop.f32.mrf.mxu0
      %7593 = vmatprep.mubr.f32.mxu0 0.0
      %7594 = vmatmul.mubr.f32.gmra.mxu0 %v7180
      %v7595 = vpop.f32.mrf.mxu0
      %v7596 = vadd.f32 %v7451, %v7595
      %v7597 = vpop.f32.mrf.mxu0
      %7598 = vmatprep.mubr.f32.mxu0 0.0
      %7599 = vmatmul.mubr.f32.gmra.mxu0 %v7183
      %v7600 = vpop.f32.mrf.mxu0
      %v7601 = vadd.f32 %v7456, %v7600
      %v7602 = vpop.f32.mrf.mxu0
      %7603 = vmatprep.mubr.f32.mxu0 0.0
      %7604 = vmatmul.mubr.f32.gmra.mxu0 %v7186
      %v7605 = vpop.f32.mrf.mxu0
      %v7606 = vadd.f32 %v7461, %v7605
      %v7607 = vpop.f32.mrf.mxu0
      %7608 = vmatprep.mubr.f32.mxu0 0.0
      %7609 = vmatmul.mubr.f32.gmra.mxu0 %v7189
      %v7610 = vpop.f32.mrf.mxu0
      %v7611 = vadd.f32 %v7466, %v7610
      %v7612 = vpop.f32.mrf.mxu0
      %7613 = vmatprep.mubr.f32.mxu0 0.0
      %7614 = vmatmul.mubr.f32.gmra.mxu0 %v7192
      %v7615 = vpop.f32.mrf.mxu0
      %v7616 = vadd.f32 %v7471, %v7615
      %v7617 = vpop.f32.mrf.mxu0
      %7618 = vmatprep.mubr.f32.mxu0 0.0
      %7619 = vmatmul.mubr.f32.gmra.mxu0 %v7195
      %v7620 = vpop.f32.mrf.mxu0
      %v7621 = vadd.f32 %v7476, %v7620
      %v7622 = vpop.f32.mrf.mxu0
      %7623 = vmatprep.mubr.f32.mxu0 0.0
      %7624 = vmatmul.mubr.f32.gmra.mxu0 %v7198
      %v7625 = vpop.f32.mrf.mxu0
      %v7626 = vadd.f32 %v7481, %v7625
      %v7627 = vpop.f32.mrf.mxu0
      %7628 = vmatprep.mubr.f32.mxu0 0.0
      %7629 = vmatmul.mubr.f32.gmra.mxu0 %v7201
      %v7630 = vpop.f32.mrf.mxu0
      %v7631 = vadd.f32 %v7486, %v7630
      %v7632 = vpop.f32.mrf.mxu0
      %7633 = vmatprep.mubr.f32.mxu0 0.0
      %7634 = vmatmul.mubr.f32.gmra.mxu0 %v7204
      %v7635 = vpop.f32.mrf.mxu0
      %v7636 = vadd.f32 %v7491, %v7635
      %v7637 = vpop.f32.mrf.mxu0
      %7638 = vmatprep.mubr.f32.mxu0 0.0
      %7639 = vmatmul.mubr.f32.gmra.mxu0 %v7207
      %v7640 = vpop.f32.mrf.mxu0
      %v7641 = vadd.f32 %v7496, %v7640
      %v7642 = vpop.f32.mrf.mxu0
      %7643 = vdwg.mxu0
      %v7644 = vld [vmem:[%s8] sm:$0xff]
      %v7645 = vld [vmem:[%s8 + $0x8] sm:$0xff]
      %v7646 = vld [vmem:[%s8 + $0x10] sm:$0xff]
      %v7647 = vld [vmem:[%s8 + $0x18] sm:$0xff]
      %v7648 = vld [vmem:[%s8 + $0x20] sm:$0xff]
      %v7649 = vld [vmem:[%s8 + $0x28] sm:$0xff]
      %v7650 = vld [vmem:[%s8 + $0x30] sm:$0xff]
      %v7651 = vld [vmem:[%s8 + $0x38] sm:$0xff]
      %v7652 = vld [vmem:[%s8 + $0x40] sm:$0xff]
      %v7653 = vld [vmem:[%s8 + $0x48] sm:$0xff]
      %v7654 = vld [vmem:[%s8 + $0x50] sm:$0xff]
      %v7655 = vld [vmem:[%s8 + $0x58] sm:$0xff]
      %v7656 = vld [vmem:[%s8 + $0x60] sm:$0xff]
      %v7657 = vld [vmem:[%s8 + $0x68] sm:$0xff]
      %v7658 = vld [vmem:[%s8 + $0x70] sm:$0xff]
      %v7659 = vld [vmem:[%s8 + $0x78] sm:$0xff]
      %v7660 = vadd.f32 %v7566, %v7571
      %v7661 = vadd.f32 %v7660, %v7576
      %v7662 = vadd.f32 %v7661, %v7581
      %v7663 = vadd.f32 %v7662, %v7586
      %v7664 = vadd.f32 %v7663, %v7591
      %v7665 = vadd.f32 %v7664, %v7596
      %v7666 = vadd.f32 %v7665, %v7601
      %v7667 = vadd.f32 %v7666, %v7606
      %v7668 = vadd.f32 %v7667, %v7611
      %v7669 = vadd.f32 %v7668, %v7616
      %v7670 = vadd.f32 %v7669, %v7621
      %v7671 = vadd.f32 %v7670, %v7626
      %v7672 = vadd.f32 %v7671, %v7631
      %v7673 = vadd.f32 %v7672, %v7636
      %v7674 = vadd.f32 %v7673, %v7641
      %v7675 = vrot.slane %v7674, 4
      %v7676 = vadd.f32 %v7674, %v7675
      %v7677 = vrot.slane %v7676, 2
      %v7678 = vadd.f32 %v7676, %v7677
      %v7679 = vrot.slane %v7678, 1
      %v7680 = vadd.f32 %v7678, %v7679
      %7681 = vmatprep.subr.mxu0 0.0
      %7682 = vmatpush1.msra.mxu0 %v7659
      %7683 = vmatprep.subr.mxu0 0.0
      %7684 = vmatpush1.msra.mxu0 %v7658
      %7685 = vmatprep.subr.mxu0 0.0
      %7686 = vmatpush1.msra.mxu0 %v7657
      %7687 = vmatprep.subr.mxu0 0.0
      %7688 = vmatpush1.msra.mxu0 %v7656
      %7689 = vmatprep.subr.mxu0 0.0
      %7690 = vmatpush1.msra.mxu0 %v7655
      %7691 = vmatprep.subr.mxu0 0.0
      %7692 = vmatpush1.msra.mxu0 %v7654
      %7693 = vmatprep.subr.mxu0 0.0
      %7694 = vmatpush1.msra.mxu0 %v7653
      %7695 = vmatprep.subr.mxu0 0.0
      %7696 = vmatpush1.msra.mxu0 %v7652
      %7697 = vmatprep.subr.mxu0 0.0
      %7698 = vmatpush1.msra.mxu0 %v7651
      %7699 = vmatprep.subr.mxu0 0.0
      %7700 = vmatpush1.msra.mxu0 %v7650
      %7701 = vmatprep.subr.mxu0 0.0
      %7702 = vmatpush1.msra.mxu0 %v7649
      %7703 = vmatprep.subr.mxu0 0.0
      %7704 = vmatpush1.msra.mxu0 %v7648
      %7705 = vmatprep.subr.mxu0 0.0
      %7706 = vmatpush1.msra.mxu0 %v7647
      %7707 = vmatprep.subr.mxu0 0.0
      %7708 = vmatpush1.msra.mxu0 %v7646
      %7709 = vmatprep.subr.mxu0 0.0
      %7710 = vmatpush1.msra.mxu0 %v7645
      %7711 = vmatprep.subr.mxu0 0.0
      %7712 = vmatpush1.msra.mxu0 %v7644
      %7713 = vmatprep.subr.mxu0 0.0
      %7714 = vmatpush2.msra.mxu0 0.0
      %7715 = vmatprep.subr.mxu0 0.0
      %7716 = vmatpush2.msra.mxu0 0.0
      %7717 = vmatprep.subr.mxu0 0.0
      %7718 = vmatpush2.msra.mxu0 0.0
      %7719 = vmatprep.subr.mxu0 0.0
      %7720 = vmatpush2.msra.mxu0 0.0
      %7721 = vmatprep.subr.mxu0 0.0
      %7722 = vmatpush2.msra.mxu0 0.0
      %7723 = vmatprep.subr.mxu0 0.0
      %7724 = vmatpush2.msra.mxu0 0.0
      %7725 = vmatprep.subr.mxu0 0.0
      %7726 = vmatpush2.msra.mxu0 0.0
      %7727 = vmatprep.subr.mxu0 0.0
      %7728 = vmatpush2.msra.mxu0 0.0
      %7729 = vmatprep.subr.mxu0 0.0
      %7730 = vmatpush2.msra.mxu0 0.0
      %7731 = vmatprep.subr.mxu0 0.0
      %7732 = vmatpush2.msra.mxu0 0.0
      %7733 = vmatprep.subr.mxu0 0.0
      %7734 = vmatpush2.msra.mxu0 0.0
      %7735 = vmatprep.subr.mxu0 0.0
      %7736 = vmatpush2.msra.mxu0 0.0
      %7737 = vmatprep.subr.mxu0 0.0
      %7738 = vmatpush2.msra.mxu0 0.0
      %7739 = vmatprep.subr.mxu0 0.0
      %7740 = vmatpush2.msra.mxu0 0.0
      %7741 = vmatprep.subr.mxu0 0.0
      %7742 = vmatpush2.msra.mxu0 0.0
      %7743 = vmatprep.subr.mxu0 0.0
      %7744 = vmatpush2.msra.mxu0 0.0
      %7745 = vmatprep.mubr.f32.mxu0 0.0
      %7746 = vmatmul.mubr.f32.gmra.mxu0 %v7680
      %v7747 = vpop.f32.mrf.mxu0
      %v7748 = vadd.f32 0.0, %v7747
      %v7749 = vpop.f32.mrf.mxu0
      %7750 = vdwg.mxu0
      %v7751 = vmul.f32 %v7748, 0.0009765625
      %v7752 = vmul.f32 %v7566, %v7566
      %v7753 = vmul.f32 %v7571, %v7571
      %v7754 = vmul.f32 %v7576, %v7576
      %v7755 = vmul.f32 %v7581, %v7581
      %v7756 = vmul.f32 %v7586, %v7586
      %v7757 = vmul.f32 %v7591, %v7591
      %v7758 = vmul.f32 %v7596, %v7596
      %v7759 = vmul.f32 %v7601, %v7601
      %v7760 = vmul.f32 %v7606, %v7606
      %v7761 = vmul.f32 %v7611, %v7611
      %v7762 = vmul.f32 %v7616, %v7616
      %v7763 = vmul.f32 %v7621, %v7621
      %v7764 = vmul.f32 %v7626, %v7626
      %v7765 = vmul.f32 %v7631, %v7631
      %v7766 = vmul.f32 %v7636, %v7636
      %v7767 = vmul.f32 %v7641, %v7641
      %v7768 = vadd.f32 %v7752, %v7753
      %v7769 = vadd.f32 %v7768, %v7754
      %v7770 = vadd.f32 %v7769, %v7755
      %v7771 = vadd.f32 %v7770, %v7756
      %v7772 = vadd.f32 %v7771, %v7757
      %v7773 = vadd.f32 %v7772, %v7758
      %v7774 = vadd.f32 %v7773, %v7759
      %v7775 = vadd.f32 %v7774, %v7760
      %v7776 = vadd.f32 %v7775, %v7761
      %v7777 = vadd.f32 %v7776, %v7762
      %v7778 = vadd.f32 %v7777, %v7763
      %v7779 = vadd.f32 %v7778, %v7764
      %v7780 = vadd.f32 %v7779, %v7765
      %v7781 = vadd.f32 %v7780, %v7766
      %v7782 = vadd.f32 %v7781, %v7767
      %v7783 = vrot.slane %v7782, 4
      %v7784 = vadd.f32 %v7782, %v7783
      %v7785 = vrot.slane %v7784, 2
      %v7786 = vadd.f32 %v7784, %v7785
      %v7787 = vrot.slane %v7786, 1
      %v7788 = vadd.f32 %v7786, %v7787
      %7789 = vmatprep.subr.mxu0 0.0
      %7790 = vmatpush1.msra.mxu0 %v7659
      %7791 = vmatprep.subr.mxu0 0.0
      %7792 = vmatpush1.msra.mxu0 %v7658
      %7793 = vmatprep.subr.mxu0 0.0
      %7794 = vmatpush1.msra.mxu0 %v7657
      %7795 = vmatprep.subr.mxu0 0.0
      %7796 = vmatpush1.msra.mxu0 %v7656
      %7797 = vmatprep.subr.mxu0 0.0
      %7798 = vmatpush1.msra.mxu0 %v7655
      %7799 = vmatprep.subr.mxu0 0.0
      %7800 = vmatpush1.msra.mxu0 %v7654
      %7801 = vmatprep.subr.mxu0 0.0
      %7802 = vmatpush1.msra.mxu0 %v7653
      %7803 = vmatprep.subr.mxu0 0.0
      %7804 = vmatpush1.msra.mxu0 %v7652
      %7805 = vmatprep.subr.mxu0 0.0
      %7806 = vmatpush1.msra.mxu0 %v7651
      %7807 = vmatprep.subr.mxu0 0.0
      %7808 = vmatpush1.msra.mxu0 %v7650
      %7809 = vmatprep.subr.mxu0 0.0
      %7810 = vmatpush1.msra.mxu0 %v7649
      %7811 = vmatprep.subr.mxu0 0.0
      %7812 = vmatpush1.msra.mxu0 %v7648
      %7813 = vmatprep.subr.mxu0 0.0
      %7814 = vmatpush1.msra.mxu0 %v7647
      %7815 = vmatprep.subr.mxu0 0.0
      %7816 = vmatpush1.msra.mxu0 %v7646
      %7817 = vmatprep.subr.mxu0 0.0
      %7818 = vmatpush1.msra.mxu0 %v7645
      %7819 = vmatprep.subr.mxu0 0.0
      %7820 = vmatpush1.msra.mxu0 %v7644
      %7821 = vmatprep.subr.mxu0 0.0
      %7822 = vmatpush2.msra.mxu0 0.0
      %7823 = vmatprep.subr.mxu0 0.0
      %7824 = vmatpush2.msra.mxu0 0.0
      %7825 = vmatprep.subr.mxu0 0.0
      %7826 = vmatpush2.msra.mxu0 0.0
      %7827 = vmatprep.subr.mxu0 0.0
      %7828 = vmatpush2.msra.mxu0 0.0
      %7829 = vmatprep.subr.mxu0 0.0
      %7830 = vmatpush2.msra.mxu0 0.0
      %7831 = vmatprep.subr.mxu0 0.0
      %7832 = vmatpush2.msra.mxu0 0.0
      %7833 = vmatprep.subr.mxu0 0.0
      %7834 = vmatpush2.msra.mxu0 0.0
      %7835 = vmatprep.subr.mxu0 0.0
      %7836 = vmatpush2.msra.mxu0 0.0
      %7837 = vmatprep.subr.mxu0 0.0
      %7838 = vmatpush2.msra.mxu0 0.0
      %7839 = vmatprep.subr.mxu0 0.0
      %7840 = vmatpush2.msra.mxu0 0.0
      %7841 = vmatprep.subr.mxu0 0.0
      %7842 = vmatpush2.msra.mxu0 0.0
      %7843 = vmatprep.subr.mxu0 0.0
      %7844 = vmatpush2.msra.mxu0 0.0
      %7845 = vmatprep.subr.mxu0 0.0
      %7846 = vmatpush2.msra.mxu0 0.0
      %7847 = vmatprep.subr.mxu0 0.0
      %7848 = vmatpush2.msra.mxu0 0.0
      %7849 = vmatprep.subr.mxu0 0.0
      %7850 = vmatpush2.msra.mxu0 0.0
      %7851 = vmatprep.subr.mxu0 0.0
      %7852 = vmatpush2.msra.mxu0 0.0
      %7853 = vmatprep.mubr.f32.mxu0 0.0
      %7854 = vmatmul.mubr.f32.gmra.mxu0 %v7788
      %v7855 = vpop.f32.mrf.mxu0
      %v7856 = vadd.f32 0.0, %v7855
      %v7857 = vpop.f32.mrf.mxu0
      %7858 = vdwg.mxu0
      %v7859 = vmul.f32 %v7856, 0.0009765625
      %v7860 = vmul.f32 %v7751, %v7751
      %v7861 = vsub.f32 %v7859, %v7860
      %v7862 = vld [vmem:[%s7] sm:$0x1]
      %v7863 = vadd.f32 %v7861, 1e-05
      %v7864 = vrsqrt.pop %v7863
      %v7865 = vmul.f32 %v7862, %v7864
      %v7866 = vld [vmem:[%s7 + $0x1] sm:$0x1]
      %v7867 = vmul.f32 %v7751, %v7865
      %v7868 = vsub.f32 %v7866, %v7867
      %v7869 = vlaneseq
      %v7870 = vshrl.u32 %v7869, 7
      %v7871 = vsub.s32 0, %v7870
      %v7872 = vrot.slane %v7865, %v7871
      %v7873 = vmul.f32 %v7566, %v7872
      %v7874 = vmul.f32 %v7571, %v7872
      %v7875 = vmul.f32 %v7576, %v7872
      %v7876 = vmul.f32 %v7581, %v7872
      %v7877 = vmul.f32 %v7586, %v7872
      %v7878 = vmul.f32 %v7591, %v7872
      %v7879 = vmul.f32 %v7596, %v7872
      %v7880 = vmul.f32 %v7601, %v7872
      %v7881 = vmul.f32 %v7606, %v7872
      %v7882 = vmul.f32 %v7611, %v7872
      %v7883 = vmul.f32 %v7616, %v7872
      %v7884 = vmul.f32 %v7621, %v7872
      %v7885 = vmul.f32 %v7626, %v7872
      %v7886 = vmul.f32 %v7631, %v7872
      %v7887 = vmul.f32 %v7636, %v7872
      %v7888 = vmul.f32 %v7641, %v7872
      %v7889 = vlaneseq
      %v7890 = vshrl.u32 %v7889, 7
      %v7891 = vsub.s32 0, %v7890
      %v7892 = vrot.slane %v7868, %v7891
      %v7893 = vadd.f32 %v7873, %v7892
      %v7894 = vadd.f32 %v7874, %v7892
      %v7895 = vadd.f32 %v7875, %v7892
      %v7896 = vadd.f32 %v7876, %v7892
      %v7897 = vadd.f32 %v7877, %v7892
      %v7898 = vadd.f32 %v7878, %v7892
      %v7899 = vadd.f32 %v7879, %v7892
      %v7900 = vadd.f32 %v7880, %v7892
      %v7901 = vadd.f32 %v7881, %v7892
      %v7902 = vadd.f32 %v7882, %v7892
      %v7903 = vadd.f32 %v7883, %v7892
      %v7904 = vadd.f32 %v7884, %v7892
      %v7905 = vadd.f32 %v7885, %v7892
      %v7906 = vadd.f32 %v7886, %v7892
      %v7907 = vadd.f32 %v7887, %v7892
      %v7908 = vadd.f32 %v7888, %v7892
      %vm7909 = vcmp.gt.f32.partialorder %v7893, 0.0
      %vm7910 = vcmp.gt.f32.partialorder %v7894, 0.0
      %vm7911 = vcmp.gt.f32.partialorder %v7895, 0.0
      %vm7912 = vcmp.gt.f32.partialorder %v7896, 0.0
      %vm7913 = vcmp.gt.f32.partialorder %v7897, 0.0
      %vm7914 = vcmp.gt.f32.partialorder %v7898, 0.0
      %vm7915 = vcmp.gt.f32.partialorder %v7899, 0.0
      %vm7916 = vcmp.gt.f32.partialorder %v7900, 0.0
      %vm7917 = vcmp.gt.f32.partialorder %v7901, 0.0
      %vm7918 = vcmp.gt.f32.partialorder %v7902, 0.0
      %vm7919 = vcmp.gt.f32.partialorder %v7903, 0.0
      %vm7920 = vcmp.gt.f32.partialorder %v7904, 0.0
      %vm7921 = vcmp.gt.f32.partialorder %v7905, 0.0
      %vm7922 = vcmp.gt.f32.partialorder %v7906, 0.0
      %vm7923 = vcmp.gt.f32.partialorder %v7907, 0.0
      %vm7924 = vcmp.gt.f32.partialorder %v7908, 0.0
      %v7925 = vmul.f32 %v7893, 0.2
      %v7926 = vmul.f32 %v7894, 0.2
      %v7927 = vmul.f32 %v7895, 0.2
      %v7928 = vmul.f32 %v7896, 0.2
      %v7929 = vmul.f32 %v7897, 0.2
      %v7930 = vmul.f32 %v7898, 0.2
      %v7931 = vmul.f32 %v7899, 0.2
      %v7932 = vmul.f32 %v7900, 0.2
      %v7933 = vmul.f32 %v7901, 0.2
      %v7934 = vmul.f32 %v7902, 0.2
      %v7935 = vmul.f32 %v7903, 0.2
      %v7936 = vmul.f32 %v7904, 0.2
      %v7937 = vmul.f32 %v7905, 0.2
      %v7938 = vmul.f32 %v7906, 0.2
      %v7939 = vmul.f32 %v7907, 0.2
      %v7940 = vmul.f32 %v7908, 0.2
      %v7941 = vsel %vm7909, %v7893, %v7925
      %v7942 = vsel %vm7910, %v7894, %v7926
      %v7943 = vsel %vm7911, %v7895, %v7927
      %v7944 = vsel %vm7912, %v7896, %v7928
      %v7945 = vsel %vm7913, %v7897, %v7929
      %v7946 = vsel %vm7914, %v7898, %v7930
      %v7947 = vsel %vm7915, %v7899, %v7931
      %v7948 = vsel %vm7916, %v7900, %v7932
      %v7949 = vsel %vm7917, %v7901, %v7933
      %v7950 = vsel %vm7918, %v7902, %v7934
      %v7951 = vsel %vm7919, %v7903, %v7935
      %v7952 = vsel %vm7920, %v7904, %v7936
      %v7953 = vsel %vm7921, %v7905, %v7937
      %v7954 = vsel %vm7922, %v7906, %v7938
      %v7955 = vsel %vm7923, %v7907, %v7939
      %v7956 = vsel %vm7924, %v7908, %v7940
      %v7957 = vld [vmem:[%s9] sm:$0xff]
      %v7958 = vld [vmem:[%s9 + $0x8] sm:$0xff]
      %v7959 = vld [vmem:[%s9 + $0x10] sm:$0xff]
      %v7960 = vld [vmem:[%s9 + $0x18] sm:$0xff]
      %v7961 = vld [vmem:[%s9 + $0x20] sm:$0xff]
      %v7962 = vld [vmem:[%s9 + $0x28] sm:$0xff]
      %v7963 = vld [vmem:[%s9 + $0x30] sm:$0xff]
      %v7964 = vld [vmem:[%s9 + $0x38] sm:$0xff]
      %v7965 = vld [vmem:[%s9 + $0x40] sm:$0xff]
      %v7966 = vld [vmem:[%s9 + $0x48] sm:$0xff]
      %v7967 = vld [vmem:[%s9 + $0x50] sm:$0xff]
      %v7968 = vld [vmem:[%s9 + $0x58] sm:$0xff]
      %v7969 = vld [vmem:[%s9 + $0x60] sm:$0xff]
      %v7970 = vld [vmem:[%s9 + $0x68] sm:$0xff]
      %v7971 = vld [vmem:[%s9 + $0x70] sm:$0xff]
      %v7972 = vld [vmem:[%s9 + $0x78] sm:$0xff]
      %7973 = vmatprep.subr.mxu0 0.0
      %7974 = vmatpush1.msra.mxu0 %v7972
      %7975 = vmatprep.subr.mxu0 0.0
      %7976 = vmatpush1.msra.mxu0 %v7971
      %7977 = vmatprep.subr.mxu0 0.0
      %7978 = vmatpush1.msra.mxu0 %v7970
      %7979 = vmatprep.subr.mxu0 0.0
      %7980 = vmatpush1.msra.mxu0 %v7969
      %7981 = vmatprep.subr.mxu0 0.0
      %7982 = vmatpush1.msra.mxu0 %v7968
      %7983 = vmatprep.subr.mxu0 0.0
      %7984 = vmatpush1.msra.mxu0 %v7967
      %7985 = vmatprep.subr.mxu0 0.0
      %7986 = vmatpush1.msra.mxu0 %v7966
      %7987 = vmatprep.subr.mxu0 0.0
      %7988 = vmatpush1.msra.mxu0 %v7965
      %7989 = vmatprep.subr.mxu0 0.0
      %7990 = vmatpush1.msra.mxu0 %v7964
      %7991 = vmatprep.subr.mxu0 0.0
      %7992 = vmatpush1.msra.mxu0 %v7963
      %7993 = vmatprep.subr.mxu0 0.0
      %7994 = vmatpush1.msra.mxu0 %v7962
      %7995 = vmatprep.subr.mxu0 0.0
      %7996 = vmatpush1.msra.mxu0 %v7961
      %7997 = vmatprep.subr.mxu0 0.0
      %7998 = vmatpush1.msra.mxu0 %v7960
      %7999 = vmatprep.subr.mxu0 0.0
      %8000 = vmatpush1.msra.mxu0 %v7959
      %8001 = vmatprep.subr.mxu0 0.0
      %8002 = vmatpush1.msra.mxu0 %v7958
      %8003 = vmatprep.subr.mxu0 0.0
      %8004 = vmatpush1.msra.mxu0 %v7957
      %8005 = vmatprep.subr.mxu0 0.0
      %8006 = vmatpush2.msra.mxu0 0.0
      %8007 = vmatprep.subr.mxu0 0.0
      %8008 = vmatpush2.msra.mxu0 0.0
      %8009 = vmatprep.subr.mxu0 0.0
      %8010 = vmatpush2.msra.mxu0 0.0
      %8011 = vmatprep.subr.mxu0 0.0
      %8012 = vmatpush2.msra.mxu0 0.0
      %8013 = vmatprep.subr.mxu0 0.0
      %8014 = vmatpush2.msra.mxu0 0.0
      %8015 = vmatprep.subr.mxu0 0.0
      %8016 = vmatpush2.msra.mxu0 0.0
      %8017 = vmatprep.subr.mxu0 0.0
      %8018 = vmatpush2.msra.mxu0 0.0
      %8019 = vmatprep.subr.mxu0 0.0
      %8020 = vmatpush2.msra.mxu0 0.0
      %8021 = vmatprep.subr.mxu0 0.0
      %8022 = vmatpush2.msra.mxu0 0.0
      %8023 = vmatprep.subr.mxu0 0.0
      %8024 = vmatpush2.msra.mxu0 0.0
      %8025 = vmatprep.subr.mxu0 0.0
      %8026 = vmatpush2.msra.mxu0 0.0
      %8027 = vmatprep.subr.mxu0 0.0
      %8028 = vmatpush2.msra.mxu0 0.0
      %8029 = vmatprep.subr.mxu0 0.0
      %8030 = vmatpush2.msra.mxu0 0.0
      %8031 = vmatprep.subr.mxu0 0.0
      %8032 = vmatpush2.msra.mxu0 0.0
      %8033 = vmatprep.subr.mxu0 0.0
      %8034 = vmatpush2.msra.mxu0 0.0
      %8035 = vmatprep.subr.mxu0 0.0
      %8036 = vmatpush2.msra.mxu0 0.0
      %8037 = vmatprep.mubr.f32.mxu0 0.0
      %8038 = vmatmul.mubr.f32.gmra.mxu0 %v7941
      %v8039 = vpop.f32.mrf.mxu0
      %v8040 = vadd.f32 0.0, %v8039
      %v8041 = vpop.f32.mrf.mxu0
      %8042 = vmatprep.mubr.f32.mxu0 0.0
      %8043 = vmatmul.mubr.f32.gmra.mxu0 %v7942
      %v8044 = vpop.f32.mrf.mxu0
      %v8045 = vadd.f32 0.0, %v8044
      %v8046 = vpop.f32.mrf.mxu0
      %8047 = vmatprep.mubr.f32.mxu0 0.0
      %8048 = vmatmul.mubr.f32.gmra.mxu0 %v7943
      %v8049 = vpop.f32.mrf.mxu0
      %v8050 = vadd.f32 0.0, %v8049
      %v8051 = vpop.f32.mrf.mxu0
      %8052 = vmatprep.mubr.f32.mxu0 0.0
      %8053 = vmatmul.mubr.f32.gmra.mxu0 %v7944
      %v8054 = vpop.f32.mrf.mxu0
      %v8055 = vadd.f32 0.0, %v8054
      %v8056 = vpop.f32.mrf.mxu0
      %8057 = vmatprep.mubr.f32.mxu0 0.0
      %8058 = vmatmul.mubr.f32.gmra.mxu0 %v7945
      %v8059 = vpop.f32.mrf.mxu0
      %v8060 = vadd.f32 0.0, %v8059
      %v8061 = vpop.f32.mrf.mxu0
      %8062 = vmatprep.mubr.f32.mxu0 0.0
      %8063 = vmatmul.mubr.f32.gmra.mxu0 %v7946
      %v8064 = vpop.f32.mrf.mxu0
      %v8065 = vadd.f32 0.0, %v8064
      %v8066 = vpop.f32.mrf.mxu0
      %8067 = vmatprep.mubr.f32.mxu0 0.0
      %8068 = vmatmul.mubr.f32.gmra.mxu0 %v7947
      %v8069 = vpop.f32.mrf.mxu0
      %v8070 = vadd.f32 0.0, %v8069
      %v8071 = vpop.f32.mrf.mxu0
      %8072 = vmatprep.mubr.f32.mxu0 0.0
      %8073 = vmatmul.mubr.f32.gmra.mxu0 %v7948
      %v8074 = vpop.f32.mrf.mxu0
      %v8075 = vadd.f32 0.0, %v8074
      %v8076 = vpop.f32.mrf.mxu0
      %8077 = vmatprep.mubr.f32.mxu0 0.0
      %8078 = vmatmul.mubr.f32.gmra.mxu0 %v7949
      %v8079 = vpop.f32.mrf.mxu0
      %v8080 = vadd.f32 0.0, %v8079
      %v8081 = vpop.f32.mrf.mxu0
      %8082 = vmatprep.mubr.f32.mxu0 0.0
      %8083 = vmatmul.mubr.f32.gmra.mxu0 %v7950
      %v8084 = vpop.f32.mrf.mxu0
      %v8085 = vadd.f32 0.0, %v8084
      %v8086 = vpop.f32.mrf.mxu0
      %8087 = vmatprep.mubr.f32.mxu0 0.0
      %8088 = vmatmul.mubr.f32.gmra.mxu0 %v7951
      %v8089 = vpop.f32.mrf.mxu0
      %v8090 = vadd.f32 0.0, %v8089
      %v8091 = vpop.f32.mrf.mxu0
      %8092 = vmatprep.mubr.f32.mxu0 0.0
      %8093 = vmatmul.mubr.f32.gmra.mxu0 %v7952
      %v8094 = vpop.f32.mrf.mxu0
      %v8095 = vadd.f32 0.0, %v8094
      %v8096 = vpop.f32.mrf.mxu0
      %8097 = vmatprep.mubr.f32.mxu0 0.0
      %8098 = vmatmul.mubr.f32.gmra.mxu0 %v7953
      %v8099 = vpop.f32.mrf.mxu0
      %v8100 = vadd.f32 0.0, %v8099
      %v8101 = vpop.f32.mrf.mxu0
      %8102 = vmatprep.mubr.f32.mxu0 0.0
      %8103 = vmatmul.mubr.f32.gmra.mxu0 %v7954
      %v8104 = vpop.f32.mrf.mxu0
      %v8105 = vadd.f32 0.0, %v8104
      %v8106 = vpop.f32.mrf.mxu0
      %8107 = vmatprep.mubr.f32.mxu0 0.0
      %8108 = vmatmul.mubr.f32.gmra.mxu0 %v7955
      %v8109 = vpop.f32.mrf.mxu0
      %v8110 = vadd.f32 0.0, %v8109
      %v8111 = vpop.f32.mrf.mxu0
      %8112 = vmatprep.mubr.f32.mxu0 0.0
      %8113 = vmatmul.mubr.f32.gmra.mxu0 %v7956
      %v8114 = vpop.f32.mrf.mxu0
      %v8115 = vadd.f32 0.0, %v8114
      %v8116 = vpop.f32.mrf.mxu0
      %8117 = vdwg.mxu0
      %v8118 = vld [vmem:[%s10] sm:$0xf]
      %v8119 = vld [vmem:[%s10 + $0x4] sm:$0xf]
      %v8120 = vld [vmem:[%s10 + $0x8] sm:$0xf]
      %v8121 = vld [vmem:[%s10 + $0xc] sm:$0xf]
      %v8122 = vld [vmem:[%s10 + $0x10] sm:$0xf]
      %v8123 = vld [vmem:[%s10 + $0x14] sm:$0xf]
      %v8124 = vld [vmem:[%s10 + $0x18] sm:$0xf]
      %v8125 = vld [vmem:[%s10 + $0x1c] sm:$0xf]
      %v8127 = vsel %vm719, %v8118, 0
      %8129 = vmatprep.subr.mxu0 0.0
      %8130 = vmatpush1.msra.mxu0 0.0
      %8131 = vmatprep.subr.mxu0 0.0
      %8132 = vmatpush1.msra.mxu0 0.0
      %8133 = vmatprep.subr.mxu0 0.0
      %8134 = vmatpush1.msra.mxu0 0.0
      %8135 = vmatprep.subr.mxu0 0.0
      %8136 = vmatpush1.msra.mxu0 0.0
      %8137 = vmatprep.subr.mxu0 0.0
      %8138 = vmatpush1.msra.mxu0 0.0
      %8139 = vmatprep.subr.mxu0 0.0
      %8140 = vmatpush1.msra.mxu0 0.0
      %8141 = vmatprep.subr.mxu0 0.0
      %8142 = vmatpush1.msra.mxu0 0.0
      %8143 = vmatprep.subr.mxu0 0.0
      %8144 = vmatpush1.msra.mxu0 0.0
      %8145 = vmatprep.subr.mxu0 0.0
      %8146 = vmatpush1.msra.mxu0 0.0
      %8147 = vmatprep.subr.mxu0 0.0
      %8148 = vmatpush1.msra.mxu0 0.0
      %8149 = vmatprep.subr.mxu0 0.0
      %8150 = vmatpush1.msra.mxu0 0.0
      %8151 = vmatprep.subr.mxu0 0.0
      %8152 = vmatpush1.msra.mxu0 0.0
      %8153 = vmatprep.subr.mxu0 0.0
      %8154 = vmatpush1.msra.mxu0 0.0
      %8155 = vmatprep.subr.mxu0 0.0
      %8156 = vmatpush1.msra.mxu0 0.0
      %8157 = vmatprep.subr.mxu0 0.0
      %8158 = vmatpush1.msra.mxu0 %v8045
      %8159 = vmatprep.subr.mxu0 0.0
      %8160 = vmatpush1.msra.mxu0 %v8040
      %8161 = vmatprep.subr.mxu0 0.0
      %8162 = vmatpush2.msra.mxu0 0.0
      %8163 = vmatprep.subr.mxu0 0.0
      %8164 = vmatpush2.msra.mxu0 0.0
      %8165 = vmatprep.subr.mxu0 0.0
      %8166 = vmatpush2.msra.mxu0 0.0
      %8167 = vmatprep.subr.mxu0 0.0
      %8168 = vmatpush2.msra.mxu0 0.0
      %8169 = vmatprep.subr.mxu0 0.0
      %8170 = vmatpush2.msra.mxu0 0.0
      %8171 = vmatprep.subr.mxu0 0.0
      %8172 = vmatpush2.msra.mxu0 0.0
      %8173 = vmatprep.subr.mxu0 0.0
      %8174 = vmatpush2.msra.mxu0 0.0
      %8175 = vmatprep.subr.mxu0 0.0
      %8176 = vmatpush2.msra.mxu0 0.0
      %8177 = vmatprep.subr.mxu0 0.0
      %8178 = vmatpush2.msra.mxu0 0.0
      %8179 = vmatprep.subr.mxu0 0.0
      %8180 = vmatpush2.msra.mxu0 0.0
      %8181 = vmatprep.subr.mxu0 0.0
      %8182 = vmatpush2.msra.mxu0 0.0
      %8183 = vmatprep.subr.mxu0 0.0
      %8184 = vmatpush2.msra.mxu0 0.0
      %8185 = vmatprep.subr.mxu0 0.0
      %8186 = vmatpush2.msra.mxu0 0.0
      %8187 = vmatprep.subr.mxu0 0.0
      %8188 = vmatpush2.msra.mxu0 0.0
      %8189 = vmatprep.subr.mxu0 0.0
      %8190 = vmatpush2.msra.mxu0 0.0
      %8191 = vmatprep.subr.mxu0 0.0
      %8192 = vmatpush2.msra.mxu0 0.0
      %8193 = vmatprep.mubr.f32.mxu0 0.0
      %8194 = vmatmul.mubr.f32.gmra.mxu0 %v8127
      %v8195 = vpop.f32.mrf.mxu0
      %v8196 = vadd.f32 0.0, %v8195
      %v8197 = vpop.f32.mrf.mxu0
      %8198 = vdwg.mxu0
      %v8200 = vsel %vm719, %v8119, 0
      %8202 = vmatprep.subr.mxu0 0.0
      %8203 = vmatpush1.msra.mxu0 0.0
      %8204 = vmatprep.subr.mxu0 0.0
      %8205 = vmatpush1.msra.mxu0 0.0
      %8206 = vmatprep.subr.mxu0 0.0
      %8207 = vmatpush1.msra.mxu0 0.0
      %8208 = vmatprep.subr.mxu0 0.0
      %8209 = vmatpush1.msra.mxu0 0.0
      %8210 = vmatprep.subr.mxu0 0.0
      %8211 = vmatpush1.msra.mxu0 0.0
      %8212 = vmatprep.subr.mxu0 0.0
      %8213 = vmatpush1.msra.mxu0 0.0
      %8214 = vmatprep.subr.mxu0 0.0
      %8215 = vmatpush1.msra.mxu0 0.0
      %8216 = vmatprep.subr.mxu0 0.0
      %8217 = vmatpush1.msra.mxu0 0.0
      %8218 = vmatprep.subr.mxu0 0.0
      %8219 = vmatpush1.msra.mxu0 0.0
      %8220 = vmatprep.subr.mxu0 0.0
      %8221 = vmatpush1.msra.mxu0 0.0
      %8222 = vmatprep.subr.mxu0 0.0
      %8223 = vmatpush1.msra.mxu0 0.0
      %8224 = vmatprep.subr.mxu0 0.0
      %8225 = vmatpush1.msra.mxu0 0.0
      %8226 = vmatprep.subr.mxu0 0.0
      %8227 = vmatpush1.msra.mxu0 0.0
      %8228 = vmatprep.subr.mxu0 0.0
      %8229 = vmatpush1.msra.mxu0 0.0
      %8230 = vmatprep.subr.mxu0 0.0
      %8231 = vmatpush1.msra.mxu0 %v8055
      %8232 = vmatprep.subr.mxu0 0.0
      %8233 = vmatpush1.msra.mxu0 %v8050
      %8234 = vmatprep.subr.mxu0 0.0
      %8235 = vmatpush2.msra.mxu0 0.0
      %8236 = vmatprep.subr.mxu0 0.0
      %8237 = vmatpush2.msra.mxu0 0.0
      %8238 = vmatprep.subr.mxu0 0.0
      %8239 = vmatpush2.msra.mxu0 0.0
      %8240 = vmatprep.subr.mxu0 0.0
      %8241 = vmatpush2.msra.mxu0 0.0
      %8242 = vmatprep.subr.mxu0 0.0
      %8243 = vmatpush2.msra.mxu0 0.0
      %8244 = vmatprep.subr.mxu0 0.0
      %8245 = vmatpush2.msra.mxu0 0.0
      %8246 = vmatprep.subr.mxu0 0.0
      %8247 = vmatpush2.msra.mxu0 0.0
      %8248 = vmatprep.subr.mxu0 0.0
      %8249 = vmatpush2.msra.mxu0 0.0
      %8250 = vmatprep.subr.mxu0 0.0
      %8251 = vmatpush2.msra.mxu0 0.0
      %8252 = vmatprep.subr.mxu0 0.0
      %8253 = vmatpush2.msra.mxu0 0.0
      %8254 = vmatprep.subr.mxu0 0.0
      %8255 = vmatpush2.msra.mxu0 0.0
      %8256 = vmatprep.subr.mxu0 0.0
      %8257 = vmatpush2.msra.mxu0 0.0
      %8258 = vmatprep.subr.mxu0 0.0
      %8259 = vmatpush2.msra.mxu0 0.0
      %8260 = vmatprep.subr.mxu0 0.0
      %8261 = vmatpush2.msra.mxu0 0.0
      %8262 = vmatprep.subr.mxu0 0.0
      %8263 = vmatpush2.msra.mxu0 0.0
      %8264 = vmatprep.subr.mxu0 0.0
      %8265 = vmatpush2.msra.mxu0 0.0
      %8266 = vmatprep.mubr.f32.mxu0 0.0
      %8267 = vmatmul.mubr.f32.gmra.mxu0 %v8200
      %v8268 = vpop.f32.mrf.mxu0
      %v8269 = vadd.f32 0.0, %v8268
      %v8270 = vpop.f32.mrf.mxu0
      %8271 = vdwg.mxu0
      %v8273 = vsel %vm719, %v8120, 0
      %8275 = vmatprep.subr.mxu0 0.0
      %8276 = vmatpush1.msra.mxu0 0.0
      %8277 = vmatprep.subr.mxu0 0.0
      %8278 = vmatpush1.msra.mxu0 0.0
      %8279 = vmatprep.subr.mxu0 0.0
      %8280 = vmatpush1.msra.mxu0 0.0
      %8281 = vmatprep.subr.mxu0 0.0
      %8282 = vmatpush1.msra.mxu0 0.0
      %8283 = vmatprep.subr.mxu0 0.0
      %8284 = vmatpush1.msra.mxu0 0.0
      %8285 = vmatprep.subr.mxu0 0.0
      %8286 = vmatpush1.msra.mxu0 0.0
      %8287 = vmatprep.subr.mxu0 0.0
      %8288 = vmatpush1.msra.mxu0 0.0
      %8289 = vmatprep.subr.mxu0 0.0
      %8290 = vmatpush1.msra.mxu0 0.0
      %8291 = vmatprep.subr.mxu0 0.0
      %8292 = vmatpush1.msra.mxu0 0.0
      %8293 = vmatprep.subr.mxu0 0.0
      %8294 = vmatpush1.msra.mxu0 0.0
      %8295 = vmatprep.subr.mxu0 0.0
      %8296 = vmatpush1.msra.mxu0 0.0
      %8297 = vmatprep.subr.mxu0 0.0
      %8298 = vmatpush1.msra.mxu0 0.0
      %8299 = vmatprep.subr.mxu0 0.0
      %8300 = vmatpush1.msra.mxu0 0.0
      %8301 = vmatprep.subr.mxu0 0.0
      %8302 = vmatpush1.msra.mxu0 0.0
      %8303 = vmatprep.subr.mxu0 0.0
      %8304 = vmatpush1.msra.mxu0 %v8065
      %8305 = vmatprep.subr.mxu0 0.0
      %8306 = vmatpush1.msra.mxu0 %v8060
      %8307 = vmatprep.subr.mxu0 0.0
      %8308 = vmatpush2.msra.mxu0 0.0
      %8309 = vmatprep.subr.mxu0 0.0
      %8310 = vmatpush2.msra.mxu0 0.0
      %8311 = vmatprep.subr.mxu0 0.0
      %8312 = vmatpush2.msra.mxu0 0.0
      %8313 = vmatprep.subr.mxu0 0.0
      %8314 = vmatpush2.msra.mxu0 0.0
      %8315 = vmatprep.subr.mxu0 0.0
      %8316 = vmatpush2.msra.mxu0 0.0
      %8317 = vmatprep.subr.mxu0 0.0
      %8318 = vmatpush2.msra.mxu0 0.0
      %8319 = vmatprep.subr.mxu0 0.0
      %8320 = vmatpush2.msra.mxu0 0.0
      %8321 = vmatprep.subr.mxu0 0.0
      %8322 = vmatpush2.msra.mxu0 0.0
      %8323 = vmatprep.subr.mxu0 0.0
      %8324 = vmatpush2.msra.mxu0 0.0
      %8325 = vmatprep.subr.mxu0 0.0
      %8326 = vmatpush2.msra.mxu0 0.0
      %8327 = vmatprep.subr.mxu0 0.0
      %8328 = vmatpush2.msra.mxu0 0.0
      %8329 = vmatprep.subr.mxu0 0.0
      %8330 = vmatpush2.msra.mxu0 0.0
      %8331 = vmatprep.subr.mxu0 0.0
      %8332 = vmatpush2.msra.mxu0 0.0
      %8333 = vmatprep.subr.mxu0 0.0
      %8334 = vmatpush2.msra.mxu0 0.0
      %8335 = vmatprep.subr.mxu0 0.0
      %8336 = vmatpush2.msra.mxu0 0.0
      %8337 = vmatprep.subr.mxu0 0.0
      %8338 = vmatpush2.msra.mxu0 0.0
      %8339 = vmatprep.mubr.f32.mxu0 0.0
      %8340 = vmatmul.mubr.f32.gmra.mxu0 %v8273
      %v8341 = vpop.f32.mrf.mxu0
      %v8342 = vadd.f32 0.0, %v8341
      %v8343 = vpop.f32.mrf.mxu0
      %8344 = vdwg.mxu0
      %v8346 = vsel %vm719, %v8121, 0
      %8348 = vmatprep.subr.mxu0 0.0
      %8349 = vmatpush1.msra.mxu0 0.0
      %8350 = vmatprep.subr.mxu0 0.0
      %8351 = vmatpush1.msra.mxu0 0.0
      %8352 = vmatprep.subr.mxu0 0.0
      %8353 = vmatpush1.msra.mxu0 0.0
      %8354 = vmatprep.subr.mxu0 0.0
      %8355 = vmatpush1.msra.mxu0 0.0
      %8356 = vmatprep.subr.mxu0 0.0
      %8357 = vmatpush1.msra.mxu0 0.0
      %8358 = vmatprep.subr.mxu0 0.0
      %8359 = vmatpush1.msra.mxu0 0.0
      %8360 = vmatprep.subr.mxu0 0.0
      %8361 = vmatpush1.msra.mxu0 0.0
      %8362 = vmatprep.subr.mxu0 0.0
      %8363 = vmatpush1.msra.mxu0 0.0
      %8364 = vmatprep.subr.mxu0 0.0
      %8365 = vmatpush1.msra.mxu0 0.0
      %8366 = vmatprep.subr.mxu0 0.0
      %8367 = vmatpush1.msra.mxu0 0.0
      %8368 = vmatprep.subr.mxu0 0.0
      %8369 = vmatpush1.msra.mxu0 0.0
      %8370 = vmatprep.subr.mxu0 0.0
      %8371 = vmatpush1.msra.mxu0 0.0
      %8372 = vmatprep.subr.mxu0 0.0
      %8373 = vmatpush1.msra.mxu0 0.0
      %8374 = vmatprep.subr.mxu0 0.0
      %8375 = vmatpush1.msra.mxu0 0.0
      %8376 = vmatprep.subr.mxu0 0.0
      %8377 = vmatpush1.msra.mxu0 %v8075
      %8378 = vmatprep.subr.mxu0 0.0
      %8379 = vmatpush1.msra.mxu0 %v8070
      %8380 = vmatprep.subr.mxu0 0.0
      %8381 = vmatpush2.msra.mxu0 0.0
      %8382 = vmatprep.subr.mxu0 0.0
      %8383 = vmatpush2.msra.mxu0 0.0
      %8384 = vmatprep.subr.mxu0 0.0
      %8385 = vmatpush2.msra.mxu0 0.0
      %8386 = vmatprep.subr.mxu0 0.0
      %8387 = vmatpush2.msra.mxu0 0.0
      %8388 = vmatprep.subr.mxu0 0.0
      %8389 = vmatpush2.msra.mxu0 0.0
      %8390 = vmatprep.subr.mxu0 0.0
      %8391 = vmatpush2.msra.mxu0 0.0
      %8392 = vmatprep.subr.mxu0 0.0
      %8393 = vmatpush2.msra.mxu0 0.0
      %8394 = vmatprep.subr.mxu0 0.0
      %8395 = vmatpush2.msra.mxu0 0.0
      %8396 = vmatprep.subr.mxu0 0.0
      %8397 = vmatpush2.msra.mxu0 0.0
      %8398 = vmatprep.subr.mxu0 0.0
      %8399 = vmatpush2.msra.mxu0 0.0
      %8400 = vmatprep.subr.mxu0 0.0
      %8401 = vmatpush2.msra.mxu0 0.0
      %8402 = vmatprep.subr.mxu0 0.0
      %8403 = vmatpush2.msra.mxu0 0.0
      %8404 = vmatprep.subr.mxu0 0.0
      %8405 = vmatpush2.msra.mxu0 0.0
      %8406 = vmatprep.subr.mxu0 0.0
      %8407 = vmatpush2.msra.mxu0 0.0
      %8408 = vmatprep.subr.mxu0 0.0
      %8409 = vmatpush2.msra.mxu0 0.0
      %8410 = vmatprep.subr.mxu0 0.0
      %8411 = vmatpush2.msra.mxu0 0.0
      %8412 = vmatprep.mubr.f32.mxu0 0.0
      %8413 = vmatmul.mubr.f32.gmra.mxu0 %v8346
      %v8414 = vpop.f32.mrf.mxu0
      %v8415 = vadd.f32 0.0, %v8414
      %v8416 = vpop.f32.mrf.mxu0
      %8417 = vdwg.mxu0
      %v8419 = vsel %vm719, %v8122, 0
      %8421 = vmatprep.subr.mxu0 0.0
      %8422 = vmatpush1.msra.mxu0 0.0
      %8423 = vmatprep.subr.mxu0 0.0
      %8424 = vmatpush1.msra.mxu0 0.0
      %8425 = vmatprep.subr.mxu0 0.0
      %8426 = vmatpush1.msra.mxu0 0.0
      %8427 = vmatprep.subr.mxu0 0.0
      %8428 = vmatpush1.msra.mxu0 0.0
      %8429 = vmatprep.subr.mxu0 0.0
      %8430 = vmatpush1.msra.mxu0 0.0
      %8431 = vmatprep.subr.mxu0 0.0
      %8432 = vmatpush1.msra.mxu0 0.0
      %8433 = vmatprep.subr.mxu0 0.0
      %8434 = vmatpush1.msra.mxu0 0.0
      %8435 = vmatprep.subr.mxu0 0.0
      %8436 = vmatpush1.msra.mxu0 0.0
      %8437 = vmatprep.subr.mxu0 0.0
      %8438 = vmatpush1.msra.mxu0 0.0
      %8439 = vmatprep.subr.mxu0 0.0
      %8440 = vmatpush1.msra.mxu0 0.0
      %8441 = vmatprep.subr.mxu0 0.0
      %8442 = vmatpush1.msra.mxu0 0.0
      %8443 = vmatprep.subr.mxu0 0.0
      %8444 = vmatpush1.msra.mxu0 0.0
      %8445 = vmatprep.subr.mxu0 0.0
      %8446 = vmatpush1.msra.mxu0 0.0
      %8447 = vmatprep.subr.mxu0 0.0
      %8448 = vmatpush1.msra.mxu0 0.0
      %8449 = vmatprep.subr.mxu0 0.0
      %8450 = vmatpush1.msra.mxu0 %v8085
      %8451 = vmatprep.subr.mxu0 0.0
      %8452 = vmatpush1.msra.mxu0 %v8080
      %8453 = vmatprep.subr.mxu0 0.0
      %8454 = vmatpush2.msra.mxu0 0.0
      %8455 = vmatprep.subr.mxu0 0.0
      %8456 = vmatpush2.msra.mxu0 0.0
      %8457 = vmatprep.subr.mxu0 0.0
      %8458 = vmatpush2.msra.mxu0 0.0
      %8459 = vmatprep.subr.mxu0 0.0
      %8460 = vmatpush2.msra.mxu0 0.0
      %8461 = vmatprep.subr.mxu0 0.0
      %8462 = vmatpush2.msra.mxu0 0.0
      %8463 = vmatprep.subr.mxu0 0.0
      %8464 = vmatpush2.msra.mxu0 0.0
      %8465 = vmatprep.subr.mxu0 0.0
      %8466 = vmatpush2.msra.mxu0 0.0
      %8467 = vmatprep.subr.mxu0 0.0
      %8468 = vmatpush2.msra.mxu0 0.0
      %8469 = vmatprep.subr.mxu0 0.0
      %8470 = vmatpush2.msra.mxu0 0.0
      %8471 = vmatprep.subr.mxu0 0.0
      %8472 = vmatpush2.msra.mxu0 0.0
      %8473 = vmatprep.subr.mxu0 0.0
      %8474 = vmatpush2.msra.mxu0 0.0
      %8475 = vmatprep.subr.mxu0 0.0
      %8476 = vmatpush2.msra.mxu0 0.0
      %8477 = vmatprep.subr.mxu0 0.0
      %8478 = vmatpush2.msra.mxu0 0.0
      %8479 = vmatprep.subr.mxu0 0.0
      %8480 = vmatpush2.msra.mxu0 0.0
      %8481 = vmatprep.subr.mxu0 0.0
      %8482 = vmatpush2.msra.mxu0 0.0
      %8483 = vmatprep.subr.mxu0 0.0
      %8484 = vmatpush2.msra.mxu0 0.0
      %8485 = vmatprep.mubr.f32.mxu0 0.0
      %8486 = vmatmul.mubr.f32.gmra.mxu0 %v8419
      %v8487 = vpop.f32.mrf.mxu0
      %v8488 = vadd.f32 0.0, %v8487
      %v8489 = vpop.f32.mrf.mxu0
      %8490 = vdwg.mxu0
      %v8492 = vsel %vm719, %v8123, 0
      %8494 = vmatprep.subr.mxu0 0.0
      %8495 = vmatpush1.msra.mxu0 0.0
      %8496 = vmatprep.subr.mxu0 0.0
      %8497 = vmatpush1.msra.mxu0 0.0
      %8498 = vmatprep.subr.mxu0 0.0
      %8499 = vmatpush1.msra.mxu0 0.0
      %8500 = vmatprep.subr.mxu0 0.0
      %8501 = vmatpush1.msra.mxu0 0.0
      %8502 = vmatprep.subr.mxu0 0.0
      %8503 = vmatpush1.msra.mxu0 0.0
      %8504 = vmatprep.subr.mxu0 0.0
      %8505 = vmatpush1.msra.mxu0 0.0
      %8506 = vmatprep.subr.mxu0 0.0
      %8507 = vmatpush1.msra.mxu0 0.0
      %8508 = vmatprep.subr.mxu0 0.0
      %8509 = vmatpush1.msra.mxu0 0.0
      %8510 = vmatprep.subr.mxu0 0.0
      %8511 = vmatpush1.msra.mxu0 0.0
      %8512 = vmatprep.subr.mxu0 0.0
      %8513 = vmatpush1.msra.mxu0 0.0
      %8514 = vmatprep.subr.mxu0 0.0
      %8515 = vmatpush1.msra.mxu0 0.0
      %8516 = vmatprep.subr.mxu0 0.0
      %8517 = vmatpush1.msra.mxu0 0.0
      %8518 = vmatprep.subr.mxu0 0.0
      %8519 = vmatpush1.msra.mxu0 0.0
      %8520 = vmatprep.subr.mxu0 0.0
      %8521 = vmatpush1.msra.mxu0 0.0
      %8522 = vmatprep.subr.mxu0 0.0
      %8523 = vmatpush1.msra.mxu0 %v8095
      %8524 = vmatprep.subr.mxu0 0.0
      %8525 = vmatpush1.msra.mxu0 %v8090
      %8526 = vmatprep.subr.mxu0 0.0
      %8527 = vmatpush2.msra.mxu0 0.0
      %8528 = vmatprep.subr.mxu0 0.0
      %8529 = vmatpush2.msra.mxu0 0.0
      %8530 = vmatprep.subr.mxu0 0.0
      %8531 = vmatpush2.msra.mxu0 0.0
      %8532 = vmatprep.subr.mxu0 0.0
      %8533 = vmatpush2.msra.mxu0 0.0
      %8534 = vmatprep.subr.mxu0 0.0
      %8535 = vmatpush2.msra.mxu0 0.0
      %8536 = vmatprep.subr.mxu0 0.0
      %8537 = vmatpush2.msra.mxu0 0.0
      %8538 = vmatprep.subr.mxu0 0.0
      %8539 = vmatpush2.msra.mxu0 0.0
      %8540 = vmatprep.subr.mxu0 0.0
      %8541 = vmatpush2.msra.mxu0 0.0
      %8542 = vmatprep.subr.mxu0 0.0
      %8543 = vmatpush2.msra.mxu0 0.0
      %8544 = vmatprep.subr.mxu0 0.0
      %8545 = vmatpush2.msra.mxu0 0.0
      %8546 = vmatprep.subr.mxu0 0.0
      %8547 = vmatpush2.msra.mxu0 0.0
      %8548 = vmatprep.subr.mxu0 0.0
      %8549 = vmatpush2.msra.mxu0 0.0
      %8550 = vmatprep.subr.mxu0 0.0
      %8551 = vmatpush2.msra.mxu0 0.0
      %8552 = vmatprep.subr.mxu0 0.0
      %8553 = vmatpush2.msra.mxu0 0.0
      %8554 = vmatprep.subr.mxu0 0.0
      %8555 = vmatpush2.msra.mxu0 0.0
      %8556 = vmatprep.subr.mxu0 0.0
      %8557 = vmatpush2.msra.mxu0 0.0
      %8558 = vmatprep.mubr.f32.mxu0 0.0
      %8559 = vmatmul.mubr.f32.gmra.mxu0 %v8492
      %v8560 = vpop.f32.mrf.mxu0
      %v8561 = vadd.f32 0.0, %v8560
      %v8562 = vpop.f32.mrf.mxu0
      %8563 = vdwg.mxu0
      %v8565 = vsel %vm719, %v8124, 0
      %8567 = vmatprep.subr.mxu0 0.0
      %8568 = vmatpush1.msra.mxu0 0.0
      %8569 = vmatprep.subr.mxu0 0.0
      %8570 = vmatpush1.msra.mxu0 0.0
      %8571 = vmatprep.subr.mxu0 0.0
      %8572 = vmatpush1.msra.mxu0 0.0
      %8573 = vmatprep.subr.mxu0 0.0
      %8574 = vmatpush1.msra.mxu0 0.0
      %8575 = vmatprep.subr.mxu0 0.0
      %8576 = vmatpush1.msra.mxu0 0.0
      %8577 = vmatprep.subr.mxu0 0.0
      %8578 = vmatpush1.msra.mxu0 0.0
      %8579 = vmatprep.subr.mxu0 0.0
      %8580 = vmatpush1.msra.mxu0 0.0
      %8581 = vmatprep.subr.mxu0 0.0
      %8582 = vmatpush1.msra.mxu0 0.0
      %8583 = vmatprep.subr.mxu0 0.0
      %8584 = vmatpush1.msra.mxu0 0.0
      %8585 = vmatprep.subr.mxu0 0.0
      %8586 = vmatpush1.msra.mxu0 0.0
      %8587 = vmatprep.subr.mxu0 0.0
      %8588 = vmatpush1.msra.mxu0 0.0
      %8589 = vmatprep.subr.mxu0 0.0
      %8590 = vmatpush1.msra.mxu0 0.0
      %8591 = vmatprep.subr.mxu0 0.0
      %8592 = vmatpush1.msra.mxu0 0.0
      %8593 = vmatprep.subr.mxu0 0.0
      %8594 = vmatpush1.msra.mxu0 0.0
      %8595 = vmatprep.subr.mxu0 0.0
      %8596 = vmatpush1.msra.mxu0 %v8105
      %8597 = vmatprep.subr.mxu0 0.0
      %8598 = vmatpush1.msra.mxu0 %v8100
      %8599 = vmatprep.subr.mxu0 0.0
      %8600 = vmatpush2.msra.mxu0 0.0
      %8601 = vmatprep.subr.mxu0 0.0
      %8602 = vmatpush2.msra.mxu0 0.0
      %8603 = vmatprep.subr.mxu0 0.0
      %8604 = vmatpush2.msra.mxu0 0.0
      %8605 = vmatprep.subr.mxu0 0.0
      %8606 = vmatpush2.msra.mxu0 0.0
      %8607 = vmatprep.subr.mxu0 0.0
      %8608 = vmatpush2.msra.mxu0 0.0
      %8609 = vmatprep.subr.mxu0 0.0
      %8610 = vmatpush2.msra.mxu0 0.0
      %8611 = vmatprep.subr.mxu0 0.0
      %8612 = vmatpush2.msra.mxu0 0.0
      %8613 = vmatprep.subr.mxu0 0.0
      %8614 = vmatpush2.msra.mxu0 0.0
      %8615 = vmatprep.subr.mxu0 0.0
      %8616 = vmatpush2.msra.mxu0 0.0
      %8617 = vmatprep.subr.mxu0 0.0
      %8618 = vmatpush2.msra.mxu0 0.0
      %8619 = vmatprep.subr.mxu0 0.0
      %8620 = vmatpush2.msra.mxu0 0.0
      %8621 = vmatprep.subr.mxu0 0.0
      %8622 = vmatpush2.msra.mxu0 0.0
      %8623 = vmatprep.subr.mxu0 0.0
      %8624 = vmatpush2.msra.mxu0 0.0
      %8625 = vmatprep.subr.mxu0 0.0
      %8626 = vmatpush2.msra.mxu0 0.0
      %8627 = vmatprep.subr.mxu0 0.0
      %8628 = vmatpush2.msra.mxu0 0.0
      %8629 = vmatprep.subr.mxu0 0.0
      %8630 = vmatpush2.msra.mxu0 0.0
      %8631 = vmatprep.mubr.f32.mxu0 0.0
      %8632 = vmatmul.mubr.f32.gmra.mxu0 %v8565
      %v8633 = vpop.f32.mrf.mxu0
      %v8634 = vadd.f32 0.0, %v8633
      %v8635 = vpop.f32.mrf.mxu0
      %8636 = vdwg.mxu0
      %v8638 = vsel %vm719, %v8125, 0
      %8640 = vmatprep.subr.mxu0 0.0
      %8641 = vmatpush1.msra.mxu0 0.0
      %8642 = vmatprep.subr.mxu0 0.0
      %8643 = vmatpush1.msra.mxu0 0.0
      %8644 = vmatprep.subr.mxu0 0.0
      %8645 = vmatpush1.msra.mxu0 0.0
      %8646 = vmatprep.subr.mxu0 0.0
      %8647 = vmatpush1.msra.mxu0 0.0
      %8648 = vmatprep.subr.mxu0 0.0
      %8649 = vmatpush1.msra.mxu0 0.0
      %8650 = vmatprep.subr.mxu0 0.0
      %8651 = vmatpush1.msra.mxu0 0.0
      %8652 = vmatprep.subr.mxu0 0.0
      %8653 = vmatpush1.msra.mxu0 0.0
      %8654 = vmatprep.subr.mxu0 0.0
      %8655 = vmatpush1.msra.mxu0 0.0
      %8656 = vmatprep.subr.mxu0 0.0
      %8657 = vmatpush1.msra.mxu0 0.0
      %8658 = vmatprep.subr.mxu0 0.0
      %8659 = vmatpush1.msra.mxu0 0.0
      %8660 = vmatprep.subr.mxu0 0.0
      %8661 = vmatpush1.msra.mxu0 0.0
      %8662 = vmatprep.subr.mxu0 0.0
      %8663 = vmatpush1.msra.mxu0 0.0
      %8664 = vmatprep.subr.mxu0 0.0
      %8665 = vmatpush1.msra.mxu0 0.0
      %8666 = vmatprep.subr.mxu0 0.0
      %8667 = vmatpush1.msra.mxu0 0.0
      %8668 = vmatprep.subr.mxu0 0.0
      %8669 = vmatpush1.msra.mxu0 %v8115
      %8670 = vmatprep.subr.mxu0 0.0
      %8671 = vmatpush1.msra.mxu0 %v8110
      %8672 = vmatprep.subr.mxu0 0.0
      %8673 = vmatpush2.msra.mxu0 0.0
      %8674 = vmatprep.subr.mxu0 0.0
      %8675 = vmatpush2.msra.mxu0 0.0
      %8676 = vmatprep.subr.mxu0 0.0
      %8677 = vmatpush2.msra.mxu0 0.0
      %8678 = vmatprep.subr.mxu0 0.0
      %8679 = vmatpush2.msra.mxu0 0.0
      %8680 = vmatprep.subr.mxu0 0.0
      %8681 = vmatpush2.msra.mxu0 0.0
      %8682 = vmatprep.subr.mxu0 0.0
      %8683 = vmatpush2.msra.mxu0 0.0
      %8684 = vmatprep.subr.mxu0 0.0
      %8685 = vmatpush2.msra.mxu0 0.0
      %8686 = vmatprep.subr.mxu0 0.0
      %8687 = vmatpush2.msra.mxu0 0.0
      %8688 = vmatprep.subr.mxu0 0.0
      %8689 = vmatpush2.msra.mxu0 0.0
      %8690 = vmatprep.subr.mxu0 0.0
      %8691 = vmatpush2.msra.mxu0 0.0
      %8692 = vmatprep.subr.mxu0 0.0
      %8693 = vmatpush2.msra.mxu0 0.0
      %8694 = vmatprep.subr.mxu0 0.0
      %8695 = vmatpush2.msra.mxu0 0.0
      %8696 = vmatprep.subr.mxu0 0.0
      %8697 = vmatpush2.msra.mxu0 0.0
      %8698 = vmatprep.subr.mxu0 0.0
      %8699 = vmatpush2.msra.mxu0 0.0
      %8700 = vmatprep.subr.mxu0 0.0
      %8701 = vmatpush2.msra.mxu0 0.0
      %8702 = vmatprep.subr.mxu0 0.0
      %8703 = vmatpush2.msra.mxu0 0.0
      %8704 = vmatprep.mubr.f32.mxu0 0.0
      %8705 = vmatmul.mubr.f32.gmra.mxu0 %v8638
      %v8706 = vpop.f32.mrf.mxu0
      %v8707 = vadd.f32 0.0, %v8706
      %v8708 = vpop.f32.mrf.mxu0
      %8709 = vdwg.mxu0
      %vm8710 = vcmask 521216
      %8711 = vst.msk [vmem:[#allocation4] sm:$0x3f] %vm8710, 0.0
      %8712 = vst.msk [vmem:[#allocation4 + $0x30] sm:$0x3f] %vm8710, 0.0
      %s8713 = scalar_lea.vmem [#allocation4], 40
      %8714 = vst.msk [vmem:[%s8713] sm:$0x3f] %vm8710, 0.0
      %8715 = vst.msk [vmem:[%s8713 + $0x30] sm:$0x3f] %vm8710, 0.0
      %s8716 = scalar_lea.vmem [#allocation4], 8
      %8717 = vst.msk [vmem:[%s8716] sm:$0x1] %vm6575, 0.0
      %8718 = vst.msk [vmem:[%s8716 + $0x8] sm:$0x1] %vm6575, 0.0
      %8719 = vst.msk [vmem:[%s8716 + $0x10] sm:$0x1] %vm6575, 0.0
      %8720 = vst.msk [vmem:[%s8716 + $0x18] sm:$0x1] %vm6575, 0.0
      %8721 = vst.msk [vmem:[%s8716 + $0x30] sm:$0x1] %vm6575, 0.0
      %8722 = vst.msk [vmem:[%s8716 + $0x38] sm:$0x1] %vm6575, 0.0
      %8723 = vst.msk [vmem:[%s8716 + $0x40] sm:$0x1] %vm6575, 0.0
      %8724 = vst.msk [vmem:[%s8716 + $0x48] sm:$0x1] %vm6575, 0.0
      %8725 = vst.msk [vmem:[%s8716 + $0x5] sm:$0x1] %vm6575, 0.0
      %8726 = vst.msk [vmem:[%s8716 + $0xd] sm:$0x1] %vm6575, 0.0
      %8727 = vst.msk [vmem:[%s8716 + $0x15] sm:$0x1] %vm6575, 0.0
      %8728 = vst.msk [vmem:[%s8716 + $0x1d] sm:$0x1] %vm6575, 0.0
      %8729 = vst.msk [vmem:[%s8716 + $0x35] sm:$0x1] %vm6575, 0.0
      %8730 = vst.msk [vmem:[%s8716 + $0x3d] sm:$0x1] %vm6575, 0.0
      %8731 = vst.msk [vmem:[%s8716 + $0x45] sm:$0x1] %vm6575, 0.0
      %8732 = vst.msk [vmem:[%s8716 + $0x4d] sm:$0x1] %vm6575, 0.0
      %vm8733 = vcmask 519168
      %8734 = vst.msk [vmem:[%s8716 + $0x1] sm:$0xf] %vm8733, %v8196
      %8735 = vst.msk [vmem:[%s8716 + $0x9] sm:$0xf] %vm8733, %v8269
      %8736 = vst.msk [vmem:[%s8716 + $0x11] sm:$0xf] %vm8733, %v8342
      %8737 = vst.msk [vmem:[%s8716 + $0x19] sm:$0xf] %vm8733, %v8415
      %8738 = vst.msk [vmem:[%s8716 + $0x31] sm:$0xf] %vm8733, %v8488
      %8739 = vst.msk [vmem:[%s8716 + $0x39] sm:$0xf] %vm8733, %v8561
      %8740 = vst.msk [vmem:[%s8716 + $0x41] sm:$0xf] %vm8733, %v8634
      %8741 = vst.msk [vmem:[%s8716 + $0x49] sm:$0xf] %vm8733, %v8707
      %v8742 = vld [vmem:[#allocation4] sm:$0xf]
      %v8743 = vld [vmem:[#allocation4 + $0x8] sm:$0xf]
      %v8744 = vld [vmem:[#allocation4 + $0x10] sm:$0xf]
      %v8745 = vld [vmem:[#allocation4 + $0x18] sm:$0xf]
      %v8746 = vld [vmem:[#allocation4 + $0x30] sm:$0xf]
      %v8747 = vld [vmem:[#allocation4 + $0x38] sm:$0xf]
      %v8748 = vld [vmem:[#allocation4 + $0x40] sm:$0xf]
      %v8749 = vld [vmem:[#allocation4 + $0x48] sm:$0xf]
      %v8750 = vld [vmem:[#allocation4 + $0x1] sm:$0xf]
      %v8751 = vld [vmem:[#allocation4 + $0x9] sm:$0xf]
      %v8752 = vld [vmem:[#allocation4 + $0x11] sm:$0xf]
      %v8753 = vld [vmem:[#allocation4 + $0x19] sm:$0xf]
      %v8754 = vld [vmem:[#allocation4 + $0x31] sm:$0xf]
      %v8755 = vld [vmem:[#allocation4 + $0x39] sm:$0xf]
      %v8756 = vld [vmem:[#allocation4 + $0x41] sm:$0xf]
      %v8757 = vld [vmem:[#allocation4 + $0x49] sm:$0xf]
      %v8758 = vld [vmem:[#allocation4 + $0x2] sm:$0xf]
      %v8759 = vld [vmem:[#allocation4 + $0xa] sm:$0xf]
      %v8760 = vld [vmem:[#allocation4 + $0x12] sm:$0xf]
      %v8761 = vld [vmem:[#allocation4 + $0x1a] sm:$0xf]
      %v8762 = vld [vmem:[#allocation4 + $0x32] sm:$0xf]
      %v8763 = vld [vmem:[#allocation4 + $0x3a] sm:$0xf]
      %v8764 = vld [vmem:[#allocation4 + $0x42] sm:$0xf]
      %v8765 = vld [vmem:[#allocation4 + $0x4a] sm:$0xf]
      %v8766 = vld [vmem:[%s8716] sm:$0xf]
      %v8767 = vld [vmem:[%s8716 + $0x8] sm:$0xf]
      %v8768 = vld [vmem:[%s8716 + $0x10] sm:$0xf]
      %v8769 = vld [vmem:[%s8716 + $0x18] sm:$0xf]
      %v8770 = vld [vmem:[%s8716 + $0x30] sm:$0xf]
      %v8771 = vld [vmem:[%s8716 + $0x38] sm:$0xf]
      %v8772 = vld [vmem:[%s8716 + $0x40] sm:$0xf]
      %v8773 = vld [vmem:[%s8716 + $0x48] sm:$0xf]
      %v8774 = vld [vmem:[%s8716 + $0x1] sm:$0xf]
      %v8775 = vld [vmem:[%s8716 + $0x9] sm:$0xf]
      %v8776 = vld [vmem:[%s8716 + $0x11] sm:$0xf]
      %v8777 = vld [vmem:[%s8716 + $0x19] sm:$0xf]
      %v8778 = vld [vmem:[%s8716 + $0x31] sm:$0xf]
      %v8779 = vld [vmem:[%s8716 + $0x39] sm:$0xf]
      %v8780 = vld [vmem:[%s8716 + $0x41] sm:$0xf]
      %v8781 = vld [vmem:[%s8716 + $0x49] sm:$0xf]
      %v8782 = vld [vmem:[%s8716 + $0x2] sm:$0xf]
      %v8783 = vld [vmem:[%s8716 + $0xa] sm:$0xf]
      %v8784 = vld [vmem:[%s8716 + $0x12] sm:$0xf]
      %v8785 = vld [vmem:[%s8716 + $0x1a] sm:$0xf]
      %v8786 = vld [vmem:[%s8716 + $0x32] sm:$0xf]
      %v8787 = vld [vmem:[%s8716 + $0x3a] sm:$0xf]
      %v8788 = vld [vmem:[%s8716 + $0x42] sm:$0xf]
      %v8789 = vld [vmem:[%s8716 + $0x4a] sm:$0xf]
      %s8790 = scalar_lea.vmem [#allocation4], 16
      %v8791 = vld [vmem:[%s8790] sm:$0xf]
      %v8792 = vld [vmem:[%s8790 + $0x8] sm:$0xf]
      %v8793 = vld [vmem:[%s8790 + $0x10] sm:$0xf]
      %v8794 = vld [vmem:[%s8790 + $0x18] sm:$0xf]
      %v8795 = vld [vmem:[%s8790 + $0x30] sm:$0xf]
      %v8796 = vld [vmem:[%s8790 + $0x38] sm:$0xf]
      %v8797 = vld [vmem:[%s8790 + $0x40] sm:$0xf]
      %v8798 = vld [vmem:[%s8790 + $0x48] sm:$0xf]
      %v8799 = vld [vmem:[%s8790 + $0x1] sm:$0xf]
      %v8800 = vld [vmem:[%s8790 + $0x9] sm:$0xf]
      %v8801 = vld [vmem:[%s8790 + $0x11] sm:$0xf]
      %v8802 = vld [vmem:[%s8790 + $0x19] sm:$0xf]
      %v8803 = vld [vmem:[%s8790 + $0x31] sm:$0xf]
      %v8804 = vld [vmem:[%s8790 + $0x39] sm:$0xf]
      %v8805 = vld [vmem:[%s8790 + $0x41] sm:$0xf]
      %v8806 = vld [vmem:[%s8790 + $0x49] sm:$0xf]
      %v8807 = vld [vmem:[%s8790 + $0x2] sm:$0xf]
      %v8808 = vld [vmem:[%s8790 + $0xa] sm:$0xf]
      %v8809 = vld [vmem:[%s8790 + $0x12] sm:$0xf]
      %v8810 = vld [vmem:[%s8790 + $0x1a] sm:$0xf]
      %v8811 = vld [vmem:[%s8790 + $0x32] sm:$0xf]
      %v8812 = vld [vmem:[%s8790 + $0x3a] sm:$0xf]
      %v8813 = vld [vmem:[%s8790 + $0x42] sm:$0xf]
      %v8814 = vld [vmem:[%s8790 + $0x4a] sm:$0xf]
      %v8823 = vcombine.low %v8742, %v8743
      %v8824 = vcombine.low %v8744, %v8745
      %v8825 = vcombine.low %v8746, %v8747
      %v8826 = vcombine.low %v8748, %v8749
      %v8839 = vcombine.low %v8750, %v8751
      %v8840 = vcombine.low %v8752, %v8753
      %v8841 = vcombine.low %v8754, %v8755
      %v8842 = vcombine.low %v8756, %v8757
      %8843 = vrot.lane.b32.xlu0 %v8839, 64
      %v8844 = vpop.permute.xlu0 %8843
      %8845 = vrot.lane.b32.xlu0 %v8840, 64
      %v8846 = vpop.permute.xlu0 %8845
      %8847 = vrot.lane.b32.xlu0 %v8841, 64
      %v8848 = vpop.permute.xlu0 %8847
      %8849 = vrot.lane.b32.xlu0 %v8842, 64
      %v8850 = vpop.permute.xlu0 %8849
      %v8863 = vcombine.low %v8758, %v8759
      %v8864 = vcombine.low %v8760, %v8761
      %v8865 = vcombine.low %v8762, %v8763
      %v8866 = vcombine.low %v8764, %v8765
      %v8879 = vcombine.low %v8766, %v8767
      %v8880 = vcombine.low %v8768, %v8769
      %v8881 = vcombine.low %v8770, %v8771
      %v8882 = vcombine.low %v8772, %v8773
      %8883 = vrot.lane.b32.xlu0 %v8879, 64
      %v8884 = vpop.permute.xlu0 %8883
      %8885 = vrot.lane.b32.xlu0 %v8880, 64
      %v8886 = vpop.permute.xlu0 %8885
      %8887 = vrot.lane.b32.xlu0 %v8881, 64
      %v8888 = vpop.permute.xlu0 %8887
      %8889 = vrot.lane.b32.xlu0 %v8882, 64
      %v8890 = vpop.permute.xlu0 %8889
      %v8903 = vcombine.low %v8774, %v8775
      %v8904 = vcombine.low %v8776, %v8777
      %v8905 = vcombine.low %v8778, %v8779
      %v8906 = vcombine.low %v8780, %v8781
      %v8919 = vcombine.low %v8782, %v8783
      %v8920 = vcombine.low %v8784, %v8785
      %v8921 = vcombine.low %v8786, %v8787
      %v8922 = vcombine.low %v8788, %v8789
      %8923 = vrot.lane.b32.xlu0 %v8919, 64
      %v8924 = vpop.permute.xlu0 %8923
      %8925 = vrot.lane.b32.xlu0 %v8920, 64
      %v8926 = vpop.permute.xlu0 %8925
      %8927 = vrot.lane.b32.xlu0 %v8921, 64
      %v8928 = vpop.permute.xlu0 %8927
      %8929 = vrot.lane.b32.xlu0 %v8922, 64
      %v8930 = vpop.permute.xlu0 %8929
      %v8943 = vcombine.low %v8791, %v8792
      %v8944 = vcombine.low %v8793, %v8794
      %v8945 = vcombine.low %v8795, %v8796
      %v8946 = vcombine.low %v8797, %v8798
      %v8959 = vcombine.low %v8799, %v8800
      %v8960 = vcombine.low %v8801, %v8802
      %v8961 = vcombine.low %v8803, %v8804
      %v8962 = vcombine.low %v8805, %v8806
      %8963 = vrot.lane.b32.xlu0 %v8959, 64
      %v8964 = vpop.permute.xlu0 %8963
      %8965 = vrot.lane.b32.xlu0 %v8960, 64
      %v8966 = vpop.permute.xlu0 %8965
      %8967 = vrot.lane.b32.xlu0 %v8961, 64
      %v8968 = vpop.permute.xlu0 %8967
      %8969 = vrot.lane.b32.xlu0 %v8962, 64
      %v8970 = vpop.permute.xlu0 %8969
      %v8983 = vcombine.low %v8807, %v8808
      %v8984 = vcombine.low %v8809, %v8810
      %v8985 = vcombine.low %v8811, %v8812
      %v8986 = vcombine.low %v8813, %v8814
      %v8987 = vsel %vm3427, %v8823, %v8844
      %v8988 = vsel %vm3427, %v8824, %v8846
      %v8989 = vsel %vm3427, %v8825, %v8848
      %v8990 = vsel %vm3427, %v8826, %v8850
      %v8991 = vsel %vm3427, %v8863, %v8884
      %v8992 = vsel %vm3427, %v8864, %v8886
      %v8993 = vsel %vm3427, %v8865, %v8888
      %v8994 = vsel %vm3427, %v8866, %v8890
      %v8995 = vsel %vm3427, %v8903, %v8924
      %v8996 = vsel %vm3427, %v8904, %v8926
      %v8997 = vsel %vm3427, %v8905, %v8928
      %v8998 = vsel %vm3427, %v8906, %v8930
      %v8999 = vsel %vm3427, %v8943, %v8964
      %v9000 = vsel %vm3427, %v8944, %v8966
      %v9001 = vsel %vm3427, %v8945, %v8968
      %v9002 = vsel %vm3427, %v8946, %v8970
      %v9003 = vld [vmem:[%s11] sm:$0xff]
      %v9004 = vld [vmem:[%s11 + $0x8] sm:$0xff]
      %v9005 = vld [vmem:[%s11 + $0x10] sm:$0xff]
      %v9006 = vld [vmem:[%s11 + $0x18] sm:$0xff]
      %v9007 = vld [vmem:[%s11 + $0x20] sm:$0xff]
      %v9008 = vld [vmem:[%s11 + $0x28] sm:$0xff]
      %v9009 = vld [vmem:[%s11 + $0x30] sm:$0xff]
      %v9010 = vld [vmem:[%s11 + $0x38] sm:$0xff]
      %v9011 = vld [vmem:[%s11 + $0x40] sm:$0xff]
      %v9012 = vld [vmem:[%s11 + $0x48] sm:$0xff]
      %v9013 = vld [vmem:[%s11 + $0x50] sm:$0xff]
      %v9014 = vld [vmem:[%s11 + $0x58] sm:$0xff]
      %v9015 = vld [vmem:[%s11 + $0x60] sm:$0xff]
      %v9016 = vld [vmem:[%s11 + $0x68] sm:$0xff]
      %v9017 = vld [vmem:[%s11 + $0x70] sm:$0xff]
      %v9018 = vld [vmem:[%s11 + $0x78] sm:$0xff]
      %v9019 = vld [vmem:[%s11 + $0x80] sm:$0xff]
      %v9020 = vld [vmem:[%s11 + $0x88] sm:$0xff]
      %v9021 = vld [vmem:[%s11 + $0x90] sm:$0xff]
      %v9022 = vld [vmem:[%s11 + $0x98] sm:$0xff]
      %v9023 = vld [vmem:[%s11 + $0xa0] sm:$0xff]
      %v9024 = vld [vmem:[%s11 + $0xa8] sm:$0xff]
      %v9025 = vld [vmem:[%s11 + $0xb0] sm:$0xff]
      %v9026 = vld [vmem:[%s11 + $0xb8] sm:$0xff]
      %v9027 = vld [vmem:[%s11 + $0xc0] sm:$0xff]
      %v9028 = vld [vmem:[%s11 + $0xc8] sm:$0xff]
      %v9029 = vld [vmem:[%s11 + $0xd0] sm:$0xff]
      %v9030 = vld [vmem:[%s11 + $0xd8] sm:$0xff]
      %v9031 = vld [vmem:[%s11 + $0xe0] sm:$0xff]
      %v9032 = vld [vmem:[%s11 + $0xe8] sm:$0xff]
      %v9033 = vld [vmem:[%s11 + $0xf0] sm:$0xff]
      %v9034 = vld [vmem:[%s11 + $0xf8] sm:$0xff]
      %v9035 = vld [vmem:[%s11 + $0x100] sm:$0xff]
      %v9036 = vld [vmem:[%s11 + $0x108] sm:$0xff]
      %v9037 = vld [vmem:[%s11 + $0x110] sm:$0xff]
      %v9038 = vld [vmem:[%s11 + $0x118] sm:$0xff]
      %v9039 = vld [vmem:[%s11 + $0x120] sm:$0xff]
      %v9040 = vld [vmem:[%s11 + $0x128] sm:$0xff]
      %v9041 = vld [vmem:[%s11 + $0x130] sm:$0xff]
      %v9042 = vld [vmem:[%s11 + $0x138] sm:$0xff]
      %v9043 = vld [vmem:[%s11 + $0x140] sm:$0xff]
      %v9044 = vld [vmem:[%s11 + $0x148] sm:$0xff]
      %v9045 = vld [vmem:[%s11 + $0x150] sm:$0xff]
      %v9046 = vld [vmem:[%s11 + $0x158] sm:$0xff]
      %v9047 = vld [vmem:[%s11 + $0x160] sm:$0xff]
      %v9048 = vld [vmem:[%s11 + $0x168] sm:$0xff]
      %v9049 = vld [vmem:[%s11 + $0x170] sm:$0xff]
      %v9050 = vld [vmem:[%s11 + $0x178] sm:$0xff]
      %v9051 = vld [vmem:[%s11 + $0x180] sm:$0xff]
      %v9052 = vld [vmem:[%s11 + $0x188] sm:$0xff]
      %v9053 = vld [vmem:[%s11 + $0x190] sm:$0xff]
      %v9054 = vld [vmem:[%s11 + $0x198] sm:$0xff]
      %v9055 = vld [vmem:[%s11 + $0x1a0] sm:$0xff]
      %v9056 = vld [vmem:[%s11 + $0x1a8] sm:$0xff]
      %v9057 = vld [vmem:[%s11 + $0x1b0] sm:$0xff]
      %v9058 = vld [vmem:[%s11 + $0x1b8] sm:$0xff]
      %v9059 = vld [vmem:[%s11 + $0x1c0] sm:$0xff]
      %v9060 = vld [vmem:[%s11 + $0x1c8] sm:$0xff]
      %v9061 = vld [vmem:[%s11 + $0x1d0] sm:$0xff]
      %v9062 = vld [vmem:[%s11 + $0x1d8] sm:$0xff]
      %v9063 = vld [vmem:[%s11 + $0x1e0] sm:$0xff]
      %v9064 = vld [vmem:[%s11 + $0x1e8] sm:$0xff]
      %v9065 = vld [vmem:[%s11 + $0x1f0] sm:$0xff]
      %v9066 = vld [vmem:[%s11 + $0x1f8] sm:$0xff]
      %v9067 = vld [vmem:[%s11 + $0x200] sm:$0xff]
      %v9068 = vld [vmem:[%s11 + $0x208] sm:$0xff]
      %v9069 = vld [vmem:[%s11 + $0x210] sm:$0xff]
      %v9070 = vld [vmem:[%s11 + $0x218] sm:$0xff]
      %v9071 = vld [vmem:[%s11 + $0x220] sm:$0xff]
      %v9072 = vld [vmem:[%s11 + $0x228] sm:$0xff]
      %v9073 = vld [vmem:[%s11 + $0x230] sm:$0xff]
      %v9074 = vld [vmem:[%s11 + $0x238] sm:$0xff]
      %v9075 = vsel %vm3427, %v8983, 0
      %v9077 = vsel %vm3427, %v8984, 0
      %v9079 = vsel %vm3427, %v8985, 0
      %v9081 = vsel %vm3427, %v8986, 0
      %9083 = vmatprep.subr.mxu0 0.0
      %9084 = vmatpush1.msra.mxu0 %v9018
      %9085 = vmatprep.subr.mxu0 0.0
      %9086 = vmatpush1.msra.mxu0 %v9017
      %9087 = vmatprep.subr.mxu0 0.0
      %9088 = vmatpush1.msra.mxu0 %v9016
      %9089 = vmatprep.subr.mxu0 0.0
      %9090 = vmatpush1.msra.mxu0 %v9015
      %9091 = vmatprep.subr.mxu0 0.0
      %9092 = vmatpush1.msra.mxu0 %v9014
      %9093 = vmatprep.subr.mxu0 0.0
      %9094 = vmatpush1.msra.mxu0 %v9013
      %9095 = vmatprep.subr.mxu0 0.0
      %9096 = vmatpush1.msra.mxu0 %v9012
      %9097 = vmatprep.subr.mxu0 0.0
      %9098 = vmatpush1.msra.mxu0 %v9011
      %9099 = vmatprep.subr.mxu0 0.0
      %9100 = vmatpush1.msra.mxu0 %v9010
      %9101 = vmatprep.subr.mxu0 0.0
      %9102 = vmatpush1.msra.mxu0 %v9009
      %9103 = vmatprep.subr.mxu0 0.0
      %9104 = vmatpush1.msra.mxu0 %v9008
      %9105 = vmatprep.subr.mxu0 0.0
      %9106 = vmatpush1.msra.mxu0 %v9007
      %9107 = vmatprep.subr.mxu0 0.0
      %9108 = vmatpush1.msra.mxu0 %v9006
      %9109 = vmatprep.subr.mxu0 0.0
      %9110 = vmatpush1.msra.mxu0 %v9005
      %9111 = vmatprep.subr.mxu0 0.0
      %9112 = vmatpush1.msra.mxu0 %v9004
      %9113 = vmatprep.subr.mxu0 0.0
      %9114 = vmatpush1.msra.mxu0 %v9003
      %9115 = vmatprep.subr.mxu0 0.0
      %9116 = vmatpush2.msra.mxu0 %v9034
      %9117 = vmatprep.subr.mxu0 0.0
      %9118 = vmatpush2.msra.mxu0 %v9033
      %9119 = vmatprep.subr.mxu0 0.0
      %9120 = vmatpush2.msra.mxu0 %v9032
      %9121 = vmatprep.subr.mxu0 0.0
      %9122 = vmatpush2.msra.mxu0 %v9031
      %9123 = vmatprep.subr.mxu0 0.0
      %9124 = vmatpush2.msra.mxu0 %v9030
      %9125 = vmatprep.subr.mxu0 0.0
      %9126 = vmatpush2.msra.mxu0 %v9029
      %9127 = vmatprep.subr.mxu0 0.0
      %9128 = vmatpush2.msra.mxu0 %v9028
      %9129 = vmatprep.subr.mxu0 0.0
      %9130 = vmatpush2.msra.mxu0 %v9027
      %9131 = vmatprep.subr.mxu0 0.0
      %9132 = vmatpush2.msra.mxu0 %v9026
      %9133 = vmatprep.subr.mxu0 0.0
      %9134 = vmatpush2.msra.mxu0 %v9025
      %9135 = vmatprep.subr.mxu0 0.0
      %9136 = vmatpush2.msra.mxu0 %v9024
      %9137 = vmatprep.subr.mxu0 0.0
      %9138 = vmatpush2.msra.mxu0 %v9023
      %9139 = vmatprep.subr.mxu0 0.0
      %9140 = vmatpush2.msra.mxu0 %v9022
      %9141 = vmatprep.subr.mxu0 0.0
      %9142 = vmatpush2.msra.mxu0 %v9021
      %9143 = vmatprep.subr.mxu0 0.0
      %9144 = vmatpush2.msra.mxu0 %v9020
      %9145 = vmatprep.subr.mxu0 0.0
      %9146 = vmatpush2.msra.mxu0 %v9019
      %9147 = vmatprep.mubr.f32.mxu0 %v8991
      %9148 = vmatmul.mubr.f32.gmra.mxu0 %v8987
      %v9149 = vpop.f32.mrf.mxu0
      %v9150 = vadd.f32 0.0, %v9149
      %v9151 = vpop.f32.mrf.mxu0
      %9152 = vmatprep.mubr.f32.mxu0 %v8992
      %9153 = vmatmul.mubr.f32.gmra.mxu0 %v8988
      %v9154 = vpop.f32.mrf.mxu0
      %v9155 = vadd.f32 0.0, %v9154
      %v9156 = vpop.f32.mrf.mxu0
      %9157 = vmatprep.mubr.f32.mxu0 %v8993
      %9158 = vmatmul.mubr.f32.gmra.mxu0 %v8989
      %v9159 = vpop.f32.mrf.mxu0
      %v9160 = vadd.f32 0.0, %v9159
      %v9161 = vpop.f32.mrf.mxu0
      %9162 = vmatprep.mubr.f32.mxu0 %v8994
      %9163 = vmatmul.mubr.f32.gmra.mxu0 %v8990
      %v9164 = vpop.f32.mrf.mxu0
      %v9165 = vadd.f32 0.0, %v9164
      %v9166 = vpop.f32.mrf.mxu0
      %9167 = vdwg.mxu0
      %9168 = vmatprep.subr.mxu0 0.0
      %9169 = vmatpush1.msra.mxu0 %v9050
      %9170 = vmatprep.subr.mxu0 0.0
      %9171 = vmatpush1.msra.mxu0 %v9049
      %9172 = vmatprep.subr.mxu0 0.0
      %9173 = vmatpush1.msra.mxu0 %v9048
      %9174 = vmatprep.subr.mxu0 0.0
      %9175 = vmatpush1.msra.mxu0 %v9047
      %9176 = vmatprep.subr.mxu0 0.0
      %9177 = vmatpush1.msra.mxu0 %v9046
      %9178 = vmatprep.subr.mxu0 0.0
      %9179 = vmatpush1.msra.mxu0 %v9045
      %9180 = vmatprep.subr.mxu0 0.0
      %9181 = vmatpush1.msra.mxu0 %v9044
      %9182 = vmatprep.subr.mxu0 0.0
      %9183 = vmatpush1.msra.mxu0 %v9043
      %9184 = vmatprep.subr.mxu0 0.0
      %9185 = vmatpush1.msra.mxu0 %v9042
      %9186 = vmatprep.subr.mxu0 0.0
      %9187 = vmatpush1.msra.mxu0 %v9041
      %9188 = vmatprep.subr.mxu0 0.0
      %9189 = vmatpush1.msra.mxu0 %v9040
      %9190 = vmatprep.subr.mxu0 0.0
      %9191 = vmatpush1.msra.mxu0 %v9039
      %9192 = vmatprep.subr.mxu0 0.0
      %9193 = vmatpush1.msra.mxu0 %v9038
      %9194 = vmatprep.subr.mxu0 0.0
      %9195 = vmatpush1.msra.mxu0 %v9037
      %9196 = vmatprep.subr.mxu0 0.0
      %9197 = vmatpush1.msra.mxu0 %v9036
      %9198 = vmatprep.subr.mxu0 0.0
      %9199 = vmatpush1.msra.mxu0 %v9035
      %9200 = vmatprep.subr.mxu0 0.0
      %9201 = vmatpush2.msra.mxu0 %v9066
      %9202 = vmatprep.subr.mxu0 0.0
      %9203 = vmatpush2.msra.mxu0 %v9065
      %9204 = vmatprep.subr.mxu0 0.0
      %9205 = vmatpush2.msra.mxu0 %v9064
      %9206 = vmatprep.subr.mxu0 0.0
      %9207 = vmatpush2.msra.mxu0 %v9063
      %9208 = vmatprep.subr.mxu0 0.0
      %9209 = vmatpush2.msra.mxu0 %v9062
      %9210 = vmatprep.subr.mxu0 0.0
      %9211 = vmatpush2.msra.mxu0 %v9061
      %9212 = vmatprep.subr.mxu0 0.0
      %9213 = vmatpush2.msra.mxu0 %v9060
      %9214 = vmatprep.subr.mxu0 0.0
      %9215 = vmatpush2.msra.mxu0 %v9059
      %9216 = vmatprep.subr.mxu0 0.0
      %9217 = vmatpush2.msra.mxu0 %v9058
      %9218 = vmatprep.subr.mxu0 0.0
      %9219 = vmatpush2.msra.mxu0 %v9057
      %9220 = vmatprep.subr.mxu0 0.0
      %9221 = vmatpush2.msra.mxu0 %v9056
      %9222 = vmatprep.subr.mxu0 0.0
      %9223 = vmatpush2.msra.mxu0 %v9055
      %9224 = vmatprep.subr.mxu0 0.0
      %9225 = vmatpush2.msra.mxu0 %v9054
      %9226 = vmatprep.subr.mxu0 0.0
      %9227 = vmatpush2.msra.mxu0 %v9053
      %9228 = vmatprep.subr.mxu0 0.0
      %9229 = vmatpush2.msra.mxu0 %v9052
      %9230 = vmatprep.subr.mxu0 0.0
      %9231 = vmatpush2.msra.mxu0 %v9051
      %9232 = vmatprep.mubr.f32.mxu0 %v8999
      %9233 = vmatmul.mubr.f32.gmra.mxu0 %v8995
      %v9234 = vpop.f32.mrf.mxu0
      %v9235 = vadd.f32 %v9150, %v9234
      %v9236 = vpop.f32.mrf.mxu0
      %9237 = vmatprep.mubr.f32.mxu0 %v9000
      %9238 = vmatmul.mubr.f32.gmra.mxu0 %v8996
      %v9239 = vpop.f32.mrf.mxu0
      %v9240 = vadd.f32 %v9155, %v9239
      %v9241 = vpop.f32.mrf.mxu0
      %9242 = vmatprep.mubr.f32.mxu0 %v9001
      %9243 = vmatmul.mubr.f32.gmra.mxu0 %v8997
      %v9244 = vpop.f32.mrf.mxu0
      %v9245 = vadd.f32 %v9160, %v9244
      %v9246 = vpop.f32.mrf.mxu0
      %9247 = vmatprep.mubr.f32.mxu0 %v9002
      %9248 = vmatmul.mubr.f32.gmra.mxu0 %v8998
      %v9249 = vpop.f32.mrf.mxu0
      %v9250 = vadd.f32 %v9165, %v9249
      %v9251 = vpop.f32.mrf.mxu0
      %9252 = vdwg.mxu0
      %9253 = vmatprep.subr.mxu0 0.0
      %9254 = vmatpush1.msra.mxu0 0.0
      %9255 = vmatprep.subr.mxu0 0.0
      %9256 = vmatpush1.msra.mxu0 0.0
      %9257 = vmatprep.subr.mxu0 0.0
      %9258 = vmatpush1.msra.mxu0 0.0
      %9259 = vmatprep.subr.mxu0 0.0
      %9260 = vmatpush1.msra.mxu0 0.0
      %9261 = vmatprep.subr.mxu0 0.0
      %9262 = vmatpush1.msra.mxu0 0.0
      %9263 = vmatprep.subr.mxu0 0.0
      %9264 = vmatpush1.msra.mxu0 0.0
      %9265 = vmatprep.subr.mxu0 0.0
      %9266 = vmatpush1.msra.mxu0 0.0
      %9267 = vmatprep.subr.mxu0 0.0
      %9268 = vmatpush1.msra.mxu0 0.0
      %9269 = vmatprep.subr.mxu0 0.0
      %9270 = vmatpush1.msra.mxu0 %v9074
      %9271 = vmatprep.subr.mxu0 0.0
      %9272 = vmatpush1.msra.mxu0 %v9073
      %9273 = vmatprep.subr.mxu0 0.0
      %9274 = vmatpush1.msra.mxu0 %v9072
      %9275 = vmatprep.subr.mxu0 0.0
      %9276 = vmatpush1.msra.mxu0 %v9071
      %9277 = vmatprep.subr.mxu0 0.0
      %9278 = vmatpush1.msra.mxu0 %v9070
      %9279 = vmatprep.subr.mxu0 0.0
      %9280 = vmatpush1.msra.mxu0 %v9069
      %9281 = vmatprep.subr.mxu0 0.0
      %9282 = vmatpush1.msra.mxu0 %v9068
      %9283 = vmatprep.subr.mxu0 0.0
      %9284 = vmatpush1.msra.mxu0 %v9067
      %9285 = vmatprep.subr.mxu0 0.0
      %9286 = vmatpush2.msra.mxu0 0.0
      %9287 = vmatprep.subr.mxu0 0.0
      %9288 = vmatpush2.msra.mxu0 0.0
      %9289 = vmatprep.subr.mxu0 0.0
      %9290 = vmatpush2.msra.mxu0 0.0
      %9291 = vmatprep.subr.mxu0 0.0
      %9292 = vmatpush2.msra.mxu0 0.0
      %9293 = vmatprep.subr.mxu0 0.0
      %9294 = vmatpush2.msra.mxu0 0.0
      %9295 = vmatprep.subr.mxu0 0.0
      %9296 = vmatpush2.msra.mxu0 0.0
      %9297 = vmatprep.subr.mxu0 0.0
      %9298 = vmatpush2.msra.mxu0 0.0
      %9299 = vmatprep.subr.mxu0 0.0
      %9300 = vmatpush2.msra.mxu0 0.0
      %9301 = vmatprep.subr.mxu0 0.0
      %9302 = vmatpush2.msra.mxu0 0.0
      %9303 = vmatprep.subr.mxu0 0.0
      %9304 = vmatpush2.msra.mxu0 0.0
      %9305 = vmatprep.subr.mxu0 0.0
      %9306 = vmatpush2.msra.mxu0 0.0
      %9307 = vmatprep.subr.mxu0 0.0
      %9308 = vmatpush2.msra.mxu0 0.0
      %9309 = vmatprep.subr.mxu0 0.0
      %9310 = vmatpush2.msra.mxu0 0.0
      %9311 = vmatprep.subr.mxu0 0.0
      %9312 = vmatpush2.msra.mxu0 0.0
      %9313 = vmatprep.subr.mxu0 0.0
      %9314 = vmatpush2.msra.mxu0 0.0
      %9315 = vmatprep.subr.mxu0 0.0
      %9316 = vmatpush2.msra.mxu0 0.0
      %9317 = vmatprep.mubr.f32.mxu0 0.0
      %9318 = vmatmul.mubr.f32.gmra.mxu0 %v9075
      %v9319 = vpop.f32.mrf.mxu0
      %v9320 = vadd.f32 %v9235, %v9319
      %v9321 = vpop.f32.mrf.mxu0
      %9322 = vmatprep.mubr.f32.mxu0 0.0
      %9323 = vmatmul.mubr.f32.gmra.mxu0 %v9077
      %v9324 = vpop.f32.mrf.mxu0
      %v9325 = vadd.f32 %v9240, %v9324
      %v9326 = vpop.f32.mrf.mxu0
      %9327 = vmatprep.mubr.f32.mxu0 0.0
      %9328 = vmatmul.mubr.f32.gmra.mxu0 %v9079
      %v9329 = vpop.f32.mrf.mxu0
      %v9330 = vadd.f32 %v9245, %v9329
      %v9331 = vpop.f32.mrf.mxu0
      %9332 = vmatprep.mubr.f32.mxu0 0.0
      %9333 = vmatmul.mubr.f32.gmra.mxu0 %v9081
      %v9334 = vpop.f32.mrf.mxu0
      %v9335 = vadd.f32 %v9250, %v9334
      %v9336 = vpop.f32.mrf.mxu0
      %9337 = vdwg.mxu0
      %v9338 = vld [vmem:[%s13] sm:$0xff]
      %v9339 = vld [vmem:[%s13 + $0x8] sm:$0xff]
      %v9340 = vld [vmem:[%s13 + $0x10] sm:$0xff]
      %v9341 = vld [vmem:[%s13 + $0x18] sm:$0xff]
      %v9342 = vld [vmem:[%s13 + $0x20] sm:$0xff]
      %v9343 = vld [vmem:[%s13 + $0x28] sm:$0xff]
      %v9344 = vld [vmem:[%s13 + $0x30] sm:$0xff]
      %v9345 = vld [vmem:[%s13 + $0x38] sm:$0xff]
      %v9346 = vld [vmem:[%s13 + $0x40] sm:$0xff]
      %v9347 = vld [vmem:[%s13 + $0x48] sm:$0xff]
      %v9348 = vld [vmem:[%s13 + $0x50] sm:$0xff]
      %v9349 = vld [vmem:[%s13 + $0x58] sm:$0xff]
      %v9350 = vld [vmem:[%s13 + $0x60] sm:$0xff]
      %v9351 = vld [vmem:[%s13 + $0x68] sm:$0xff]
      %v9352 = vld [vmem:[%s13 + $0x70] sm:$0xff]
      %v9353 = vld [vmem:[%s13 + $0x78] sm:$0xff]
      %v9354 = vadd.f32 %v9320, %v9325
      %v9355 = vadd.f32 %v9354, %v9330
      %v9356 = vadd.f32 %v9355, %v9335
      %v9357 = vrot.slane %v9356, 4
      %v9358 = vadd.f32 %v9356, %v9357
      %v9359 = vrot.slane %v9358, 2
      %v9360 = vadd.f32 %v9358, %v9359
      %v9361 = vrot.slane %v9360, 1
      %v9362 = vadd.f32 %v9360, %v9361
      %9363 = vmatprep.subr.mxu0 0.0
      %9364 = vmatpush1.msra.mxu0 %v9353
      %9365 = vmatprep.subr.mxu0 0.0
      %9366 = vmatpush1.msra.mxu0 %v9352
      %9367 = vmatprep.subr.mxu0 0.0
      %9368 = vmatpush1.msra.mxu0 %v9351
      %9369 = vmatprep.subr.mxu0 0.0
      %9370 = vmatpush1.msra.mxu0 %v9350
      %9371 = vmatprep.subr.mxu0 0.0
      %9372 = vmatpush1.msra.mxu0 %v9349
      %9373 = vmatprep.subr.mxu0 0.0
      %9374 = vmatpush1.msra.mxu0 %v9348
      %9375 = vmatprep.subr.mxu0 0.0
      %9376 = vmatpush1.msra.mxu0 %v9347
      %9377 = vmatprep.subr.mxu0 0.0
      %9378 = vmatpush1.msra.mxu0 %v9346
      %9379 = vmatprep.subr.mxu0 0.0
      %9380 = vmatpush1.msra.mxu0 %v9345
      %9381 = vmatprep.subr.mxu0 0.0
      %9382 = vmatpush1.msra.mxu0 %v9344
      %9383 = vmatprep.subr.mxu0 0.0
      %9384 = vmatpush1.msra.mxu0 %v9343
      %9385 = vmatprep.subr.mxu0 0.0
      %9386 = vmatpush1.msra.mxu0 %v9342
      %9387 = vmatprep.subr.mxu0 0.0
      %9388 = vmatpush1.msra.mxu0 %v9341
      %9389 = vmatprep.subr.mxu0 0.0
      %9390 = vmatpush1.msra.mxu0 %v9340
      %9391 = vmatprep.subr.mxu0 0.0
      %9392 = vmatpush1.msra.mxu0 %v9339
      %9393 = vmatprep.subr.mxu0 0.0
      %9394 = vmatpush1.msra.mxu0 %v9338
      %9395 = vmatprep.subr.mxu0 0.0
      %9396 = vmatpush2.msra.mxu0 0.0
      %9397 = vmatprep.subr.mxu0 0.0
      %9398 = vmatpush2.msra.mxu0 0.0
      %9399 = vmatprep.subr.mxu0 0.0
      %9400 = vmatpush2.msra.mxu0 0.0
      %9401 = vmatprep.subr.mxu0 0.0
      %9402 = vmatpush2.msra.mxu0 0.0
      %9403 = vmatprep.subr.mxu0 0.0
      %9404 = vmatpush2.msra.mxu0 0.0
      %9405 = vmatprep.subr.mxu0 0.0
      %9406 = vmatpush2.msra.mxu0 0.0
      %9407 = vmatprep.subr.mxu0 0.0
      %9408 = vmatpush2.msra.mxu0 0.0
      %9409 = vmatprep.subr.mxu0 0.0
      %9410 = vmatpush2.msra.mxu0 0.0
      %9411 = vmatprep.subr.mxu0 0.0
      %9412 = vmatpush2.msra.mxu0 0.0
      %9413 = vmatprep.subr.mxu0 0.0
      %9414 = vmatpush2.msra.mxu0 0.0
      %9415 = vmatprep.subr.mxu0 0.0
      %9416 = vmatpush2.msra.mxu0 0.0
      %9417 = vmatprep.subr.mxu0 0.0
      %9418 = vmatpush2.msra.mxu0 0.0
      %9419 = vmatprep.subr.mxu0 0.0
      %9420 = vmatpush2.msra.mxu0 0.0
      %9421 = vmatprep.subr.mxu0 0.0
      %9422 = vmatpush2.msra.mxu0 0.0
      %9423 = vmatprep.subr.mxu0 0.0
      %9424 = vmatpush2.msra.mxu0 0.0
      %9425 = vmatprep.subr.mxu0 0.0
      %9426 = vmatpush2.msra.mxu0 0.0
      %9427 = vmatprep.mubr.f32.mxu0 0.0
      %9428 = vmatmul.mubr.f32.gmra.mxu0 %v9362
      %v9429 = vpop.f32.mrf.mxu0
      %v9430 = vadd.f32 0.0, %v9429
      %v9431 = vpop.f32.mrf.mxu0
      %9432 = vdwg.mxu0
      %v9433 = vmul.f32 %v9430, 0.0078125
      %v9434 = vmul.f32 %v9320, %v9320
      %v9435 = vmul.f32 %v9325, %v9325
      %v9436 = vmul.f32 %v9330, %v9330
      %v9437 = vmul.f32 %v9335, %v9335
      %v9438 = vadd.f32 %v9434, %v9435
      %v9439 = vadd.f32 %v9438, %v9436
      %v9440 = vadd.f32 %v9439, %v9437
      %v9441 = vrot.slane %v9440, 4
      %v9442 = vadd.f32 %v9440, %v9441
      %v9443 = vrot.slane %v9442, 2
      %v9444 = vadd.f32 %v9442, %v9443
      %v9445 = vrot.slane %v9444, 1
      %v9446 = vadd.f32 %v9444, %v9445
      %9447 = vmatprep.subr.mxu0 0.0
      %9448 = vmatpush1.msra.mxu0 %v9353
      %9449 = vmatprep.subr.mxu0 0.0
      %9450 = vmatpush1.msra.mxu0 %v9352
      %9451 = vmatprep.subr.mxu0 0.0
      %9452 = vmatpush1.msra.mxu0 %v9351
      %9453 = vmatprep.subr.mxu0 0.0
      %9454 = vmatpush1.msra.mxu0 %v9350
      %9455 = vmatprep.subr.mxu0 0.0
      %9456 = vmatpush1.msra.mxu0 %v9349
      %9457 = vmatprep.subr.mxu0 0.0
      %9458 = vmatpush1.msra.mxu0 %v9348
      %9459 = vmatprep.subr.mxu0 0.0
      %9460 = vmatpush1.msra.mxu0 %v9347
      %9461 = vmatprep.subr.mxu0 0.0
      %9462 = vmatpush1.msra.mxu0 %v9346
      %9463 = vmatprep.subr.mxu0 0.0
      %9464 = vmatpush1.msra.mxu0 %v9345
      %9465 = vmatprep.subr.mxu0 0.0
      %9466 = vmatpush1.msra.mxu0 %v9344
      %9467 = vmatprep.subr.mxu0 0.0
      %9468 = vmatpush1.msra.mxu0 %v9343
      %9469 = vmatprep.subr.mxu0 0.0
      %9470 = vmatpush1.msra.mxu0 %v9342
      %9471 = vmatprep.subr.mxu0 0.0
      %9472 = vmatpush1.msra.mxu0 %v9341
      %9473 = vmatprep.subr.mxu0 0.0
      %9474 = vmatpush1.msra.mxu0 %v9340
      %9475 = vmatprep.subr.mxu0 0.0
      %9476 = vmatpush1.msra.mxu0 %v9339
      %9477 = vmatprep.subr.mxu0 0.0
      %9478 = vmatpush1.msra.mxu0 %v9338
      %9479 = vmatprep.subr.mxu0 0.0
      %9480 = vmatpush2.msra.mxu0 0.0
      %9481 = vmatprep.subr.mxu0 0.0
      %9482 = vmatpush2.msra.mxu0 0.0
      %9483 = vmatprep.subr.mxu0 0.0
      %9484 = vmatpush2.msra.mxu0 0.0
      %9485 = vmatprep.subr.mxu0 0.0
      %9486 = vmatpush2.msra.mxu0 0.0
      %9487 = vmatprep.subr.mxu0 0.0
      %9488 = vmatpush2.msra.mxu0 0.0
      %9489 = vmatprep.subr.mxu0 0.0
      %9490 = vmatpush2.msra.mxu0 0.0
      %9491 = vmatprep.subr.mxu0 0.0
      %9492 = vmatpush2.msra.mxu0 0.0
      %9493 = vmatprep.subr.mxu0 0.0
      %9494 = vmatpush2.msra.mxu0 0.0
      %9495 = vmatprep.subr.mxu0 0.0
      %9496 = vmatpush2.msra.mxu0 0.0
      %9497 = vmatprep.subr.mxu0 0.0
      %9498 = vmatpush2.msra.mxu0 0.0
      %9499 = vmatprep.subr.mxu0 0.0
      %9500 = vmatpush2.msra.mxu0 0.0
      %9501 = vmatprep.subr.mxu0 0.0
      %9502 = vmatpush2.msra.mxu0 0.0
      %9503 = vmatprep.subr.mxu0 0.0
      %9504 = vmatpush2.msra.mxu0 0.0
      %9505 = vmatprep.subr.mxu0 0.0
      %9506 = vmatpush2.msra.mxu0 0.0
      %9507 = vmatprep.subr.mxu0 0.0
      %9508 = vmatpush2.msra.mxu0 0.0
      %9509 = vmatprep.subr.mxu0 0.0
      %9510 = vmatpush2.msra.mxu0 0.0
      %9511 = vmatprep.mubr.f32.mxu0 0.0
      %9512 = vmatmul.mubr.f32.gmra.mxu0 %v9446
      %v9513 = vpop.f32.mrf.mxu0
      %v9514 = vadd.f32 0.0, %v9513
      %v9515 = vpop.f32.mrf.mxu0
      %9516 = vdwg.mxu0
      %v9517 = vmul.f32 %v9514, 0.0078125
      %v9518 = vmul.f32 %v9433, %v9433
      %v9519 = vsub.f32 %v9517, %v9518
      %v9520 = vld [vmem:[%s12] sm:$0x1]
      %v9521 = vadd.f32 %v9519, 1e-05
      %v9522 = vrsqrt.pop %v9521
      %v9523 = vmul.f32 %v9520, %v9522
      %v9524 = vld [vmem:[%s12 + $0x1] sm:$0x1]
      %v9525 = vmul.f32 %v9433, %v9523
      %v9526 = vsub.f32 %v9524, %v9525
      %v9527 = vlaneseq
      %v9528 = vshrl.u32 %v9527, 7
      %v9529 = vsub.s32 0, %v9528
      %v9530 = vrot.slane %v9523, %v9529
      %v9531 = vmul.f32 %v9320, %v9530
      %v9532 = vmul.f32 %v9325, %v9530
      %v9533 = vmul.f32 %v9330, %v9530
      %v9534 = vmul.f32 %v9335, %v9530
      %v9535 = vlaneseq
      %v9536 = vshrl.u32 %v9535, 7
      %v9537 = vsub.s32 0, %v9536
      %v9538 = vrot.slane %v9526, %v9537
      %v9539 = vadd.f32 %v9531, %v9538
      %v9540 = vadd.f32 %v9532, %v9538
      %v9541 = vadd.f32 %v9533, %v9538
      %v9542 = vadd.f32 %v9534, %v9538
      %vm9543 = vcmp.gt.f32.partialorder %v9539, 0.0
      %vm9544 = vcmp.gt.f32.partialorder %v9540, 0.0
      %vm9545 = vcmp.gt.f32.partialorder %v9541, 0.0
      %vm9546 = vcmp.gt.f32.partialorder %v9542, 0.0
      %v9547 = vmul.f32 %v9539, 0.2
      %v9548 = vmul.f32 %v9540, 0.2
      %v9549 = vmul.f32 %v9541, 0.2
      %v9550 = vmul.f32 %v9542, 0.2
      %v9551 = vsel %vm9543, %v9539, %v9547
      %v9552 = vsel %vm9544, %v9540, %v9548
      %v9553 = vsel %vm9545, %v9541, %v9549
      %v9554 = vsel %vm9546, %v9542, %v9550
      %v9555 = vld [vmem:[%s14] sm:$0xff]
      %v9556 = vld [vmem:[%s14 + $0x8] sm:$0xff]
      %v9557 = vld [vmem:[%s14 + $0x10] sm:$0xff]
      %v9558 = vld [vmem:[%s14 + $0x18] sm:$0xff]
      %v9559 = vld [vmem:[%s14 + $0x20] sm:$0xff]
      %v9560 = vld [vmem:[%s14 + $0x28] sm:$0xff]
      %v9561 = vld [vmem:[%s14 + $0x30] sm:$0xff]
      %v9562 = vld [vmem:[%s14 + $0x38] sm:$0xff]
      %v9563 = vld [vmem:[%s14 + $0x40] sm:$0xff]
      %v9564 = vld [vmem:[%s14 + $0x48] sm:$0xff]
      %v9565 = vld [vmem:[%s14 + $0x50] sm:$0xff]
      %v9566 = vld [vmem:[%s14 + $0x58] sm:$0xff]
      %v9567 = vld [vmem:[%s14 + $0x60] sm:$0xff]
      %v9568 = vld [vmem:[%s14 + $0x68] sm:$0xff]
      %v9569 = vld [vmem:[%s14 + $0x70] sm:$0xff]
      %v9570 = vld [vmem:[%s14 + $0x78] sm:$0xff]
      %9571 = vmatprep.subr.mxu0 0.0
      %9572 = vmatpush1.msra.mxu0 %v9570
      %9573 = vmatprep.subr.mxu0 0.0
      %9574 = vmatpush1.msra.mxu0 %v9569
      %9575 = vmatprep.subr.mxu0 0.0
      %9576 = vmatpush1.msra.mxu0 %v9568
      %9577 = vmatprep.subr.mxu0 0.0
      %9578 = vmatpush1.msra.mxu0 %v9567
      %9579 = vmatprep.subr.mxu0 0.0
      %9580 = vmatpush1.msra.mxu0 %v9566
      %9581 = vmatprep.subr.mxu0 0.0
      %9582 = vmatpush1.msra.mxu0 %v9565
      %9583 = vmatprep.subr.mxu0 0.0
      %9584 = vmatpush1.msra.mxu0 %v9564
      %9585 = vmatprep.subr.mxu0 0.0
      %9586 = vmatpush1.msra.mxu0 %v9563
      %9587 = vmatprep.subr.mxu0 0.0
      %9588 = vmatpush1.msra.mxu0 %v9562
      %9589 = vmatprep.subr.mxu0 0.0
      %9590 = vmatpush1.msra.mxu0 %v9561
      %9591 = vmatprep.subr.mxu0 0.0
      %9592 = vmatpush1.msra.mxu0 %v9560
      %9593 = vmatprep.subr.mxu0 0.0
      %9594 = vmatpush1.msra.mxu0 %v9559
      %9595 = vmatprep.subr.mxu0 0.0
      %9596 = vmatpush1.msra.mxu0 %v9558
      %9597 = vmatprep.subr.mxu0 0.0
      %9598 = vmatpush1.msra.mxu0 %v9557
      %9599 = vmatprep.subr.mxu0 0.0
      %9600 = vmatpush1.msra.mxu0 %v9556
      %9601 = vmatprep.subr.mxu0 0.0
      %9602 = vmatpush1.msra.mxu0 %v9555
      %9603 = vmatprep.subr.mxu0 0.0
      %9604 = vmatpush2.msra.mxu0 0.0
      %9605 = vmatprep.subr.mxu0 0.0
      %9606 = vmatpush2.msra.mxu0 0.0
      %9607 = vmatprep.subr.mxu0 0.0
      %9608 = vmatpush2.msra.mxu0 0.0
      %9609 = vmatprep.subr.mxu0 0.0
      %9610 = vmatpush2.msra.mxu0 0.0
      %9611 = vmatprep.subr.mxu0 0.0
      %9612 = vmatpush2.msra.mxu0 0.0
      %9613 = vmatprep.subr.mxu0 0.0
      %9614 = vmatpush2.msra.mxu0 0.0
      %9615 = vmatprep.subr.mxu0 0.0
      %9616 = vmatpush2.msra.mxu0 0.0
      %9617 = vmatprep.subr.mxu0 0.0
      %9618 = vmatpush2.msra.mxu0 0.0
      %9619 = vmatprep.subr.mxu0 0.0
      %9620 = vmatpush2.msra.mxu0 0.0
      %9621 = vmatprep.subr.mxu0 0.0
      %9622 = vmatpush2.msra.mxu0 0.0
      %9623 = vmatprep.subr.mxu0 0.0
      %9624 = vmatpush2.msra.mxu0 0.0
      %9625 = vmatprep.subr.mxu0 0.0
      %9626 = vmatpush2.msra.mxu0 0.0
      %9627 = vmatprep.subr.mxu0 0.0
      %9628 = vmatpush2.msra.mxu0 0.0
      %9629 = vmatprep.subr.mxu0 0.0
      %9630 = vmatpush2.msra.mxu0 0.0
      %9631 = vmatprep.subr.mxu0 0.0
      %9632 = vmatpush2.msra.mxu0 0.0
      %9633 = vmatprep.subr.mxu0 0.0
      %9634 = vmatpush2.msra.mxu0 0.0
      %9635 = vmatprep.mubr.f32.mxu0 0.0
      %9636 = vmatmul.mubr.f32.gmra.mxu0 %v9551
      %v9637 = vpop.f32.mrf.mxu0
      %v9638 = vadd.f32 0.0, %v9637
      %v9639 = vpop.f32.mrf.mxu0
      %9640 = vmatprep.mubr.f32.mxu0 0.0
      %9641 = vmatmul.mubr.f32.gmra.mxu0 %v9552
      %v9642 = vpop.f32.mrf.mxu0
      %v9643 = vadd.f32 0.0, %v9642
      %v9644 = vpop.f32.mrf.mxu0
      %9645 = vmatprep.mubr.f32.mxu0 0.0
      %9646 = vmatmul.mubr.f32.gmra.mxu0 %v9553
      %v9647 = vpop.f32.mrf.mxu0
      %v9648 = vadd.f32 0.0, %v9647
      %v9649 = vpop.f32.mrf.mxu0
      %9650 = vmatprep.mubr.f32.mxu0 0.0
      %9651 = vmatmul.mubr.f32.gmra.mxu0 %v9554
      %v9652 = vpop.f32.mrf.mxu0
      %v9653 = vadd.f32 0.0, %v9652
      %v9654 = vpop.f32.mrf.mxu0
      %9655 = vdwg.mxu0
      %v9656 = vld [vmem:[%s15] sm:$0x3]
      %v9657 = vld [vmem:[%s15 + $0x2] sm:$0x3]
      %v9658 = vld [vmem:[%s15 + $0x4] sm:$0x3]
      %v9659 = vld [vmem:[%s15 + $0x6] sm:$0x3]
      %vm9660 = vcmask 64512
      %v9662 = vsel %vm9660, %v9656, 0
      %9664 = vmatprep.subr.mxu0 0.0
      %9665 = vmatpush1.msra.mxu0 0.0
      %9666 = vmatprep.subr.mxu0 0.0
      %9667 = vmatpush1.msra.mxu0 0.0
      %9668 = vmatprep.subr.mxu0 0.0
      %9669 = vmatpush1.msra.mxu0 0.0
      %9670 = vmatprep.subr.mxu0 0.0
      %9671 = vmatpush1.msra.mxu0 0.0
      %9672 = vmatprep.subr.mxu0 0.0
      %9673 = vmatpush1.msra.mxu0 0.0
      %9674 = vmatprep.subr.mxu0 0.0
      %9675 = vmatpush1.msra.mxu0 0.0
      %9676 = vmatprep.subr.mxu0 0.0
      %9677 = vmatpush1.msra.mxu0 0.0
      %9678 = vmatprep.subr.mxu0 0.0
      %9679 = vmatpush1.msra.mxu0 0.0
      %9680 = vmatprep.subr.mxu0 0.0
      %9681 = vmatpush1.msra.mxu0 0.0
      %9682 = vmatprep.subr.mxu0 0.0
      %9683 = vmatpush1.msra.mxu0 0.0
      %9684 = vmatprep.subr.mxu0 0.0
      %9685 = vmatpush1.msra.mxu0 0.0
      %9686 = vmatprep.subr.mxu0 0.0
      %9687 = vmatpush1.msra.mxu0 0.0
      %9688 = vmatprep.subr.mxu0 0.0
      %9689 = vmatpush1.msra.mxu0 0.0
      %9690 = vmatprep.subr.mxu0 0.0
      %9691 = vmatpush1.msra.mxu0 0.0
      %9692 = vmatprep.subr.mxu0 0.0
      %9693 = vmatpush1.msra.mxu0 0.0
      %9694 = vmatprep.subr.mxu0 0.0
      %9695 = vmatpush1.msra.mxu0 %v9638
      %9696 = vmatprep.subr.mxu0 0.0
      %9697 = vmatpush2.msra.mxu0 0.0
      %9698 = vmatprep.subr.mxu0 0.0
      %9699 = vmatpush2.msra.mxu0 0.0
      %9700 = vmatprep.subr.mxu0 0.0
      %9701 = vmatpush2.msra.mxu0 0.0
      %9702 = vmatprep.subr.mxu0 0.0
      %9703 = vmatpush2.msra.mxu0 0.0
      %9704 = vmatprep.subr.mxu0 0.0
      %9705 = vmatpush2.msra.mxu0 0.0
      %9706 = vmatprep.subr.mxu0 0.0
      %9707 = vmatpush2.msra.mxu0 0.0
      %9708 = vmatprep.subr.mxu0 0.0
      %9709 = vmatpush2.msra.mxu0 0.0
      %9710 = vmatprep.subr.mxu0 0.0
      %9711 = vmatpush2.msra.mxu0 0.0
      %9712 = vmatprep.subr.mxu0 0.0
      %9713 = vmatpush2.msra.mxu0 0.0
      %9714 = vmatprep.subr.mxu0 0.0
      %9715 = vmatpush2.msra.mxu0 0.0
      %9716 = vmatprep.subr.mxu0 0.0
      %9717 = vmatpush2.msra.mxu0 0.0
      %9718 = vmatprep.subr.mxu0 0.0
      %9719 = vmatpush2.msra.mxu0 0.0
      %9720 = vmatprep.subr.mxu0 0.0
      %9721 = vmatpush2.msra.mxu0 0.0
      %9722 = vmatprep.subr.mxu0 0.0
      %9723 = vmatpush2.msra.mxu0 0.0
      %9724 = vmatprep.subr.mxu0 0.0
      %9725 = vmatpush2.msra.mxu0 0.0
      %9726 = vmatprep.subr.mxu0 0.0
      %9727 = vmatpush2.msra.mxu0 0.0
      %9728 = vmatprep.mubr.f32.mxu0 0.0
      %9729 = vmatmul.mubr.f32.gmra.mxu0 %v9662
      %v9730 = vpop.f32.mrf.mxu0
      %v9731 = vadd.f32 0.0, %v9730
      %v9732 = vpop.f32.mrf.mxu0
      %9733 = vdwg.mxu0
      %v9735 = vsel %vm9660, %v9657, 0
      %9737 = vmatprep.subr.mxu0 0.0
      %9738 = vmatpush1.msra.mxu0 0.0
      %9739 = vmatprep.subr.mxu0 0.0
      %9740 = vmatpush1.msra.mxu0 0.0
      %9741 = vmatprep.subr.mxu0 0.0
      %9742 = vmatpush1.msra.mxu0 0.0
      %9743 = vmatprep.subr.mxu0 0.0
      %9744 = vmatpush1.msra.mxu0 0.0
      %9745 = vmatprep.subr.mxu0 0.0
      %9746 = vmatpush1.msra.mxu0 0.0
      %9747 = vmatprep.subr.mxu0 0.0
      %9748 = vmatpush1.msra.mxu0 0.0
      %9749 = vmatprep.subr.mxu0 0.0
      %9750 = vmatpush1.msra.mxu0 0.0
      %9751 = vmatprep.subr.mxu0 0.0
      %9752 = vmatpush1.msra.mxu0 0.0
      %9753 = vmatprep.subr.mxu0 0.0
      %9754 = vmatpush1.msra.mxu0 0.0
      %9755 = vmatprep.subr.mxu0 0.0
      %9756 = vmatpush1.msra.mxu0 0.0
      %9757 = vmatprep.subr.mxu0 0.0
      %9758 = vmatpush1.msra.mxu0 0.0
      %9759 = vmatprep.subr.mxu0 0.0
      %9760 = vmatpush1.msra.mxu0 0.0
      %9761 = vmatprep.subr.mxu0 0.0
      %9762 = vmatpush1.msra.mxu0 0.0
      %9763 = vmatprep.subr.mxu0 0.0
      %9764 = vmatpush1.msra.mxu0 0.0
      %9765 = vmatprep.subr.mxu0 0.0
      %9766 = vmatpush1.msra.mxu0 0.0
      %9767 = vmatprep.subr.mxu0 0.0
      %9768 = vmatpush1.msra.mxu0 %v9643
      %9769 = vmatprep.subr.mxu0 0.0
      %9770 = vmatpush2.msra.mxu0 0.0
      %9771 = vmatprep.subr.mxu0 0.0
      %9772 = vmatpush2.msra.mxu0 0.0
      %9773 = vmatprep.subr.mxu0 0.0
      %9774 = vmatpush2.msra.mxu0 0.0
      %9775 = vmatprep.subr.mxu0 0.0
      %9776 = vmatpush2.msra.mxu0 0.0
      %9777 = vmatprep.subr.mxu0 0.0
      %9778 = vmatpush2.msra.mxu0 0.0
      %9779 = vmatprep.subr.mxu0 0.0
      %9780 = vmatpush2.msra.mxu0 0.0
      %9781 = vmatprep.subr.mxu0 0.0
      %9782 = vmatpush2.msra.mxu0 0.0
      %9783 = vmatprep.subr.mxu0 0.0
      %9784 = vmatpush2.msra.mxu0 0.0
      %9785 = vmatprep.subr.mxu0 0.0
      %9786 = vmatpush2.msra.mxu0 0.0
      %9787 = vmatprep.subr.mxu0 0.0
      %9788 = vmatpush2.msra.mxu0 0.0
      %9789 = vmatprep.subr.mxu0 0.0
      %9790 = vmatpush2.msra.mxu0 0.0
      %9791 = vmatprep.subr.mxu0 0.0
      %9792 = vmatpush2.msra.mxu0 0.0
      %9793 = vmatprep.subr.mxu0 0.0
      %9794 = vmatpush2.msra.mxu0 0.0
      %9795 = vmatprep.subr.mxu0 0.0
      %9796 = vmatpush2.msra.mxu0 0.0
      %9797 = vmatprep.subr.mxu0 0.0
      %9798 = vmatpush2.msra.mxu0 0.0
      %9799 = vmatprep.subr.mxu0 0.0
      %9800 = vmatpush2.msra.mxu0 0.0
      %9801 = vmatprep.mubr.f32.mxu0 0.0
      %9802 = vmatmul.mubr.f32.gmra.mxu0 %v9735
      %v9803 = vpop.f32.mrf.mxu0
      %v9804 = vadd.f32 0.0, %v9803
      %v9805 = vpop.f32.mrf.mxu0
      %9806 = vdwg.mxu0
      %v9808 = vsel %vm9660, %v9658, 0
      %9810 = vmatprep.subr.mxu0 0.0
      %9811 = vmatpush1.msra.mxu0 0.0
      %9812 = vmatprep.subr.mxu0 0.0
      %9813 = vmatpush1.msra.mxu0 0.0
      %9814 = vmatprep.subr.mxu0 0.0
      %9815 = vmatpush1.msra.mxu0 0.0
      %9816 = vmatprep.subr.mxu0 0.0
      %9817 = vmatpush1.msra.mxu0 0.0
      %9818 = vmatprep.subr.mxu0 0.0
      %9819 = vmatpush1.msra.mxu0 0.0
      %9820 = vmatprep.subr.mxu0 0.0
      %9821 = vmatpush1.msra.mxu0 0.0
      %9822 = vmatprep.subr.mxu0 0.0
      %9823 = vmatpush1.msra.mxu0 0.0
      %9824 = vmatprep.subr.mxu0 0.0
      %9825 = vmatpush1.msra.mxu0 0.0
      %9826 = vmatprep.subr.mxu0 0.0
      %9827 = vmatpush1.msra.mxu0 0.0
      %9828 = vmatprep.subr.mxu0 0.0
      %9829 = vmatpush1.msra.mxu0 0.0
      %9830 = vmatprep.subr.mxu0 0.0
      %9831 = vmatpush1.msra.mxu0 0.0
      %9832 = vmatprep.subr.mxu0 0.0
      %9833 = vmatpush1.msra.mxu0 0.0
      %9834 = vmatprep.subr.mxu0 0.0
      %9835 = vmatpush1.msra.mxu0 0.0
      %9836 = vmatprep.subr.mxu0 0.0
      %9837 = vmatpush1.msra.mxu0 0.0
      %9838 = vmatprep.subr.mxu0 0.0
      %9839 = vmatpush1.msra.mxu0 0.0
      %9840 = vmatprep.subr.mxu0 0.0
      %9841 = vmatpush1.msra.mxu0 %v9648
      %9842 = vmatprep.subr.mxu0 0.0
      %9843 = vmatpush2.msra.mxu0 0.0
      %9844 = vmatprep.subr.mxu0 0.0
      %9845 = vmatpush2.msra.mxu0 0.0
      %9846 = vmatprep.subr.mxu0 0.0
      %9847 = vmatpush2.msra.mxu0 0.0
      %9848 = vmatprep.subr.mxu0 0.0
      %9849 = vmatpush2.msra.mxu0 0.0
      %9850 = vmatprep.subr.mxu0 0.0
      %9851 = vmatpush2.msra.mxu0 0.0
      %9852 = vmatprep.subr.mxu0 0.0
      %9853 = vmatpush2.msra.mxu0 0.0
      %9854 = vmatprep.subr.mxu0 0.0
      %9855 = vmatpush2.msra.mxu0 0.0
      %9856 = vmatprep.subr.mxu0 0.0
      %9857 = vmatpush2.msra.mxu0 0.0
      %9858 = vmatprep.subr.mxu0 0.0
      %9859 = vmatpush2.msra.mxu0 0.0
      %9860 = vmatprep.subr.mxu0 0.0
      %9861 = vmatpush2.msra.mxu0 0.0
      %9862 = vmatprep.subr.mxu0 0.0
      %9863 = vmatpush2.msra.mxu0 0.0
      %9864 = vmatprep.subr.mxu0 0.0
      %9865 = vmatpush2.msra.mxu0 0.0
      %9866 = vmatprep.subr.mxu0 0.0
      %9867 = vmatpush2.msra.mxu0 0.0
      %9868 = vmatprep.subr.mxu0 0.0
      %9869 = vmatpush2.msra.mxu0 0.0
      %9870 = vmatprep.subr.mxu0 0.0
      %9871 = vmatpush2.msra.mxu0 0.0
      %9872 = vmatprep.subr.mxu0 0.0
      %9873 = vmatpush2.msra.mxu0 0.0
      %9874 = vmatprep.mubr.f32.mxu0 0.0
      %9875 = vmatmul.mubr.f32.gmra.mxu0 %v9808
      %v9876 = vpop.f32.mrf.mxu0
      %v9877 = vadd.f32 0.0, %v9876
      %v9878 = vpop.f32.mrf.mxu0
      %9879 = vdwg.mxu0
      %v9881 = vsel %vm9660, %v9659, 0
      %9883 = vmatprep.subr.mxu0 0.0
      %9884 = vmatpush1.msra.mxu0 0.0
      %9885 = vmatprep.subr.mxu0 0.0
      %9886 = vmatpush1.msra.mxu0 0.0
      %9887 = vmatprep.subr.mxu0 0.0
      %9888 = vmatpush1.msra.mxu0 0.0
      %9889 = vmatprep.subr.mxu0 0.0
      %9890 = vmatpush1.msra.mxu0 0.0
      %9891 = vmatprep.subr.mxu0 0.0
      %9892 = vmatpush1.msra.mxu0 0.0
      %9893 = vmatprep.subr.mxu0 0.0
      %9894 = vmatpush1.msra.mxu0 0.0
      %9895 = vmatprep.subr.mxu0 0.0
      %9896 = vmatpush1.msra.mxu0 0.0
      %9897 = vmatprep.subr.mxu0 0.0
      %9898 = vmatpush1.msra.mxu0 0.0
      %9899 = vmatprep.subr.mxu0 0.0
      %9900 = vmatpush1.msra.mxu0 0.0
      %9901 = vmatprep.subr.mxu0 0.0
      %9902 = vmatpush1.msra.mxu0 0.0
      %9903 = vmatprep.subr.mxu0 0.0
      %9904 = vmatpush1.msra.mxu0 0.0
      %9905 = vmatprep.subr.mxu0 0.0
      %9906 = vmatpush1.msra.mxu0 0.0
      %9907 = vmatprep.subr.mxu0 0.0
      %9908 = vmatpush1.msra.mxu0 0.0
      %9909 = vmatprep.subr.mxu0 0.0
      %9910 = vmatpush1.msra.mxu0 0.0
      %9911 = vmatprep.subr.mxu0 0.0
      %9912 = vmatpush1.msra.mxu0 0.0
      %9913 = vmatprep.subr.mxu0 0.0
      %9914 = vmatpush1.msra.mxu0 %v9653
      %9915 = vmatprep.subr.mxu0 0.0
      %9916 = vmatpush2.msra.mxu0 0.0
      %9917 = vmatprep.subr.mxu0 0.0
      %9918 = vmatpush2.msra.mxu0 0.0
      %9919 = vmatprep.subr.mxu0 0.0
      %9920 = vmatpush2.msra.mxu0 0.0
      %9921 = vmatprep.subr.mxu0 0.0
      %9922 = vmatpush2.msra.mxu0 0.0
      %9923 = vmatprep.subr.mxu0 0.0
      %9924 = vmatpush2.msra.mxu0 0.0
      %9925 = vmatprep.subr.mxu0 0.0
      %9926 = vmatpush2.msra.mxu0 0.0
      %9927 = vmatprep.subr.mxu0 0.0
      %9928 = vmatpush2.msra.mxu0 0.0
      %9929 = vmatprep.subr.mxu0 0.0
      %9930 = vmatpush2.msra.mxu0 0.0
      %9931 = vmatprep.subr.mxu0 0.0
      %9932 = vmatpush2.msra.mxu0 0.0
      %9933 = vmatprep.subr.mxu0 0.0
      %9934 = vmatpush2.msra.mxu0 0.0
      %9935 = vmatprep.subr.mxu0 0.0
      %9936 = vmatpush2.msra.mxu0 0.0
      %9937 = vmatprep.subr.mxu0 0.0
      %9938 = vmatpush2.msra.mxu0 0.0
      %9939 = vmatprep.subr.mxu0 0.0
      %9940 = vmatpush2.msra.mxu0 0.0
      %9941 = vmatprep.subr.mxu0 0.0
      %9942 = vmatpush2.msra.mxu0 0.0
      %9943 = vmatprep.subr.mxu0 0.0
      %9944 = vmatpush2.msra.mxu0 0.0
      %9945 = vmatprep.subr.mxu0 0.0
      %9946 = vmatpush2.msra.mxu0 0.0
      %9947 = vmatprep.mubr.f32.mxu0 0.0
      %9948 = vmatmul.mubr.f32.gmra.mxu0 %v9881
      %v9949 = vpop.f32.mrf.mxu0
      %v9950 = vadd.f32 0.0, %v9949
      %v9951 = vpop.f32.mrf.mxu0
      %9952 = vdwg.mxu0
      %9953 = vst.msk [vmem:[#allocation5] sm:$0xf] %vm8733, 0.0
      %9954 = vst.msk [vmem:[#allocation5 + $0x10] sm:$0xf] %vm8733, 0.0
      %s9955 = scalar_lea.vmem [#allocation5], 12
      %9956 = vst.msk [vmem:[%s9955] sm:$0xf] %vm8733, 0.0
      %9957 = vst.msk [vmem:[%s9955 + $0x10] sm:$0xf] %vm8733, 0.0
      %s9958 = scalar_lea.vmem [#allocation5], 4
      %9959 = vst.msk [vmem:[%s9958] sm:$0x1] %vm6575, 0.0
      %9960 = vst.msk [vmem:[%s9958 + $0x4] sm:$0x1] %vm6575, 0.0
      %9961 = vst.msk [vmem:[%s9958 + $0x10] sm:$0x1] %vm6575, 0.0
      %9962 = vst.msk [vmem:[%s9958 + $0x14] sm:$0x1] %vm6575, 0.0
      %9963 = vst.msk [vmem:[%s9958 + $0x3] sm:$0x1] %vm6575, 0.0
      %9964 = vst.msk [vmem:[%s9958 + $0x7] sm:$0x1] %vm6575, 0.0
      %9965 = vst.msk [vmem:[%s9958 + $0x13] sm:$0x1] %vm6575, 0.0
      %9966 = vst.msk [vmem:[%s9958 + $0x17] sm:$0x1] %vm6575, 0.0
      %9967 = vst.msk [vmem:[%s9958 + $0x1] sm:$0x3] %vm6565, %v9731
      %9968 = vst.msk [vmem:[%s9958 + $0x5] sm:$0x3] %vm6565, %v9804
      %9969 = vst.msk [vmem:[%s9958 + $0x11] sm:$0x3] %vm6565, %v9877
      %9970 = vst.msk [vmem:[%s9958 + $0x15] sm:$0x3] %vm6565, %v9950
      %v9971 = vld [vmem:[#allocation5] sm:$0x3]
      %v9972 = vld [vmem:[#allocation5 + $0x4] sm:$0x3]
      %v9973 = vld [vmem:[#allocation5 + $0x10] sm:$0x3]
      %v9974 = vld [vmem:[#allocation5 + $0x14] sm:$0x3]
      %v9975 = vld [vmem:[#allocation5 + $0x1] sm:$0x3]
      %v9976 = vld [vmem:[#allocation5 + $0x5] sm:$0x3]
      %v9977 = vld [vmem:[#allocation5 + $0x11] sm:$0x3]
      %v9978 = vld [vmem:[#allocation5 + $0x15] sm:$0x3]
      %v9979 = vld [vmem:[#allocation5 + $0x2] sm:$0x3]
      %v9980 = vld [vmem:[#allocation5 + $0x6] sm:$0x3]
      %v9981 = vld [vmem:[#allocation5 + $0x12] sm:$0x3]
      %v9982 = vld [vmem:[#allocation5 + $0x16] sm:$0x3]
      %v9983 = vld [vmem:[%s9958] sm:$0x3]
      %v9984 = vld [vmem:[%s9958 + $0x4] sm:$0x3]
      %v9985 = vld [vmem:[%s9958 + $0x10] sm:$0x3]
      %v9986 = vld [vmem:[%s9958 + $0x14] sm:$0x3]
      %v9987 = vld [vmem:[%s9958 + $0x1] sm:$0x3]
      %v9988 = vld [vmem:[%s9958 + $0x5] sm:$0x3]
      %v9989 = vld [vmem:[%s9958 + $0x11] sm:$0x3]
      %v9990 = vld [vmem:[%s9958 + $0x15] sm:$0x3]
      %v9991 = vld [vmem:[%s9958 + $0x2] sm:$0x3]
      %v9992 = vld [vmem:[%s9958 + $0x6] sm:$0x3]
      %v9993 = vld [vmem:[%s9958 + $0x12] sm:$0x3]
      %v9994 = vld [vmem:[%s9958 + $0x16] sm:$0x3]
      %s9995 = scalar_lea.vmem [#allocation5], 8
      %v9996 = vld [vmem:[%s9995] sm:$0x3]
      %v9997 = vld [vmem:[%s9995 + $0x4] sm:$0x3]
      %v9998 = vld [vmem:[%s9995 + $0x10] sm:$0x3]
      %v9999 = vld [vmem:[%s9995 + $0x14] sm:$0x3]
      %v10000 = vld [vmem:[%s9995 + $0x1] sm:$0x3]
      %v10001 = vld [vmem:[%s9995 + $0x5] sm:$0x3]
      %v10002 = vld [vmem:[%s9995 + $0x11] sm:$0x3]
      %v10003 = vld [vmem:[%s9995 + $0x15] sm:$0x3]
      %v10004 = vld [vmem:[%s9995 + $0x2] sm:$0x3]
      %v10005 = vld [vmem:[%s9995 + $0x6] sm:$0x3]
      %v10006 = vld [vmem:[%s9995 + $0x12] sm:$0x3]
      %v10007 = vld [vmem:[%s9995 + $0x16] sm:$0x3]
      %v10012 = vcombine.low %v9971, %v9972
      %v10013 = vcombine.low %v9973, %v9974
      %v10015 = vunpack.c.l.s4 1983009808
      %v10016 = vunpack.c.0.s8 %v10015
      %v10017 = vlaneseq
      %v10018 = vshrl.u32 %v10017, 7
      %v10019 = vsub.s32 %v10016, %v10018
      %v10020 = vrot.slane %v10012, %v10019
      %v10022 = vunpack.c.l.s4 1983009808
      %v10023 = vunpack.c.0.s8 %v10022
      %v10024 = vlaneseq
      %v10025 = vshrl.u32 %v10024, 7
      %v10026 = vsub.s32 %v10023, %v10025
      %v10027 = vrot.slane %v10013, %v10026
      %v10028 = vcombine.low %v10020, %v10027
      %v10034 = vcombine.low %v9975, %v9976
      %v10035 = vcombine.low %v9977, %v9978
      %v10037 = vunpack.c.l.s4 1983009808
      %v10038 = vunpack.c.0.s8 %v10037
      %v10039 = vlaneseq
      %v10040 = vshrl.u32 %v10039, 7
      %v10041 = vsub.s32 %v10038, %v10040
      %v10042 = vrot.slane %v10034, %v10041
      %v10044 = vunpack.c.l.s4 1983009808
      %v10045 = vunpack.c.0.s8 %v10044
      %v10046 = vlaneseq
      %v10047 = vshrl.u32 %v10046, 7
      %v10048 = vsub.s32 %v10045, %v10047
      %v10049 = vrot.slane %v10035, %v10048
      %v10050 = vcombine.low %v10042, %v10049
      %10051 = vrot.lane.b32.xlu0 %v10050, 64
      %v10052 = vpop.permute.xlu0 %10051
      %v10058 = vcombine.low %v9979, %v9980
      %v10059 = vcombine.low %v9981, %v9982
      %v10061 = vunpack.c.l.s4 1983009808
      %v10062 = vunpack.c.0.s8 %v10061
      %v10063 = vlaneseq
      %v10064 = vshrl.u32 %v10063, 7
      %v10065 = vsub.s32 %v10062, %v10064
      %v10066 = vrot.slane %v10058, %v10065
      %v10068 = vunpack.c.l.s4 1983009808
      %v10069 = vunpack.c.0.s8 %v10068
      %v10070 = vlaneseq
      %v10071 = vshrl.u32 %v10070, 7
      %v10072 = vsub.s32 %v10069, %v10071
      %v10073 = vrot.slane %v10059, %v10072
      %v10074 = vcombine.low %v10066, %v10073
      %v10080 = vcombine.low %v9983, %v9984
      %v10081 = vcombine.low %v9985, %v9986
      %v10083 = vunpack.c.l.s4 1983009808
      %v10084 = vunpack.c.0.s8 %v10083
      %v10085 = vlaneseq
      %v10086 = vshrl.u32 %v10085, 7
      %v10087 = vsub.s32 %v10084, %v10086
      %v10088 = vrot.slane %v10080, %v10087
      %v10090 = vunpack.c.l.s4 1983009808
      %v10091 = vunpack.c.0.s8 %v10090
      %v10092 = vlaneseq
      %v10093 = vshrl.u32 %v10092, 7
      %v10094 = vsub.s32 %v10091, %v10093
      %v10095 = vrot.slane %v10081, %v10094
      %v10096 = vcombine.low %v10088, %v10095
      %10097 = vrot.lane.b32.xlu0 %v10096, 64
      %v10098 = vpop.permute.xlu0 %10097
      %v10104 = vcombine.low %v9987, %v9988
      %v10105 = vcombine.low %v9989, %v9990
      %v10107 = vunpack.c.l.s4 1983009808
      %v10108 = vunpack.c.0.s8 %v10107
      %v10109 = vlaneseq
      %v10110 = vshrl.u32 %v10109, 7
      %v10111 = vsub.s32 %v10108, %v10110
      %v10112 = vrot.slane %v10104, %v10111
      %v10114 = vunpack.c.l.s4 1983009808
      %v10115 = vunpack.c.0.s8 %v10114
      %v10116 = vlaneseq
      %v10117 = vshrl.u32 %v10116, 7
      %v10118 = vsub.s32 %v10115, %v10117
      %v10119 = vrot.slane %v10105, %v10118
      %v10120 = vcombine.low %v10112, %v10119
      %v10126 = vcombine.low %v9991, %v9992
      %v10127 = vcombine.low %v9993, %v9994
      %v10129 = vunpack.c.l.s4 1983009808
      %v10130 = vunpack.c.0.s8 %v10129
      %v10131 = vlaneseq
      %v10132 = vshrl.u32 %v10131, 7
      %v10133 = vsub.s32 %v10130, %v10132
      %v10134 = vrot.slane %v10126, %v10133
      %v10136 = vunpack.c.l.s4 1983009808
      %v10137 = vunpack.c.0.s8 %v10136
      %v10138 = vlaneseq
      %v10139 = vshrl.u32 %v10138, 7
      %v10140 = vsub.s32 %v10137, %v10139
      %v10141 = vrot.slane %v10127, %v10140
      %v10142 = vcombine.low %v10134, %v10141
      %10143 = vrot.lane.b32.xlu0 %v10142, 64
      %v10144 = vpop.permute.xlu0 %10143
      %v10150 = vcombine.low %v9996, %v9997
      %v10151 = vcombine.low %v9998, %v9999
      %v10153 = vunpack.c.l.s4 1983009808
      %v10154 = vunpack.c.0.s8 %v10153
      %v10155 = vlaneseq
      %v10156 = vshrl.u32 %v10155, 7
      %v10157 = vsub.s32 %v10154, %v10156
      %v10158 = vrot.slane %v10150, %v10157
      %v10160 = vunpack.c.l.s4 1983009808
      %v10161 = vunpack.c.0.s8 %v10160
      %v10162 = vlaneseq
      %v10163 = vshrl.u32 %v10162, 7
      %v10164 = vsub.s32 %v10161, %v10163
      %v10165 = vrot.slane %v10151, %v10164
      %v10166 = vcombine.low %v10158, %v10165
      %v10172 = vcombine.low %v10000, %v10001
      %v10173 = vcombine.low %v10002, %v10003
      %v10175 = vunpack.c.l.s4 1983009808
      %v10176 = vunpack.c.0.s8 %v10175
      %v10177 = vlaneseq
      %v10178 = vshrl.u32 %v10177, 7
      %v10179 = vsub.s32 %v10176, %v10178
      %v10180 = vrot.slane %v10172, %v10179
      %v10182 = vunpack.c.l.s4 1983009808
      %v10183 = vunpack.c.0.s8 %v10182
      %v10184 = vlaneseq
      %v10185 = vshrl.u32 %v10184, 7
      %v10186 = vsub.s32 %v10183, %v10185
      %v10187 = vrot.slane %v10173, %v10186
      %v10188 = vcombine.low %v10180, %v10187
      %10189 = vrot.lane.b32.xlu0 %v10188, 64
      %v10190 = vpop.permute.xlu0 %10189
      %v10196 = vcombine.low %v10004, %v10005
      %v10197 = vcombine.low %v10006, %v10007
      %v10199 = vunpack.c.l.s4 1983009808
      %v10200 = vunpack.c.0.s8 %v10199
      %v10201 = vlaneseq
      %v10202 = vshrl.u32 %v10201, 7
      %v10203 = vsub.s32 %v10200, %v10202
      %v10204 = vrot.slane %v10196, %v10203
      %v10206 = vunpack.c.l.s4 1983009808
      %v10207 = vunpack.c.0.s8 %v10206
      %v10208 = vlaneseq
      %v10209 = vshrl.u32 %v10208, 7
      %v10210 = vsub.s32 %v10207, %v10209
      %v10211 = vrot.slane %v10197, %v10210
      %v10212 = vcombine.low %v10204, %v10211
      %v10213 = vsel %vm3427, %v10028, %v10052
      %v10214 = vsel %vm3427, %v10074, %v10098
      %v10215 = vsel %vm3427, %v10120, %v10144
      %v10216 = vsel %vm3427, %v10166, %v10190
      %v10217 = vld [vmem:[%s16] sm:$0xff]
      %v10218 = vld [vmem:[%s16 + $0x8] sm:$0xff]
      %v10219 = vld [vmem:[%s16 + $0x10] sm:$0xff]
      %v10220 = vld [vmem:[%s16 + $0x18] sm:$0xff]
      %v10221 = vld [vmem:[%s16 + $0x20] sm:$0xff]
      %v10222 = vld [vmem:[%s16 + $0x28] sm:$0xff]
      %v10223 = vld [vmem:[%s16 + $0x30] sm:$0xff]
      %v10224 = vld [vmem:[%s16 + $0x38] sm:$0xff]
      %v10225 = vld [vmem:[%s16 + $0x40] sm:$0xff]
      %v10226 = vld [vmem:[%s16 + $0x48] sm:$0xff]
      %v10227 = vld [vmem:[%s16 + $0x50] sm:$0xff]
      %v10228 = vld [vmem:[%s16 + $0x58] sm:$0xff]
      %v10229 = vld [vmem:[%s16 + $0x60] sm:$0xff]
      %v10230 = vld [vmem:[%s16 + $0x68] sm:$0xff]
      %v10231 = vld [vmem:[%s16 + $0x70] sm:$0xff]
      %v10232 = vld [vmem:[%s16 + $0x78] sm:$0xff]
      %v10233 = vld [vmem:[%s16 + $0x80] sm:$0xff]
      %v10234 = vld [vmem:[%s16 + $0x88] sm:$0xff]
      %v10235 = vld [vmem:[%s16 + $0x90] sm:$0xff]
      %v10236 = vld [vmem:[%s16 + $0x98] sm:$0xff]
      %v10237 = vld [vmem:[%s16 + $0xa0] sm:$0xff]
      %v10238 = vld [vmem:[%s16 + $0xa8] sm:$0xff]
      %v10239 = vld [vmem:[%s16 + $0xb0] sm:$0xff]
      %v10240 = vld [vmem:[%s16 + $0xb8] sm:$0xff]
      %v10241 = vld [vmem:[%s16 + $0xc0] sm:$0xff]
      %v10242 = vld [vmem:[%s16 + $0xc8] sm:$0xff]
      %v10243 = vld [vmem:[%s16 + $0xd0] sm:$0xff]
      %v10244 = vld [vmem:[%s16 + $0xd8] sm:$0xff]
      %v10245 = vld [vmem:[%s16 + $0xe0] sm:$0xff]
      %v10246 = vld [vmem:[%s16 + $0xe8] sm:$0xff]
      %v10247 = vld [vmem:[%s16 + $0xf0] sm:$0xff]
      %v10248 = vld [vmem:[%s16 + $0xf8] sm:$0xff]
      %v10249 = vld [vmem:[%s16 + $0x100] sm:$0xff]
      %v10250 = vld [vmem:[%s16 + $0x108] sm:$0xff]
      %v10251 = vld [vmem:[%s16 + $0x110] sm:$0xff]
      %v10252 = vld [vmem:[%s16 + $0x118] sm:$0xff]
      %v10253 = vld [vmem:[%s16 + $0x120] sm:$0xff]
      %v10254 = vld [vmem:[%s16 + $0x128] sm:$0xff]
      %v10255 = vld [vmem:[%s16 + $0x130] sm:$0xff]
      %v10256 = vld [vmem:[%s16 + $0x138] sm:$0xff]
      %v10257 = vld [vmem:[%s16 + $0x140] sm:$0xff]
      %v10258 = vld [vmem:[%s16 + $0x148] sm:$0xff]
      %v10259 = vld [vmem:[%s16 + $0x150] sm:$0xff]
      %v10260 = vld [vmem:[%s16 + $0x158] sm:$0xff]
      %v10261 = vld [vmem:[%s16 + $0x160] sm:$0xff]
      %v10262 = vld [vmem:[%s16 + $0x168] sm:$0xff]
      %v10263 = vld [vmem:[%s16 + $0x170] sm:$0xff]
      %v10264 = vld [vmem:[%s16 + $0x178] sm:$0xff]
      %v10265 = vld [vmem:[%s16 + $0x180] sm:$0xff]
      %v10266 = vld [vmem:[%s16 + $0x188] sm:$0xff]
      %v10267 = vld [vmem:[%s16 + $0x190] sm:$0xff]
      %v10268 = vld [vmem:[%s16 + $0x198] sm:$0xff]
      %v10269 = vld [vmem:[%s16 + $0x1a0] sm:$0xff]
      %v10270 = vld [vmem:[%s16 + $0x1a8] sm:$0xff]
      %v10271 = vld [vmem:[%s16 + $0x1b0] sm:$0xff]
      %v10272 = vld [vmem:[%s16 + $0x1b8] sm:$0xff]
      %v10273 = vld [vmem:[%s16 + $0x1c0] sm:$0xff]
      %v10274 = vld [vmem:[%s16 + $0x1c8] sm:$0xff]
      %v10275 = vld [vmem:[%s16 + $0x1d0] sm:$0xff]
      %v10276 = vld [vmem:[%s16 + $0x1d8] sm:$0xff]
      %v10277 = vld [vmem:[%s16 + $0x1e0] sm:$0xff]
      %v10278 = vld [vmem:[%s16 + $0x1e8] sm:$0xff]
      %v10279 = vld [vmem:[%s16 + $0x1f0] sm:$0xff]
      %v10280 = vld [vmem:[%s16 + $0x1f8] sm:$0xff]
      %v10281 = vld [vmem:[%s16 + $0x200] sm:$0xff]
      %v10282 = vld [vmem:[%s16 + $0x208] sm:$0xff]
      %v10283 = vld [vmem:[%s16 + $0x210] sm:$0xff]
      %v10284 = vld [vmem:[%s16 + $0x218] sm:$0xff]
      %v10285 = vld [vmem:[%s16 + $0x220] sm:$0xff]
      %v10286 = vld [vmem:[%s16 + $0x228] sm:$0xff]
      %v10287 = vld [vmem:[%s16 + $0x230] sm:$0xff]
      %v10288 = vld [vmem:[%s16 + $0x238] sm:$0xff]
      %v10289 = vsel %vm3427, %v10212, 0
      %10291 = vmatprep.subr.mxu0 0.0
      %10292 = vmatpush1.msra.mxu0 %v10232
      %10293 = vmatprep.subr.mxu0 0.0
      %10294 = vmatpush1.msra.mxu0 %v10231
      %10295 = vmatprep.subr.mxu0 0.0
      %10296 = vmatpush1.msra.mxu0 %v10230
      %10297 = vmatprep.subr.mxu0 0.0
      %10298 = vmatpush1.msra.mxu0 %v10229
      %10299 = vmatprep.subr.mxu0 0.0
      %10300 = vmatpush1.msra.mxu0 %v10228
      %10301 = vmatprep.subr.mxu0 0.0
      %10302 = vmatpush1.msra.mxu0 %v10227
      %10303 = vmatprep.subr.mxu0 0.0
      %10304 = vmatpush1.msra.mxu0 %v10226
      %10305 = vmatprep.subr.mxu0 0.0
      %10306 = vmatpush1.msra.mxu0 %v10225
      %10307 = vmatprep.subr.mxu0 0.0
      %10308 = vmatpush1.msra.mxu0 %v10224
      %10309 = vmatprep.subr.mxu0 0.0
      %10310 = vmatpush1.msra.mxu0 %v10223
      %10311 = vmatprep.subr.mxu0 0.0
      %10312 = vmatpush1.msra.mxu0 %v10222
      %10313 = vmatprep.subr.mxu0 0.0
      %10314 = vmatpush1.msra.mxu0 %v10221
      %10315 = vmatprep.subr.mxu0 0.0
      %10316 = vmatpush1.msra.mxu0 %v10220
      %10317 = vmatprep.subr.mxu0 0.0
      %10318 = vmatpush1.msra.mxu0 %v10219
      %10319 = vmatprep.subr.mxu0 0.0
      %10320 = vmatpush1.msra.mxu0 %v10218
      %10321 = vmatprep.subr.mxu0 0.0
      %10322 = vmatpush1.msra.mxu0 %v10217
      %10323 = vmatprep.subr.mxu0 0.0
      %10324 = vmatpush2.msra.mxu0 %v10248
      %10325 = vmatprep.subr.mxu0 0.0
      %10326 = vmatpush2.msra.mxu0 %v10247
      %10327 = vmatprep.subr.mxu0 0.0
      %10328 = vmatpush2.msra.mxu0 %v10246
      %10329 = vmatprep.subr.mxu0 0.0
      %10330 = vmatpush2.msra.mxu0 %v10245
      %10331 = vmatprep.subr.mxu0 0.0
      %10332 = vmatpush2.msra.mxu0 %v10244
      %10333 = vmatprep.subr.mxu0 0.0
      %10334 = vmatpush2.msra.mxu0 %v10243
      %10335 = vmatprep.subr.mxu0 0.0
      %10336 = vmatpush2.msra.mxu0 %v10242
      %10337 = vmatprep.subr.mxu0 0.0
      %10338 = vmatpush2.msra.mxu0 %v10241
      %10339 = vmatprep.subr.mxu0 0.0
      %10340 = vmatpush2.msra.mxu0 %v10240
      %10341 = vmatprep.subr.mxu0 0.0
      %10342 = vmatpush2.msra.mxu0 %v10239
      %10343 = vmatprep.subr.mxu0 0.0
      %10344 = vmatpush2.msra.mxu0 %v10238
      %10345 = vmatprep.subr.mxu0 0.0
      %10346 = vmatpush2.msra.mxu0 %v10237
      %10347 = vmatprep.subr.mxu0 0.0
      %10348 = vmatpush2.msra.mxu0 %v10236
      %10349 = vmatprep.subr.mxu0 0.0
      %10350 = vmatpush2.msra.mxu0 %v10235
      %10351 = vmatprep.subr.mxu0 0.0
      %10352 = vmatpush2.msra.mxu0 %v10234
      %10353 = vmatprep.subr.mxu0 0.0
      %10354 = vmatpush2.msra.mxu0 %v10233
      %10355 = vmatprep.mubr.f32.mxu0 %v10214
      %10356 = vmatmul.mubr.f32.gmra.mxu0 %v10213
      %v10357 = vpop.f32.mrf.mxu0
      %v10358 = vadd.f32 0.0, %v10357
      %v10359 = vpop.f32.mrf.mxu0
      %10360 = vdwg.mxu0
      %10361 = vmatprep.subr.mxu0 0.0
      %10362 = vmatpush1.msra.mxu0 %v10264
      %10363 = vmatprep.subr.mxu0 0.0
      %10364 = vmatpush1.msra.mxu0 %v10263
      %10365 = vmatprep.subr.mxu0 0.0
      %10366 = vmatpush1.msra.mxu0 %v10262
      %10367 = vmatprep.subr.mxu0 0.0
      %10368 = vmatpush1.msra.mxu0 %v10261
      %10369 = vmatprep.subr.mxu0 0.0
      %10370 = vmatpush1.msra.mxu0 %v10260
      %10371 = vmatprep.subr.mxu0 0.0
      %10372 = vmatpush1.msra.mxu0 %v10259
      %10373 = vmatprep.subr.mxu0 0.0
      %10374 = vmatpush1.msra.mxu0 %v10258
      %10375 = vmatprep.subr.mxu0 0.0
      %10376 = vmatpush1.msra.mxu0 %v10257
      %10377 = vmatprep.subr.mxu0 0.0
      %10378 = vmatpush1.msra.mxu0 %v10256
      %10379 = vmatprep.subr.mxu0 0.0
      %10380 = vmatpush1.msra.mxu0 %v10255
      %10381 = vmatprep.subr.mxu0 0.0
      %10382 = vmatpush1.msra.mxu0 %v10254
      %10383 = vmatprep.subr.mxu0 0.0
      %10384 = vmatpush1.msra.mxu0 %v10253
      %10385 = vmatprep.subr.mxu0 0.0
      %10386 = vmatpush1.msra.mxu0 %v10252
      %10387 = vmatprep.subr.mxu0 0.0
      %10388 = vmatpush1.msra.mxu0 %v10251
      %10389 = vmatprep.subr.mxu0 0.0
      %10390 = vmatpush1.msra.mxu0 %v10250
      %10391 = vmatprep.subr.mxu0 0.0
      %10392 = vmatpush1.msra.mxu0 %v10249
      %10393 = vmatprep.subr.mxu0 0.0
      %10394 = vmatpush2.msra.mxu0 %v10280
      %10395 = vmatprep.subr.mxu0 0.0
      %10396 = vmatpush2.msra.mxu0 %v10279
      %10397 = vmatprep.subr.mxu0 0.0
      %10398 = vmatpush2.msra.mxu0 %v10278
      %10399 = vmatprep.subr.mxu0 0.0
      %10400 = vmatpush2.msra.mxu0 %v10277
      %10401 = vmatprep.subr.mxu0 0.0
      %10402 = vmatpush2.msra.mxu0 %v10276
      %10403 = vmatprep.subr.mxu0 0.0
      %10404 = vmatpush2.msra.mxu0 %v10275
      %10405 = vmatprep.subr.mxu0 0.0
      %10406 = vmatpush2.msra.mxu0 %v10274
      %10407 = vmatprep.subr.mxu0 0.0
      %10408 = vmatpush2.msra.mxu0 %v10273
      %10409 = vmatprep.subr.mxu0 0.0
      %10410 = vmatpush2.msra.mxu0 %v10272
      %10411 = vmatprep.subr.mxu0 0.0
      %10412 = vmatpush2.msra.mxu0 %v10271
      %10413 = vmatprep.subr.mxu0 0.0
      %10414 = vmatpush2.msra.mxu0 %v10270
      %10415 = vmatprep.subr.mxu0 0.0
      %10416 = vmatpush2.msra.mxu0 %v10269
      %10417 = vmatprep.subr.mxu0 0.0
      %10418 = vmatpush2.msra.mxu0 %v10268
      %10419 = vmatprep.subr.mxu0 0.0
      %10420 = vmatpush2.msra.mxu0 %v10267
      %10421 = vmatprep.subr.mxu0 0.0
      %10422 = vmatpush2.msra.mxu0 %v10266
      %10423 = vmatprep.subr.mxu0 0.0
      %10424 = vmatpush2.msra.mxu0 %v10265
      %10425 = vmatprep.mubr.f32.mxu0 %v10216
      %10426 = vmatmul.mubr.f32.gmra.mxu0 %v10215
      %v10427 = vpop.f32.mrf.mxu0
      %v10428 = vadd.f32 %v10358, %v10427
      %v10429 = vpop.f32.mrf.mxu0
      %10430 = vdwg.mxu0
      %10431 = vmatprep.subr.mxu0 0.0
      %10432 = vmatpush1.msra.mxu0 0.0
      %10433 = vmatprep.subr.mxu0 0.0
      %10434 = vmatpush1.msra.mxu0 0.0
      %10435 = vmatprep.subr.mxu0 0.0
      %10436 = vmatpush1.msra.mxu0 0.0
      %10437 = vmatprep.subr.mxu0 0.0
      %10438 = vmatpush1.msra.mxu0 0.0
      %10439 = vmatprep.subr.mxu0 0.0
      %10440 = vmatpush1.msra.mxu0 0.0
      %10441 = vmatprep.subr.mxu0 0.0
      %10442 = vmatpush1.msra.mxu0 0.0
      %10443 = vmatprep.subr.mxu0 0.0
      %10444 = vmatpush1.msra.mxu0 0.0
      %10445 = vmatprep.subr.mxu0 0.0
      %10446 = vmatpush1.msra.mxu0 0.0
      %10447 = vmatprep.subr.mxu0 0.0
      %10448 = vmatpush1.msra.mxu0 %v10288
      %10449 = vmatprep.subr.mxu0 0.0
      %10450 = vmatpush1.msra.mxu0 %v10287
      %10451 = vmatprep.subr.mxu0 0.0
      %10452 = vmatpush1.msra.mxu0 %v10286
      %10453 = vmatprep.subr.mxu0 0.0
      %10454 = vmatpush1.msra.mxu0 %v10285
      %10455 = vmatprep.subr.mxu0 0.0
      %10456 = vmatpush1.msra.mxu0 %v10284
      %10457 = vmatprep.subr.mxu0 0.0
      %10458 = vmatpush1.msra.mxu0 %v10283
      %10459 = vmatprep.subr.mxu0 0.0
      %10460 = vmatpush1.msra.mxu0 %v10282
      %10461 = vmatprep.subr.mxu0 0.0
      %10462 = vmatpush1.msra.mxu0 %v10281
      %10463 = vmatprep.subr.mxu0 0.0
      %10464 = vmatpush2.msra.mxu0 0.0
      %10465 = vmatprep.subr.mxu0 0.0
      %10466 = vmatpush2.msra.mxu0 0.0
      %10467 = vmatprep.subr.mxu0 0.0
      %10468 = vmatpush2.msra.mxu0 0.0
      %10469 = vmatprep.subr.mxu0 0.0
      %10470 = vmatpush2.msra.mxu0 0.0
      %10471 = vmatprep.subr.mxu0 0.0
      %10472 = vmatpush2.msra.mxu0 0.0
      %10473 = vmatprep.subr.mxu0 0.0
      %10474 = vmatpush2.msra.mxu0 0.0
      %10475 = vmatprep.subr.mxu0 0.0
      %10476 = vmatpush2.msra.mxu0 0.0
      %10477 = vmatprep.subr.mxu0 0.0
      %10478 = vmatpush2.msra.mxu0 0.0
      %10479 = vmatprep.subr.mxu0 0.0
      %10480 = vmatpush2.msra.mxu0 0.0
      %10481 = vmatprep.subr.mxu0 0.0
      %10482 = vmatpush2.msra.mxu0 0.0
      %10483 = vmatprep.subr.mxu0 0.0
      %10484 = vmatpush2.msra.mxu0 0.0
      %10485 = vmatprep.subr.mxu0 0.0
      %10486 = vmatpush2.msra.mxu0 0.0
      %10487 = vmatprep.subr.mxu0 0.0
      %10488 = vmatpush2.msra.mxu0 0.0
      %10489 = vmatprep.subr.mxu0 0.0
      %10490 = vmatpush2.msra.mxu0 0.0
      %10491 = vmatprep.subr.mxu0 0.0
      %10492 = vmatpush2.msra.mxu0 0.0
      %10493 = vmatprep.subr.mxu0 0.0
      %10494 = vmatpush2.msra.mxu0 0.0
      %10495 = vmatprep.mubr.f32.mxu0 0.0
      %10496 = vmatmul.mubr.f32.gmra.mxu0 %v10289
      %v10497 = vpop.f32.mrf.mxu0
      %v10498 = vadd.f32 %v10428, %v10497
      %v10499 = vpop.f32.mrf.mxu0
      %10500 = vdwg.mxu0
      %v10501 = vld [vmem:[%s18] sm:$0xff]
      %v10502 = vld [vmem:[%s18 + $0x8] sm:$0xff]
      %v10503 = vsel %vm719, %v10498, 0.0
      %v10504 = vrot.slane %v10503, 4
      %v10505 = vadd.f32 %v10503, %v10504
      %v10506 = vrot.slane %v10505, 2
      %v10507 = vadd.f32 %v10505, %v10506
      %v10508 = vrot.slane %v10507, 1
      %v10509 = vadd.f32 %v10507, %v10508
      %v10511 = vsel %vm719, %v10509, 0
      %10513 = vmatprep.subr.mxu0 0.0
      %10514 = vmatpush1.msra.mxu0 0.0
      %10515 = vmatprep.subr.mxu0 0.0
      %10516 = vmatpush1.msra.mxu0 0.0
      %10517 = vmatprep.subr.mxu0 0.0
      %10518 = vmatpush1.msra.mxu0 0.0
      %10519 = vmatprep.subr.mxu0 0.0
      %10520 = vmatpush1.msra.mxu0 0.0
      %10521 = vmatprep.subr.mxu0 0.0
      %10522 = vmatpush1.msra.mxu0 0.0
      %10523 = vmatprep.subr.mxu0 0.0
      %10524 = vmatpush1.msra.mxu0 0.0
      %10525 = vmatprep.subr.mxu0 0.0
      %10526 = vmatpush1.msra.mxu0 0.0
      %10527 = vmatprep.subr.mxu0 0.0
      %10528 = vmatpush1.msra.mxu0 0.0
      %10529 = vmatprep.subr.mxu0 0.0
      %10530 = vmatpush1.msra.mxu0 0.0
      %10531 = vmatprep.subr.mxu0 0.0
      %10532 = vmatpush1.msra.mxu0 0.0
      %10533 = vmatprep.subr.mxu0 0.0
      %10534 = vmatpush1.msra.mxu0 0.0
      %10535 = vmatprep.subr.mxu0 0.0
      %10536 = vmatpush1.msra.mxu0 0.0
      %10537 = vmatprep.subr.mxu0 0.0
      %10538 = vmatpush1.msra.mxu0 0.0
      %10539 = vmatprep.subr.mxu0 0.0
      %10540 = vmatpush1.msra.mxu0 0.0
      %10541 = vmatprep.subr.mxu0 0.0
      %10542 = vmatpush1.msra.mxu0 %v10502
      %10543 = vmatprep.subr.mxu0 0.0
      %10544 = vmatpush1.msra.mxu0 %v10501
      %10545 = vmatprep.subr.mxu0 0.0
      %10546 = vmatpush2.msra.mxu0 0.0
      %10547 = vmatprep.subr.mxu0 0.0
      %10548 = vmatpush2.msra.mxu0 0.0
      %10549 = vmatprep.subr.mxu0 0.0
      %10550 = vmatpush2.msra.mxu0 0.0
      %10551 = vmatprep.subr.mxu0 0.0
      %10552 = vmatpush2.msra.mxu0 0.0
      %10553 = vmatprep.subr.mxu0 0.0
      %10554 = vmatpush2.msra.mxu0 0.0
      %10555 = vmatprep.subr.mxu0 0.0
      %10556 = vmatpush2.msra.mxu0 0.0
      %10557 = vmatprep.subr.mxu0 0.0
      %10558 = vmatpush2.msra.mxu0 0.0
      %10559 = vmatprep.subr.mxu0 0.0
      %10560 = vmatpush2.msra.mxu0 0.0
      %10561 = vmatprep.subr.mxu0 0.0
      %10562 = vmatpush2.msra.mxu0 0.0
      %10563 = vmatprep.subr.mxu0 0.0
      %10564 = vmatpush2.msra.mxu0 0.0
      %10565 = vmatprep.subr.mxu0 0.0
      %10566 = vmatpush2.msra.mxu0 0.0
      %10567 = vmatprep.subr.mxu0 0.0
      %10568 = vmatpush2.msra.mxu0 0.0
      %10569 = vmatprep.subr.mxu0 0.0
      %10570 = vmatpush2.msra.mxu0 0.0
      %10571 = vmatprep.subr.mxu0 0.0
      %10572 = vmatpush2.msra.mxu0 0.0
      %10573 = vmatprep.subr.mxu0 0.0
      %10574 = vmatpush2.msra.mxu0 0.0
      %10575 = vmatprep.subr.mxu0 0.0
      %10576 = vmatpush2.msra.mxu0 0.0
      %10577 = vmatprep.mubr.f32.mxu0 0.0
      %10578 = vmatmul.mubr.f32.gmra.mxu0 %v10511
      %v10579 = vpop.f32.mrf.mxu0
      %v10580 = vadd.f32 0.0, %v10579
      %v10581 = vpop.f32.mrf.mxu0
      %10582 = vdwg.mxu0
      %v10583 = vmul.f32 %v10580, 0.0625
      %v10584 = vmul.f32 %v10498, %v10498
      %v10585 = vsel %vm719, %v10584, 0.0
      %v10586 = vrot.slane %v10585, 4
      %v10587 = vadd.f32 %v10585, %v10586
      %v10588 = vrot.slane %v10587, 2
      %v10589 = vadd.f32 %v10587, %v10588
      %v10590 = vrot.slane %v10589, 1
      %v10591 = vadd.f32 %v10589, %v10590
      %v10593 = vsel %vm719, %v10591, 0
      %10595 = vmatprep.subr.mxu0 0.0
      %10596 = vmatpush1.msra.mxu0 0.0
      %10597 = vmatprep.subr.mxu0 0.0
      %10598 = vmatpush1.msra.mxu0 0.0
      %10599 = vmatprep.subr.mxu0 0.0
      %10600 = vmatpush1.msra.mxu0 0.0
      %10601 = vmatprep.subr.mxu0 0.0
      %10602 = vmatpush1.msra.mxu0 0.0
      %10603 = vmatprep.subr.mxu0 0.0
      %10604 = vmatpush1.msra.mxu0 0.0
      %10605 = vmatprep.subr.mxu0 0.0
      %10606 = vmatpush1.msra.mxu0 0.0
      %10607 = vmatprep.subr.mxu0 0.0
      %10608 = vmatpush1.msra.mxu0 0.0
      %10609 = vmatprep.subr.mxu0 0.0
      %10610 = vmatpush1.msra.mxu0 0.0
      %10611 = vmatprep.subr.mxu0 0.0
      %10612 = vmatpush1.msra.mxu0 0.0
      %10613 = vmatprep.subr.mxu0 0.0
      %10614 = vmatpush1.msra.mxu0 0.0
      %10615 = vmatprep.subr.mxu0 0.0
      %10616 = vmatpush1.msra.mxu0 0.0
      %10617 = vmatprep.subr.mxu0 0.0
      %10618 = vmatpush1.msra.mxu0 0.0
      %10619 = vmatprep.subr.mxu0 0.0
      %10620 = vmatpush1.msra.mxu0 0.0
      %10621 = vmatprep.subr.mxu0 0.0
      %10622 = vmatpush1.msra.mxu0 0.0
      %10623 = vmatprep.subr.mxu0 0.0
      %10624 = vmatpush1.msra.mxu0 %v10502
      %10625 = vmatprep.subr.mxu0 0.0
      %10626 = vmatpush1.msra.mxu0 %v10501
      %10627 = vmatprep.subr.mxu0 0.0
      %10628 = vmatpush2.msra.mxu0 0.0
      %10629 = vmatprep.subr.mxu0 0.0
      %10630 = vmatpush2.msra.mxu0 0.0
      %10631 = vmatprep.subr.mxu0 0.0
      %10632 = vmatpush2.msra.mxu0 0.0
      %10633 = vmatprep.subr.mxu0 0.0
      %10634 = vmatpush2.msra.mxu0 0.0
      %10635 = vmatprep.subr.mxu0 0.0
      %10636 = vmatpush2.msra.mxu0 0.0
      %10637 = vmatprep.subr.mxu0 0.0
      %10638 = vmatpush2.msra.mxu0 0.0
      %10639 = vmatprep.subr.mxu0 0.0
      %10640 = vmatpush2.msra.mxu0 0.0
      %10641 = vmatprep.subr.mxu0 0.0
      %10642 = vmatpush2.msra.mxu0 0.0
      %10643 = vmatprep.subr.mxu0 0.0
      %10644 = vmatpush2.msra.mxu0 0.0
      %10645 = vmatprep.subr.mxu0 0.0
      %10646 = vmatpush2.msra.mxu0 0.0
      %10647 = vmatprep.subr.mxu0 0.0
      %10648 = vmatpush2.msra.mxu0 0.0
      %10649 = vmatprep.subr.mxu0 0.0
      %10650 = vmatpush2.msra.mxu0 0.0
      %10651 = vmatprep.subr.mxu0 0.0
      %10652 = vmatpush2.msra.mxu0 0.0
      %10653 = vmatprep.subr.mxu0 0.0
      %10654 = vmatpush2.msra.mxu0 0.0
      %10655 = vmatprep.subr.mxu0 0.0
      %10656 = vmatpush2.msra.mxu0 0.0
      %10657 = vmatprep.subr.mxu0 0.0
      %10658 = vmatpush2.msra.mxu0 0.0
      %10659 = vmatprep.mubr.f32.mxu0 0.0
      %10660 = vmatmul.mubr.f32.gmra.mxu0 %v10593
      %v10661 = vpop.f32.mrf.mxu0
      %v10662 = vadd.f32 0.0, %v10661
      %v10663 = vpop.f32.mrf.mxu0
      %10664 = vdwg.mxu0
      %v10665 = vmul.f32 %v10662, 0.0625
      %v10666 = vmul.f32 %v10583, %v10583
      %v10667 = vsub.f32 %v10665, %v10666
      %v10668 = vld [vmem:[%s17] sm:$0x1]
      %v10669 = vadd.f32 %v10667, 1e-05
      %v10670 = vrsqrt.pop %v10669
      %v10671 = vmul.f32 %v10668, %v10670
      %v10672 = vld [vmem:[%s17 + $0x1] sm:$0x1]
      %v10673 = vmul.f32 %v10583, %v10671
      %v10674 = vsub.f32 %v10672, %v10673
      %v10675 = vlaneseq
      %v10676 = vshrl.u32 %v10675, 7
      %v10677 = vsub.s32 0, %v10676
      %v10678 = vrot.slane %v10671, %v10677
      %v10679 = vmul.f32 %v10498, %v10678
      %v10680 = vlaneseq
      %v10681 = vshrl.u32 %v10680, 7
      %v10682 = vsub.s32 0, %v10681
      %v10683 = vrot.slane %v10674, %v10682
      %v10684 = vadd.f32 %v10679, %v10683
      %vm10685 = vcmp.gt.f32.partialorder %v10684, 0.0
      %v10686 = vmul.f32 %v10684, 0.2
      %v10687 = vsel %vm10685, %v10684, %v10686
      %v10688 = vld [vmem:[%s19] sm:$0xff]
      %v10689 = vld [vmem:[%s19 + $0x8] sm:$0xff]
      %v10691 = vsel %vm719, %v10687, 0
      %10693 = vmatprep.subr.mxu0 0.0
      %10694 = vmatpush1.msra.mxu0 0.0
      %10695 = vmatprep.subr.mxu0 0.0
      %10696 = vmatpush1.msra.mxu0 0.0
      %10697 = vmatprep.subr.mxu0 0.0
      %10698 = vmatpush1.msra.mxu0 0.0
      %10699 = vmatprep.subr.mxu0 0.0
      %10700 = vmatpush1.msra.mxu0 0.0
      %10701 = vmatprep.subr.mxu0 0.0
      %10702 = vmatpush1.msra.mxu0 0.0
      %10703 = vmatprep.subr.mxu0 0.0
      %10704 = vmatpush1.msra.mxu0 0.0
      %10705 = vmatprep.subr.mxu0 0.0
      %10706 = vmatpush1.msra.mxu0 0.0
      %10707 = vmatprep.subr.mxu0 0.0
      %10708 = vmatpush1.msra.mxu0 0.0
      %10709 = vmatprep.subr.mxu0 0.0
      %10710 = vmatpush1.msra.mxu0 0.0
      %10711 = vmatprep.subr.mxu0 0.0
      %10712 = vmatpush1.msra.mxu0 0.0
      %10713 = vmatprep.subr.mxu0 0.0
      %10714 = vmatpush1.msra.mxu0 0.0
      %10715 = vmatprep.subr.mxu0 0.0
      %10716 = vmatpush1.msra.mxu0 0.0
      %10717 = vmatprep.subr.mxu0 0.0
      %10718 = vmatpush1.msra.mxu0 0.0
      %10719 = vmatprep.subr.mxu0 0.0
      %10720 = vmatpush1.msra.mxu0 0.0
      %10721 = vmatprep.subr.mxu0 0.0
      %10722 = vmatpush1.msra.mxu0 %v10689
      %10723 = vmatprep.subr.mxu0 0.0
      %10724 = vmatpush1.msra.mxu0 %v10688
      %10725 = vmatprep.subr.mxu0 0.0
      %10726 = vmatpush2.msra.mxu0 0.0
      %10727 = vmatprep.subr.mxu0 0.0
      %10728 = vmatpush2.msra.mxu0 0.0
      %10729 = vmatprep.subr.mxu0 0.0
      %10730 = vmatpush2.msra.mxu0 0.0
      %10731 = vmatprep.subr.mxu0 0.0
      %10732 = vmatpush2.msra.mxu0 0.0
      %10733 = vmatprep.subr.mxu0 0.0
      %10734 = vmatpush2.msra.mxu0 0.0
      %10735 = vmatprep.subr.mxu0 0.0
      %10736 = vmatpush2.msra.mxu0 0.0
      %10737 = vmatprep.subr.mxu0 0.0
      %10738 = vmatpush2.msra.mxu0 0.0
      %10739 = vmatprep.subr.mxu0 0.0
      %10740 = vmatpush2.msra.mxu0 0.0
      %10741 = vmatprep.subr.mxu0 0.0
      %10742 = vmatpush2.msra.mxu0 0.0
      %10743 = vmatprep.subr.mxu0 0.0
      %10744 = vmatpush2.msra.mxu0 0.0
      %10745 = vmatprep.subr.mxu0 0.0
      %10746 = vmatpush2.msra.mxu0 0.0
      %10747 = vmatprep.subr.mxu0 0.0
      %10748 = vmatpush2.msra.mxu0 0.0
      %10749 = vmatprep.subr.mxu0 0.0
      %10750 = vmatpush2.msra.mxu0 0.0
      %10751 = vmatprep.subr.mxu0 0.0
      %10752 = vmatpush2.msra.mxu0 0.0
      %10753 = vmatprep.subr.mxu0 0.0
      %10754 = vmatpush2.msra.mxu0 0.0
      %10755 = vmatprep.subr.mxu0 0.0
      %10756 = vmatpush2.msra.mxu0 0.0
      %10757 = vmatprep.mubr.f32.mxu0 0.0
      %10758 = vmatmul.mubr.f32.gmra.mxu0 %v10691
      %v10759 = vpop.f32.mrf.mxu0
      %v10760 = vadd.f32 0.0, %v10759
      %v10761 = vpop.f32.mrf.mxu0
      %10762 = vdwg.mxu0
      %v10764 = vcombine.high %v10760, %v10760
      %v10765 = vld [vmem:[%s20] sm:$0x1]
      %v10766 = vld [vmem:[%s20 + $0x1] sm:$0x1]
      %vm10767 = vcmask 31744
      %v10769 = vsel %vm10767, %v10765, 0
      %vm10771 = vcmask 1043456
      %v10772 = vsel %vm10771, %v10760, 0
      %10774 = vmatprep.subr.mxu0 0.0
      %10775 = vmatpush1.msra.mxu0 0.0
      %10776 = vmatprep.subr.mxu0 0.0
      %10777 = vmatpush1.msra.mxu0 0.0
      %10778 = vmatprep.subr.mxu0 0.0
      %10779 = vmatpush1.msra.mxu0 0.0
      %10780 = vmatprep.subr.mxu0 0.0
      %10781 = vmatpush1.msra.mxu0 0.0
      %10782 = vmatprep.subr.mxu0 0.0
      %10783 = vmatpush1.msra.mxu0 0.0
      %10784 = vmatprep.subr.mxu0 0.0
      %10785 = vmatpush1.msra.mxu0 0.0
      %10786 = vmatprep.subr.mxu0 0.0
      %10787 = vmatpush1.msra.mxu0 0.0
      %10788 = vmatprep.subr.mxu0 0.0
      %10789 = vmatpush1.msra.mxu0 0.0
      %10790 = vmatprep.subr.mxu0 0.0
      %10791 = vmatpush1.msra.mxu0 0.0
      %10792 = vmatprep.subr.mxu0 0.0
      %10793 = vmatpush1.msra.mxu0 0.0
      %10794 = vmatprep.subr.mxu0 0.0
      %10795 = vmatpush1.msra.mxu0 0.0
      %10796 = vmatprep.subr.mxu0 0.0
      %10797 = vmatpush1.msra.mxu0 0.0
      %10798 = vmatprep.subr.mxu0 0.0
      %10799 = vmatpush1.msra.mxu0 0.0
      %10800 = vmatprep.subr.mxu0 0.0
      %10801 = vmatpush1.msra.mxu0 0.0
      %10802 = vmatprep.subr.mxu0 0.0
      %10803 = vmatpush1.msra.mxu0 0.0
      %10804 = vmatprep.subr.mxu0 0.0
      %10805 = vmatpush1.msra.mxu0 %v10772
      %10806 = vmatprep.subr.mxu0 0.0
      %10807 = vmatpush2.msra.mxu0 0.0
      %10808 = vmatprep.subr.mxu0 0.0
      %10809 = vmatpush2.msra.mxu0 0.0
      %10810 = vmatprep.subr.mxu0 0.0
      %10811 = vmatpush2.msra.mxu0 0.0
      %10812 = vmatprep.subr.mxu0 0.0
      %10813 = vmatpush2.msra.mxu0 0.0
      %10814 = vmatprep.subr.mxu0 0.0
      %10815 = vmatpush2.msra.mxu0 0.0
      %10816 = vmatprep.subr.mxu0 0.0
      %10817 = vmatpush2.msra.mxu0 0.0
      %10818 = vmatprep.subr.mxu0 0.0
      %10819 = vmatpush2.msra.mxu0 0.0
      %10820 = vmatprep.subr.mxu0 0.0
      %10821 = vmatpush2.msra.mxu0 0.0
      %10822 = vmatprep.subr.mxu0 0.0
      %10823 = vmatpush2.msra.mxu0 0.0
      %10824 = vmatprep.subr.mxu0 0.0
      %10825 = vmatpush2.msra.mxu0 0.0
      %10826 = vmatprep.subr.mxu0 0.0
      %10827 = vmatpush2.msra.mxu0 0.0
      %10828 = vmatprep.subr.mxu0 0.0
      %10829 = vmatpush2.msra.mxu0 0.0
      %10830 = vmatprep.subr.mxu0 0.0
      %10831 = vmatpush2.msra.mxu0 0.0
      %10832 = vmatprep.subr.mxu0 0.0
      %10833 = vmatpush2.msra.mxu0 0.0
      %10834 = vmatprep.subr.mxu0 0.0
      %10835 = vmatpush2.msra.mxu0 0.0
      %10836 = vmatprep.subr.mxu0 0.0
      %10837 = vmatpush2.msra.mxu0 0.0
      %10838 = vmatprep.mubr.f32.mxu0 0.0
      %10839 = vmatmul.mubr.f32.gmra.mxu0 %v10769
      %v10840 = vpop.f32.mrf.mxu0
      %v10841 = vadd.f32 0.0, %v10840
      %v10842 = vpop.f32.mrf.mxu0
      %10843 = vdwg.mxu0
      %v10845 = vsel %vm10767, %v10766, 0
      %v10847 = vsel %vm10771, %v10764, 0
      %10849 = vmatprep.subr.mxu0 0.0
      %10850 = vmatpush1.msra.mxu0 0.0
      %10851 = vmatprep.subr.mxu0 0.0
      %10852 = vmatpush1.msra.mxu0 0.0
      %10853 = vmatprep.subr.mxu0 0.0
      %10854 = vmatpush1.msra.mxu0 0.0
      %10855 = vmatprep.subr.mxu0 0.0
      %10856 = vmatpush1.msra.mxu0 0.0
      %10857 = vmatprep.subr.mxu0 0.0
      %10858 = vmatpush1.msra.mxu0 0.0
      %10859 = vmatprep.subr.mxu0 0.0
      %10860 = vmatpush1.msra.mxu0 0.0
      %10861 = vmatprep.subr.mxu0 0.0
      %10862 = vmatpush1.msra.mxu0 0.0
      %10863 = vmatprep.subr.mxu0 0.0
      %10864 = vmatpush1.msra.mxu0 0.0
      %10865 = vmatprep.subr.mxu0 0.0
      %10866 = vmatpush1.msra.mxu0 0.0
      %10867 = vmatprep.subr.mxu0 0.0
      %10868 = vmatpush1.msra.mxu0 0.0
      %10869 = vmatprep.subr.mxu0 0.0
      %10870 = vmatpush1.msra.mxu0 0.0
      %10871 = vmatprep.subr.mxu0 0.0
      %10872 = vmatpush1.msra.mxu0 0.0
      %10873 = vmatprep.subr.mxu0 0.0
      %10874 = vmatpush1.msra.mxu0 0.0
      %10875 = vmatprep.subr.mxu0 0.0
      %10876 = vmatpush1.msra.mxu0 0.0
      %10877 = vmatprep.subr.mxu0 0.0
      %10878 = vmatpush1.msra.mxu0 0.0
      %10879 = vmatprep.subr.mxu0 0.0
      %10880 = vmatpush1.msra.mxu0 %v10847
      %10881 = vmatprep.subr.mxu0 0.0
      %10882 = vmatpush2.msra.mxu0 0.0
      %10883 = vmatprep.subr.mxu0 0.0
      %10884 = vmatpush2.msra.mxu0 0.0
      %10885 = vmatprep.subr.mxu0 0.0
      %10886 = vmatpush2.msra.mxu0 0.0
      %10887 = vmatprep.subr.mxu0 0.0
      %10888 = vmatpush2.msra.mxu0 0.0
      %10889 = vmatprep.subr.mxu0 0.0
      %10890 = vmatpush2.msra.mxu0 0.0
      %10891 = vmatprep.subr.mxu0 0.0
      %10892 = vmatpush2.msra.mxu0 0.0
      %10893 = vmatprep.subr.mxu0 0.0
      %10894 = vmatpush2.msra.mxu0 0.0
      %10895 = vmatprep.subr.mxu0 0.0
      %10896 = vmatpush2.msra.mxu0 0.0
      %10897 = vmatprep.subr.mxu0 0.0
      %10898 = vmatpush2.msra.mxu0 0.0
      %10899 = vmatprep.subr.mxu0 0.0
      %10900 = vmatpush2.msra.mxu0 0.0
      %10901 = vmatprep.subr.mxu0 0.0
      %10902 = vmatpush2.msra.mxu0 0.0
      %10903 = vmatprep.subr.mxu0 0.0
      %10904 = vmatpush2.msra.mxu0 0.0
      %10905 = vmatprep.subr.mxu0 0.0
      %10906 = vmatpush2.msra.mxu0 0.0
      %10907 = vmatprep.subr.mxu0 0.0
      %10908 = vmatpush2.msra.mxu0 0.0
      %10909 = vmatprep.subr.mxu0 0.0
      %10910 = vmatpush2.msra.mxu0 0.0
      %10911 = vmatprep.subr.mxu0 0.0
      %10912 = vmatpush2.msra.mxu0 0.0
      %10913 = vmatprep.mubr.f32.mxu0 0.0
      %10914 = vmatmul.mubr.f32.gmra.mxu0 %v10845
      %v10915 = vpop.f32.mrf.mxu0
      %v10916 = vadd.f32 0.0, %v10915
      %v10917 = vpop.f32.mrf.mxu0
      %10918 = vdwg.mxu0
      %vm10919 = vcmask 57344
      %10920 = vst.msk [vmem:[%s654] sm:$0x1] %vm10919, %v10841
      %10921 = vst.msk [vmem:[%s654 + $0x1] sm:$0x1] %vm10919, %v10916
      %p10922 = scmp.lt.s32.totalorder %s32, 1
      %s10923 = scalar_select %p10922, %s32, 1
      %s10924 = smul.addr %s10923, 2
      %s10925 = scalar_lea.vmem %s21, %s10924
      // Predicated region
      $region105: #{lilac_forward.1} parent=103 // pred_check
        %p10926 = pneg %p496
      $region106: #{lilac_forward.1} parent=103 // pred_check_branch
        %10928 = sbr.rel (%p10926) target = $region108
      $region107: #{lilac_forward.1} parent=103 // pred_region
        _
      $region108: #{lilac_forward.1} parent=103 // pred_fallthru
        _
    $region104: #{lilac_forward.1} parent=5 // pred_fallthru
      _
    %p10929 = scmp.le.s32.totalorder 2, %s27
    // Predicated region
    $region109: #{lilac_forward.1} parent=5 // pred_check
      %p10930 = pneg %p10929
    $region110: #{lilac_forward.1} parent=5 // pred_check_branch
      %10932 = sbr.rel (%p10930) target = $region112
    $region111: #{lilac_forward.1} parent=5 // pred_region
      %s10933 = ssub.s32 %s27, 2
      // Predicated region
      $region113: #{lilac_forward.1} parent=111 // pred_check
        %p10934 = pneg %p502
      $region114: #{lilac_forward.1} parent=111 // pred_check_branch
        %10936 = sbr.rel (%p10934) target = $region116
      $region115: #{lilac_forward.1} parent=111 // pred_region
        %p10937 = scmp.lt.s32.totalorder %s33, 1
        %s10938 = scalar_select %p10937, %s33, 1
        %s10939 = smul.addr %s10938, 2
        %s10940 = scalar_lea.vmem %s21, %s10939
      $region116: #{lilac_forward.1} parent=111 // pred_fallthru
        _
    $region112: #{lilac_forward.1} parent=5 // pred_fallthru
      _
  $region6: #{lilac_forward.1} parent=0 // loop_footer
    %s31 = sadd.s32 1, %s27
  $region7: #{lilac_forward.1} parent=0 // loop_footer_branch
    %26 = sbr.rel target = $region3
  $region8: #{lilac_forward.1} parent=0 // loop_exit
    _

</llo_original>
